<compile_context>
chip_gen: v6e
topology: v6e:2x2x1
jax: 0.10.0
libtpu: 0.0.40
codegen_flags: <defaults>
</compile_context>

<pallas_src>
import jax
import jax.numpy as jnp
import numpy as np
from jax.experimental import pallas as pl
from jax.experimental.pallas import tpu as pltpu


def _rup(x, m):
    return ((x + m - 1) // m) * m


# ----------------------------------------------------------------------------
# Pallas kernel
# ----------------------------------------------------------------------------
def vattn_decoder_kernel(
    # batch-blocked sequence data
    emb_ref,       # (T, Bb, I)   bf16  time-major embeddings (padded batch)
    z_ref,         # (Bb, L)      f32   latent (constant over time)
    ctx_ref,       # (Bb, S, C)   bf16  encoder context
    mask_ref,      # (Bb, S)      f32   1.0 = padding position
    h0_ref,        # (Bb, H)      f32   initial hidden (bridge_type='zero')
    # GRU cell 1 (input weight pre-split into emb / z rows in the wrapper)
    w_ih1e_ref,    # (I, 3H)  bf16
    w_ih1z_ref,    # (L, 3H)  f32
    b_ih1_ref,     # (1, 3H)  f32
    w_hh1_ref,     # (H, 3H)  f32
    b_hh1_ref,     # (1, 3H)  f32
    # Bahdanau attention (bk + bq folded; linear_logit bias cancels in softmax)
    wk_ref,        # (C, A)   bf16
    bkq_ref,       # (1, A)   f32
    wl_ref,        # (1, A)   f32
    # GRU cell 2 hidden weight fused with the query projection: [w_hh2 | pad | wq]
    w_hq_ref,      # (H, H3p + A) f32  (H3p = round_up(3H, 128) -> q slab lane-aligned)
    b_hh2_ref,     # (1, 3H)  f32
    w_ih2_ref,     # (C, 3H)  f32
    b_ih2_ref,     # (1, 3H)  f32
    # fused output projection [w_in; w_hd; w_cx] with 128-aligned row slabs, padded out dim
    w_proj_ref,    # (Kproj, Ip)  bf16
    b_proj_ref,    # (1, Ip)      f32
    # outputs
    logits_ref,    # (T, Bb, Ip)  f32
    hfin_ref,      # (Bb, H)      f32
    # scratch
    gi1_scr,       # (T, Bb, 3H)  f32   precomputed GRU1 input gates (emb + z + b_ih1)
    keys_scr,      # (Bb, S, A)   f32   attention key cache (bk + bq folded)
    nmask_scr,     # (Bb, S)      f32   additive attention mask
    proj_scr,      # (T*Bb, Kproj) bf16 [emb | h2 | attn] column slabs for the epilogue GEMM
):
    T, Bb, I = emb_ref.shape
    H = h0_ref.shape[1]
    S, C = ctx_ref.shape[1], ctx_ref.shape[2]
    A = wk_ref.shape[1]
    H3 = 3 * H
    H3p = w_hq_ref.shape[1] - A
    Kproj = proj_scr.shape[1]
    Ip = logits_ref.shape[2]
    Hoff = _rup(I, 128)                      # column slab offsets inside proj_scr
    Coff = Hoff + _rup(H, 128)
    f32, bf16 = jnp.float32, jnp.bfloat16

    # ---------------- one-time precompute (off the serial critical path) ----------
    # Zero the projection scratch only when padded slabs exist, so uninitialized VMEM
    # never feeds the epilogue GEMM (even against w_proj's zero rows).
    if Hoff > I or Coff > Hoff + H or Kproj > Coff + C:
        proj_scr[...] = jnp.zeros_like(proj_scr)

    emb2d = emb_ref[...].reshape(T * Bb, I)                    # bf16, pre-loop only
    proj_scr[:, 0:I] = emb2d                                   # emb slab of the fused epilogue

    # GRU1 input-side gates for all timesteps in one bf16 MXU GEMM, with the
    # time-invariant z contribution and b_ih1 folded in -> zero per-step adds.
    gi_emb = jnp.dot(emb2d, w_ih1e_ref[...], preferred_element_type=f32)
    z_gate = (jnp.dot(z_ref[...], w_ih1z_ref[...], preferred_element_type=f32)
              + b_ih1_ref[...])                                # (Bb, 3H)
    gi1_scr[...] = gi_emb.reshape(T, Bb, H3) + z_gate[None, :, :]

    # Attention key cache: one (Bb*S, C) @ (C, A) bf16 GEMM; bk and bq folded in.
    keys = (jnp.dot(ctx_ref[...].reshape(Bb * S, C), wk_ref[...],
                    preferred_element_type=f32) + bkq_ref[...])
    keys_scr[...] = keys.reshape(Bb, S, A)

    # Additive mask, computed once (no per-step compare/broadcast).
    nmask_scr[...] = jnp.where(mask_ref[...] > 0.5, f32(-1e30), f32(0.0))

    def gru_gates(gi, gh, h_prev):
        # PyTorch nn.GRUCell semantics, gate order [r, z, n]; the hidden n-bias is
        # inside gh and therefore correctly multiplied by r.
        # (Gate slices are lane-aligned whenever H is a multiple of 128.)
        r = jax.nn.sigmoid(gi[:, 0:H] + gh[:, 0:H])
        zg = jax.nn.sigmoid(gi[:, H:2 * H] + gh[:, H:2 * H])
        n = jnp.tanh(gi[:, 2 * H:H3] + r * gh[:, 2 * H:H3])
        return (1.0 - zg) * n + zg * h_prev

    # ---------------------------- serial recurrence --------------------------------
    def step(t, h):
        if isinstance(t, int):
            row = t * Bb                       # static offset (fully unrolled path)
        else:
            row = pl.multiple_of(t * Bb, 8)    # fori_loop path: keep row slices aligned

        # GRU cell 1: input gates precomputed; only the hidden-side matmul is serial.
        gi1 = gi1_scr[t]                                            # (Bb, 3H)
        gh1 = (jnp.dot(h, w_hh1_ref[...], preferred_element_type=f32)
               + b_hh1_ref[...])
        h1 = gru_gates(gi1, gh1, h)

        # Fused h1-side matmul: [w_hh2 | pad | wq] -> one MXU push; the query slab
        # starts at the 128-aligned column H3p (padded in the wrapper).
        hq = jnp.dot(h1, w_hq_ref[...], preferred_element_type=f32)
        gh2 = hq[:, 0:H3] + b_hh2_ref[...]
        q = hq[:, H3p:H3p + A]                                      # (Bb, A)

        # Bahdanau attention.  Scores are bounded by ||wl||_1 (tanh in [-1, 1]), so exp
        # needs no max-shift; the denominator clamp keeps fully-masked rows NaN-free.
        t3 = jnp.tanh(keys_scr[...] + q[:, None, :])                # (Bb, S, A)
        scores = jnp.sum(t3 * wl_ref[...], axis=-1) + nmask_scr[...]
        ex = jnp.exp(scores)
        denom = jnp.maximum(jnp.sum(ex, axis=-1, keepdims=True), f32(1e-30))
        wts = ex * pl.reciprocal(denom, approx=True)                # (Bb, S)
        # Attention value on the MXU (batched 1xS @ SxC) instead of a VALU/XLU reduce.
        attn_val = jnp.einsum(
            'bqs,bsc->bqc', wts[:, None, :].astype(bf16), ctx_ref[...],
            preferred_element_type=f32)[:, 0, :]                    # (Bb, C)

        # GRU cell 2.
        gi2 = (jnp.dot(attn_val, w_ih2_ref[...], preferred_element_type=f32)
               + b_ih2_ref[...])
        h2 = gru_gates(gi2, gh2, h1)

        # Stash h2 / attn into their 128-aligned column slabs of the epilogue GEMM input.
        proj_scr[pl.ds(row, Bb), Hoff:Hoff + H] = h2.astype(bf16)
        proj_scr[pl.ds(row, Bb), Coff:Coff + C] = attn_val.astype(bf16)
        return h2

    h = h0_ref[...]
    if T <= 16:
        # Full unroll: static offsets everywhere, maximum LLO scheduler visibility.
        for t in range(T):
            h = step(t, h)
    else:
        # Large T: bound vreg live ranges / compile time with a partially unrolled loop.
        h = jax.lax.fori_loop(0, T, step, h, unroll=4)

    hfin_ref[...] = h

    # --------- deferred output projection: ONE bf16 GEMM over all T*Bb rows ---------
    logits = jnp.tanh(
        jnp.dot(proj_scr[...], w_proj_ref[...], preferred_element_type=f32)
        + b_proj_ref[...])
    logits_ref[...] = logits.reshape(T, Bb, Ip)
    # dropout(rate=0.0) is the identity.


# ----------------------------------------------------------------------------
# Wrapper (plain-JAX glue) + parameter init
# ----------------------------------------------------------------------------
def init_params(key, n_words, input_size, hidden_size, context_size, latent_size):
    scale = 0.08
    ks = jax.random.split(key, 16)

    def lin(k, din, dout):
        kw, kb = jax.random.split(k)
        w = jax.random.normal(kw, (din, dout), jnp.float32) * scale
        b = jax.random.normal(kb, (1, dout), jnp.float32) * scale
        return w, b

    IL = input_size + latent_size      # latent_type='input'
    A = context_size                   # Bahdanau hidden defaults to key size

    emb_table = jax.random.normal(ks[0], (n_words, input_size), jnp.float32) * 0.1
    emb_table = emb_table.at[0].set(0.0)   # padding_idx = 0

    p = {"emb_table": emb_table}
    p["w_ih1"], p["b_ih1"] = lin(ks[1], IL, 3 * hidden_size)
    p["w_hh1"], p["b_hh1"] = lin(ks[2], hidden_size, 3 * hidden_size)
    p["wk"], p["bk"] = lin(ks[3], context_size, A)
    p["wq"], p["bq"] = lin(ks[4], hidden_size, A)
    p["wl"] = jax.random.normal(ks[5], (1, A), jnp.float32) * scale      # linear_logit weight
    p["bl"] = jax.random.normal(ks[6], (1, 1), jnp.float32) * scale      # linear_logit bias
    p["w_ih2"], p["b_ih2"] = lin(ks[7], context_size, 3 * hidden_size)
    p["w_hh2"], p["b_hh2"] = lin(ks[8], hidden_size, 3 * hidden_size)
    p["w_in"], p["b_in"] = lin(ks[9], input_size, input_size)
    p["w_hd"], p["b_hd"] = lin(ks[10], hidden_size, input_size)
    p["w_cx"], p["b_cx"] = lin(ks[11], context_size, input_size)
    return p


@jax.jit
def vattn_decoder_forward(params, y, z, context, context_mask, hidden):
    p = params
    f32, bf16 = jnp.float32, jnp.bfloat16

    emb = jnp.take(p["emb_table"], y, axis=0)                 # (B, T, I) embedding gather (glue)
    B, T, I = emb.shape
    S, C = context.shape[1], context.shape[2]
    H = hidden.shape[-1]
    A = p["wq"].shape[-1]
    L = z.shape[-1]
    H3 = 3 * H

    # ---- pad batch to a full sublane tile; cast the hoisted-GEMM operands to bf16 ----
    Bp = _rup(B, 8)
    pb = Bp - B
    emb_tm = jnp.pad(jnp.transpose(emb, (1, 0, 2)),
                     ((0, 0), (0, pb), (0, 0))).astype(bf16)  # (T, Bp, I)
    z_p = jnp.pad(z, ((0, pb), (0, 0)))
    ctx_p = jnp.pad(context, ((0, pb), (0, 0), (0, 0))).astype(bf16)
    mask_p = jnp.pad(context_mask, ((0, pb), (0, 0)))         # padded rows stay unmasked
    h0_p = jnp.pad(hidden, ((0, pb), (0, 0)))

    # ---- wrapper-side weight packing (free XLA plumbing; keeps kernel slices aligned) ----
    w_ih1e = p["w_ih1"][:I].astype(bf16)                      # emb rows of GRU1 input weight
    w_ih1z = p["w_ih1"][I:]                                   # z rows (used once, f32)
    H3p = _rup(H3, 128)
    w_hq = jnp.concatenate(
        [p["w_hh2"], jnp.zeros((H, H3p - H3), f32), p["wq"]], axis=1)   # (H, H3p + A)
    bkq = p["bk"] + p["bq"]
    wk_bf = p["wk"].astype(bf16)

    Ip = _rup(I, 128)                                         # lane-dense logits output
    Hoff = _rup(I, 128)
    Coff = Hoff + _rup(H, 128)
    Kproj = Coff + _rup(C, 128)
    w_proj = (jnp.zeros((Kproj, Ip), f32)
              .at[0:I, 0:I].set(p["w_in"])
              .at[Hoff:Hoff + H, 0:I].set(p["w_hd"])
              .at[Coff:Coff + C, 0:I].set(p["w_cx"])).astype(bf16)
    b_proj = jnp.zeros((1, Ip), f32).at[:, 0:I].set(p["b_in"] + p["b_hd"] + p["b_cx"])

    # ---- grid over batch blocks (the recurrences are independent per batch row) ----
    Bb = Bp
    # TODO(synk): on v7x set Bb = Bp // 2 (keep it a multiple of 16 for the bf16 inputs) so the
    # "parallel" batch-grid axis shards the independent recurrences across both TensorCores.
    grid = (Bp // Bb,)

    args = (emb_tm, z_p, ctx_p, mask_p, h0_p,
            w_ih1e, w_ih1z, p["b_ih1"], p["w_hh1"], p["b_hh1"],
            wk_bf, bkq, p["wl"],
            w_hq, p["b_hh2"], p["w_ih2"], p["b_ih2"],
            w_proj, b_proj)

    def full_spec(x):
        nd = x.ndim
        return pl.BlockSpec(x.shape, lambda i: (0,) * nd)

    in_specs = [
        pl.BlockSpec((T, Bb, I), lambda i: (0, i, 0)),     # emb
        pl.BlockSpec((Bb, L), lambda i: (i, 0)),           # z
        pl.BlockSpec((Bb, S, C), lambda i: (i, 0, 0)),     # ctx
        pl.BlockSpec((Bb, S), lambda i: (i, 0)),           # mask
        pl.BlockSpec((Bb, H), lambda i: (i, 0)),           # h0
    ] + [full_spec(a) for a in args[5:]]

    out_specs = (
        pl.BlockSpec((T, Bb, Ip), lambda i: (0, i, 0)),    # logits (lane-dense last dim)
        pl.BlockSpec((Bb, H), lambda i: (i, 0)),           # final hidden
    )
    scratch_shapes = [
        pltpu.VMEM((T, Bb, H3), f32),        # gi1_scr
        pltpu.VMEM((Bb, S, A), f32),         # keys_scr
        pltpu.VMEM((Bb, S), f32),            # nmask_scr
        pltpu.VMEM((T * Bb, Kproj), bf16),   # proj_scr
    ]

    # Explicit VMEM budget: blocked inputs/outputs are double-buffered by the pipeline.
    def nbytes(a):
        return int(np.prod(a.shape)) * a.dtype.itemsize
    blk_bytes = sum(nbytes(a) for a in args[:5]) + T * Bb * Ip * 4 + Bb * H * 4
    w_bytes = sum(nbytes(a) for a in args[5:])
    scr_bytes = (T * Bb * H3 + Bb * S * A + Bb * S) * 4 + T * Bb * Kproj * 2
    vmem_limit = int(min(max(2 * blk_bytes + w_bytes + scr_bytes + (8 << 20), 32 << 20),
                         100 << 20))

    logits3, h_out = pl.pallas_call(
        vattn_decoder_kernel,
        out_shape=(
            jax.ShapeDtypeStruct((T, Bp, Ip), f32),
            jax.ShapeDtypeStruct((Bp, H), f32),
        ),
        grid_spec=pltpu.PrefetchScalarGridSpec(
            num_scalar_prefetch=0,
            grid=grid,
            in_specs=in_specs,
            out_specs=out_specs,
            scratch_shapes=scratch_shapes,
        ),
        compiler_params=pltpu.CompilerParams(
            dimension_semantics=("parallel",),
            vmem_limit_bytes=vmem_limit,
        ),
    )(*args)

    logits = jnp.transpose(logits3[:, :B, :I], (1, 0, 2))      # back to (B, T, I)
    return logits, h_out[:B]


# ----------------------------------------------------------------------------
# Pure-JAX reference (mirrors the PyTorch forward) for validation
# ----------------------------------------------------------------------------
def reference_forward(params, y, z, context, context_mask, hidden):
    p = params
    emb = jnp.take(p["emb_table"], y, axis=0)
    B, T, I = emb.shape
    H = hidden.shape[-1]
    z_rep = jnp.broadcast_to(z[:, None, :], (B, T, z.shape[-1]))
    inp = jnp.concatenate([emb, z_rep], axis=-1)
    keys = context @ p["wk"] + p["bk"]

    def gru(x, h, w_ih, b_ih, w_hh, b_hh):
        gi = x @ w_ih + b_ih
        gh = h @ w_hh + b_hh
        r = jax.nn.sigmoid(gi[:, :H] + gh[:, :H])
        zt = jax.nn.sigmoid(gi[:, H:2 * H] + gh[:, H:2 * H])
        n = jnp.tanh(gi[:, 2 * H:] + r * gh[:, 2 * H:])
        return (1.0 - zt) * n + zt * h

    h = hidden
    outs, attns = [], []
    for t in range(T):
        h1 = gru(inp[:, t], h, p["w_ih1"], p["b_ih1"], p["w_hh1"], p["b_hh1"])
        q = h1 @ p["wq"] + p["bq"]
        sc = jnp.sum(jnp.tanh(keys + q[:, None, :]) * p["wl"], axis=-1) + p["bl"][0, 0]
        sc = jnp.where(context_mask > 0.5, -1e18, sc)
        w = jax.nn.softmax(sc, axis=-1)
        av = jnp.sum(w[:, :, None] * context, axis=1)
        h2 = gru(av, h1, p["w_ih2"], p["b_ih2"], p["w_hh2"], p["b_hh2"])
        outs.append(h2)
        attns.append(av)
        h = h2
    out = jnp.stack(outs, axis=1)
    attn = jnp.stack(attns, axis=1)
    logits = jnp.tanh(emb @ p["w_in"] + p["b_in"]
                      + out @ p["w_hd"] + p["b_hd"]
                      + attn @ p["w_cx"] + p["b_cx"])
    return logits, h


# ----------------------------------------------------------------------------
if __name__ == "__main__":
    B, T, S = 2, 8, 8
    n_words, input_size, hidden_size, context_size, latent_size = 50, 32, 32, 32, 16

    key = jax.random.PRNGKey(0)
    kp, ky, kz, kc = jax.random.split(key, 4)

    params = init_params(kp, n_words, input_size, hidden_size, context_size, latent_size)
    y = jax.random.randint(ky, (B, T), 1, n_words)                      # token ids
    z = jax.random.normal(kz, (B, latent_size), jnp.float32)            # latent
    context = jax.random.normal(kc, (B, S, context_size), jnp.float32)  # encoder context
    context_mask = jnp.zeros((B, S), jnp.float32)                       # no padding
    hidden = jnp.zeros((B, hidden_size), jnp.float32)                   # bridge_type='zero'

    logits, h_out = vattn_decoder_forward(params, y, z, context, context_mask, hidden)
    jax.block_until_ready((logits, h_out))

    ref_logits, ref_h = reference_forward(params, y, z, context, context_mask, hidden)
    # Loose tolerance: bf16 MXU operands on the hoisted GEMMs + approx softmax reciprocal.
    np.testing.assert_allclose(np.asarray(logits), np.asarray(ref_logits), atol=5e-2, rtol=5e-2)
    np.testing.assert_allclose(np.asarray(h_out), np.asarray(ref_h), atol=5e-2, rtol=5e-2)

    print("KERNEL_OK")
</pallas_src>

<mosaic_0001>
module attributes {stable_mosaic.version = 11 : i64} {
  func.func @vattn_decoder_kernel(%arg0: i32, %arg1: memref<8x8x32xbf16, #tpu.memory_space<vmem>>, %arg2: memref<8x16xf32, #tpu.memory_space<vmem>>, %arg3: memref<8x8x32xbf16, #tpu.memory_space<vmem>>, %arg4: memref<8x8xf32, #tpu.memory_space<vmem>>, %arg5: memref<8x32xf32, #tpu.memory_space<vmem>>, %arg6: memref<32x96xbf16, #tpu.memory_space<vmem>>, %arg7: memref<16x96xf32, #tpu.memory_space<vmem>>, %arg8: memref<1x96xf32, #tpu.memory_space<vmem>>, %arg9: memref<32x96xf32, #tpu.memory_space<vmem>>, %arg10: memref<1x96xf32, #tpu.memory_space<vmem>>, %arg11: memref<32x32xbf16, #tpu.memory_space<vmem>>, %arg12: memref<1x32xf32, #tpu.memory_space<vmem>>, %arg13: memref<1x32xf32, #tpu.memory_space<vmem>>, %arg14: memref<32x160xf32, #tpu.memory_space<vmem>>, %arg15: memref<1x96xf32, #tpu.memory_space<vmem>>, %arg16: memref<32x96xf32, #tpu.memory_space<vmem>>, %arg17: memref<1x96xf32, #tpu.memory_space<vmem>>, %arg18: memref<384x128xbf16, #tpu.memory_space<vmem>>, %arg19: memref<1x128xf32, #tpu.memory_space<vmem>>, %arg20: memref<8x8x128xf32, #tpu.memory_space<vmem>>, %arg21: memref<8x32xf32, #tpu.memory_space<vmem>>, %arg22: memref<8x8x96xf32, #tpu.memory_space<vmem>>, %arg23: memref<8x8x32xf32, #tpu.memory_space<vmem>>, %arg24: memref<8x8xf32, #tpu.memory_space<vmem>>, %arg25: memref<64x384xbf16, #tpu.memory_space<vmem>>) attributes {dimension_semantics = [#tpu.dimension_semantics<parallel>], iteration_bounds = array<i64: 1>, scalar_prefetch = 0 : i64, scratch_operands = 4 : i64, tpu.core_type = #tpu.core_type<tc>, window_params = [{transform_indices = @transform_0, window_bounds = array<i64: 8, 8, 32>}, {transform_indices = @transform_1, window_bounds = array<i64: 8, 16>}, {transform_indices = @transform_2, window_bounds = array<i64: 8, 8, 32>}, {transform_indices = @transform_3, window_bounds = array<i64: 8, 8>}, {transform_indices = @transform_4, window_bounds = array<i64: 8, 32>}, {pipeline_mode = #tpu.pipeline_mode<synchronous>, transform_indices = @transform_5, window_bounds = array<i64: 32, 96>}, {pipeline_mode = #tpu.pipeline_mode<synchronous>, transform_indices = @transform_6, window_bounds = array<i64: 16, 96>}, {pipeline_mode = #tpu.pipeline_mode<synchronous>, transform_indices = @transform_7, window_bounds = array<i64: 1, 96>}, {pipeline_mode = #tpu.pipeline_mode<synchronous>, transform_indices = @transform_8, window_bounds = array<i64: 32, 96>}, {pipeline_mode = #tpu.pipeline_mode<synchronous>, transform_indices = @transform_9, window_bounds = array<i64: 1, 96>}, {pipeline_mode = #tpu.pipeline_mode<synchronous>, transform_indices = @transform_10, window_bounds = array<i64: 32, 32>}, {pipeline_mode = #tpu.pipeline_mode<synchronous>, transform_indices = @transform_11, window_bounds = array<i64: 1, 32>}, {pipeline_mode = #tpu.pipeline_mode<synchronous>, transform_indices = @transform_12, window_bounds = array<i64: 1, 32>}, {pipeline_mode = #tpu.pipeline_mode<synchronous>, transform_indices = @transform_13, window_bounds = array<i64: 32, 160>}, {pipeline_mode = #tpu.pipeline_mode<synchronous>, transform_indices = @transform_14, window_bounds = array<i64: 1, 96>}, {pipeline_mode = #tpu.pipeline_mode<synchronous>, transform_indices = @transform_15, window_bounds = array<i64: 32, 96>}, {pipeline_mode = #tpu.pipeline_mode<synchronous>, transform_indices = @transform_16, window_bounds = array<i64: 1, 96>}, {pipeline_mode = #tpu.pipeline_mode<synchronous>, transform_indices = @transform_17, window_bounds = array<i64: 384, 128>}, {pipeline_mode = #tpu.pipeline_mode<synchronous>, transform_indices = @transform_18, window_bounds = array<i64: 1, 128>}, {transform_indices = @transform_19, window_bounds = array<i64: 8, 8, 128>}, {transform_indices = @transform_20, window_bounds = array<i64: 8, 32>}]} {
    %cst = arith.constant 0.000000e+00 : bf16
    %0 = vector.broadcast %cst : bf16 to vector<64x384xbf16>
    %c0 = arith.constant 0 : index
    %c0_0 = arith.constant 0 : index
    %1 = vector.load %arg25[%c0, %c0_0] : memref<64x384xbf16, #tpu.memory_space<vmem>>, vector<64x384xbf16>
    tpu.vector_store %arg25[%c0, %c0_0], %0 {strides = array<i32>} : memref<64x384xbf16, #tpu.memory_space<vmem>>, vector<64x384xbf16>,
    %c0_1 = arith.constant 0 : index
    %c0_2 = arith.constant 0 : index
    %c0_3 = arith.constant 0 : index
    %2 = vector.load %arg1[%c0_1, %c0_2, %c0_3] : memref<8x8x32xbf16, #tpu.memory_space<vmem>>, vector<8x8x32xbf16>
    %3 = vector.shape_cast %2 : vector<8x8x32xbf16> to vector<64x32xbf16>
    %c0_4 = arith.constant 0 : index
    %c0_5 = arith.constant 0 : index
    %4 = vector.load %arg25[%c0_4, %c0_5] : memref<64x384xbf16, #tpu.memory_space<vmem>>, vector<64x32xbf16>
    tpu.vector_store %arg25[%c0_4, %c0_5], %3 {strides = array<i32>} : memref<64x384xbf16, #tpu.memory_space<vmem>>, vector<64x32xbf16>,
    %c0_6 = arith.constant 0 : index
    %c0_7 = arith.constant 0 : index
    %5 = vector.load %arg6[%c0_6, %c0_7] : memref<32x96xbf16, #tpu.memory_space<vmem>>, vector<32x96xbf16>
    %cst_8 = arith.constant dense<0.000000e+00> : vector<64x96xf32>
    %6 = tpu.matmul %3, %5, %cst_8 {dimension_numbers = #tpu.dot_dimension_numbers<[1], [0], [0], [1], [0, 0, 1, 1], [], []>} : vector<64x32xbf16>, vector<32x96xbf16>, vector<64x96xf32> -> vector<64x96xf32>
    %c0_9 = arith.constant 0 : index
    %c0_10 = arith.constant 0 : index
    %7 = vector.load %arg2[%c0_9, %c0_10] : memref<8x16xf32, #tpu.memory_space<vmem>>, vector<8x16xf32>
    %c0_11 = arith.constant 0 : index
    %c0_12 = arith.constant 0 : index
    %8 = vector.load %arg7[%c0_11, %c0_12] : memref<16x96xf32, #tpu.memory_space<vmem>>, vector<16x96xf32>
    %cst_13 = arith.constant dense<0.000000e+00> : vector<8x96xf32>
    %9 = tpu.matmul %7, %8, %cst_13 {dimension_numbers = #tpu.dot_dimension_numbers<[1], [0], [0], [1], [0, 0, 1, 1], [], []>} : vector<8x16xf32>, vector<16x96xf32>, vector<8x96xf32> -> vector<8x96xf32>
    %c0_14 = arith.constant 0 : index
    %c0_15 = arith.constant 0 : index
    %10 = vector.load %arg8[%c0_14, %c0_15] : memref<1x96xf32, #tpu.memory_space<vmem>>, vector<1x96xf32>
    %11 = vector.broadcast %10 : vector<1x96xf32> to vector<8x96xf32>
    %12 = arith.addf %9, %11 : vector<8x96xf32>
    %13 = vector.shape_cast %6 : vector<64x96xf32> to vector<8x8x96xf32>
    %14 = vector.shape_cast %12 : vector<8x96xf32> to vector<1x8x96xf32>
    %15 = vector.broadcast %14 : vector<1x8x96xf32> to vector<8x8x96xf32>
    %16 = arith.addf %13, %15 : vector<8x8x96xf32>
    %c0_16 = arith.constant 0 : index
    %c0_17 = arith.constant 0 : index
    %c0_18 = arith.constant 0 : index
    %17 = vector.load %arg22[%c0_16, %c0_17, %c0_18] : memref<8x8x96xf32, #tpu.memory_space<vmem>>, vector<8x8x96xf32>
    tpu.vector_store %arg22[%c0_16, %c0_17, %c0_18], %16 {strides = array<i32>} : memref<8x8x96xf32, #tpu.memory_space<vmem>>, vector<8x8x96xf32>,
    %c0_19 = arith.constant 0 : index
    %c0_20 = arith.constant 0 : index
    %c0_21 = arith.constant 0 : index
    %18 = vector.load %arg3[%c0_19, %c0_20, %c0_21] : memref<8x8x32xbf16, #tpu.memory_space<vmem>>, vector<8x8x32xbf16>
    %19 = vector.shape_cast %18 : vector<8x8x32xbf16> to vector<64x32xbf16>
    %c0_22 = arith.constant 0 : index
    %c0_23 = arith.constant 0 : index
    %20 = vector.load %arg11[%c0_22, %c0_23] : memref<32x32xbf16, #tpu.memory_space<vmem>>, vector<32x32xbf16>
    %cst_24 = arith.constant dense<0.000000e+00> : vector<64x32xf32>
    %21 = tpu.matmul %19, %20, %cst_24 {dimension_numbers = #tpu.dot_dimension_numbers<[1], [0], [0], [1], [0, 0, 1, 1], [], []>} : vector<64x32xbf16>, vector<32x32xbf16>, vector<64x32xf32> -> vector<64x32xf32>
    %c0_25 = arith.constant 0 : index
    %c0_26 = arith.constant 0 : index
    %22 = vector.load %arg12[%c0_25, %c0_26] : memref<1x32xf32, #tpu.memory_space<vmem>>, vector<1x32xf32>
    %23 = vector.broadcast %22 : vector<1x32xf32> to vector<64x32xf32>
    %24 = arith.addf %21, %23 : vector<64x32xf32>
    %25 = vector.shape_cast %24 : vector<64x32xf32> to vector<8x8x32xf32>
    %c0_27 = arith.constant 0 : index
    %c0_28 = arith.constant 0 : index
    %c0_29 = arith.constant 0 : index
    %26 = vector.load %arg23[%c0_27, %c0_28, %c0_29] : memref<8x8x32xf32, #tpu.memory_space<vmem>>, vector<8x8x32xf32>
    tpu.vector_store %arg23[%c0_27, %c0_28, %c0_29], %25 {strides = array<i32>} : memref<8x8x32xf32, #tpu.memory_space<vmem>>, vector<8x8x32xf32>,
    %c0_30 = arith.constant 0 : index
    %c0_31 = arith.constant 0 : index
    %27 = vector.load %arg4[%c0_30, %c0_31] : memref<8x8xf32, #tpu.memory_space<vmem>>, vector<8x8xf32>
    %cst_32 = arith.constant 5.000000e-01 : f32
    %28 = vector.broadcast %cst_32 : f32 to vector<8x8xf32>
    %29 = arith.cmpf ogt, %27, %28 : vector<8x8xf32>
    %cst_33 = arith.constant -1.000000e+30 : f32
    %cst_34 = arith.constant 0.000000e+00 : f32
    %30 = vector.broadcast %cst_33 : f32 to vector<8x8xf32>
    %31 = vector.broadcast %cst_34 : f32 to vector<8x8xf32>
    %32 = arith.select %29, %30, %31 : vector<8x8xi1>, vector<8x8xf32>
    %c0_35 = arith.constant 0 : index
    %c0_36 = arith.constant 0 : index
    %33 = vector.load %arg24[%c0_35, %c0_36] : memref<8x8xf32, #tpu.memory_space<vmem>>, vector<8x8xf32>
    tpu.vector_store %arg24[%c0_35, %c0_36], %32 {strides = array<i32>} : memref<8x8xf32, #tpu.memory_space<vmem>>, vector<8x8xf32>,
    %c0_37 = arith.constant 0 : index
    %c0_38 = arith.constant 0 : index
    %34 = vector.load %arg5[%c0_37, %c0_38] : memref<8x32xf32, #tpu.memory_space<vmem>>, vector<8x32xf32>
    %c0_39 = arith.constant 0 : index
    %c0_40 = arith.constant 0 : index
    %c0_41 = arith.constant 0 : index
    %35 = vector.load %arg22[%c0_39, %c0_40, %c0_41] : memref<8x8x96xf32, #tpu.memory_space<vmem>>, vector<1x8x96xf32>
    %36 = vector.shape_cast %35 : vector<1x8x96xf32> to vector<8x96xf32>
    %c0_42 = arith.constant 0 : index
    %c0_43 = arith.constant 0 : index
    %37 = vector.load %arg9[%c0_42, %c0_43] : memref<32x96xf32, #tpu.memory_space<vmem>>, vector<32x96xf32>
    %cst_44 = arith.constant dense<0.000000e+00> : vector<8x96xf32>
    %38 = tpu.matmul %34, %37, %cst_44 {dimension_numbers = #tpu.dot_dimension_numbers<[1], [0], [0], [1], [0, 0, 1, 1], [], []>} : vector<8x32xf32>, vector<32x96xf32>, vector<8x96xf32> -> vector<8x96xf32>
    %c0_45 = arith.constant 0 : index
    %c0_46 = arith.constant 0 : index
    %39 = vector.load %arg10[%c0_45, %c0_46] : memref<1x96xf32, #tpu.memory_space<vmem>>, vector<1x96xf32>
    %40 = vector.broadcast %39 : vector<1x96xf32> to vector<8x96xf32>
    %41 = arith.addf %38, %40 : vector<8x96xf32>
    %42 = vector.extract_strided_slice %36 {offsets = [0, 0], sizes = [8, 32], strides = [1, 1]} : vector<8x96xf32> to vector<8x32xf32>
    %43 = vector.extract_strided_slice %41 {offsets = [0, 0], sizes = [8, 32], strides = [1, 1]} : vector<8x96xf32> to vector<8x32xf32>
    %44 = arith.addf %42, %43 : vector<8x32xf32>
    %45 = arith.negf %44 : vector<8x32xf32>
    %46 = math.exp %45 : vector<8x32xf32>
    %cst_47 = arith.constant 1.000000e+00 : f32
    %47 = vector.broadcast %cst_47 : f32 to vector<8x32xf32>
    %48 = arith.addf %47, %46 : vector<8x32xf32>
    %49 = arith.divf %47, %48 : vector<8x32xf32>
    %50 = vector.extract_strided_slice %36 {offsets = [0, 32], sizes = [8, 32], strides = [1, 1]} : vector<8x96xf32> to vector<8x32xf32>
    %51 = vector.extract_strided_slice %41 {offsets = [0, 32], sizes = [8, 32], strides = [1, 1]} : vector<8x96xf32> to vector<8x32xf32>
    %52 = arith.addf %50, %51 : vector<8x32xf32>
    %53 = arith.negf %52 : vector<8x32xf32>
    %54 = math.exp %53 : vector<8x32xf32>
    %cst_48 = arith.constant 1.000000e+00 : f32
    %55 = vector.broadcast %cst_48 : f32 to vector<8x32xf32>
    %56 = arith.addf %55, %54 : vector<8x32xf32>
    %57 = arith.divf %55, %56 : vector<8x32xf32>
    %58 = vector.extract_strided_slice %36 {offsets = [0, 64], sizes = [8, 32], strides = [1, 1]} : vector<8x96xf32> to vector<8x32xf32>
    %59 = vector.extract_strided_slice %41 {offsets = [0, 64], sizes = [8, 32], strides = [1, 1]} : vector<8x96xf32> to vector<8x32xf32>
    %60 = arith.mulf %49, %59 : vector<8x32xf32>
    %61 = arith.addf %58, %60 : vector<8x32xf32>
    %62 = math.tanh %61 : vector<8x32xf32>
    %cst_49 = arith.constant 1.000000e+00 : f32
    %63 = vector.broadcast %cst_49 : f32 to vector<8x32xf32>
    %64 = arith.subf %63, %57 : vector<8x32xf32>
    %65 = arith.mulf %64, %62 : vector<8x32xf32>
    %66 = arith.mulf %57, %34 : vector<8x32xf32>
    %67 = arith.addf %65, %66 : vector<8x32xf32>
    %c0_50 = arith.constant 0 : index
    %c0_51 = arith.constant 0 : index
    %68 = vector.load %arg14[%c0_50, %c0_51] : memref<32x160xf32, #tpu.memory_space<vmem>>, vector<32x160xf32>
    %cst_52 = arith.constant dense<0.000000e+00> : vector<8x160xf32>
    %69 = tpu.matmul %67, %68, %cst_52 {dimension_numbers = #tpu.dot_dimension_numbers<[1], [0], [0], [1], [0, 0, 1, 1], [], []>} : vector<8x32xf32>, vector<32x160xf32>, vector<8x160xf32> -> vector<8x160xf32>
    %70 = vector.extract_strided_slice %69 {offsets = [0, 0], sizes = [8, 96], strides = [1, 1]} : vector<8x160xf32> to vector<8x96xf32>
    %c0_53 = arith.constant 0 : index
    %c0_54 = arith.constant 0 : index
    %71 = vector.load %arg15[%c0_53, %c0_54] : memref<1x96xf32, #tpu.memory_space<vmem>>, vector<1x96xf32>
    %72 = vector.broadcast %71 : vector<1x96xf32> to vector<8x96xf32>
    %73 = arith.addf %70, %72 : vector<8x96xf32>
    %74 = vector.extract_strided_slice %69 {offsets = [0, 128], sizes = [8, 32], strides = [1, 1]} : vector<8x160xf32> to vector<8x32xf32>
    %c0_55 = arith.constant 0 : index
    %c0_56 = arith.constant 0 : index
    %c0_57 = arith.constant 0 : index
    %75 = vector.load %arg23[%c0_55, %c0_56, %c0_57] : memref<8x8x32xf32, #tpu.memory_space<vmem>>, vector<8x8x32xf32>
    %76 = vector.shape_cast %74 : vector<8x32xf32> to vector<8x1x32xf32>
    %77 = vector.broadcast %76 : vector<8x1x32xf32> to vector<8x8x32xf32>
    %78 = arith.addf %75, %77 : vector<8x8x32xf32>
    %79 = math.tanh %78 : vector<8x8x32xf32>
    %c0_58 = arith.constant 0 : index
    %c0_59 = arith.constant 0 : index
    %80 = vector.load %arg13[%c0_58, %c0_59] : memref<1x32xf32, #tpu.memory_space<vmem>>, vector<1x32xf32>
    %81 = vector.shape_cast %80 : vector<1x32xf32> to vector<1x1x32xf32>
    %82 = vector.broadcast %81 : vector<1x1x32xf32> to vector<8x8x32xf32>
    %83 = arith.mulf %79, %82 : vector<8x8x32xf32>
    %cst_60 = arith.constant dense<0.000000e+00> : vector<8x8xf32>
    %84 = vector.multi_reduction <add>, %83, %cst_60 [2] : vector<8x8x32xf32> to vector<8x8xf32>
    %c0_61 = arith.constant 0 : index
    %c0_62 = arith.constant 0 : index
    %85 = vector.load %arg24[%c0_61, %c0_62] : memref<8x8xf32, #tpu.memory_space<vmem>>, vector<8x8xf32>
    %86 = arith.addf %84, %85 : vector<8x8xf32>
    %87 = math.exp %86 : vector<8x8xf32>
    %cst_63 = arith.constant dense<0.000000e+00> : vector<8xf32>
    %88 = vector.multi_reduction <add>, %87, %cst_63 [1] : vector<8x8xf32> to vector<8xf32>
    %89 = vector.shape_cast %88 : vector<8xf32> to vector<8x1xf32>
    %cst_64 = arith.constant 1.000000e-30 : f32
    %90 = vector.broadcast %cst_64 : f32 to vector<8x1xf32>
    %91 = arith.maximumf %89, %90 : vector<8x1xf32>
    %92 = tpu.reciprocal %91 {approx = true} : vector<8x1xf32> -> vector<8x1xf32>
    %93 = vector.broadcast %92 : vector<8x1xf32> to vector<8x8xf32>
    %94 = arith.mulf %87, %93 : vector<8x8xf32>
    %95 = vector.shape_cast %94 : vector<8x8xf32> to vector<8x1x8xf32>
    %96 = arith.truncf %95 : vector<8x1x8xf32> to vector<8x1x8xbf16>
    %c0_65 = arith.constant 0 : index
    %c0_66 = arith.constant 0 : index
    %c0_67 = arith.constant 0 : index
    %97 = vector.load %arg3[%c0_65, %c0_66, %c0_67] : memref<8x8x32xbf16, #tpu.memory_space<vmem>>, vector<8x8x32xbf16>
    "tpu.trace_start"() <{level = 10 : i32, message = "bqs,bsc->bqc"}> : () -> ()
    %cst_68 = arith.constant dense<0.000000e+00> : vector<8x1x32xf32>
    %98 = tpu.matmul %96, %97, %cst_68 {dimension_numbers = #tpu.dot_dimension_numbers<[2], [1], [1], [2], [0, 0, 0, 1, 1, 2], [0], [0]>} : vector<8x1x8xbf16>, vector<8x8x32xbf16>, vector<8x1x32xf32> -> vector<8x1x32xf32>
    "tpu.trace_stop"() : () -> ()
    %99 = vector.shape_cast %98 : vector<8x1x32xf32> to vector<8x32xf32>
    %c0_69 = arith.constant 0 : index
    %c0_70 = arith.constant 0 : index
    %100 = vector.load %arg16[%c0_69, %c0_70] : memref<32x96xf32, #tpu.memory_space<vmem>>, vector<32x96xf32>
    %cst_71 = arith.constant dense<0.000000e+00> : vector<8x96xf32>
    %101 = tpu.matmul %99, %100, %cst_71 {dimension_numbers = #tpu.dot_dimension_numbers<[1], [0], [0], [1], [0, 0, 1, 1], [], []>} : vector<8x32xf32>, vector<32x96xf32>, vector<8x96xf32> -> vector<8x96xf32>
    %c0_72 = arith.constant 0 : index
    %c0_73 = arith.constant 0 : index
    %102 = vector.load %arg17[%c0_72, %c0_73] : memref<1x96xf32, #tpu.memory_space<vmem>>, vector<1x96xf32>
    %103 = vector.broadcast %102 : vector<1x96xf32> to vector<8x96xf32>
    %104 = arith.addf %101, %103 : vector<8x96xf32>
    %105 = vector.extract_strided_slice %104 {offsets = [0, 0], sizes = [8, 32], strides = [1, 1]} : vector<8x96xf32> to vector<8x32xf32>
    %106 = vector.extract_strided_slice %73 {offsets = [0, 0], sizes = [8, 32], strides = [1, 1]} : vector<8x96xf32> to vector<8x32xf32>
    %107 = arith.addf %105, %106 : vector<8x32xf32>
    %108 = arith.negf %107 : vector<8x32xf32>
    %109 = math.exp %108 : vector<8x32xf32>
    %cst_74 = arith.constant 1.000000e+00 : f32
    %110 = vector.broadcast %cst_74 : f32 to vector<8x32xf32>
    %111 = arith.addf %110, %109 : vector<8x32xf32>
    %112 = arith.divf %110, %111 : vector<8x32xf32>
    %113 = vector.extract_strided_slice %104 {offsets = [0, 32], sizes = [8, 32], strides = [1, 1]} : vector<8x96xf32> to vector<8x32xf32>
    %114 = vector.extract_strided_slice %73 {offsets = [0, 32], sizes = [8, 32], strides = [1, 1]} : vector<8x96xf32> to vector<8x32xf32>
    %115 = arith.addf %113, %114 : vector<8x32xf32>
    %116 = arith.negf %115 : vector<8x32xf32>
    %117 = math.exp %116 : vector<8x32xf32>
    %cst_75 = arith.constant 1.000000e+00 : f32
    %118 = vector.broadcast %cst_75 : f32 to vector<8x32xf32>
    %119 = arith.addf %118, %117 : vector<8x32xf32>
    %120 = arith.divf %118, %119 : vector<8x32xf32>
    %121 = vector.extract_strided_slice %104 {offsets = [0, 64], sizes = [8, 32], strides = [1, 1]} : vector<8x96xf32> to vector<8x32xf32>
    %122 = vector.extract_strided_slice %73 {offsets = [0, 64], sizes = [8, 32], strides = [1, 1]} : vector<8x96xf32> to vector<8x32xf32>
    %123 = arith.mulf %112, %122 : vector<8x32xf32>
    %124 = arith.addf %121, %123 : vector<8x32xf32>
    %125 = math.tanh %124 : vector<8x32xf32>
    %cst_76 = arith.constant 1.000000e+00 : f32
    %126 = vector.broadcast %cst_76 : f32 to vector<8x32xf32>
    %127 = arith.subf %126, %120 : vector<8x32xf32>
    %128 = arith.mulf %127, %125 : vector<8x32xf32>
    %129 = arith.mulf %120, %67 : vector<8x32xf32>
    %130 = arith.addf %128, %129 : vector<8x32xf32>
    %131 = arith.truncf %130 : vector<8x32xf32> to vector<8x32xbf16>
    %c0_77 = arith.constant 0 : index
    %c128 = arith.constant 128 : index
    %132 = vector.load %arg25[%c0_77, %c128] : memref<64x384xbf16, #tpu.memory_space<vmem>>, vector<8x32xbf16>
    tpu.vector_store %arg25[%c0_77, %c128], %131 {strides = array<i32>} : memref<64x384xbf16, #tpu.memory_space<vmem>>, vector<8x32xbf16>,
    %133 = arith.truncf %99 : vector<8x32xf32> to vector<8x32xbf16>
    %c0_78 = arith.constant 0 : index
    %c256 = arith.constant 256 : index
    %134 = vector.load %arg25[%c0_78, %c256] : memref<64x384xbf16, #tpu.memory_space<vmem>>, vector<8x32xbf16>
    tpu.vector_store %arg25[%c0_78, %c256], %133 {strides = array<i32>} : memref<64x384xbf16, #tpu.memory_space<vmem>>, vector<8x32xbf16>,
    %c1 = arith.constant 1 : index
    %c0_79 = arith.constant 0 : index
    %c0_80 = arith.constant 0 : index
    %135 = vector.load %arg22[%c1, %c0_79, %c0_80] : memref<8x8x96xf32, #tpu.memory_space<vmem>>, vector<1x8x96xf32>
    %136 = vector.shape_cast %135 : vector<1x8x96xf32> to vector<8x96xf32>
    %c0_81 = arith.constant 0 : index
    %c0_82 = arith.constant 0 : index
    %137 = vector.load %arg9[%c0_81, %c0_82] : memref<32x96xf32, #tpu.memory_space<vmem>>, vector<32x96xf32>
    %cst_83 = arith.constant dense<0.000000e+00> : vector<8x96xf32>
    %138 = tpu.matmul %130, %137, %cst_83 {dimension_numbers = #tpu.dot_dimension_numbers<[1], [0], [0], [1], [0, 0, 1, 1], [], []>} : vector<8x32xf32>, vector<32x96xf32>, vector<8x96xf32> -> vector<8x96xf32>
    %c0_84 = arith.constant 0 : index
    %c0_85 = arith.constant 0 : index
    %139 = vector.load %arg10[%c0_84, %c0_85] : memref<1x96xf32, #tpu.memory_space<vmem>>, vector<1x96xf32>
    %140 = vector.broadcast %139 : vector<1x96xf32> to vector<8x96xf32>
    %141 = arith.addf %138, %140 : vector<8x96xf32>
    %142 = vector.extract_strided_slice %136 {offsets = [0, 0], sizes = [8, 32], strides = [1, 1]} : vector<8x96xf32> to vector<8x32xf32>
    %143 = vector.extract_strided_slice %141 {offsets = [0, 0], sizes = [8, 32], strides = [1, 1]} : vector<8x96xf32> to vector<8x32xf32>
    %144 = arith.addf %142, %143 : vector<8x32xf32>
    %145 = arith.negf %144 : vector<8x32xf32>
    %146 = math.exp %145 : vector<8x32xf32>
    %cst_86 = arith.constant 1.000000e+00 : f32
    %147 = vector.broadcast %cst_86 : f32 to vector<8x32xf32>
    %148 = arith.addf %147, %146 : vector<8x32xf32>
    %149 = arith.divf %147, %148 : vector<8x32xf32>
    %150 = vector.extract_strided_slice %136 {offsets = [0, 32], sizes = [8, 32], strides = [1, 1]} : vector<8x96xf32> to vector<8x32xf32>
    %151 = vector.extract_strided_slice %141 {offsets = [0, 32], sizes = [8, 32], strides = [1, 1]} : vector<8x96xf32> to vector<8x32xf32>
    %152 = arith.addf %150, %151 : vector<8x32xf32>
    %153 = arith.negf %152 : vector<8x32xf32>
    %154 = math.exp %153 : vector<8x32xf32>
    %cst_87 = arith.constant 1.000000e+00 : f32
    %155 = vector.broadcast %cst_87 : f32 to vector<8x32xf32>
    %156 = arith.addf %155, %154 : vector<8x32xf32>
    %157 = arith.divf %155, %156 : vector<8x32xf32>
    %158 = vector.extract_strided_slice %136 {offsets = [0, 64], sizes = [8, 32], strides = [1, 1]} : vector<8x96xf32> to vector<8x32xf32>
    %159 = vector.extract_strided_slice %141 {offsets = [0, 64], sizes = [8, 32], strides = [1, 1]} : vector<8x96xf32> to vector<8x32xf32>
    %160 = arith.mulf %149, %159 : vector<8x32xf32>
    %161 = arith.addf %158, %160 : vector<8x32xf32>
    %162 = math.tanh %161 : vector<8x32xf32>
    %cst_88 = arith.constant 1.000000e+00 : f32
    %163 = vector.broadcast %cst_88 : f32 to vector<8x32xf32>
    %164 = arith.subf %163, %157 : vector<8x32xf32>
    %165 = arith.mulf %164, %162 : vector<8x32xf32>
    %166 = arith.mulf %157, %130 : vector<8x32xf32>
    %167 = arith.addf %165, %166 : vector<8x32xf32>
    %c0_89 = arith.constant 0 : index
    %c0_90 = arith.constant 0 : index
    %168 = vector.load %arg14[%c0_89, %c0_90] : memref<32x160xf32, #tpu.memory_space<vmem>>, vector<32x160xf32>
    %cst_91 = arith.constant dense<0.000000e+00> : vector<8x160xf32>
    %169 = tpu.matmul %167, %168, %cst_91 {dimension_numbers = #tpu.dot_dimension_numbers<[1], [0], [0], [1], [0, 0, 1, 1], [], []>} : vector<8x32xf32>, vector<32x160xf32>, vector<8x160xf32> -> vector<8x160xf32>
    %170 = vector.extract_strided_slice %169 {offsets = [0, 0], sizes = [8, 96], strides = [1, 1]} : vector<8x160xf32> to vector<8x96xf32>
    %c0_92 = arith.constant 0 : index
    %c0_93 = arith.constant 0 : index
    %171 = vector.load %arg15[%c0_92, %c0_93] : memref<1x96xf32, #tpu.memory_space<vmem>>, vector<1x96xf32>
    %172 = vector.broadcast %171 : vector<1x96xf32> to vector<8x96xf32>
    %173 = arith.addf %170, %172 : vector<8x96xf32>
    %174 = vector.extract_strided_slice %169 {offsets = [0, 128], sizes = [8, 32], strides = [1, 1]} : vector<8x160xf32> to vector<8x32xf32>
    %c0_94 = arith.constant 0 : index
    %c0_95 = arith.constant 0 : index
    %c0_96 = arith.constant 0 : index
    %175 = vector.load %arg23[%c0_94, %c0_95, %c0_96] : memref<8x8x32xf32, #tpu.memory_space<vmem>>, vector<8x8x32xf32>
    %176 = vector.shape_cast %174 : vector<8x32xf32> to vector<8x1x32xf32>
    %177 = vector.broadcast %176 : vector<8x1x32xf32> to vector<8x8x32xf32>
    %178 = arith.addf %175, %177 : vector<8x8x32xf32>
    %179 = math.tanh %178 : vector<8x8x32xf32>
    %c0_97 = arith.constant 0 : index
    %c0_98 = arith.constant 0 : index
    %180 = vector.load %arg13[%c0_97, %c0_98] : memref<1x32xf32, #tpu.memory_space<vmem>>, vector<1x32xf32>
    %181 = vector.shape_cast %180 : vector<1x32xf32> to vector<1x1x32xf32>
    %182 = vector.broadcast %181 : vector<1x1x32xf32> to vector<8x8x32xf32>
    %183 = arith.mulf %179, %182 : vector<8x8x32xf32>
    %cst_99 = arith.constant dense<0.000000e+00> : vector<8x8xf32>
    %184 = vector.multi_reduction <add>, %183, %cst_99 [2] : vector<8x8x32xf32> to vector<8x8xf32>
    %c0_100 = arith.constant 0 : index
    %c0_101 = arith.constant 0 : index
    %185 = vector.load %arg24[%c0_100, %c0_101] : memref<8x8xf32, #tpu.memory_space<vmem>>, vector<8x8xf32>
    %186 = arith.addf %184, %185 : vector<8x8xf32>
    %187 = math.exp %186 : vector<8x8xf32>
    %cst_102 = arith.constant dense<0.000000e+00> : vector<8xf32>
    %188 = vector.multi_reduction <add>, %187, %cst_102 [1] : vector<8x8xf32> to vector<8xf32>
    %189 = vector.shape_cast %188 : vector<8xf32> to vector<8x1xf32>
    %cst_103 = arith.constant 1.000000e-30 : f32
    %190 = vector.broadcast %cst_103 : f32 to vector<8x1xf32>
    %191 = arith.maximumf %189, %190 : vector<8x1xf32>
    %192 = tpu.reciprocal %191 {approx = true} : vector<8x1xf32> -> vector<8x1xf32>
    %193 = vector.broadcast %192 : vector<8x1xf32> to vector<8x8xf32>
    %194 = arith.mulf %187, %193 : vector<8x8xf32>
    %195 = vector.shape_cast %194 : vector<8x8xf32> to vector<8x1x8xf32>
    %196 = arith.truncf %195 : vector<8x1x8xf32> to vector<8x1x8xbf16>
    %c0_104 = arith.constant 0 : index
    %c0_105 = arith.constant 0 : index
    %c0_106 = arith.constant 0 : index
    %197 = vector.load %arg3[%c0_104, %c0_105, %c0_106] : memref<8x8x32xbf16, #tpu.memory_space<vmem>>, vector<8x8x32xbf16>
    "tpu.trace_start"() <{level = 10 : i32, message = "bqs,bsc->bqc"}> : () -> ()
    %cst_107 = arith.constant dense<0.000000e+00> : vector<8x1x32xf32>
    %198 = tpu.matmul %196, %197, %cst_107 {dimension_numbers = #tpu.dot_dimension_numbers<[2], [1], [1], [2], [0, 0, 0, 1, 1, 2], [0], [0]>} : vector<8x1x8xbf16>, vector<8x8x32xbf16>, vector<8x1x32xf32> -> vector<8x1x32xf32>
    "tpu.trace_stop"() : () -> ()
    %199 = vector.shape_cast %198 : vector<8x1x32xf32> to vector<8x32xf32>
    %c0_108 = arith.constant 0 : index
    %c0_109 = arith.constant 0 : index
    %200 = vector.load %arg16[%c0_108, %c0_109] : memref<32x96xf32, #tpu.memory_space<vmem>>, vector<32x96xf32>
    %cst_110 = arith.constant dense<0.000000e+00> : vector<8x96xf32>
    %201 = tpu.matmul %199, %200, %cst_110 {dimension_numbers = #tpu.dot_dimension_numbers<[1], [0], [0], [1], [0, 0, 1, 1], [], []>} : vector<8x32xf32>, vector<32x96xf32>, vector<8x96xf32> -> vector<8x96xf32>
    %c0_111 = arith.constant 0 : index
    %c0_112 = arith.constant 0 : index
    %202 = vector.load %arg17[%c0_111, %c0_112] : memref<1x96xf32, #tpu.memory_space<vmem>>, vector<1x96xf32>
    %203 = vector.broadcast %202 : vector<1x96xf32> to vector<8x96xf32>
    %204 = arith.addf %201, %203 : vector<8x96xf32>
    %205 = vector.extract_strided_slice %204 {offsets = [0, 0], sizes = [8, 32], strides = [1, 1]} : vector<8x96xf32> to vector<8x32xf32>
    %206 = vector.extract_strided_slice %173 {offsets = [0, 0], sizes = [8, 32], strides = [1, 1]} : vector<8x96xf32> to vector<8x32xf32>
    %207 = arith.addf %205, %206 : vector<8x32xf32>
    %208 = arith.negf %207 : vector<8x32xf32>
    %209 = math.exp %208 : vector<8x32xf32>
    %cst_113 = arith.constant 1.000000e+00 : f32
    %210 = vector.broadcast %cst_113 : f32 to vector<8x32xf32>
    %211 = arith.addf %210, %209 : vector<8x32xf32>
    %212 = arith.divf %210, %211 : vector<8x32xf32>
    %213 = vector.extract_strided_slice %204 {offsets = [0, 32], sizes = [8, 32], strides = [1, 1]} : vector<8x96xf32> to vector<8x32xf32>
    %214 = vector.extract_strided_slice %173 {offsets = [0, 32], sizes = [8, 32], strides = [1, 1]} : vector<8x96xf32> to vector<8x32xf32>
    %215 = arith.addf %213, %214 : vector<8x32xf32>
    %216 = arith.negf %215 : vector<8x32xf32>
    %217 = math.exp %216 : vector<8x32xf32>
    %cst_114 = arith.constant 1.000000e+00 : f32
    %218 = vector.broadcast %cst_114 : f32 to vector<8x32xf32>
    %219 = arith.addf %218, %217 : vector<8x32xf32>
    %220 = arith.divf %218, %219 : vector<8x32xf32>
    %221 = vector.extract_strided_slice %204 {offsets = [0, 64], sizes = [8, 32], strides = [1, 1]} : vector<8x96xf32> to vector<8x32xf32>
    %222 = vector.extract_strided_slice %173 {offsets = [0, 64], sizes = [8, 32], strides = [1, 1]} : vector<8x96xf32> to vector<8x32xf32>
    %223 = arith.mulf %212, %222 : vector<8x32xf32>
    %224 = arith.addf %221, %223 : vector<8x32xf32>
    %225 = math.tanh %224 : vector<8x32xf32>
    %cst_115 = arith.constant 1.000000e+00 : f32
    %226 = vector.broadcast %cst_115 : f32 to vector<8x32xf32>
    %227 = arith.subf %226, %220 : vector<8x32xf32>
    %228 = arith.mulf %227, %225 : vector<8x32xf32>
    %229 = arith.mulf %220, %167 : vector<8x32xf32>
    %230 = arith.addf %228, %229 : vector<8x32xf32>
    %231 = arith.truncf %230 : vector<8x32xf32> to vector<8x32xbf16>
    %c8 = arith.constant 8 : index
    %c128_116 = arith.constant 128 : index
    %232 = vector.load %arg25[%c8, %c128_116] : memref<64x384xbf16, #tpu.memory_space<vmem>>, vector<8x32xbf16>
    tpu.vector_store %arg25[%c8, %c128_116], %231 {strides = array<i32>} : memref<64x384xbf16, #tpu.memory_space<vmem>>, vector<8x32xbf16>,
    %233 = arith.truncf %199 : vector<8x32xf32> to vector<8x32xbf16>
    %c8_117 = arith.constant 8 : index
    %c256_118 = arith.constant 256 : index
    %234 = vector.load %arg25[%c8_117, %c256_118] : memref<64x384xbf16, #tpu.memory_space<vmem>>, vector<8x32xbf16>
    tpu.vector_store %arg25[%c8_117, %c256_118], %233 {strides = array<i32>} : memref<64x384xbf16, #tpu.memory_space<vmem>>, vector<8x32xbf16>,
    %c2 = arith.constant 2 : index
    %c0_119 = arith.constant 0 : index
    %c0_120 = arith.constant 0 : index
    %235 = vector.load %arg22[%c2, %c0_119, %c0_120] : memref<8x8x96xf32, #tpu.memory_space<vmem>>, vector<1x8x96xf32>
    %236 = vector.shape_cast %235 : vector<1x8x96xf32> to vector<8x96xf32>
    %c0_121 = arith.constant 0 : index
    %c0_122 = arith.constant 0 : index
    %237 = vector.load %arg9[%c0_121, %c0_122] : memref<32x96xf32, #tpu.memory_space<vmem>>, vector<32x96xf32>
    %cst_123 = arith.constant dense<0.000000e+00> : vector<8x96xf32>
    %238 = tpu.matmul %230, %237, %cst_123 {dimension_numbers = #tpu.dot_dimension_numbers<[1], [0], [0], [1], [0, 0, 1, 1], [], []>} : vector<8x32xf32>, vector<32x96xf32>, vector<8x96xf32> -> vector<8x96xf32>
    %c0_124 = arith.constant 0 : index
    %c0_125 = arith.constant 0 : index
    %239 = vector.load %arg10[%c0_124, %c0_125] : memref<1x96xf32, #tpu.memory_space<vmem>>, vector<1x96xf32>
    %240 = vector.broadcast %239 : vector<1x96xf32> to vector<8x96xf32>
    %241 = arith.addf %238, %240 : vector<8x96xf32>
    %242 = vector.extract_strided_slice %236 {offsets = [0, 0], sizes = [8, 32], strides = [1, 1]} : vector<8x96xf32> to vector<8x32xf32>
    %243 = vector.extract_strided_slice %241 {offsets = [0, 0], sizes = [8, 32], strides = [1, 1]} : vector<8x96xf32> to vector<8x32xf32>
    %244 = arith.addf %242, %243 : vector<8x32xf32>
    %245 = arith.negf %244 : vector<8x32xf32>
    %246 = math.exp %245 : vector<8x32xf32>
    %cst_126 = arith.constant 1.000000e+00 : f32
    %247 = vector.broadcast %cst_126 : f32 to vector<8x32xf32>
    %248 = arith.addf %247, %246 : vector<8x32xf32>
    %249 = arith.divf %247, %248 : vector<8x32xf32>
    %250 = vector.extract_strided_slice %236 {offsets = [0, 32], sizes = [8, 32], strides = [1, 1]} : vector<8x96xf32> to vector<8x32xf32>
    %251 = vector.extract_strided_slice %241 {offsets = [0, 32], sizes = [8, 32], strides = [1, 1]} : vector<8x96xf32> to vector<8x32xf32>
    %252 = arith.addf %250, %251 : vector<8x32xf32>
    %253 = arith.negf %252 : vector<8x32xf32>
    %254 = math.exp %253 : vector<8x32xf32>
    %cst_127 = arith.constant 1.000000e+00 : f32
    %255 = vector.broadcast %cst_127 : f32 to vector<8x32xf32>
    %256 = arith.addf %255, %254 : vector<8x32xf32>
    %257 = arith.divf %255, %256 : vector<8x32xf32>
    %258 = vector.extract_strided_slice %236 {offsets = [0, 64], sizes = [8, 32], strides = [1, 1]} : vector<8x96xf32> to vector<8x32xf32>
    %259 = vector.extract_strided_slice %241 {offsets = [0, 64], sizes = [8, 32], strides = [1, 1]} : vector<8x96xf32> to vector<8x32xf32>
    %260 = arith.mulf %249, %259 : vector<8x32xf32>
    %261 = arith.addf %258, %260 : vector<8x32xf32>
    %262 = math.tanh %261 : vector<8x32xf32>
    %cst_128 = arith.constant 1.000000e+00 : f32
    %263 = vector.broadcast %cst_128 : f32 to vector<8x32xf32>
    %264 = arith.subf %263, %257 : vector<8x32xf32>
    %265 = arith.mulf %264, %262 : vector<8x32xf32>
    %266 = arith.mulf %257, %230 : vector<8x32xf32>
    %267 = arith.addf %265, %266 : vector<8x32xf32>
    %c0_129 = arith.constant 0 : index
    %c0_130 = arith.constant 0 : index
    %268 = vector.load %arg14[%c0_129, %c0_130] : memref<32x160xf32, #tpu.memory_space<vmem>>, vector<32x160xf32>
    %cst_131 = arith.constant dense<0.000000e+00> : vector<8x160xf32>
    %269 = tpu.matmul %267, %268, %cst_131 {dimension_numbers = #tpu.dot_dimension_numbers<[1], [0], [0], [1], [0, 0, 1, 1], [], []>} : vector<8x32xf32>, vector<32x160xf32>, vector<8x160xf32> -> vector<8x160xf32>
    %270 = vector.extract_strided_slice %269 {offsets = [0, 0], sizes = [8, 96], strides = [1, 1]} : vector<8x160xf32> to vector<8x96xf32>
    %c0_132 = arith.constant 0 : index
    %c0_133 = arith.constant 0 : index
    %271 = vector.load %arg15[%c0_132, %c0_133] : memref<1x96xf32, #tpu.memory_space<vmem>>, vector<1x96xf32>
    %272 = vector.broadcast %271 : vector<1x96xf32> to vector<8x96xf32>
    %273 = arith.addf %270, %272 : vector<8x96xf32>
    %274 = vector.extract_strided_slice %269 {offsets = [0, 128], sizes = [8, 32], strides = [1, 1]} : vector<8x160xf32> to vector<8x32xf32>
    %c0_134 = arith.constant 0 : index
    %c0_135 = arith.constant 0 : index
    %c0_136 = arith.constant 0 : index
    %275 = vector.load %arg23[%c0_134, %c0_135, %c0_136] : memref<8x8x32xf32, #tpu.memory_space<vmem>>, vector<8x8x32xf32>
    %276 = vector.shape_cast %274 : vector<8x32xf32> to vector<8x1x32xf32>
    %277 = vector.broadcast %276 : vector<8x1x32xf32> to vector<8x8x32xf32>
    %278 = arith.addf %275, %277 : vector<8x8x32xf32>
    %279 = math.tanh %278 : vector<8x8x32xf32>
    %c0_137 = arith.constant 0 : index
    %c0_138 = arith.constant 0 : index
    %280 = vector.load %arg13[%c0_137, %c0_138] : memref<1x32xf32, #tpu.memory_space<vmem>>, vector<1x32xf32>
    %281 = vector.shape_cast %280 : vector<1x32xf32> to vector<1x1x32xf32>
    %282 = vector.broadcast %281 : vector<1x1x32xf32> to vector<8x8x32xf32>
    %283 = arith.mulf %279, %282 : vector<8x8x32xf32>
    %cst_139 = arith.constant dense<0.000000e+00> : vector<8x8xf32>
    %284 = vector.multi_reduction <add>, %283, %cst_139 [2] : vector<8x8x32xf32> to vector<8x8xf32>
    %c0_140 = arith.constant 0 : index
    %c0_141 = arith.constant 0 : index
    %285 = vector.load %arg24[%c0_140, %c0_141] : memref<8x8xf32, #tpu.memory_space<vmem>>, vector<8x8xf32>
    %286 = arith.addf %284, %285 : vector<8x8xf32>
    %287 = math.exp %286 : vector<8x8xf32>
    %cst_142 = arith.constant dense<0.000000e+00> : vector<8xf32>
    %288 = vector.multi_reduction <add>, %287, %cst_142 [1] : vector<8x8xf32> to vector<8xf32>
    %289 = vector.shape_cast %288 : vector<8xf32> to vector<8x1xf32>
    %cst_143 = arith.constant 1.000000e-30 : f32
    %290 = vector.broadcast %cst_143 : f32 to vector<8x1xf32>
    %291 = arith.maximumf %289, %290 : vector<8x1xf32>
    %292 = tpu.reciprocal %291 {approx = true} : vector<8x1xf32> -> vector<8x1xf32>
    %293 = vector.broadcast %292 : vector<8x1xf32> to vector<8x8xf32>
    %294 = arith.mulf %287, %293 : vector<8x8xf32>
    %295 = vector.shape_cast %294 : vector<8x8xf32> to vector<8x1x8xf32>
    %296 = arith.truncf %295 : vector<8x1x8xf32> to vector<8x1x8xbf16>
    %c0_144 = arith.constant 0 : index
    %c0_145 = arith.constant 0 : index
    %c0_146 = arith.constant 0 : index
    %297 = vector.load %arg3[%c0_144, %c0_145, %c0_146] : memref<8x8x32xbf16, #tpu.memory_space<vmem>>, vector<8x8x32xbf16>
    "tpu.trace_start"() <{level = 10 : i32, message = "bqs,bsc->bqc"}> : () -> ()
    %cst_147 = arith.constant dense<0.000000e+00> : vector<8x1x32xf32>
    %298 = tpu.matmul %296, %297, %cst_147 {dimension_numbers = #tpu.dot_dimension_numbers<[2], [1], [1], [2], [0, 0, 0, 1, 1, 2], [0], [0]>} : vector<8x1x8xbf16>, vector<8x8x32xbf16>, vector<8x1x32xf32> -> vector<8x1x32xf32>
    "tpu.trace_stop"() : () -> ()
    %299 = vector.shape_cast %298 : vector<8x1x32xf32> to vector<8x32xf32>
    %c0_148 = arith.constant 0 : index
    %c0_149 = arith.constant 0 : index
    %300 = vector.load %arg16[%c0_148, %c0_149] : memref<32x96xf32, #tpu.memory_space<vmem>>, vector<32x96xf32>
    %cst_150 = arith.constant dense<0.000000e+00> : vector<8x96xf32>
    %301 = tpu.matmul %299, %300, %cst_150 {dimension_numbers = #tpu.dot_dimension_numbers<[1], [0], [0], [1], [0, 0, 1, 1], [], []>} : vector<8x32xf32>, vector<32x96xf32>, vector<8x96xf32> -> vector<8x96xf32>
    %c0_151 = arith.constant 0 : index
    %c0_152 = arith.constant 0 : index
    %302 = vector.load %arg17[%c0_151, %c0_152] : memref<1x96xf32, #tpu.memory_space<vmem>>, vector<1x96xf32>
    %303 = vector.broadcast %302 : vector<1x96xf32> to vector<8x96xf32>
    %304 = arith.addf %301, %303 : vector<8x96xf32>
    %305 = vector.extract_strided_slice %304 {offsets = [0, 0], sizes = [8, 32], strides = [1, 1]} : vector<8x96xf32> to vector<8x32xf32>
    %306 = vector.extract_strided_slice %273 {offsets = [0, 0], sizes = [8, 32], strides = [1, 1]} : vector<8x96xf32> to vector<8x32xf32>
    %307 = arith.addf %305, %306 : vector<8x32xf32>
    %308 = arith.negf %307 : vector<8x32xf32>
    %309 = math.exp %308 : vector<8x32xf32>
    %cst_153 = arith.constant 1.000000e+00 : f32
    %310 = vector.broadcast %cst_153 : f32 to vector<8x32xf32>
    %311 = arith.addf %310, %309 : vector<8x32xf32>
    %312 = arith.divf %310, %311 : vector<8x32xf32>
    %313 = vector.extract_strided_slice %304 {offsets = [0, 32], sizes = [8, 32], strides = [1, 1]} : vector<8x96xf32> to vector<8x32xf32>
    %314 = vector.extract_strided_slice %273 {offsets = [0, 32], sizes = [8, 32], strides = [1, 1]} : vector<8x96xf32> to vector<8x32xf32>
    %315 = arith.addf %313, %314 : vector<8x32xf32>
    %316 = arith.negf %315 : vector<8x32xf32>
    %317 = math.exp %316 : vector<8x32xf32>
    %cst_154 = arith.constant 1.000000e+00 : f32
    %318 = vector.broadcast %cst_154 : f32 to vector<8x32xf32>
    %319 = arith.addf %318, %317 : vector<8x32xf32>
    %320 = arith.divf %318, %319 : vector<8x32xf32>
    %321 = vector.extract_strided_slice %304 {offsets = [0, 64], sizes = [8, 32], strides = [1, 1]} : vector<8x96xf32> to vector<8x32xf32>
    %322 = vector.extract_strided_slice %273 {offsets = [0, 64], sizes = [8, 32], strides = [1, 1]} : vector<8x96xf32> to vector<8x32xf32>
    %323 = arith.mulf %312, %322 : vector<8x32xf32>
    %324 = arith.addf %321, %323 : vector<8x32xf32>
    %325 = math.tanh %324 : vector<8x32xf32>
    %cst_155 = arith.constant 1.000000e+00 : f32
    %326 = vector.broadcast %cst_155 : f32 to vector<8x32xf32>
    %327 = arith.subf %326, %320 : vector<8x32xf32>
    %328 = arith.mulf %327, %325 : vector<8x32xf32>
    %329 = arith.mulf %320, %267 : vector<8x32xf32>
    %330 = arith.addf %328, %329 : vector<8x32xf32>
    %331 = arith.truncf %330 : vector<8x32xf32> to vector<8x32xbf16>
    %c16 = arith.constant 16 : index
    %c128_156 = arith.constant 128 : index
    %332 = vector.load %arg25[%c16, %c128_156] : memref<64x384xbf16, #tpu.memory_space<vmem>>, vector<8x32xbf16>
    tpu.vector_store %arg25[%c16, %c128_156], %331 {strides = array<i32>} : memref<64x384xbf16, #tpu.memory_space<vmem>>, vector<8x32xbf16>,
    %333 = arith.truncf %299 : vector<8x32xf32> to vector<8x32xbf16>
    %c16_157 = arith.constant 16 : index
    %c256_158 = arith.constant 256 : index
    %334 = vector.load %arg25[%c16_157, %c256_158] : memref<64x384xbf16, #tpu.memory_space<vmem>>, vector<8x32xbf16>
    tpu.vector_store %arg25[%c16_157, %c256_158], %333 {strides = array<i32>} : memref<64x384xbf16, #tpu.memory_space<vmem>>, vector<8x32xbf16>,
    %c3 = arith.constant 3 : index
    %c0_159 = arith.constant 0 : index
    %c0_160 = arith.constant 0 : index
    %335 = vector.load %arg22[%c3, %c0_159, %c0_160] : memref<8x8x96xf32, #tpu.memory_space<vmem>>, vector<1x8x96xf32>
    %336 = vector.shape_cast %335 : vector<1x8x96xf32> to vector<8x96xf32>
    %c0_161 = arith.constant 0 : index
    %c0_162 = arith.constant 0 : index
    %337 = vector.load %arg9[%c0_161, %c0_162] : memref<32x96xf32, #tpu.memory_space<vmem>>, vector<32x96xf32>
    %cst_163 = arith.constant dense<0.000000e+00> : vector<8x96xf32>
    %338 = tpu.matmul %330, %337, %cst_163 {dimension_numbers = #tpu.dot_dimension_numbers<[1], [0], [0], [1], [0, 0, 1, 1], [], []>} : vector<8x32xf32>, vector<32x96xf32>, vector<8x96xf32> -> vector<8x96xf32>
    %c0_164 = arith.constant 0 : index
    %c0_165 = arith.constant 0 : index
    %339 = vector.load %arg10[%c0_164, %c0_165] : memref<1x96xf32, #tpu.memory_space<vmem>>, vector<1x96xf32>
    %340 = vector.broadcast %339 : vector<1x96xf32> to vector<8x96xf32>
    %341 = arith.addf %338, %340 : vector<8x96xf32>
    %342 = vector.extract_strided_slice %336 {offsets = [0, 0], sizes = [8, 32], strides = [1, 1]} : vector<8x96xf32> to vector<8x32xf32>
    %343 = vector.extract_strided_slice %341 {offsets = [0, 0], sizes = [8, 32], strides = [1, 1]} : vector<8x96xf32> to vector<8x32xf32>
    %344 = arith.addf %342, %343 : vector<8x32xf32>
    %345 = arith.negf %344 : vector<8x32xf32>
    %346 = math.exp %345 : vector<8x32xf32>
    %cst_166 = arith.constant 1.000000e+00 : f32
    %347 = vector.broadcast %cst_166 : f32 to vector<8x32xf32>
    %348 = arith.addf %347, %346 : vector<8x32xf32>
    %349 = arith.divf %347, %348 : vector<8x32xf32>
    %350 = vector.extract_strided_slice %336 {offsets = [0, 32], sizes = [8, 32], strides = [1, 1]} : vector<8x96xf32> to vector<8x32xf32>
    %351 = vector.extract_strided_slice %341 {offsets = [0, 32], sizes = [8, 32], strides = [1, 1]} : vector<8x96xf32> to vector<8x32xf32>
    %352 = arith.addf %350, %351 : vector<8x32xf32>
    %353 = arith.negf %352 : vector<8x32xf32>
    %354 = math.exp %353 : vector<8x32xf32>
    %cst_167 = arith.constant 1.000000e+00 : f32
    %355 = vector.broadcast %cst_167 : f32 to vector<8x32xf32>
    %356 = arith.addf %355, %354 : vector<8x32xf32>
    %357 = arith.divf %355, %356 : vector<8x32xf32>
    %358 = vector.extract_strided_slice %336 {offsets = [0, 64], sizes = [8, 32], strides = [1, 1]} : vector<8x96xf32> to vector<8x32xf32>
    %359 = vector.extract_strided_slice %341 {offsets = [0, 64], sizes = [8, 32], strides = [1, 1]} : vector<8x96xf32> to vector<8x32xf32>
    %360 = arith.mulf %349, %359 : vector<8x32xf32>
    %361 = arith.addf %358, %360 : vector<8x32xf32>
    %362 = math.tanh %361 : vector<8x32xf32>
    %cst_168 = arith.constant 1.000000e+00 : f32
    %363 = vector.broadcast %cst_168 : f32 to vector<8x32xf32>
    %364 = arith.subf %363, %357 : vector<8x32xf32>
    %365 = arith.mulf %364, %362 : vector<8x32xf32>
    %366 = arith.mulf %357, %330 : vector<8x32xf32>
    %367 = arith.addf %365, %366 : vector<8x32xf32>
    %c0_169 = arith.constant 0 : index
    %c0_170 = arith.constant 0 : index
    %368 = vector.load %arg14[%c0_169, %c0_170] : memref<32x160xf32, #tpu.memory_space<vmem>>, vector<32x160xf32>
    %cst_171 = arith.constant dense<0.000000e+00> : vector<8x160xf32>
    %369 = tpu.matmul %367, %368, %cst_171 {dimension_numbers = #tpu.dot_dimension_numbers<[1], [0], [0], [1], [0, 0, 1, 1], [], []>} : vector<8x32xf32>, vector<32x160xf32>, vector<8x160xf32> -> vector<8x160xf32>
    %370 = vector.extract_strided_slice %369 {offsets = [0, 0], sizes = [8, 96], strides = [1, 1]} : vector<8x160xf32> to vector<8x96xf32>
    %c0_172 = arith.constant 0 : index
    %c0_173 = arith.constant 0 : index
    %371 = vector.load %arg15[%c0_172, %c0_173] : memref<1x96xf32, #tpu.memory_space<vmem>>, vector<1x96xf32>
    %372 = vector.broadcast %371 : vector<1x96xf32> to vector<8x96xf32>
    %373 = arith.addf %370, %372 : vector<8x96xf32>
    %374 = vector.extract_strided_slice %369 {offsets = [0, 128], sizes = [8, 32], strides = [1, 1]} : vector<8x160xf32> to vector<8x32xf32>
    %c0_174 = arith.constant 0 : index
    %c0_175 = arith.constant 0 : index
    %c0_176 = arith.constant 0 : index
    %375 = vector.load %arg23[%c0_174, %c0_175, %c0_176] : memref<8x8x32xf32, #tpu.memory_space<vmem>>, vector<8x8x32xf32>
    %376 = vector.shape_cast %374 : vector<8x32xf32> to vector<8x1x32xf32>
    %377 = vector.broadcast %376 : vector<8x1x32xf32> to vector<8x8x32xf32>
    %378 = arith.addf %375, %377 : vector<8x8x32xf32>
    %379 = math.tanh %378 : vector<8x8x32xf32>
    %c0_177 = arith.constant 0 : index
    %c0_178 = arith.constant 0 : index
    %380 = vector.load %arg13[%c0_177, %c0_178] : memref<1x32xf32, #tpu.memory_space<vmem>>, vector<1x32xf32>
    %381 = vector.shape_cast %380 : vector<1x32xf32> to vector<1x1x32xf32>
    %382 = vector.broadcast %381 : vector<1x1x32xf32> to vector<8x8x32xf32>
    %383 = arith.mulf %379, %382 : vector<8x8x32xf32>
    %cst_179 = arith.constant dense<0.000000e+00> : vector<8x8xf32>
    %384 = vector.multi_reduction <add>, %383, %cst_179 [2] : vector<8x8x32xf32> to vector<8x8xf32>
    %c0_180 = arith.constant 0 : index
    %c0_181 = arith.constant 0 : index
    %385 = vector.load %arg24[%c0_180, %c0_181] : memref<8x8xf32, #tpu.memory_space<vmem>>, vector<8x8xf32>
    %386 = arith.addf %384, %385 : vector<8x8xf32>
    %387 = math.exp %386 : vector<8x8xf32>
    %cst_182 = arith.constant dense<0.000000e+00> : vector<8xf32>
    %388 = vector.multi_reduction <add>, %387, %cst_182 [1] : vector<8x8xf32> to vector<8xf32>
    %389 = vector.shape_cast %388 : vector<8xf32> to vector<8x1xf32>
    %cst_183 = arith.constant 1.000000e-30 : f32
    %390 = vector.broadcast %cst_183 : f32 to vector<8x1xf32>
    %391 = arith.maximumf %389, %390 : vector<8x1xf32>
    %392 = tpu.reciprocal %391 {approx = true} : vector<8x1xf32> -> vector<8x1xf32>
    %393 = vector.broadcast %392 : vector<8x1xf32> to vector<8x8xf32>
    %394 = arith.mulf %387, %393 : vector<8x8xf32>
    %395 = vector.shape_cast %394 : vector<8x8xf32> to vector<8x1x8xf32>
    %396 = arith.truncf %395 : vector<8x1x8xf32> to vector<8x1x8xbf16>
    %c0_184 = arith.constant 0 : index
    %c0_185 = arith.constant 0 : index
    %c0_186 = arith.constant 0 : index
    %397 = vector.load %arg3[%c0_184, %c0_185, %c0_186] : memref<8x8x32xbf16, #tpu.memory_space<vmem>>, vector<8x8x32xbf16>
    "tpu.trace_start"() <{level = 10 : i32, message = "bqs,bsc->bqc"}> : () -> ()
    %cst_187 = arith.constant dense<0.000000e+00> : vector<8x1x32xf32>
    %398 = tpu.matmul %396, %397, %cst_187 {dimension_numbers = #tpu.dot_dimension_numbers<[2], [1], [1], [2], [0, 0, 0, 1, 1, 2], [0], [0]>} : vector<8x1x8xbf16>, vector<8x8x32xbf16>, vector<8x1x32xf32> -> vector<8x1x32xf32>
    "tpu.trace_stop"() : () -> ()
    %399 = vector.shape_cast %398 : vector<8x1x32xf32> to vector<8x32xf32>
    %c0_188 = arith.constant 0 : index
    %c0_189 = arith.constant 0 : index
    %400 = vector.load %arg16[%c0_188, %c0_189] : memref<32x96xf32, #tpu.memory_space<vmem>>, vector<32x96xf32>
    %cst_190 = arith.constant dense<0.000000e+00> : vector<8x96xf32>
    %401 = tpu.matmul %399, %400, %cst_190 {dimension_numbers = #tpu.dot_dimension_numbers<[1], [0], [0], [1], [0, 0, 1, 1], [], []>} : vector<8x32xf32>, vector<32x96xf32>, vector<8x96xf32> -> vector<8x96xf32>
    %c0_191 = arith.constant 0 : index
    %c0_192 = arith.constant 0 : index
    %402 = vector.load %arg17[%c0_191, %c0_192] : memref<1x96xf32, #tpu.memory_space<vmem>>, vector<1x96xf32>
    %403 = vector.broadcast %402 : vector<1x96xf32> to vector<8x96xf32>
    %404 = arith.addf %401, %403 : vector<8x96xf32>
    %405 = vector.extract_strided_slice %404 {offsets = [0, 0], sizes = [8, 32], strides = [1, 1]} : vector<8x96xf32> to vector<8x32xf32>
    %406 = vector.extract_strided_slice %373 {offsets = [0, 0], sizes = [8, 32], strides = [1, 1]} : vector<8x96xf32> to vector<8x32xf32>
    %407 = arith.addf %405, %406 : vector<8x32xf32>
    %408 = arith.negf %407 : vector<8x32xf32>
    %409 = math.exp %408 : vector<8x32xf32>
    %cst_193 = arith.constant 1.000000e+00 : f32
    %410 = vector.broadcast %cst_193 : f32 to vector<8x32xf32>
    %411 = arith.addf %410, %409 : vector<8x32xf32>
    %412 = arith.divf %410, %411 : vector<8x32xf32>
    %413 = vector.extract_strided_slice %404 {offsets = [0, 32], sizes = [8, 32], strides = [1, 1]} : vector<8x96xf32> to vector<8x32xf32>
    %414 = vector.extract_strided_slice %373 {offsets = [0, 32], sizes = [8, 32], strides = [1, 1]} : vector<8x96xf32> to vector<8x32xf32>
    %415 = arith.addf %413, %414 : vector<8x32xf32>
    %416 = arith.negf %415 : vector<8x32xf32>
    %417 = math.exp %416 : vector<8x32xf32>
    %cst_194 = arith.constant 1.000000e+00 : f32
    %418 = vector.broadcast %cst_194 : f32 to vector<8x32xf32>
    %419 = arith.addf %418, %417 : vector<8x32xf32>
    %420 = arith.divf %418, %419 : vector<8x32xf32>
    %421 = vector.extract_strided_slice %404 {offsets = [0, 64], sizes = [8, 32], strides = [1, 1]} : vector<8x96xf32> to vector<8x32xf32>
    %422 = vector.extract_strided_slice %373 {offsets = [0, 64], sizes = [8, 32], strides = [1, 1]} : vector<8x96xf32> to vector<8x32xf32>
    %423 = arith.mulf %412, %422 : vector<8x32xf32>
    %424 = arith.addf %421, %423 : vector<8x32xf32>
    %425 = math.tanh %424 : vector<8x32xf32>
    %cst_195 = arith.constant 1.000000e+00 : f32
    %426 = vector.broadcast %cst_195 : f32 to vector<8x32xf32>
    %427 = arith.subf %426, %420 : vector<8x32xf32>
    %428 = arith.mulf %427, %425 : vector<8x32xf32>
    %429 = arith.mulf %420, %367 : vector<8x32xf32>
    %430 = arith.addf %428, %429 : vector<8x32xf32>
    %431 = arith.truncf %430 : vector<8x32xf32> to vector<8x32xbf16>
    %c24 = arith.constant 24 : index
    %c128_196 = arith.constant 128 : index
    %432 = vector.load %arg25[%c24, %c128_196] : memref<64x384xbf16, #tpu.memory_space<vmem>>, vector<8x32xbf16>
    tpu.vector_store %arg25[%c24, %c128_196], %431 {strides = array<i32>} : memref<64x384xbf16, #tpu.memory_space<vmem>>, vector<8x32xbf16>,
    %433 = arith.truncf %399 : vector<8x32xf32> to vector<8x32xbf16>
    %c24_197 = arith.constant 24 : index
    %c256_198 = arith.constant 256 : index
    %434 = vector.load %arg25[%c24_197, %c256_198] : memref<64x384xbf16, #tpu.memory_space<vmem>>, vector<8x32xbf16>
    tpu.vector_store %arg25[%c24_197, %c256_198], %433 {strides = array<i32>} : memref<64x384xbf16, #tpu.memory_space<vmem>>, vector<8x32xbf16>,
    %c4 = arith.constant 4 : index
    %c0_199 = arith.constant 0 : index
    %c0_200 = arith.constant 0 : index
    %435 = vector.load %arg22[%c4, %c0_199, %c0_200] : memref<8x8x96xf32, #tpu.memory_space<vmem>>, vector<1x8x96xf32>
    %436 = vector.shape_cast %435 : vector<1x8x96xf32> to vector<8x96xf32>
    %c0_201 = arith.constant 0 : index
    %c0_202 = arith.constant 0 : index
    %437 = vector.load %arg9[%c0_201, %c0_202] : memref<32x96xf32, #tpu.memory_space<vmem>>, vector<32x96xf32>
    %cst_203 = arith.constant dense<0.000000e+00> : vector<8x96xf32>
    %438 = tpu.matmul %430, %437, %cst_203 {dimension_numbers = #tpu.dot_dimension_numbers<[1], [0], [0], [1], [0, 0, 1, 1], [], []>} : vector<8x32xf32>, vector<32x96xf32>, vector<8x96xf32> -> vector<8x96xf32>
    %c0_204 = arith.constant 0 : index
    %c0_205 = arith.constant 0 : index
    %439 = vector.load %arg10[%c0_204, %c0_205] : memref<1x96xf32, #tpu.memory_space<vmem>>, vector<1x96xf32>
    %440 = vector.broadcast %439 : vector<1x96xf32> to vector<8x96xf32>
    %441 = arith.addf %438, %440 : vector<8x96xf32>
    %442 = vector.extract_strided_slice %436 {offsets = [0, 0], sizes = [8, 32], strides = [1, 1]} : vector<8x96xf32> to vector<8x32xf32>
    %443 = vector.extract_strided_slice %441 {offsets = [0, 0], sizes = [8, 32], strides = [1, 1]} : vector<8x96xf32> to vector<8x32xf32>
    %444 = arith.addf %442, %443 : vector<8x32xf32>
    %445 = arith.negf %444 : vector<8x32xf32>
    %446 = math.exp %445 : vector<8x32xf32>
    %cst_206 = arith.constant 1.000000e+00 : f32
    %447 = vector.broadcast %cst_206 : f32 to vector<8x32xf32>
    %448 = arith.addf %447, %446 : vector<8x32xf32>
    %449 = arith.divf %447, %448 : vector<8x32xf32>
    %450 = vector.extract_strided_slice %436 {offsets = [0, 32], sizes = [8, 32], strides = [1, 1]} : vector<8x96xf32> to vector<8x32xf32>
    %451 = vector.extract_strided_slice %441 {offsets = [0, 32], sizes = [8, 32], strides = [1, 1]} : vector<8x96xf32> to vector<8x32xf32>
    %452 = arith.addf %450, %451 : vector<8x32xf32>
    %453 = arith.negf %452 : vector<8x32xf32>
    %454 = math.exp %453 : vector<8x32xf32>
    %cst_207 = arith.constant 1.000000e+00 : f32
    %455 = vector.broadcast %cst_207 : f32 to vector<8x32xf32>
    %456 = arith.addf %455, %454 : vector<8x32xf32>
    %457 = arith.divf %455, %456 : vector<8x32xf32>
    %458 = vector.extract_strided_slice %436 {offsets = [0, 64], sizes = [8, 32], strides = [1, 1]} : vector<8x96xf32> to vector<8x32xf32>
    %459 = vector.extract_strided_slice %441 {offsets = [0, 64], sizes = [8, 32], strides = [1, 1]} : vector<8x96xf32> to vector<8x32xf32>
    %460 = arith.mulf %449, %459 : vector<8x32xf32>
    %461 = arith.addf %458, %460 : vector<8x32xf32>
    %462 = math.tanh %461 : vector<8x32xf32>
    %cst_208 = arith.constant 1.000000e+00 : f32
    %463 = vector.broadcast %cst_208 : f32 to vector<8x32xf32>
    %464 = arith.subf %463, %457 : vector<8x32xf32>
    %465 = arith.mulf %464, %462 : vector<8x32xf32>
    %466 = arith.mulf %457, %430 : vector<8x32xf32>
    %467 = arith.addf %465, %466 : vector<8x32xf32>
    %c0_209 = arith.constant 0 : index
    %c0_210 = arith.constant 0 : index
    %468 = vector.load %arg14[%c0_209, %c0_210] : memref<32x160xf32, #tpu.memory_space<vmem>>, vector<32x160xf32>
    %cst_211 = arith.constant dense<0.000000e+00> : vector<8x160xf32>
    %469 = tpu.matmul %467, %468, %cst_211 {dimension_numbers = #tpu.dot_dimension_numbers<[1], [0], [0], [1], [0, 0, 1, 1], [], []>} : vector<8x32xf32>, vector<32x160xf32>, vector<8x160xf32> -> vector<8x160xf32>
    %470 = vector.extract_strided_slice %469 {offsets = [0, 0], sizes = [8, 96], strides = [1, 1]} : vector<8x160xf32> to vector<8x96xf32>
    %c0_212 = arith.constant 0 : index
    %c0_213 = arith.constant 0 : index
    %471 = vector.load %arg15[%c0_212, %c0_213] : memref<1x96xf32, #tpu.memory_space<vmem>>, vector<1x96xf32>
    %472 = vector.broadcast %471 : vector<1x96xf32> to vector<8x96xf32>
    %473 = arith.addf %470, %472 : vector<8x96xf32>
    %474 = vector.extract_strided_slice %469 {offsets = [0, 128], sizes = [8, 32], strides = [1, 1]} : vector<8x160xf32> to vector<8x32xf32>
    %c0_214 = arith.constant 0 : index
    %c0_215 = arith.constant 0 : index
    %c0_216 = arith.constant 0 : index
    %475 = vector.load %arg23[%c0_214, %c0_215, %c0_216] : memref<8x8x32xf32, #tpu.memory_space<vmem>>, vector<8x8x32xf32>
    %476 = vector.shape_cast %474 : vector<8x32xf32> to vector<8x1x32xf32>
    %477 = vector.broadcast %476 : vector<8x1x32xf32> to vector<8x8x32xf32>
    %478 = arith.addf %475, %477 : vector<8x8x32xf32>
    %479 = math.tanh %478 : vector<8x8x32xf32>
    %c0_217 = arith.constant 0 : index
    %c0_218 = arith.constant 0 : index
    %480 = vector.load %arg13[%c0_217, %c0_218] : memref<1x32xf32, #tpu.memory_space<vmem>>, vector<1x32xf32>
    %481 = vector.shape_cast %480 : vector<1x32xf32> to vector<1x1x32xf32>
    %482 = vector.broadcast %481 : vector<1x1x32xf32> to vector<8x8x32xf32>
    %483 = arith.mulf %479, %482 : vector<8x8x32xf32>
    %cst_219 = arith.constant dense<0.000000e+00> : vector<8x8xf32>
    %484 = vector.multi_reduction <add>, %483, %cst_219 [2] : vector<8x8x32xf32> to vector<8x8xf32>
    %c0_220 = arith.constant 0 : index
    %c0_221 = arith.constant 0 : index
    %485 = vector.load %arg24[%c0_220, %c0_221] : memref<8x8xf32, #tpu.memory_space<vmem>>, vector<8x8xf32>
    %486 = arith.addf %484, %485 : vector<8x8xf32>
    %487 = math.exp %486 : vector<8x8xf32>
    %cst_222 = arith.constant dense<0.000000e+00> : vector<8xf32>
    %488 = vector.multi_reduction <add>, %487, %cst_222 [1] : vector<8x8xf32> to vector<8xf32>
    %489 = vector.shape_cast %488 : vector<8xf32> to vector<8x1xf32>
    %cst_223 = arith.constant 1.000000e-30 : f32
    %490 = vector.broadcast %cst_223 : f32 to vector<8x1xf32>
    %491 = arith.maximumf %489, %490 : vector<8x1xf32>
    %492 = tpu.reciprocal %491 {approx = true} : vector<8x1xf32> -> vector<8x1xf32>
    %493 = vector.broadcast %492 : vector<8x1xf32> to vector<8x8xf32>
    %494 = arith.mulf %487, %493 : vector<8x8xf32>
    %495 = vector.shape_cast %494 : vector<8x8xf32> to vector<8x1x8xf32>
    %496 = arith.truncf %495 : vector<8x1x8xf32> to vector<8x1x8xbf16>
    %c0_224 = arith.constant 0 : index
    %c0_225 = arith.constant 0 : index
    %c0_226 = arith.constant 0 : index
    %497 = vector.load %arg3[%c0_224, %c0_225, %c0_226] : memref<8x8x32xbf16, #tpu.memory_space<vmem>>, vector<8x8x32xbf16>
    "tpu.trace_start"() <{level = 10 : i32, message = "bqs,bsc->bqc"}> : () -> ()
    %cst_227 = arith.constant dense<0.000000e+00> : vector<8x1x32xf32>
    %498 = tpu.matmul %496, %497, %cst_227 {dimension_numbers = #tpu.dot_dimension_numbers<[2], [1], [1], [2], [0, 0, 0, 1, 1, 2], [0], [0]>} : vector<8x1x8xbf16>, vector<8x8x32xbf16>, vector<8x1x32xf32> -> vector<8x1x32xf32>
    "tpu.trace_stop"() : () -> ()
    %499 = vector.shape_cast %498 : vector<8x1x32xf32> to vector<8x32xf32>
    %c0_228 = arith.constant 0 : index
    %c0_229 = arith.constant 0 : index
    %500 = vector.load %arg16[%c0_228, %c0_229] : memref<32x96xf32, #tpu.memory_space<vmem>>, vector<32x96xf32>
    %cst_230 = arith.constant dense<0.000000e+00> : vector<8x96xf32>
    %501 = tpu.matmul %499, %500, %cst_230 {dimension_numbers = #tpu.dot_dimension_numbers<[1], [0], [0], [1], [0, 0, 1, 1], [], []>} : vector<8x32xf32>, vector<32x96xf32>, vector<8x96xf32> -> vector<8x96xf32>
    %c0_231 = arith.constant 0 : index
    %c0_232 = arith.constant 0 : index
    %502 = vector.load %arg17[%c0_231, %c0_232] : memref<1x96xf32, #tpu.memory_space<vmem>>, vector<1x96xf32>
    %503 = vector.broadcast %502 : vector<1x96xf32> to vector<8x96xf32>
    %504 = arith.addf %501, %503 : vector<8x96xf32>
    %505 = vector.extract_strided_slice %504 {offsets = [0, 0], sizes = [8, 32], strides = [1, 1]} : vector<8x96xf32> to vector<8x32xf32>
    %506 = vector.extract_strided_slice %473 {offsets = [0, 0], sizes = [8, 32], strides = [1, 1]} : vector<8x96xf32> to vector<8x32xf32>
    %507 = arith.addf %505, %506 : vector<8x32xf32>
    %508 = arith.negf %507 : vector<8x32xf32>
    %509 = math.exp %508 : vector<8x32xf32>
    %cst_233 = arith.constant 1.000000e+00 : f32
    %510 = vector.broadcast %cst_233 : f32 to vector<8x32xf32>
    %511 = arith.addf %510, %509 : vector<8x32xf32>
    %512 = arith.divf %510, %511 : vector<8x32xf32>
    %513 = vector.extract_strided_slice %504 {offsets = [0, 32], sizes = [8, 32], strides = [1, 1]} : vector<8x96xf32> to vector<8x32xf32>
    %514 = vector.extract_strided_slice %473 {offsets = [0, 32], sizes = [8, 32], strides = [1, 1]} : vector<8x96xf32> to vector<8x32xf32>
    %515 = arith.addf %513, %514 : vector<8x32xf32>
    %516 = arith.negf %515 : vector<8x32xf32>
    %517 = math.exp %516 : vector<8x32xf32>
    %cst_234 = arith.constant 1.000000e+00 : f32
    %518 = vector.broadcast %cst_234 : f32 to vector<8x32xf32>
    %519 = arith.addf %518, %517 : vector<8x32xf32>
    %520 = arith.divf %518, %519 : vector<8x32xf32>
    %521 = vector.extract_strided_slice %504 {offsets = [0, 64], sizes = [8, 32], strides = [1, 1]} : vector<8x96xf32> to vector<8x32xf32>
    %522 = vector.extract_strided_slice %473 {offsets = [0, 64], sizes = [8, 32], strides = [1, 1]} : vector<8x96xf32> to vector<8x32xf32>
    %523 = arith.mulf %512, %522 : vector<8x32xf32>
    %524 = arith.addf %521, %523 : vector<8x32xf32>
    %525 = math.tanh %524 : vector<8x32xf32>
    %cst_235 = arith.constant 1.000000e+00 : f32
    %526 = vector.broadcast %cst_235 : f32 to vector<8x32xf32>
    %527 = arith.subf %526, %520 : vector<8x32xf32>
    %528 = arith.mulf %527, %525 : vector<8x32xf32>
    %529 = arith.mulf %520, %467 : vector<8x32xf32>
    %530 = arith.addf %528, %529 : vector<8x32xf32>
    %531 = arith.truncf %530 : vector<8x32xf32> to vector<8x32xbf16>
    %c32 = arith.constant 32 : index
    %c128_236 = arith.constant 128 : index
    %532 = vector.load %arg25[%c32, %c128_236] : memref<64x384xbf16, #tpu.memory_space<vmem>>, vector<8x32xbf16>
    tpu.vector_store %arg25[%c32, %c128_236], %531 {strides = array<i32>} : memref<64x384xbf16, #tpu.memory_space<vmem>>, vector<8x32xbf16>,
    %533 = arith.truncf %499 : vector<8x32xf32> to vector<8x32xbf16>
    %c32_237 = arith.constant 32 : index
    %c256_238 = arith.constant 256 : index
    %534 = vector.load %arg25[%c32_237, %c256_238] : memref<64x384xbf16, #tpu.memory_space<vmem>>, vector<8x32xbf16>
    tpu.vector_store %arg25[%c32_237, %c256_238], %533 {strides = array<i32>} : memref<64x384xbf16, #tpu.memory_space<vmem>>, vector<8x32xbf16>,
    %c5 = arith.constant 5 : index
    %c0_239 = arith.constant 0 : index
    %c0_240 = arith.constant 0 : index
    %535 = vector.load %arg22[%c5, %c0_239, %c0_240] : memref<8x8x96xf32, #tpu.memory_space<vmem>>, vector<1x8x96xf32>
    %536 = vector.shape_cast %535 : vector<1x8x96xf32> to vector<8x96xf32>
    %c0_241 = arith.constant 0 : index
    %c0_242 = arith.constant 0 : index
    %537 = vector.load %arg9[%c0_241, %c0_242] : memref<32x96xf32, #tpu.memory_space<vmem>>, vector<32x96xf32>
    %cst_243 = arith.constant dense<0.000000e+00> : vector<8x96xf32>
    %538 = tpu.matmul %530, %537, %cst_243 {dimension_numbers = #tpu.dot_dimension_numbers<[1], [0], [0], [1], [0, 0, 1, 1], [], []>} : vector<8x32xf32>, vector<32x96xf32>, vector<8x96xf32> -> vector<8x96xf32>
    %c0_244 = arith.constant 0 : index
    %c0_245 = arith.constant 0 : index
    %539 = vector.load %arg10[%c0_244, %c0_245] : memref<1x96xf32, #tpu.memory_space<vmem>>, vector<1x96xf32>
    %540 = vector.broadcast %539 : vector<1x96xf32> to vector<8x96xf32>
    %541 = arith.addf %538, %540 : vector<8x96xf32>
    %542 = vector.extract_strided_slice %536 {offsets = [0, 0], sizes = [8, 32], strides = [1, 1]} : vector<8x96xf32> to vector<8x32xf32>
    %543 = vector.extract_strided_slice %541 {offsets = [0, 0], sizes = [8, 32], strides = [1, 1]} : vector<8x96xf32> to vector<8x32xf32>
    %544 = arith.addf %542, %543 : vector<8x32xf32>
    %545 = arith.negf %544 : vector<8x32xf32>
    %546 = math.exp %545 : vector<8x32xf32>
    %cst_246 = arith.constant 1.000000e+00 : f32
    %547 = vector.broadcast %cst_246 : f32 to vector<8x32xf32>
    %548 = arith.addf %547, %546 : vector<8x32xf32>
    %549 = arith.divf %547, %548 : vector<8x32xf32>
    %550 = vector.extract_strided_slice %536 {offsets = [0, 32], sizes = [8, 32], strides = [1, 1]} : vector<8x96xf32> to vector<8x32xf32>
    %551 = vector.extract_strided_slice %541 {offsets = [0, 32], sizes = [8, 32], strides = [1, 1]} : vector<8x96xf32> to vector<8x32xf32>
    %552 = arith.addf %550, %551 : vector<8x32xf32>
    %553 = arith.negf %552 : vector<8x32xf32>
    %554 = math.exp %553 : vector<8x32xf32>
    %cst_247 = arith.constant 1.000000e+00 : f32
    %555 = vector.broadcast %cst_247 : f32 to vector<8x32xf32>
    %556 = arith.addf %555, %554 : vector<8x32xf32>
    %557 = arith.divf %555, %556 : vector<8x32xf32>
    %558 = vector.extract_strided_slice %536 {offsets = [0, 64], sizes = [8, 32], strides = [1, 1]} : vector<8x96xf32> to vector<8x32xf32>
    %559 = vector.extract_strided_slice %541 {offsets = [0, 64], sizes = [8, 32], strides = [1, 1]} : vector<8x96xf32> to vector<8x32xf32>
    %560 = arith.mulf %549, %559 : vector<8x32xf32>
    %561 = arith.addf %558, %560 : vector<8x32xf32>
    %562 = math.tanh %561 : vector<8x32xf32>
    %cst_248 = arith.constant 1.000000e+00 : f32
    %563 = vector.broadcast %cst_248 : f32 to vector<8x32xf32>
    %564 = arith.subf %563, %557 : vector<8x32xf32>
    %565 = arith.mulf %564, %562 : vector<8x32xf32>
    %566 = arith.mulf %557, %530 : vector<8x32xf32>
    %567 = arith.addf %565, %566 : vector<8x32xf32>
    %c0_249 = arith.constant 0 : index
    %c0_250 = arith.constant 0 : index
    %568 = vector.load %arg14[%c0_249, %c0_250] : memref<32x160xf32, #tpu.memory_space<vmem>>, vector<32x160xf32>
    %cst_251 = arith.constant dense<0.000000e+00> : vector<8x160xf32>
    %569 = tpu.matmul %567, %568, %cst_251 {dimension_numbers = #tpu.dot_dimension_numbers<[1], [0], [0], [1], [0, 0, 1, 1], [], []>} : vector<8x32xf32>, vector<32x160xf32>, vector<8x160xf32> -> vector<8x160xf32>
    %570 = vector.extract_strided_slice %569 {offsets = [0, 0], sizes = [8, 96], strides = [1, 1]} : vector<8x160xf32> to vector<8x96xf32>
    %c0_252 = arith.constant 0 : index
    %c0_253 = arith.constant 0 : index
    %571 = vector.load %arg15[%c0_252, %c0_253] : memref<1x96xf32, #tpu.memory_space<vmem>>, vector<1x96xf32>
    %572 = vector.broadcast %571 : vector<1x96xf32> to vector<8x96xf32>
    %573 = arith.addf %570, %572 : vector<8x96xf32>
    %574 = vector.extract_strided_slice %569 {offsets = [0, 128], sizes = [8, 32], strides = [1, 1]} : vector<8x160xf32> to vector<8x32xf32>
    %c0_254 = arith.constant 0 : index
    %c0_255 = arith.constant 0 : index
    %c0_256 = arith.constant 0 : index
    %575 = vector.load %arg23[%c0_254, %c0_255, %c0_256] : memref<8x8x32xf32, #tpu.memory_space<vmem>>, vector<8x8x32xf32>
    %576 = vector.shape_cast %574 : vector<8x32xf32> to vector<8x1x32xf32>
    %577 = vector.broadcast %576 : vector<8x1x32xf32> to vector<8x8x32xf32>
    %578 = arith.addf %575, %577 : vector<8x8x32xf32>
    %579 = math.tanh %578 : vector<8x8x32xf32>
    %c0_257 = arith.constant 0 : index
    %c0_258 = arith.constant 0 : index
    %580 = vector.load %arg13[%c0_257, %c0_258] : memref<1x32xf32, #tpu.memory_space<vmem>>, vector<1x32xf32>
    %581 = vector.shape_cast %580 : vector<1x32xf32> to vector<1x1x32xf32>
    %582 = vector.broadcast %581 : vector<1x1x32xf32> to vector<8x8x32xf32>
    %583 = arith.mulf %579, %582 : vector<8x8x32xf32>
    %cst_259 = arith.constant dense<0.000000e+00> : vector<8x8xf32>
    %584 = vector.multi_reduction <add>, %583, %cst_259 [2] : vector<8x8x32xf32> to vector<8x8xf32>
    %c0_260 = arith.constant 0 : index
    %c0_261 = arith.constant 0 : index
    %585 = vector.load %arg24[%c0_260, %c0_261] : memref<8x8xf32, #tpu.memory_space<vmem>>, vector<8x8xf32>
    %586 = arith.addf %584, %585 : vector<8x8xf32>
    %587 = math.exp %586 : vector<8x8xf32>
    %cst_262 = arith.constant dense<0.000000e+00> : vector<8xf32>
    %588 = vector.multi_reduction <add>, %587, %cst_262 [1] : vector<8x8xf32> to vector<8xf32>
    %589 = vector.shape_cast %588 : vector<8xf32> to vector<8x1xf32>
    %cst_263 = arith.constant 1.000000e-30 : f32
    %590 = vector.broadcast %cst_263 : f32 to vector<8x1xf32>
    %591 = arith.maximumf %589, %590 : vector<8x1xf32>
    %592 = tpu.reciprocal %591 {approx = true} : vector<8x1xf32> -> vector<8x1xf32>
    %593 = vector.broadcast %592 : vector<8x1xf32> to vector<8x8xf32>
    %594 = arith.mulf %587, %593 : vector<8x8xf32>
    %595 = vector.shape_cast %594 : vector<8x8xf32> to vector<8x1x8xf32>
    %596 = arith.truncf %595 : vector<8x1x8xf32> to vector<8x1x8xbf16>
    %c0_264 = arith.constant 0 : index
    %c0_265 = arith.constant 0 : index
    %c0_266 = arith.constant 0 : index
    %597 = vector.load %arg3[%c0_264, %c0_265, %c0_266] : memref<8x8x32xbf16, #tpu.memory_space<vmem>>, vector<8x8x32xbf16>
    "tpu.trace_start"() <{level = 10 : i32, message = "bqs,bsc->bqc"}> : () -> ()
    %cst_267 = arith.constant dense<0.000000e+00> : vector<8x1x32xf32>
    %598 = tpu.matmul %596, %597, %cst_267 {dimension_numbers = #tpu.dot_dimension_numbers<[2], [1], [1], [2], [0, 0, 0, 1, 1, 2], [0], [0]>} : vector<8x1x8xbf16>, vector<8x8x32xbf16>, vector<8x1x32xf32> -> vector<8x1x32xf32>
    "tpu.trace_stop"() : () -> ()
    %599 = vector.shape_cast %598 : vector<8x1x32xf32> to vector<8x32xf32>
    %c0_268 = arith.constant 0 : index
    %c0_269 = arith.constant 0 : index
    %600 = vector.load %arg16[%c0_268, %c0_269] : memref<32x96xf32, #tpu.memory_space<vmem>>, vector<32x96xf32>
    %cst_270 = arith.constant dense<0.000000e+00> : vector<8x96xf32>
    %601 = tpu.matmul %599, %600, %cst_270 {dimension_numbers = #tpu.dot_dimension_numbers<[1], [0], [0], [1], [0, 0, 1, 1], [], []>} : vector<8x32xf32>, vector<32x96xf32>, vector<8x96xf32> -> vector<8x96xf32>
    %c0_271 = arith.constant 0 : index
    %c0_272 = arith.constant 0 : index
    %602 = vector.load %arg17[%c0_271, %c0_272] : memref<1x96xf32, #tpu.memory_space<vmem>>, vector<1x96xf32>
    %603 = vector.broadcast %602 : vector<1x96xf32> to vector<8x96xf32>
    %604 = arith.addf %601, %603 : vector<8x96xf32>
    %605 = vector.extract_strided_slice %604 {offsets = [0, 0], sizes = [8, 32], strides = [1, 1]} : vector<8x96xf32> to vector<8x32xf32>
    %606 = vector.extract_strided_slice %573 {offsets = [0, 0], sizes = [8, 32], strides = [1, 1]} : vector<8x96xf32> to vector<8x32xf32>
    %607 = arith.addf %605, %606 : vector<8x32xf32>
    %608 = arith.negf %607 : vector<8x32xf32>
    %609 = math.exp %608 : vector<8x32xf32>
    %cst_273 = arith.constant 1.000000e+00 : f32
    %610 = vector.broadcast %cst_273 : f32 to vector<8x32xf32>
    %611 = arith.addf %610, %609 : vector<8x32xf32>
    %612 = arith.divf %610, %611 : vector<8x32xf32>
    %613 = vector.extract_strided_slice %604 {offsets = [0, 32], sizes = [8, 32], strides = [1, 1]} : vector<8x96xf32> to vector<8x32xf32>
    %614 = vector.extract_strided_slice %573 {offsets = [0, 32], sizes = [8, 32], strides = [1, 1]} : vector<8x96xf32> to vector<8x32xf32>
    %615 = arith.addf %613, %614 : vector<8x32xf32>
    %616 = arith.negf %615 : vector<8x32xf32>
    %617 = math.exp %616 : vector<8x32xf32>
    %cst_274 = arith.constant 1.000000e+00 : f32
    %618 = vector.broadcast %cst_274 : f32 to vector<8x32xf32>
    %619 = arith.addf %618, %617 : vector<8x32xf32>
    %620 = arith.divf %618, %619 : vector<8x32xf32>
    %621 = vector.extract_strided_slice %604 {offsets = [0, 64], sizes = [8, 32], strides = [1, 1]} : vector<8x96xf32> to vector<8x32xf32>
    %622 = vector.extract_strided_slice %573 {offsets = [0, 64], sizes = [8, 32], strides = [1, 1]} : vector<8x96xf32> to vector<8x32xf32>
    %623 = arith.mulf %612, %622 : vector<8x32xf32>
    %624 = arith.addf %621, %623 : vector<8x32xf32>
    %625 = math.tanh %624 : vector<8x32xf32>
    %cst_275 = arith.constant 1.000000e+00 : f32
    %626 = vector.broadcast %cst_275 : f32 to vector<8x32xf32>
    %627 = arith.subf %626, %620 : vector<8x32xf32>
    %628 = arith.mulf %627, %625 : vector<8x32xf32>
    %629 = arith.mulf %620, %567 : vector<8x32xf32>
    %630 = arith.addf %628, %629 : vector<8x32xf32>
    %631 = arith.truncf %630 : vector<8x32xf32> to vector<8x32xbf16>
    %c40 = arith.constant 40 : index
    %c128_276 = arith.constant 128 : index
    %632 = vector.load %arg25[%c40, %c128_276] : memref<64x384xbf16, #tpu.memory_space<vmem>>, vector<8x32xbf16>
    tpu.vector_store %arg25[%c40, %c128_276], %631 {strides = array<i32>} : memref<64x384xbf16, #tpu.memory_space<vmem>>, vector<8x32xbf16>,
    %633 = arith.truncf %599 : vector<8x32xf32> to vector<8x32xbf16>
    %c40_277 = arith.constant 40 : index
    %c256_278 = arith.constant 256 : index
    %634 = vector.load %arg25[%c40_277, %c256_278] : memref<64x384xbf16, #tpu.memory_space<vmem>>, vector<8x32xbf16>
    tpu.vector_store %arg25[%c40_277, %c256_278], %633 {strides = array<i32>} : memref<64x384xbf16, #tpu.memory_space<vmem>>, vector<8x32xbf16>,
    %c6 = arith.constant 6 : index
    %c0_279 = arith.constant 0 : index
    %c0_280 = arith.constant 0 : index
    %635 = vector.load %arg22[%c6, %c0_279, %c0_280] : memref<8x8x96xf32, #tpu.memory_space<vmem>>, vector<1x8x96xf32>
    %636 = vector.shape_cast %635 : vector<1x8x96xf32> to vector<8x96xf32>
    %c0_281 = arith.constant 0 : index
    %c0_282 = arith.constant 0 : index
    %637 = vector.load %arg9[%c0_281, %c0_282] : memref<32x96xf32, #tpu.memory_space<vmem>>, vector<32x96xf32>
    %cst_283 = arith.constant dense<0.000000e+00> : vector<8x96xf32>
    %638 = tpu.matmul %630, %637, %cst_283 {dimension_numbers = #tpu.dot_dimension_numbers<[1], [0], [0], [1], [0, 0, 1, 1], [], []>} : vector<8x32xf32>, vector<32x96xf32>, vector<8x96xf32> -> vector<8x96xf32>
    %c0_284 = arith.constant 0 : index
    %c0_285 = arith.constant 0 : index
    %639 = vector.load %arg10[%c0_284, %c0_285] : memref<1x96xf32, #tpu.memory_space<vmem>>, vector<1x96xf32>
    %640 = vector.broadcast %639 : vector<1x96xf32> to vector<8x96xf32>
    %641 = arith.addf %638, %640 : vector<8x96xf32>
    %642 = vector.extract_strided_slice %636 {offsets = [0, 0], sizes = [8, 32], strides = [1, 1]} : vector<8x96xf32> to vector<8x32xf32>
    %643 = vector.extract_strided_slice %641 {offsets = [0, 0], sizes = [8, 32], strides = [1, 1]} : vector<8x96xf32> to vector<8x32xf32>
    %644 = arith.addf %642, %643 : vector<8x32xf32>
    %645 = arith.negf %644 : vector<8x32xf32>
    %646 = math.exp %645 : vector<8x32xf32>
    %cst_286 = arith.constant 1.000000e+00 : f32
    %647 = vector.broadcast %cst_286 : f32 to vector<8x32xf32>
    %648 = arith.addf %647, %646 : vector<8x32xf32>
    %649 = arith.divf %647, %648 : vector<8x32xf32>
    %650 = vector.extract_strided_slice %636 {offsets = [0, 32], sizes = [8, 32], strides = [1, 1]} : vector<8x96xf32> to vector<8x32xf32>
    %651 = vector.extract_strided_slice %641 {offsets = [0, 32], sizes = [8, 32], strides = [1, 1]} : vector<8x96xf32> to vector<8x32xf32>
    %652 = arith.addf %650, %651 : vector<8x32xf32>
    %653 = arith.negf %652 : vector<8x32xf32>
    %654 = math.exp %653 : vector<8x32xf32>
    %cst_287 = arith.constant 1.000000e+00 : f32
    %655 = vector.broadcast %cst_287 : f32 to vector<8x32xf32>
    %656 = arith.addf %655, %654 : vector<8x32xf32>
    %657 = arith.divf %655, %656 : vector<8x32xf32>
    %658 = vector.extract_strided_slice %636 {offsets = [0, 64], sizes = [8, 32], strides = [1, 1]} : vector<8x96xf32> to vector<8x32xf32>
    %659 = vector.extract_strided_slice %641 {offsets = [0, 64], sizes = [8, 32], strides = [1, 1]} : vector<8x96xf32> to vector<8x32xf32>
    %660 = arith.mulf %649, %659 : vector<8x32xf32>
    %661 = arith.addf %658, %660 : vector<8x32xf32>
    %662 = math.tanh %661 : vector<8x32xf32>
    %cst_288 = arith.constant 1.000000e+00 : f32
    %663 = vector.broadcast %cst_288 : f32 to vector<8x32xf32>
    %664 = arith.subf %663, %657 : vector<8x32xf32>
    %665 = arith.mulf %664, %662 : vector<8x32xf32>
    %666 = arith.mulf %657, %630 : vector<8x32xf32>
    %667 = arith.addf %665, %666 : vector<8x32xf32>
    %c0_289 = arith.constant 0 : index
    %c0_290 = arith.constant 0 : index
    %668 = vector.load %arg14[%c0_289, %c0_290] : memref<32x160xf32, #tpu.memory_space<vmem>>, vector<32x160xf32>
    %cst_291 = arith.constant dense<0.000000e+00> : vector<8x160xf32>
    %669 = tpu.matmul %667, %668, %cst_291 {dimension_numbers = #tpu.dot_dimension_numbers<[1], [0], [0], [1], [0, 0, 1, 1], [], []>} : vector<8x32xf32>, vector<32x160xf32>, vector<8x160xf32> -> vector<8x160xf32>
    %670 = vector.extract_strided_slice %669 {offsets = [0, 0], sizes = [8, 96], strides = [1, 1]} : vector<8x160xf32> to vector<8x96xf32>
    %c0_292 = arith.constant 0 : index
    %c0_293 = arith.constant 0 : index
    %671 = vector.load %arg15[%c0_292, %c0_293] : memref<1x96xf32, #tpu.memory_space<vmem>>, vector<1x96xf32>
    %672 = vector.broadcast %671 : vector<1x96xf32> to vector<8x96xf32>
    %673 = arith.addf %670, %672 : vector<8x96xf32>
    %674 = vector.extract_strided_slice %669 {offsets = [0, 128], sizes = [8, 32], strides = [1, 1]} : vector<8x160xf32> to vector<8x32xf32>
    %c0_294 = arith.constant 0 : index
    %c0_295 = arith.constant 0 : index
    %c0_296 = arith.constant 0 : index
    %675 = vector.load %arg23[%c0_294, %c0_295, %c0_296] : memref<8x8x32xf32, #tpu.memory_space<vmem>>, vector<8x8x32xf32>
    %676 = vector.shape_cast %674 : vector<8x32xf32> to vector<8x1x32xf32>
    %677 = vector.broadcast %676 : vector<8x1x32xf32> to vector<8x8x32xf32>
    %678 = arith.addf %675, %677 : vector<8x8x32xf32>
    %679 = math.tanh %678 : vector<8x8x32xf32>
    %c0_297 = arith.constant 0 : index
    %c0_298 = arith.constant 0 : index
    %680 = vector.load %arg13[%c0_297, %c0_298] : memref<1x32xf32, #tpu.memory_space<vmem>>, vector<1x32xf32>
    %681 = vector.shape_cast %680 : vector<1x32xf32> to vector<1x1x32xf32>
    %682 = vector.broadcast %681 : vector<1x1x32xf32> to vector<8x8x32xf32>
    %683 = arith.mulf %679, %682 : vector<8x8x32xf32>
    %cst_299 = arith.constant dense<0.000000e+00> : vector<8x8xf32>
    %684 = vector.multi_reduction <add>, %683, %cst_299 [2] : vector<8x8x32xf32> to vector<8x8xf32>
    %c0_300 = arith.constant 0 : index
    %c0_301 = arith.constant 0 : index
    %685 = vector.load %arg24[%c0_300, %c0_301] : memref<8x8xf32, #tpu.memory_space<vmem>>, vector<8x8xf32>
    %686 = arith.addf %684, %685 : vector<8x8xf32>
    %687 = math.exp %686 : vector<8x8xf32>
    %cst_302 = arith.constant dense<0.000000e+00> : vector<8xf32>
    %688 = vector.multi_reduction <add>, %687, %cst_302 [1] : vector<8x8xf32> to vector<8xf32>
    %689 = vector.shape_cast %688 : vector<8xf32> to vector<8x1xf32>
    %cst_303 = arith.constant 1.000000e-30 : f32
    %690 = vector.broadcast %cst_303 : f32 to vector<8x1xf32>
    %691 = arith.maximumf %689, %690 : vector<8x1xf32>
    %692 = tpu.reciprocal %691 {approx = true} : vector<8x1xf32> -> vector<8x1xf32>
    %693 = vector.broadcast %692 : vector<8x1xf32> to vector<8x8xf32>
    %694 = arith.mulf %687, %693 : vector<8x8xf32>
    %695 = vector.shape_cast %694 : vector<8x8xf32> to vector<8x1x8xf32>
    %696 = arith.truncf %695 : vector<8x1x8xf32> to vector<8x1x8xbf16>
    %c0_304 = arith.constant 0 : index
    %c0_305 = arith.constant 0 : index
    %c0_306 = arith.constant 0 : index
    %697 = vector.load %arg3[%c0_304, %c0_305, %c0_306] : memref<8x8x32xbf16, #tpu.memory_space<vmem>>, vector<8x8x32xbf16>
    "tpu.trace_start"() <{level = 10 : i32, message = "bqs,bsc->bqc"}> : () -> ()
    %cst_307 = arith.constant dense<0.000000e+00> : vector<8x1x32xf32>
    %698 = tpu.matmul %696, %697, %cst_307 {dimension_numbers = #tpu.dot_dimension_numbers<[2], [1], [1], [2], [0, 0, 0, 1, 1, 2], [0], [0]>} : vector<8x1x8xbf16>, vector<8x8x32xbf16>, vector<8x1x32xf32> -> vector<8x1x32xf32>
    "tpu.trace_stop"() : () -> ()
    %699 = vector.shape_cast %698 : vector<8x1x32xf32> to vector<8x32xf32>
    %c0_308 = arith.constant 0 : index
    %c0_309 = arith.constant 0 : index
    %700 = vector.load %arg16[%c0_308, %c0_309] : memref<32x96xf32, #tpu.memory_space<vmem>>, vector<32x96xf32>
    %cst_310 = arith.constant dense<0.000000e+00> : vector<8x96xf32>
    %701 = tpu.matmul %699, %700, %cst_310 {dimension_numbers = #tpu.dot_dimension_numbers<[1], [0], [0], [1], [0, 0, 1, 1], [], []>} : vector<8x32xf32>, vector<32x96xf32>, vector<8x96xf32> -> vector<8x96xf32>
    %c0_311 = arith.constant 0 : index
    %c0_312 = arith.constant 0 : index
    %702 = vector.load %arg17[%c0_311, %c0_312] : memref<1x96xf32, #tpu.memory_space<vmem>>, vector<1x96xf32>
    %703 = vector.broadcast %702 : vector<1x96xf32> to vector<8x96xf32>
    %704 = arith.addf %701, %703 : vector<8x96xf32>
    %705 = vector.extract_strided_slice %704 {offsets = [0, 0], sizes = [8, 32], strides = [1, 1]} : vector<8x96xf32> to vector<8x32xf32>
    %706 = vector.extract_strided_slice %673 {offsets = [0, 0], sizes = [8, 32], strides = [1, 1]} : vector<8x96xf32> to vector<8x32xf32>
    %707 = arith.addf %705, %706 : vector<8x32xf32>
    %708 = arith.negf %707 : vector<8x32xf32>
    %709 = math.exp %708 : vector<8x32xf32>
    %cst_313 = arith.constant 1.000000e+00 : f32
    %710 = vector.broadcast %cst_313 : f32 to vector<8x32xf32>
    %711 = arith.addf %710, %709 : vector<8x32xf32>
    %712 = arith.divf %710, %711 : vector<8x32xf32>
    %713 = vector.extract_strided_slice %704 {offsets = [0, 32], sizes = [8, 32], strides = [1, 1]} : vector<8x96xf32> to vector<8x32xf32>
    %714 = vector.extract_strided_slice %673 {offsets = [0, 32], sizes = [8, 32], strides = [1, 1]} : vector<8x96xf32> to vector<8x32xf32>
    %715 = arith.addf %713, %714 : vector<8x32xf32>
    %716 = arith.negf %715 : vector<8x32xf32>
    %717 = math.exp %716 : vector<8x32xf32>
    %cst_314 = arith.constant 1.000000e+00 : f32
    %718 = vector.broadcast %cst_314 : f32 to vector<8x32xf32>
    %719 = arith.addf %718, %717 : vector<8x32xf32>
    %720 = arith.divf %718, %719 : vector<8x32xf32>
    %721 = vector.extract_strided_slice %704 {offsets = [0, 64], sizes = [8, 32], strides = [1, 1]} : vector<8x96xf32> to vector<8x32xf32>
    %722 = vector.extract_strided_slice %673 {offsets = [0, 64], sizes = [8, 32], strides = [1, 1]} : vector<8x96xf32> to vector<8x32xf32>
    %723 = arith.mulf %712, %722 : vector<8x32xf32>
    %724 = arith.addf %721, %723 : vector<8x32xf32>
    %725 = math.tanh %724 : vector<8x32xf32>
    %cst_315 = arith.constant 1.000000e+00 : f32
    %726 = vector.broadcast %cst_315 : f32 to vector<8x32xf32>
    %727 = arith.subf %726, %720 : vector<8x32xf32>
    %728 = arith.mulf %727, %725 : vector<8x32xf32>
    %729 = arith.mulf %720, %667 : vector<8x32xf32>
    %730 = arith.addf %728, %729 : vector<8x32xf32>
    %731 = arith.truncf %730 : vector<8x32xf32> to vector<8x32xbf16>
    %c48 = arith.constant 48 : index
    %c128_316 = arith.constant 128 : index
    %732 = vector.load %arg25[%c48, %c128_316] : memref<64x384xbf16, #tpu.memory_space<vmem>>, vector<8x32xbf16>
    tpu.vector_store %arg25[%c48, %c128_316], %731 {strides = array<i32>} : memref<64x384xbf16, #tpu.memory_space<vmem>>, vector<8x32xbf16>,
    %733 = arith.truncf %699 : vector<8x32xf32> to vector<8x32xbf16>
    %c48_317 = arith.constant 48 : index
    %c256_318 = arith.constant 256 : index
    %734 = vector.load %arg25[%c48_317, %c256_318] : memref<64x384xbf16, #tpu.memory_space<vmem>>, vector<8x32xbf16>
    tpu.vector_store %arg25[%c48_317, %c256_318], %733 {strides = array<i32>} : memref<64x384xbf16, #tpu.memory_space<vmem>>, vector<8x32xbf16>,
    %c7 = arith.constant 7 : index
    %c0_319 = arith.constant 0 : index
    %c0_320 = arith.constant 0 : index
    %735 = vector.load %arg22[%c7, %c0_319, %c0_320] : memref<8x8x96xf32, #tpu.memory_space<vmem>>, vector<1x8x96xf32>
    %736 = vector.shape_cast %735 : vector<1x8x96xf32> to vector<8x96xf32>
    %c0_321 = arith.constant 0 : index
    %c0_322 = arith.constant 0 : index
    %737 = vector.load %arg9[%c0_321, %c0_322] : memref<32x96xf32, #tpu.memory_space<vmem>>, vector<32x96xf32>
    %cst_323 = arith.constant dense<0.000000e+00> : vector<8x96xf32>
    %738 = tpu.matmul %730, %737, %cst_323 {dimension_numbers = #tpu.dot_dimension_numbers<[1], [0], [0], [1], [0, 0, 1, 1], [], []>} : vector<8x32xf32>, vector<32x96xf32>, vector<8x96xf32> -> vector<8x96xf32>
    %c0_324 = arith.constant 0 : index
    %c0_325 = arith.constant 0 : index
    %739 = vector.load %arg10[%c0_324, %c0_325] : memref<1x96xf32, #tpu.memory_space<vmem>>, vector<1x96xf32>
    %740 = vector.broadcast %739 : vector<1x96xf32> to vector<8x96xf32>
    %741 = arith.addf %738, %740 : vector<8x96xf32>
    %742 = vector.extract_strided_slice %736 {offsets = [0, 0], sizes = [8, 32], strides = [1, 1]} : vector<8x96xf32> to vector<8x32xf32>
    %743 = vector.extract_strided_slice %741 {offsets = [0, 0], sizes = [8, 32], strides = [1, 1]} : vector<8x96xf32> to vector<8x32xf32>
    %744 = arith.addf %742, %743 : vector<8x32xf32>
    %745 = arith.negf %744 : vector<8x32xf32>
    %746 = math.exp %745 : vector<8x32xf32>
    %cst_326 = arith.constant 1.000000e+00 : f32
    %747 = vector.broadcast %cst_326 : f32 to vector<8x32xf32>
    %748 = arith.addf %747, %746 : vector<8x32xf32>
    %749 = arith.divf %747, %748 : vector<8x32xf32>
    %750 = vector.extract_strided_slice %736 {offsets = [0, 32], sizes = [8, 32], strides = [1, 1]} : vector<8x96xf32> to vector<8x32xf32>
    %751 = vector.extract_strided_slice %741 {offsets = [0, 32], sizes = [8, 32], strides = [1, 1]} : vector<8x96xf32> to vector<8x32xf32>
    %752 = arith.addf %750, %751 : vector<8x32xf32>
    %753 = arith.negf %752 : vector<8x32xf32>
    %754 = math.exp %753 : vector<8x32xf32>
    %cst_327 = arith.constant 1.000000e+00 : f32
    %755 = vector.broadcast %cst_327 : f32 to vector<8x32xf32>
    %756 = arith.addf %755, %754 : vector<8x32xf32>
    %757 = arith.divf %755, %756 : vector<8x32xf32>
    %758 = vector.extract_strided_slice %736 {offsets = [0, 64], sizes = [8, 32], strides = [1, 1]} : vector<8x96xf32> to vector<8x32xf32>
    %759 = vector.extract_strided_slice %741 {offsets = [0, 64], sizes = [8, 32], strides = [1, 1]} : vector<8x96xf32> to vector<8x32xf32>
    %760 = arith.mulf %749, %759 : vector<8x32xf32>
    %761 = arith.addf %758, %760 : vector<8x32xf32>
    %762 = math.tanh %761 : vector<8x32xf32>
    %cst_328 = arith.constant 1.000000e+00 : f32
    %763 = vector.broadcast %cst_328 : f32 to vector<8x32xf32>
    %764 = arith.subf %763, %757 : vector<8x32xf32>
    %765 = arith.mulf %764, %762 : vector<8x32xf32>
    %766 = arith.mulf %757, %730 : vector<8x32xf32>
    %767 = arith.addf %765, %766 : vector<8x32xf32>
    %c0_329 = arith.constant 0 : index
    %c0_330 = arith.constant 0 : index
    %768 = vector.load %arg14[%c0_329, %c0_330] : memref<32x160xf32, #tpu.memory_space<vmem>>, vector<32x160xf32>
    %cst_331 = arith.constant dense<0.000000e+00> : vector<8x160xf32>
    %769 = tpu.matmul %767, %768, %cst_331 {dimension_numbers = #tpu.dot_dimension_numbers<[1], [0], [0], [1], [0, 0, 1, 1], [], []>} : vector<8x32xf32>, vector<32x160xf32>, vector<8x160xf32> -> vector<8x160xf32>
    %770 = vector.extract_strided_slice %769 {offsets = [0, 0], sizes = [8, 96], strides = [1, 1]} : vector<8x160xf32> to vector<8x96xf32>
    %c0_332 = arith.constant 0 : index
    %c0_333 = arith.constant 0 : index
    %771 = vector.load %arg15[%c0_332, %c0_333] : memref<1x96xf32, #tpu.memory_space<vmem>>, vector<1x96xf32>
    %772 = vector.broadcast %771 : vector<1x96xf32> to vector<8x96xf32>
    %773 = arith.addf %770, %772 : vector<8x96xf32>
    %774 = vector.extract_strided_slice %769 {offsets = [0, 128], sizes = [8, 32], strides = [1, 1]} : vector<8x160xf32> to vector<8x32xf32>
    %c0_334 = arith.constant 0 : index
    %c0_335 = arith.constant 0 : index
    %c0_336 = arith.constant 0 : index
    %775 = vector.load %arg23[%c0_334, %c0_335, %c0_336] : memref<8x8x32xf32, #tpu.memory_space<vmem>>, vector<8x8x32xf32>
    %776 = vector.shape_cast %774 : vector<8x32xf32> to vector<8x1x32xf32>
    %777 = vector.broadcast %776 : vector<8x1x32xf32> to vector<8x8x32xf32>
    %778 = arith.addf %775, %777 : vector<8x8x32xf32>
    %779 = math.tanh %778 : vector<8x8x32xf32>
    %c0_337 = arith.constant 0 : index
    %c0_338 = arith.constant 0 : index
    %780 = vector.load %arg13[%c0_337, %c0_338] : memref<1x32xf32, #tpu.memory_space<vmem>>, vector<1x32xf32>
    %781 = vector.shape_cast %780 : vector<1x32xf32> to vector<1x1x32xf32>
    %782 = vector.broadcast %781 : vector<1x1x32xf32> to vector<8x8x32xf32>
    %783 = arith.mulf %779, %782 : vector<8x8x32xf32>
    %cst_339 = arith.constant dense<0.000000e+00> : vector<8x8xf32>
    %784 = vector.multi_reduction <add>, %783, %cst_339 [2] : vector<8x8x32xf32> to vector<8x8xf32>
    %c0_340 = arith.constant 0 : index
    %c0_341 = arith.constant 0 : index
    %785 = vector.load %arg24[%c0_340, %c0_341] : memref<8x8xf32, #tpu.memory_space<vmem>>, vector<8x8xf32>
    %786 = arith.addf %784, %785 : vector<8x8xf32>
    %787 = math.exp %786 : vector<8x8xf32>
    %cst_342 = arith.constant dense<0.000000e+00> : vector<8xf32>
    %788 = vector.multi_reduction <add>, %787, %cst_342 [1] : vector<8x8xf32> to vector<8xf32>
    %789 = vector.shape_cast %788 : vector<8xf32> to vector<8x1xf32>
    %cst_343 = arith.constant 1.000000e-30 : f32
    %790 = vector.broadcast %cst_343 : f32 to vector<8x1xf32>
    %791 = arith.maximumf %789, %790 : vector<8x1xf32>
    %792 = tpu.reciprocal %791 {approx = true} : vector<8x1xf32> -> vector<8x1xf32>
    %793 = vector.broadcast %792 : vector<8x1xf32> to vector<8x8xf32>
    %794 = arith.mulf %787, %793 : vector<8x8xf32>
    %795 = vector.shape_cast %794 : vector<8x8xf32> to vector<8x1x8xf32>
    %796 = arith.truncf %795 : vector<8x1x8xf32> to vector<8x1x8xbf16>
    %c0_344 = arith.constant 0 : index
    %c0_345 = arith.constant 0 : index
    %c0_346 = arith.constant 0 : index
    %797 = vector.load %arg3[%c0_344, %c0_345, %c0_346] : memref<8x8x32xbf16, #tpu.memory_space<vmem>>, vector<8x8x32xbf16>
    "tpu.trace_start"() <{level = 10 : i32, message = "bqs,bsc->bqc"}> : () -> ()
    %cst_347 = arith.constant dense<0.000000e+00> : vector<8x1x32xf32>
    %798 = tpu.matmul %796, %797, %cst_347 {dimension_numbers = #tpu.dot_dimension_numbers<[2], [1], [1], [2], [0, 0, 0, 1, 1, 2], [0], [0]>} : vector<8x1x8xbf16>, vector<8x8x32xbf16>, vector<8x1x32xf32> -> vector<8x1x32xf32>
    "tpu.trace_stop"() : () -> ()
    %799 = vector.shape_cast %798 : vector<8x1x32xf32> to vector<8x32xf32>
    %c0_348 = arith.constant 0 : index
    %c0_349 = arith.constant 0 : index
    %800 = vector.load %arg16[%c0_348, %c0_349] : memref<32x96xf32, #tpu.memory_space<vmem>>, vector<32x96xf32>
    %cst_350 = arith.constant dense<0.000000e+00> : vector<8x96xf32>
    %801 = tpu.matmul %799, %800, %cst_350 {dimension_numbers = #tpu.dot_dimension_numbers<[1], [0], [0], [1], [0, 0, 1, 1], [], []>} : vector<8x32xf32>, vector<32x96xf32>, vector<8x96xf32> -> vector<8x96xf32>
    %c0_351 = arith.constant 0 : index
    %c0_352 = arith.constant 0 : index
    %802 = vector.load %arg17[%c0_351, %c0_352] : memref<1x96xf32, #tpu.memory_space<vmem>>, vector<1x96xf32>
    %803 = vector.broadcast %802 : vector<1x96xf32> to vector<8x96xf32>
    %804 = arith.addf %801, %803 : vector<8x96xf32>
    %805 = vector.extract_strided_slice %804 {offsets = [0, 0], sizes = [8, 32], strides = [1, 1]} : vector<8x96xf32> to vector<8x32xf32>
    %806 = vector.extract_strided_slice %773 {offsets = [0, 0], sizes = [8, 32], strides = [1, 1]} : vector<8x96xf32> to vector<8x32xf32>
    %807 = arith.addf %805, %806 : vector<8x32xf32>
    %808 = arith.negf %807 : vector<8x32xf32>
    %809 = math.exp %808 : vector<8x32xf32>
    %cst_353 = arith.constant 1.000000e+00 : f32
    %810 = vector.broadcast %cst_353 : f32 to vector<8x32xf32>
    %811 = arith.addf %810, %809 : vector<8x32xf32>
    %812 = arith.divf %810, %811 : vector<8x32xf32>
    %813 = vector.extract_strided_slice %804 {offsets = [0, 32], sizes = [8, 32], strides = [1, 1]} : vector<8x96xf32> to vector<8x32xf32>
    %814 = vector.extract_strided_slice %773 {offsets = [0, 32], sizes = [8, 32], strides = [1, 1]} : vector<8x96xf32> to vector<8x32xf32>
    %815 = arith.addf %813, %814 : vector<8x32xf32>
    %816 = arith.negf %815 : vector<8x32xf32>
    %817 = math.exp %816 : vector<8x32xf32>
    %cst_354 = arith.constant 1.000000e+00 : f32
    %818 = vector.broadcast %cst_354 : f32 to vector<8x32xf32>
    %819 = arith.addf %818, %817 : vector<8x32xf32>
    %820 = arith.divf %818, %819 : vector<8x32xf32>
    %821 = vector.extract_strided_slice %804 {offsets = [0, 64], sizes = [8, 32], strides = [1, 1]} : vector<8x96xf32> to vector<8x32xf32>
    %822 = vector.extract_strided_slice %773 {offsets = [0, 64], sizes = [8, 32], strides = [1, 1]} : vector<8x96xf32> to vector<8x32xf32>
    %823 = arith.mulf %812, %822 : vector<8x32xf32>
    %824 = arith.addf %821, %823 : vector<8x32xf32>
    %825 = math.tanh %824 : vector<8x32xf32>
    %cst_355 = arith.constant 1.000000e+00 : f32
    %826 = vector.broadcast %cst_355 : f32 to vector<8x32xf32>
    %827 = arith.subf %826, %820 : vector<8x32xf32>
    %828 = arith.mulf %827, %825 : vector<8x32xf32>
    %829 = arith.mulf %820, %767 : vector<8x32xf32>
    %830 = arith.addf %828, %829 : vector<8x32xf32>
    %831 = arith.truncf %830 : vector<8x32xf32> to vector<8x32xbf16>
    %c56 = arith.constant 56 : index
    %c128_356 = arith.constant 128 : index
    %832 = vector.load %arg25[%c56, %c128_356] : memref<64x384xbf16, #tpu.memory_space<vmem>>, vector<8x32xbf16>
    tpu.vector_store %arg25[%c56, %c128_356], %831 {strides = array<i32>} : memref<64x384xbf16, #tpu.memory_space<vmem>>, vector<8x32xbf16>,
    %833 = arith.truncf %799 : vector<8x32xf32> to vector<8x32xbf16>
    %c56_357 = arith.constant 56 : index
    %c256_358 = arith.constant 256 : index
    %834 = vector.load %arg25[%c56_357, %c256_358] : memref<64x384xbf16, #tpu.memory_space<vmem>>, vector<8x32xbf16>
    tpu.vector_store %arg25[%c56_357, %c256_358], %833 {strides = array<i32>} : memref<64x384xbf16, #tpu.memory_space<vmem>>, vector<8x32xbf16>,
    %c0_359 = arith.constant 0 : index
    %c0_360 = arith.constant 0 : index
    %835 = vector.load %arg21[%c0_359, %c0_360] : memref<8x32xf32, #tpu.memory_space<vmem>>, vector<8x32xf32>
    tpu.vector_store %arg21[%c0_359, %c0_360], %830 {strides = array<i32>} : memref<8x32xf32, #tpu.memory_space<vmem>>, vector<8x32xf32>,
    %c0_361 = arith.constant 0 : index
    %c0_362 = arith.constant 0 : index
    %836 = vector.load %arg25[%c0_361, %c0_362] : memref<64x384xbf16, #tpu.memory_space<vmem>>, vector<64x384xbf16>
    %c0_363 = arith.constant 0 : index
    %c0_364 = arith.constant 0 : index
    %837 = vector.load %arg18[%c0_363, %c0_364] : memref<384x128xbf16, #tpu.memory_space<vmem>>, vector<384x128xbf16>
    %cst_365 = arith.constant dense<0.000000e+00> : vector<64x128xf32>
    %838 = tpu.matmul %836, %837, %cst_365 {dimension_numbers = #tpu.dot_dimension_numbers<[1], [0], [0], [1], [0, 0, 1, 1], [], []>} : vector<64x384xbf16>, vector<384x128xbf16>, vector<64x128xf32> -> vector<64x128xf32>
    %c0_366 = arith.constant 0 : index
    %c0_367 = arith.constant 0 : index
    %839 = vector.load %arg19[%c0_366, %c0_367] : memref<1x128xf32, #tpu.memory_space<vmem>>, vector<1x128xf32>
    %840 = vector.broadcast %839 : vector<1x128xf32> to vector<64x128xf32>
    %841 = arith.addf %838, %840 : vector<64x128xf32>
    %842 = math.tanh %841 : vector<64x128xf32>
    %843 = vector.shape_cast %842 : vector<64x128xf32> to vector<8x8x128xf32>
    %c0_368 = arith.constant 0 : index
    %c0_369 = arith.constant 0 : index
    %c0_370 = arith.constant 0 : index
    %844 = vector.load %arg20[%c0_368, %c0_369, %c0_370] : memref<8x8x128xf32, #tpu.memory_space<vmem>>, vector<8x8x128xf32>
    tpu.vector_store %arg20[%c0_368, %c0_369, %c0_370], %843 {strides = array<i32>} : memref<8x8x128xf32, #tpu.memory_space<vmem>>, vector<8x8x128xf32>,
    return
  }
  func.func @transform_0(%arg0: i32) -> (i32, i32, i32) {
    %c0_i32 = arith.constant 0 : i32
    %c0_i32_0 = arith.constant 0 : i32
    %c0_i32_1 = arith.constant 0 : i32
    return %c0_i32, %arg0, %c0_i32_0 : i32, i32, i32
  }
  func.func @transform_1(%arg0: i32) -> (i32, i32) {
    %c0_i32 = arith.constant 0 : i32
    %c0_i32_0 = arith.constant 0 : i32
    return %arg0, %c0_i32 : i32, i32
  }
  func.func @transform_2(%arg0: i32) -> (i32, i32, i32) {
    %c0_i32 = arith.constant 0 : i32
    %c0_i32_0 = arith.constant 0 : i32
    %c0_i32_1 = arith.constant 0 : i32
    return %arg0, %c0_i32, %c0_i32_0 : i32, i32, i32
  }
  func.func @transform_3(%arg0: i32) -> (i32, i32) {
    %c0_i32 = arith.constant 0 : i32
    %c0_i32_0 = arith.constant 0 : i32
    return %arg0, %c0_i32 : i32, i32
  }
  func.func @transform_4(%arg0: i32) -> (i32, i32) {
    %c0_i32 = arith.constant 0 : i32
    %c0_i32_0 = arith.constant 0 : i32
    return %arg0, %c0_i32 : i32, i32
  }
  func.func @transform_5(%arg0: i32) -> (i32, i32) {
    %c0_i32 = arith.constant 0 : i32
    %c0_i32_0 = arith.constant 0 : i32
    %c0_i32_1 = arith.constant 0 : i32
    return %c0_i32, %c0_i32_0 : i32, i32
  }
  func.func @transform_6(%arg0: i32) -> (i32, i32) {
    %c0_i32 = arith.constant 0 : i32
    %c0_i32_0 = arith.constant 0 : i32
    %c0_i32_1 = arith.constant 0 : i32
    return %c0_i32, %c0_i32_0 : i32, i32
  }
  func.func @transform_7(%arg0: i32) -> (i32, i32) {
    %c0_i32 = arith.constant 0 : i32
    %c0_i32_0 = arith.constant 0 : i32
    %c0_i32_1 = arith.constant 0 : i32
    return %c0_i32, %c0_i32_0 : i32, i32
  }
  func.func @transform_8(%arg0: i32) -> (i32, i32) {
    %c0_i32 = arith.constant 0 : i32
    %c0_i32_0 = arith.constant 0 : i32
    %c0_i32_1 = arith.constant 0 : i32
    return %c0_i32, %c0_i32_0 : i32, i32
  }
  func.func @transform_9(%arg0: i32) -> (i32, i32) {
    %c0_i32 = arith.constant 0 : i32
    %c0_i32_0 = arith.constant 0 : i32
    %c0_i32_1 = arith.constant 0 : i32
    return %c0_i32, %c0_i32_0 : i32, i32
  }
  func.func @transform_10(%arg0: i32) -> (i32, i32) {
    %c0_i32 = arith.constant 0 : i32
    %c0_i32_0 = arith.constant 0 : i32
    %c0_i32_1 = arith.constant 0 : i32
    return %c0_i32, %c0_i32_0 : i32, i32
  }
  func.func @transform_11(%arg0: i32) -> (i32, i32) {
    %c0_i32 = arith.constant 0 : i32
    %c0_i32_0 = arith.constant 0 : i32
    %c0_i32_1 = arith.constant 0 : i32
    return %c0_i32, %c0_i32_0 : i32, i32
  }
  func.func @transform_12(%arg0: i32) -> (i32, i32) {
    %c0_i32 = arith.constant 0 : i32
    %c0_i32_0 = arith.constant 0 : i32
    %c0_i32_1 = arith.constant 0 : i32
    return %c0_i32, %c0_i32_0 : i32, i32
  }
  func.func @transform_13(%arg0: i32) -> (i32, i32) {
    %c0_i32 = arith.constant 0 : i32
    %c0_i32_0 = arith.constant 0 : i32
    %c0_i32_1 = arith.constant 0 : i32
    return %c0_i32, %c0_i32_0 : i32, i32
  }
  func.func @transform_14(%arg0: i32) -> (i32, i32) {
    %c0_i32 = arith.constant 0 : i32
    %c0_i32_0 = arith.constant 0 : i32
    %c0_i32_1 = arith.constant 0 : i32
    return %c0_i32, %c0_i32_0 : i32, i32
  }
  func.func @transform_15(%arg0: i32) -> (i32, i32) {
    %c0_i32 = arith.constant 0 : i32
    %c0_i32_0 = arith.constant 0 : i32
    %c0_i32_1 = arith.constant 0 : i32
    return %c0_i32, %c0_i32_0 : i32, i32
  }
  func.func @transform_16(%arg0: i32) -> (i32, i32) {
    %c0_i32 = arith.constant 0 : i32
    %c0_i32_0 = arith.constant 0 : i32
    %c0_i32_1 = arith.constant 0 : i32
    return %c0_i32, %c0_i32_0 : i32, i32
  }
  func.func @transform_17(%arg0: i32) -> (i32, i32) {
    %c0_i32 = arith.constant 0 : i32
    %c0_i32_0 = arith.constant 0 : i32
    %c0_i32_1 = arith.constant 0 : i32
    return %c0_i32, %c0_i32_0 : i32, i32
  }
  func.func @transform_18(%arg0: i32) -> (i32, i32) {
    %c0_i32 = arith.constant 0 : i32
    %c0_i32_0 = arith.constant 0 : i32
    %c0_i32_1 = arith.constant 0 : i32
    return %c0_i32, %c0_i32_0 : i32, i32
  }
  func.func @transform_19(%arg0: i32) -> (i32, i32, i32) {
    %c0_i32 = arith.constant 0 : i32
    %c0_i32_0 = arith.constant 0 : i32
    %c0_i32_1 = arith.constant 0 : i32
    return %c0_i32, %arg0, %c0_i32_0 : i32, i32, i32
  }
  func.func @transform_20(%arg0: i32) -> (i32, i32) {
    %c0_i32 = arith.constant 0 : i32
    %c0_i32_0 = arith.constant 0 : i32
    return %arg0, %c0_i32 : i32, i32
  }
}

</mosaic_0001>

<llo_original>
// kernel: vattn_decoder_forward.1
$region0: #{vattn_decoder_forward.1}
  #allocation0 [shape = 'u32[]', space=smem, size = 0x4, offset = 0x4, fixed_abs, tag = 'smem constant byte address 0x4 - core index']
  #allocation1 [shape = 'u32[144,128]{1,0:T(1,128)}', space=vmem, size = 0x12000, scoped, tag = 'internal scratch']
  #allocation2 [shape = 'f32[8,8,96]{2,1,0:T(8,128)}', space=vmem, size = 0x8000, scoped, tag = 'scratch operand']
  #allocation3 [shape = 'f32[8,8,32]{2,1,0:T(8,128)}', space=vmem, size = 0x8000, scoped, tag = 'scratch operand']
  #allocation4 [shape = 'f32[8,8]{1,0:T(8,128)}', space=vmem, size = 0x1000, scoped, tag = 'scratch operand']
  #allocation5 [shape = 'bf16[64,384]{1,0:T(8,128)(2,1)}', space=vmem, size = 0xc000, scoped, tag = 'scratch operand']
  %s0 = inlined_call_operand.vmem [shape: bf16[8,8,32], index: 0, kind: input, shape index: {}]
  %s1 = inlined_call_operand.vmem [shape: f32[8,16], index: 1, kind: input, shape index: {}]
  %s2 = inlined_call_operand.vmem [shape: bf16[8,8,32], index: 2, kind: input, shape index: {}]
  %s3 = inlined_call_operand.vmem [shape: f32[8,8], index: 3, kind: input, shape index: {}]
  %s4 = inlined_call_operand.vmem [shape: f32[8,32], index: 4, kind: input, shape index: {}]
  %s5 = inlined_call_operand.vmem [shape: bf16[32,96], index: 5, kind: input, shape index: {}]
  %s6 = inlined_call_operand.vmem [shape: f32[16,96], index: 6, kind: input, shape index: {}]
  %s7 = inlined_call_operand.vmem [shape: f32[1,96], index: 7, kind: input, shape index: {}]
  %s8 = inlined_call_operand.vmem [shape: f32[32,96], index: 8, kind: input, shape index: {}]
  %s9 = inlined_call_operand.vmem [shape: f32[1,96], index: 9, kind: input, shape index: {}]
  %s10 = inlined_call_operand.vmem [shape: bf16[32,32], index: 10, kind: input, shape index: {}]
  %s11 = inlined_call_operand.vmem [shape: f32[1,32], index: 11, kind: input, shape index: {}]
  %s12 = inlined_call_operand.vmem [shape: f32[1,32], index: 12, kind: input, shape index: {}]
  %s13 = inlined_call_operand.vmem [shape: f32[32,160], index: 13, kind: input, shape index: {}]
  %s14 = inlined_call_operand.vmem [shape: f32[1,96], index: 14, kind: input, shape index: {}]
  %s15 = inlined_call_operand.vmem [shape: f32[32,96], index: 15, kind: input, shape index: {}]
  %s16 = inlined_call_operand.vmem [shape: f32[1,96], index: 16, kind: input, shape index: {}]
  %s17 = inlined_call_operand.vmem [shape: bf16[384,128], index: 17, kind: input, shape index: {}]
  %s18 = inlined_call_operand.vmem [shape: f32[1,128], index: 18, kind: input, shape index: {}]
  %s19 = inlined_call_operand.vmem [shape: f32[8,8,128], index: 19, kind: output, shape index: {0}]
  %s20 = inlined_call_operand.vmem [shape: f32[8,32], index: 20, kind: output, shape index: {1}]
  %21 = xla_tuple %s19, %s20
  %s22 = sld [smem:[#allocation0]]
  $region94: #{vattn_decoder_forward.1} parent=0
    _
  %s24 = ssub.s32 1, %s22
  %s25 = scalar_select 0, %s24, %s22
  // Predicated region
  $region2: #{vattn_decoder_forward.1} parent=0 // pred_check
    _
  $region3: #{vattn_decoder_forward.1} parent=0 // pred_check_branch
    %27 = sbr.rel (0) target = $region5
  $region4: #{vattn_decoder_forward.1} parent=0 // pred_region
    _
  $region5: #{vattn_decoder_forward.1} parent=0 // pred_fallthru
    _
  // Predicated region
  $region6: #{vattn_decoder_forward.1} parent=0 // pred_check
    _
  $region7: #{vattn_decoder_forward.1} parent=0 // pred_check_branch
    %29 = sbr.rel (0) target = $region9
  $region8: #{vattn_decoder_forward.1} parent=0 // pred_region
    _
  $region9: #{vattn_decoder_forward.1} parent=0 // pred_fallthru
    _
  // Predicated region
  $region10: #{vattn_decoder_forward.1} parent=0 // pred_check
    _
  $region11: #{vattn_decoder_forward.1} parent=0 // pred_check_branch
    %31 = sbr.rel (0) target = $region13
  $region12: #{vattn_decoder_forward.1} parent=0 // pred_region
    _
  $region13: #{vattn_decoder_forward.1} parent=0 // pred_fallthru
    _
  // Predicated region
  $region14: #{vattn_decoder_forward.1} parent=0 // pred_check
    _
  $region15: #{vattn_decoder_forward.1} parent=0 // pred_check_branch
    %33 = sbr.rel (0) target = $region17
  $region16: #{vattn_decoder_forward.1} parent=0 // pred_region
    _
  $region17: #{vattn_decoder_forward.1} parent=0 // pred_fallthru
    _
  // Predicated region
  $region18: #{vattn_decoder_forward.1} parent=0 // pred_check
    _
  $region19: #{vattn_decoder_forward.1} parent=0 // pred_check_branch
    %35 = sbr.rel (0) target = $region21
  $region20: #{vattn_decoder_forward.1} parent=0 // pred_region
    _
  $region21: #{vattn_decoder_forward.1} parent=0 // pred_fallthru
    _
  // Predicated region
  $region22: #{vattn_decoder_forward.1} parent=0 // pred_check
    _
  $region23: #{vattn_decoder_forward.1} parent=0 // pred_check_branch
    %37 = sbr.rel (0) target = $region25
  $region24: #{vattn_decoder_forward.1} parent=0 // pred_region
    _
  $region25: #{vattn_decoder_forward.1} parent=0 // pred_fallthru
    _
  // Predicated region
  $region26: #{vattn_decoder_forward.1} parent=0 // pred_check
    _
  $region27: #{vattn_decoder_forward.1} parent=0 // pred_check_branch
    %39 = sbr.rel (0) target = $region29
  $region28: #{vattn_decoder_forward.1} parent=0 // pred_region
    _
  $region29: #{vattn_decoder_forward.1} parent=0 // pred_fallthru
    _
  // Predicated region
  $region30: #{vattn_decoder_forward.1} parent=0 // pred_check
    _
  $region31: #{vattn_decoder_forward.1} parent=0 // pred_check_branch
    %41 = sbr.rel (0) target = $region33
  $region32: #{vattn_decoder_forward.1} parent=0 // pred_region
    _
  $region33: #{vattn_decoder_forward.1} parent=0 // pred_fallthru
    _
  // Predicated region
  $region34: #{vattn_decoder_forward.1} parent=0 // pred_check
    _
  $region35: #{vattn_decoder_forward.1} parent=0 // pred_check_branch
    %43 = sbr.rel (0) target = $region37
  $region36: #{vattn_decoder_forward.1} parent=0 // pred_region
    _
  $region37: #{vattn_decoder_forward.1} parent=0 // pred_fallthru
    _
  // Predicated region
  $region38: #{vattn_decoder_forward.1} parent=0 // pred_check
    _
  $region39: #{vattn_decoder_forward.1} parent=0 // pred_check_branch
    %45 = sbr.rel (0) target = $region41
  $region40: #{vattn_decoder_forward.1} parent=0 // pred_region
    _
  $region41: #{vattn_decoder_forward.1} parent=0 // pred_fallthru
    _
  // Predicated region
  $region42: #{vattn_decoder_forward.1} parent=0 // pred_check
    _
  $region43: #{vattn_decoder_forward.1} parent=0 // pred_check_branch
    %47 = sbr.rel (0) target = $region45
  $region44: #{vattn_decoder_forward.1} parent=0 // pred_region
    _
  $region45: #{vattn_decoder_forward.1} parent=0 // pred_fallthru
    _
  // Predicated region
  $region46: #{vattn_decoder_forward.1} parent=0 // pred_check
    _
  $region47: #{vattn_decoder_forward.1} parent=0 // pred_check_branch
    %49 = sbr.rel (0) target = $region49
  $region48: #{vattn_decoder_forward.1} parent=0 // pred_region
    _
  $region49: #{vattn_decoder_forward.1} parent=0 // pred_fallthru
    _
  // Predicated region
  $region50: #{vattn_decoder_forward.1} parent=0 // pred_check
    _
  $region51: #{vattn_decoder_forward.1} parent=0 // pred_check_branch
    %51 = sbr.rel (0) target = $region53
  $region52: #{vattn_decoder_forward.1} parent=0 // pred_region
    _
  $region53: #{vattn_decoder_forward.1} parent=0 // pred_fallthru
    _
  // Predicated region
  $region54: #{vattn_decoder_forward.1} parent=0 // pred_check
    _
  $region55: #{vattn_decoder_forward.1} parent=0 // pred_check_branch
    %53 = sbr.rel (0) target = $region57
  $region56: #{vattn_decoder_forward.1} parent=0 // pred_region
    _
  $region57: #{vattn_decoder_forward.1} parent=0 // pred_fallthru
    _
  // Predicated region
  $region58: #{vattn_decoder_forward.1} parent=0 // pred_check
    _
  $region59: #{vattn_decoder_forward.1} parent=0 // pred_check_branch
    %55 = sbr.rel (0) target = $region61
  $region60: #{vattn_decoder_forward.1} parent=0 // pred_region
    _
  $region61: #{vattn_decoder_forward.1} parent=0 // pred_fallthru
    _
  // Predicated region
  $region62: #{vattn_decoder_forward.1} parent=0 // pred_check
    _
  $region63: #{vattn_decoder_forward.1} parent=0 // pred_check_branch
    %57 = sbr.rel (0) target = $region65
  $region64: #{vattn_decoder_forward.1} parent=0 // pred_region
    _
  $region65: #{vattn_decoder_forward.1} parent=0 // pred_fallthru
    _
  // Predicated region
  $region66: #{vattn_decoder_forward.1} parent=0 // pred_check
    _
  $region67: #{vattn_decoder_forward.1} parent=0 // pred_check_branch
    %59 = sbr.rel (0) target = $region69
  $region68: #{vattn_decoder_forward.1} parent=0 // pred_region
    _
  $region69: #{vattn_decoder_forward.1} parent=0 // pred_fallthru
    _
  // Predicated region
  $region70: #{vattn_decoder_forward.1} parent=0 // pred_check
    _
  $region71: #{vattn_decoder_forward.1} parent=0 // pred_check_branch
    %61 = sbr.rel (0) target = $region73
  $region72: #{vattn_decoder_forward.1} parent=0 // pred_region
    _
  $region73: #{vattn_decoder_forward.1} parent=0 // pred_fallthru
    _
  // Predicated region
  $region74: #{vattn_decoder_forward.1} parent=0 // pred_check
    _
  $region75: #{vattn_decoder_forward.1} parent=0 // pred_check_branch
    %63 = sbr.rel (0) target = $region77
  $region76: #{vattn_decoder_forward.1} parent=0 // pred_region
    _
  $region77: #{vattn_decoder_forward.1} parent=0 // pred_fallthru
    _
  %65 = vst [vmem:[#allocation5] sm:$0xff] 0
  %66 = vst [vmem:[#allocation5 + $0x8] sm:$0xf] 0
  %67 = vst [vmem:[#allocation5 + $0xc] sm:$0xff] 0
  %68 = vst [vmem:[#allocation5 + $0x14] sm:$0xf] 0
  %69 = vst [vmem:[#allocation5 + $0x18] sm:$0xff] 0
  %70 = vst [vmem:[#allocation5 + $0x20] sm:$0xf] 0
  %71 = vst [vmem:[#allocation5 + $0x24] sm:$0xff] 0
  %72 = vst [vmem:[#allocation5 + $0x2c] sm:$0xf] 0
  %73 = vst [vmem:[#allocation5 + $0x30] sm:$0xff] 0
  %74 = vst [vmem:[#allocation5 + $0x38] sm:$0xf] 0
  %75 = vst [vmem:[#allocation5 + $0x3c] sm:$0xff] 0
  %76 = vst [vmem:[#allocation5 + $0x44] sm:$0xf] 0
  %77 = vst [vmem:[#allocation5 + $0x48] sm:$0xff] 0
  %78 = vst [vmem:[#allocation5 + $0x50] sm:$0xf] 0
  %79 = vst [vmem:[#allocation5 + $0x54] sm:$0xff] 0
  %80 = vst [vmem:[#allocation5 + $0x5c] sm:$0xf] 0
  %v81 = vld [vmem:[%s0] sm:$0xf]
  %v82 = vld [vmem:[%s0 + $0x4] sm:$0xf]
  %v83 = vld [vmem:[%s0 + $0x8] sm:$0xf]
  %v84 = vld [vmem:[%s0 + $0xc] sm:$0xf]
  %v85 = vld [vmem:[%s0 + $0x10] sm:$0xf]
  %v86 = vld [vmem:[%s0 + $0x14] sm:$0xf]
  %v87 = vld [vmem:[%s0 + $0x18] sm:$0xf]
  %v88 = vld [vmem:[%s0 + $0x1c] sm:$0xf]
  %vm89 = vcmask 257024
  %90 = vst.msk [vmem:[#allocation5] sm:$0xf] %vm89, %v81
  %91 = vst.msk [vmem:[#allocation5 + $0xc] sm:$0xf] %vm89, %v82
  %92 = vst.msk [vmem:[#allocation5 + $0x18] sm:$0xf] %vm89, %v83
  %93 = vst.msk [vmem:[#allocation5 + $0x24] sm:$0xf] %vm89, %v84
  %94 = vst.msk [vmem:[#allocation5 + $0x30] sm:$0xf] %vm89, %v85
  %95 = vst.msk [vmem:[#allocation5 + $0x3c] sm:$0xf] %vm89, %v86
  %96 = vst.msk [vmem:[#allocation5 + $0x48] sm:$0xf] %vm89, %v87
  %97 = vst.msk [vmem:[#allocation5 + $0x54] sm:$0xf] %vm89, %v88
  %v98 = vld [vmem:[%s5] sm:$0xf]
  %v99 = vld [vmem:[%s5 + $0x4] sm:$0xf]
  %v100 = vld [vmem:[%s5 + $0x8] sm:$0xf]
  %v101 = vld [vmem:[%s5 + $0xc] sm:$0xf]
  %v110 = vunpack.c.l.b16 %v81
  %v111 = vunpack.c.l.b16 %v82
  %v112 = vunpack.c.l.b16 %v83
  %v113 = vunpack.c.l.b16 %v84
  %v114 = vunpack.c.l.b16 %v85
  %v115 = vunpack.c.l.b16 %v86
  %v116 = vunpack.c.l.b16 %v87
  %v117 = vunpack.c.l.b16 %v88
  %v118 = vpack.c.b16 %v111, %v110
  %v119 = vpack.c.b16 %v113, %v112
  %v120 = vpack.c.b16 %v115, %v114
  %v121 = vpack.c.b16 %v117, %v116
  %v126 = vunpack.c.l.b16 %v98
  %v127 = vunpack.c.l.b16 %v99
  %v128 = vunpack.c.l.b16 %v100
  %v129 = vunpack.c.l.b16 %v101
  %v130 = vpack.c.b16 %v127, %v126
  %v131 = vpack.c.b16 %v129, %v128
  %vm134 = vcmask 261120
  %v136 = vsel %vm134, %v118, 0
  %v139 = vsel %vm134, %v119, 0
  %v142 = vsel %vm134, %v120, 0
  %v145 = vsel %vm134, %v121, 0
  %147 = vmatprep.subr.bf16.mxu0 0
  %148 = vmatpush1.bf16.msra.mxu0 0
  %149 = vmatprep.subr.bf16.mxu0 0
  %150 = vmatpush1.bf16.msra.mxu0 0
  %151 = vmatprep.subr.bf16.mxu0 0
  %152 = vmatpush1.bf16.msra.mxu0 0
  %153 = vmatprep.subr.bf16.mxu0 0
  %154 = vmatpush1.bf16.msra.mxu0 0
  %155 = vmatprep.subr.bf16.mxu0 0
  %156 = vmatpush1.bf16.msra.mxu0 0
  %157 = vmatprep.subr.bf16.mxu0 0
  %158 = vmatpush1.bf16.msra.mxu0 0
  %159 = vmatprep.subr.bf16.mxu0 0
  %160 = vmatpush1.bf16.msra.mxu0 %v131
  %161 = vmatprep.subr.bf16.mxu0 0
  %162 = vmatpush1.bf16.msra.mxu0 %v130
  %163 = vmatprep.subr.bf16.mxu0 0
  %164 = vmatpush2.bf16.msra.mxu0 0
  %165 = vmatprep.subr.bf16.mxu0 0
  %166 = vmatpush2.bf16.msra.mxu0 0
  %167 = vmatprep.subr.bf16.mxu0 0
  %168 = vmatpush2.bf16.msra.mxu0 0
  %169 = vmatprep.subr.bf16.mxu0 0
  %170 = vmatpush2.bf16.msra.mxu0 0
  %171 = vmatprep.subr.bf16.mxu0 0
  %172 = vmatpush2.bf16.msra.mxu0 0
  %173 = vmatprep.subr.bf16.mxu0 0
  %174 = vmatpush2.bf16.msra.mxu0 0
  %175 = vmatprep.subr.bf16.mxu0 0
  %176 = vmatpush2.bf16.msra.mxu0 0
  %177 = vmatprep.subr.bf16.mxu0 0
  %178 = vmatpush2.bf16.msra.mxu0 0
  %179 = vmatprep.mubr.bf16.mxu0 0
  %180 = vmatmul.mubr.bf16.gmra.mxu0 %v136
  %v181 = vpop.f32.mrf.mxu0
  %v182 = vadd.f32 0.0, %v181
  %v183 = vpop.f32.mrf.mxu0
  %v184 = vpop.f32.mrf.mxu0
  %v185 = vadd.f32 0.0, %v184
  %v186 = vpop.f32.mrf.mxu0
  %187 = vmatprep.mubr.bf16.mxu0 0
  %188 = vmatmul.mubr.bf16.gmra.mxu0 %v139
  %v189 = vpop.f32.mrf.mxu0
  %v190 = vadd.f32 0.0, %v189
  %v191 = vpop.f32.mrf.mxu0
  %v192 = vpop.f32.mrf.mxu0
  %v193 = vadd.f32 0.0, %v192
  %v194 = vpop.f32.mrf.mxu0
  %195 = vmatprep.mubr.bf16.mxu0 0
  %196 = vmatmul.mubr.bf16.gmra.mxu0 %v142
  %v197 = vpop.f32.mrf.mxu0
  %v198 = vadd.f32 0.0, %v197
  %v199 = vpop.f32.mrf.mxu0
  %v200 = vpop.f32.mrf.mxu0
  %v201 = vadd.f32 0.0, %v200
  %v202 = vpop.f32.mrf.mxu0
  %203 = vmatprep.mubr.bf16.mxu0 0
  %204 = vmatmul.mubr.bf16.gmra.mxu0 %v145
  %v205 = vpop.f32.mrf.mxu0
  %v206 = vadd.f32 0.0, %v205
  %v207 = vpop.f32.mrf.mxu0
  %v208 = vpop.f32.mrf.mxu0
  %v209 = vadd.f32 0.0, %v208
  %v210 = vpop.f32.mrf.mxu0
  %211 = vdwg.mxu0
  %v212 = vld [vmem:[%s1] sm:$0xff]
  %v213 = vld [vmem:[%s6] sm:$0xff]
  %v214 = vld [vmem:[%s6 + $0x8] sm:$0xff]
  %v215 = vld [vmem:[%s7] sm:$0x1]
  %v217 = vlaneseq
  %v218 = vshrl.u32 %v217, 7
  %v219 = vsub.s32 0, %v218
  %v220 = vrot.slane %v215, %v219
  %vm222 = vcmask 130048
  %v224 = vsel %vm222, %v212, 0
  %226 = vmatprep.subr.mxu0 0.0
  %227 = vmatpush1.msra.mxu0 0.0
  %228 = vmatprep.subr.mxu0 0.0
  %229 = vmatpush1.msra.mxu0 0.0
  %230 = vmatprep.subr.mxu0 0.0
  %231 = vmatpush1.msra.mxu0 0.0
  %232 = vmatprep.subr.mxu0 0.0
  %233 = vmatpush1.msra.mxu0 0.0
  %234 = vmatprep.subr.mxu0 0.0
  %235 = vmatpush1.msra.mxu0 0.0
  %236 = vmatprep.subr.mxu0 0.0
  %237 = vmatpush1.msra.mxu0 0.0
  %238 = vmatprep.subr.mxu0 0.0
  %239 = vmatpush1.msra.mxu0 0.0
  %240 = vmatprep.subr.mxu0 0.0
  %241 = vmatpush1.msra.mxu0 0.0
  %242 = vmatprep.subr.mxu0 0.0
  %243 = vmatpush1.msra.mxu0 0.0
  %244 = vmatprep.subr.mxu0 0.0
  %245 = vmatpush1.msra.mxu0 0.0
  %246 = vmatprep.subr.mxu0 0.0
  %247 = vmatpush1.msra.mxu0 0.0
  %248 = vmatprep.subr.mxu0 0.0
  %249 = vmatpush1.msra.mxu0 0.0
  %250 = vmatprep.subr.mxu0 0.0
  %251 = vmatpush1.msra.mxu0 0.0
  %252 = vmatprep.subr.mxu0 0.0
  %253 = vmatpush1.msra.mxu0 0.0
  %254 = vmatprep.subr.mxu0 0.0
  %255 = vmatpush1.msra.mxu0 %v214
  %256 = vmatprep.subr.mxu0 0.0
  %257 = vmatpush1.msra.mxu0 %v213
  %258 = vmatprep.subr.mxu0 0.0
  %259 = vmatpush2.msra.mxu0 0.0
  %260 = vmatprep.subr.mxu0 0.0
  %261 = vmatpush2.msra.mxu0 0.0
  %262 = vmatprep.subr.mxu0 0.0
  %263 = vmatpush2.msra.mxu0 0.0
  %264 = vmatprep.subr.mxu0 0.0
  %265 = vmatpush2.msra.mxu0 0.0
  %266 = vmatprep.subr.mxu0 0.0
  %267 = vmatpush2.msra.mxu0 0.0
  %268 = vmatprep.subr.mxu0 0.0
  %269 = vmatpush2.msra.mxu0 0.0
  %270 = vmatprep.subr.mxu0 0.0
  %271 = vmatpush2.msra.mxu0 0.0
  %272 = vmatprep.subr.mxu0 0.0
  %273 = vmatpush2.msra.mxu0 0.0
  %274 = vmatprep.subr.mxu0 0.0
  %275 = vmatpush2.msra.mxu0 0.0
  %276 = vmatprep.subr.mxu0 0.0
  %277 = vmatpush2.msra.mxu0 0.0
  %278 = vmatprep.subr.mxu0 0.0
  %279 = vmatpush2.msra.mxu0 0.0
  %280 = vmatprep.subr.mxu0 0.0
  %281 = vmatpush2.msra.mxu0 0.0
  %282 = vmatprep.subr.mxu0 0.0
  %283 = vmatpush2.msra.mxu0 0.0
  %284 = vmatprep.subr.mxu0 0.0
  %285 = vmatpush2.msra.mxu0 0.0
  %286 = vmatprep.subr.mxu0 0.0
  %287 = vmatpush2.msra.mxu0 0.0
  %288 = vmatprep.subr.mxu0 0.0
  %289 = vmatpush2.msra.mxu0 0.0
  %290 = vmatprep.mubr.f32.mxu0 0.0
  %291 = vmatmul.mubr.f32.gmra.mxu0 %v224
  %v292 = vpop.f32.mrf.mxu0
  %v293 = vadd.f32 %v220, %v292
  %v294 = vpop.f32.mrf.mxu0
  %295 = vdwg.mxu0
  %v296 = vadd.f32 %v182, %v293
  %v297 = vadd.f32 %v185, %v293
  %v298 = vadd.f32 %v190, %v293
  %v299 = vadd.f32 %v193, %v293
  %v300 = vadd.f32 %v198, %v293
  %v301 = vadd.f32 %v201, %v293
  %v302 = vadd.f32 %v206, %v293
  %v303 = vadd.f32 %v209, %v293
  %vm304 = vcmask 785408
  %305 = vst.msk [vmem:[#allocation2] sm:$0xff] %vm304, %v296
  %306 = vst.msk [vmem:[#allocation2 + $0x8] sm:$0xff] %vm304, %v297
  %307 = vst.msk [vmem:[#allocation2 + $0x10] sm:$0xff] %vm304, %v298
  %308 = vst.msk [vmem:[#allocation2 + $0x18] sm:$0xff] %vm304, %v299
  %309 = vst.msk [vmem:[#allocation2 + $0x20] sm:$0xff] %vm304, %v300
  %310 = vst.msk [vmem:[#allocation2 + $0x28] sm:$0xff] %vm304, %v301
  %311 = vst.msk [vmem:[#allocation2 + $0x30] sm:$0xff] %vm304, %v302
  %312 = vst.msk [vmem:[#allocation2 + $0x38] sm:$0xff] %vm304, %v303
  %v313 = vld [vmem:[%s2] sm:$0xf]
  %v314 = vld [vmem:[%s2 + $0x4] sm:$0xf]
  %v315 = vld [vmem:[%s2 + $0x8] sm:$0xf]
  %v316 = vld [vmem:[%s2 + $0xc] sm:$0xf]
  %v317 = vld [vmem:[%s2 + $0x10] sm:$0xf]
  %v318 = vld [vmem:[%s2 + $0x14] sm:$0xf]
  %v319 = vld [vmem:[%s2 + $0x18] sm:$0xf]
  %v320 = vld [vmem:[%s2 + $0x1c] sm:$0xf]
  %v321 = vld [vmem:[%s10] sm:$0xf]
  %v322 = vld [vmem:[%s10 + $0x4] sm:$0xf]
  %v323 = vld [vmem:[%s10 + $0x8] sm:$0xf]
  %v324 = vld [vmem:[%s10 + $0xc] sm:$0xf]
  %v325 = vld [vmem:[%s11] sm:$0x1]
  %v327 = vlaneseq
  %v328 = vshrl.u32 %v327, 7
  %v329 = vsub.s32 0, %v328
  %v330 = vrot.slane %v325, %v329
  %v340 = vunpack.c.l.b16 %v313
  %v341 = vunpack.c.l.b16 %v314
  %v342 = vunpack.c.l.b16 %v315
  %v343 = vunpack.c.l.b16 %v316
  %v344 = vunpack.c.l.b16 %v317
  %v345 = vunpack.c.l.b16 %v318
  %v346 = vunpack.c.l.b16 %v319
  %v347 = vunpack.c.l.b16 %v320
  %v348 = vpack.c.b16 %v341, %v340
  %v349 = vpack.c.b16 %v343, %v342
  %v350 = vpack.c.b16 %v345, %v344
  %v351 = vpack.c.b16 %v347, %v346
  %v356 = vunpack.c.l.b16 %v321
  %v357 = vunpack.c.l.b16 %v322
  %v358 = vunpack.c.l.b16 %v323
  %v359 = vunpack.c.l.b16 %v324
  %v360 = vpack.c.b16 %v357, %v356
  %v361 = vpack.c.b16 %v359, %v358
  %v365 = vsel %vm134, %v348, 0
  %v368 = vsel %vm134, %v349, 0
  %v371 = vsel %vm134, %v350, 0
  %v374 = vsel %vm134, %v351, 0
  %376 = vmatprep.subr.bf16.mxu0 0
  %377 = vmatpush1.bf16.msra.mxu0 0
  %378 = vmatprep.subr.bf16.mxu0 0
  %379 = vmatpush1.bf16.msra.mxu0 0
  %380 = vmatprep.subr.bf16.mxu0 0
  %381 = vmatpush1.bf16.msra.mxu0 0
  %382 = vmatprep.subr.bf16.mxu0 0
  %383 = vmatpush1.bf16.msra.mxu0 0
  %384 = vmatprep.subr.bf16.mxu0 0
  %385 = vmatpush1.bf16.msra.mxu0 0
  %386 = vmatprep.subr.bf16.mxu0 0
  %387 = vmatpush1.bf16.msra.mxu0 0
  %388 = vmatprep.subr.bf16.mxu0 0
  %389 = vmatpush1.bf16.msra.mxu0 %v361
  %390 = vmatprep.subr.bf16.mxu0 0
  %391 = vmatpush1.bf16.msra.mxu0 %v360
  %392 = vmatprep.subr.bf16.mxu0 0
  %393 = vmatpush2.bf16.msra.mxu0 0
  %394 = vmatprep.subr.bf16.mxu0 0
  %395 = vmatpush2.bf16.msra.mxu0 0
  %396 = vmatprep.subr.bf16.mxu0 0
  %397 = vmatpush2.bf16.msra.mxu0 0
  %398 = vmatprep.subr.bf16.mxu0 0
  %399 = vmatpush2.bf16.msra.mxu0 0
  %400 = vmatprep.subr.bf16.mxu0 0
  %401 = vmatpush2.bf16.msra.mxu0 0
  %402 = vmatprep.subr.bf16.mxu0 0
  %403 = vmatpush2.bf16.msra.mxu0 0
  %404 = vmatprep.subr.bf16.mxu0 0
  %405 = vmatpush2.bf16.msra.mxu0 0
  %406 = vmatprep.subr.bf16.mxu0 0
  %407 = vmatpush2.bf16.msra.mxu0 0
  %408 = vmatprep.mubr.bf16.mxu0 0
  %409 = vmatmul.mubr.bf16.gmra.mxu0 %v365
  %v410 = vpop.f32.mrf.mxu0
  %v411 = vadd.f32 %v330, %v410
  %v412 = vpop.f32.mrf.mxu0
  %v413 = vpop.f32.mrf.mxu0
  %v414 = vadd.f32 %v330, %v413
  %v415 = vpop.f32.mrf.mxu0
  %416 = vmatprep.mubr.bf16.mxu0 0
  %417 = vmatmul.mubr.bf16.gmra.mxu0 %v368
  %v418 = vpop.f32.mrf.mxu0
  %v419 = vadd.f32 %v330, %v418
  %v420 = vpop.f32.mrf.mxu0
  %v421 = vpop.f32.mrf.mxu0
  %v422 = vadd.f32 %v330, %v421
  %v423 = vpop.f32.mrf.mxu0
  %424 = vmatprep.mubr.bf16.mxu0 0
  %425 = vmatmul.mubr.bf16.gmra.mxu0 %v371
  %v426 = vpop.f32.mrf.mxu0
  %v427 = vadd.f32 %v330, %v426
  %v428 = vpop.f32.mrf.mxu0
  %v429 = vpop.f32.mrf.mxu0
  %v430 = vadd.f32 %v330, %v429
  %v431 = vpop.f32.mrf.mxu0
  %432 = vmatprep.mubr.bf16.mxu0 0
  %433 = vmatmul.mubr.bf16.gmra.mxu0 %v374
  %v434 = vpop.f32.mrf.mxu0
  %v435 = vadd.f32 %v330, %v434
  %v436 = vpop.f32.mrf.mxu0
  %v437 = vpop.f32.mrf.mxu0
  %v438 = vadd.f32 %v330, %v437
  %v439 = vpop.f32.mrf.mxu0
  %440 = vdwg.mxu0
  %441 = vst.msk [vmem:[#allocation3] sm:$0xff] %vm134, %v411
  %442 = vst.msk [vmem:[#allocation3 + $0x8] sm:$0xff] %vm134, %v414
  %443 = vst.msk [vmem:[#allocation3 + $0x10] sm:$0xff] %vm134, %v419
  %444 = vst.msk [vmem:[#allocation3 + $0x18] sm:$0xff] %vm134, %v422
  %445 = vst.msk [vmem:[#allocation3 + $0x20] sm:$0xff] %vm134, %v427
  %446 = vst.msk [vmem:[#allocation3 + $0x28] sm:$0xff] %vm134, %v430
  %447 = vst.msk [vmem:[#allocation3 + $0x30] sm:$0xff] %vm134, %v435
  %448 = vst.msk [vmem:[#allocation3 + $0x38] sm:$0xff] %vm134, %v438
  %v449 = vld [vmem:[%s3] sm:$0xff]
  %vm450 = vcmp.gt.f32.partialorder %v449, 0.5
  %v451 = vsel %vm450, -1e+30, 0.0
  %vm452 = vcmask 64512
  %453 = vst.msk [vmem:[#allocation4] sm:$0xff] %vm452, %v451
  %v454 = vld [vmem:[%s4] sm:$0xff]
  %v455 = vld [vmem:[#allocation2] sm:$0xff]
  %v456 = vld [vmem:[%s8] sm:$0xff]
  %v457 = vld [vmem:[%s8 + $0x8] sm:$0xff]
  %v458 = vld [vmem:[%s8 + $0x10] sm:$0xff]
  %v459 = vld [vmem:[%s8 + $0x18] sm:$0xff]
  %v460 = vld [vmem:[%s9] sm:$0x1]
  %v462 = vlaneseq
  %v463 = vshrl.u32 %v462, 7
  %v464 = vsub.s32 0, %v463
  %v465 = vrot.slane %v460, %v464
  %v468 = vsel %vm134, %v454, 0
  %470 = vmatprep.subr.mxu0 0.0
  %471 = vmatpush1.msra.mxu0 0.0
  %472 = vmatprep.subr.mxu0 0.0
  %473 = vmatpush1.msra.mxu0 0.0
  %474 = vmatprep.subr.mxu0 0.0
  %475 = vmatpush1.msra.mxu0 0.0
  %476 = vmatprep.subr.mxu0 0.0
  %477 = vmatpush1.msra.mxu0 0.0
  %478 = vmatprep.subr.mxu0 0.0
  %479 = vmatpush1.msra.mxu0 0.0
  %480 = vmatprep.subr.mxu0 0.0
  %481 = vmatpush1.msra.mxu0 0.0
  %482 = vmatprep.subr.mxu0 0.0
  %483 = vmatpush1.msra.mxu0 0.0
  %484 = vmatprep.subr.mxu0 0.0
  %485 = vmatpush1.msra.mxu0 0.0
  %486 = vmatprep.subr.mxu0 0.0
  %487 = vmatpush1.msra.mxu0 0.0
  %488 = vmatprep.subr.mxu0 0.0
  %489 = vmatpush1.msra.mxu0 0.0
  %490 = vmatprep.subr.mxu0 0.0
  %491 = vmatpush1.msra.mxu0 0.0
  %492 = vmatprep.subr.mxu0 0.0
  %493 = vmatpush1.msra.mxu0 0.0
  %494 = vmatprep.subr.mxu0 0.0
  %495 = vmatpush1.msra.mxu0 %v459
  %496 = vmatprep.subr.mxu0 0.0
  %497 = vmatpush1.msra.mxu0 %v458
  %498 = vmatprep.subr.mxu0 0.0
  %499 = vmatpush1.msra.mxu0 %v457
  %500 = vmatprep.subr.mxu0 0.0
  %501 = vmatpush1.msra.mxu0 %v456
  %502 = vmatprep.subr.mxu0 0.0
  %503 = vmatpush2.msra.mxu0 0.0
  %504 = vmatprep.subr.mxu0 0.0
  %505 = vmatpush2.msra.mxu0 0.0
  %506 = vmatprep.subr.mxu0 0.0
  %507 = vmatpush2.msra.mxu0 0.0
  %508 = vmatprep.subr.mxu0 0.0
  %509 = vmatpush2.msra.mxu0 0.0
  %510 = vmatprep.subr.mxu0 0.0
  %511 = vmatpush2.msra.mxu0 0.0
  %512 = vmatprep.subr.mxu0 0.0
  %513 = vmatpush2.msra.mxu0 0.0
  %514 = vmatprep.subr.mxu0 0.0
  %515 = vmatpush2.msra.mxu0 0.0
  %516 = vmatprep.subr.mxu0 0.0
  %517 = vmatpush2.msra.mxu0 0.0
  %518 = vmatprep.subr.mxu0 0.0
  %519 = vmatpush2.msra.mxu0 0.0
  %520 = vmatprep.subr.mxu0 0.0
  %521 = vmatpush2.msra.mxu0 0.0
  %522 = vmatprep.subr.mxu0 0.0
  %523 = vmatpush2.msra.mxu0 0.0
  %524 = vmatprep.subr.mxu0 0.0
  %525 = vmatpush2.msra.mxu0 0.0
  %526 = vmatprep.subr.mxu0 0.0
  %527 = vmatpush2.msra.mxu0 0.0
  %528 = vmatprep.subr.mxu0 0.0
  %529 = vmatpush2.msra.mxu0 0.0
  %530 = vmatprep.subr.mxu0 0.0
  %531 = vmatpush2.msra.mxu0 0.0
  %532 = vmatprep.subr.mxu0 0.0
  %533 = vmatpush2.msra.mxu0 0.0
  %534 = vmatprep.mubr.f32.mxu0 0.0
  %535 = vmatmul.mubr.f32.gmra.mxu0 %v468
  %v536 = vpop.f32.mrf.mxu0
  %v537 = vadd.f32 %v465, %v536
  %v538 = vpop.f32.mrf.mxu0
  %539 = vdwg.mxu0
  %v540 = vadd.f32 %v455, %v537
  %v541 = vxor.u32 %v540, 2147483648
  %v542 = vmul.f32 %v541, 1.442695
  %v543 = vpow.pop %v542
  %v544 = vadd.f32 %v543, 1.0
  %v545 = vrcp.pop %v544
  %v546 = vmul.f32 1.0, %v545
  %548 = vrot.lane.b32.xlu0 %v537, 64
  %v549 = vpop.permute.xlu0 %548
  %v551 = vmul.f32 %v546, %v549
  %553 = vrot.lane.b32.xlu0 %v551, 64
  %v554 = vpop.permute.xlu0 %553
  %v556 = vadd.f32 %v455, %v554
  %v557 = vtanh.pop %v556
  %v558 = vsub.f32 1.0, %v546
  %560 = vrot.lane.b32.xlu0 %v557, 96
  %v561 = vpop.permute.xlu0 %560
  %v563 = vmul.f32 %v558, %v561
  %564 = vrot.lane.b32.xlu0 %v454, 32
  %v565 = vpop.permute.xlu0 %564
  %v567 = vmul.f32 %v546, %v565
  %v568 = vadd.f32 %v563, %v567
  %v569 = vld [vmem:[%s13] sm:$0xff]
  %v570 = vld [vmem:[%s13 + $0x8] sm:$0xff]
  %v571 = vld [vmem:[%s13 + $0x10] sm:$0xff]
  %v572 = vld [vmem:[%s13 + $0x18] sm:$0xff]
  %v573 = vld [vmem:[%s13 + $0x20] sm:$0xff]
  %v574 = vld [vmem:[%s13 + $0x28] sm:$0xff]
  %v575 = vld [vmem:[%s13 + $0x30] sm:$0xff]
  %v576 = vld [vmem:[%s13 + $0x38] sm:$0xff]
  %578 = vrot.lane.b32.xlu0 %v568, 96
  %v579 = vpop.permute.xlu0 %578
  %v580 = vsel %vm134, %v579, 0
  %582 = vmatprep.subr.mxu0 0.0
  %583 = vmatpush1.msra.mxu0 0.0
  %584 = vmatprep.subr.mxu0 0.0
  %585 = vmatpush1.msra.mxu0 0.0
  %586 = vmatprep.subr.mxu0 0.0
  %587 = vmatpush1.msra.mxu0 0.0
  %588 = vmatprep.subr.mxu0 0.0
  %589 = vmatpush1.msra.mxu0 0.0
  %590 = vmatprep.subr.mxu0 0.0
  %591 = vmatpush1.msra.mxu0 0.0
  %592 = vmatprep.subr.mxu0 0.0
  %593 = vmatpush1.msra.mxu0 0.0
  %594 = vmatprep.subr.mxu0 0.0
  %595 = vmatpush1.msra.mxu0 0.0
  %596 = vmatprep.subr.mxu0 0.0
  %597 = vmatpush1.msra.mxu0 0.0
  %598 = vmatprep.subr.mxu0 0.0
  %599 = vmatpush1.msra.mxu0 0.0
  %600 = vmatprep.subr.mxu0 0.0
  %601 = vmatpush1.msra.mxu0 0.0
  %602 = vmatprep.subr.mxu0 0.0
  %603 = vmatpush1.msra.mxu0 0.0
  %604 = vmatprep.subr.mxu0 0.0
  %605 = vmatpush1.msra.mxu0 0.0
  %606 = vmatprep.subr.mxu0 %v576
  %607 = vmatpush1.msra.mxu0 %v575
  %608 = vmatprep.subr.mxu0 %v574
  %609 = vmatpush1.msra.mxu0 %v573
  %610 = vmatprep.subr.mxu0 %v572
  %611 = vmatpush1.msra.mxu0 %v571
  %612 = vmatprep.subr.mxu0 %v570
  %613 = vmatpush1.msra.mxu0 %v569
  %614 = vmatprep.subr.mxu0 0.0
  %615 = vmatpush2.msra.mxu0 0.0
  %616 = vmatprep.subr.mxu0 0.0
  %617 = vmatpush2.msra.mxu0 0.0
  %618 = vmatprep.subr.mxu0 0.0
  %619 = vmatpush2.msra.mxu0 0.0
  %620 = vmatprep.subr.mxu0 0.0
  %621 = vmatpush2.msra.mxu0 0.0
  %622 = vmatprep.subr.mxu0 0.0
  %623 = vmatpush2.msra.mxu0 0.0
  %624 = vmatprep.subr.mxu0 0.0
  %625 = vmatpush2.msra.mxu0 0.0
  %626 = vmatprep.subr.mxu0 0.0
  %627 = vmatpush2.msra.mxu0 0.0
  %628 = vmatprep.subr.mxu0 0.0
  %629 = vmatpush2.msra.mxu0 0.0
  %630 = vmatprep.subr.mxu0 0.0
  %631 = vmatpush2.msra.mxu0 0.0
  %632 = vmatprep.subr.mxu0 0.0
  %633 = vmatpush2.msra.mxu0 0.0
  %634 = vmatprep.subr.mxu0 0.0
  %635 = vmatpush2.msra.mxu0 0.0
  %636 = vmatprep.subr.mxu0 0.0
  %637 = vmatpush2.msra.mxu0 0.0
  %638 = vmatprep.subr.mxu0 0.0
  %639 = vmatpush2.msra.mxu0 0.0
  %640 = vmatprep.subr.mxu0 0.0
  %641 = vmatpush2.msra.mxu0 0.0
  %642 = vmatprep.subr.mxu0 0.0
  %643 = vmatpush2.msra.mxu0 0.0
  %644 = vmatprep.subr.mxu0 0.0
  %645 = vmatpush2.msra.mxu0 0.0
  %646 = vmatprep.mubr.f32.mxu0 0.0
  %647 = vmatmul.mubr.f32.gmra.mxu0 %v580
  %v648 = vpop.f32.mrf.mxu0
  %v649 = vadd.f32 0.0, %v648
  %v650 = vpop.f32.mrf.mxu0
  %v651 = vadd.f32 0.0, %v650
  %652 = vdwg.mxu0
  %v653 = vld [vmem:[%s14] sm:$0x1]
  %v655 = vlaneseq
  %v656 = vshrl.u32 %v655, 7
  %v657 = vsub.s32 0, %v656
  %v658 = vrot.slane %v653, %v657
  %v660 = vadd.f32 %v649, %v658
  %v661 = vld [vmem:[#allocation3] sm:$0xff]
  %v662 = vld [vmem:[#allocation3 + $0x8] sm:$0xff]
  %v663 = vld [vmem:[#allocation3 + $0x10] sm:$0xff]
  %v664 = vld [vmem:[#allocation3 + $0x18] sm:$0xff]
  %v665 = vld [vmem:[#allocation3 + $0x20] sm:$0xff]
  %v666 = vld [vmem:[#allocation3 + $0x28] sm:$0xff]
  %v667 = vld [vmem:[#allocation3 + $0x30] sm:$0xff]
  %v668 = vld [vmem:[#allocation3 + $0x38] sm:$0xff]
  %v670 = vcombine.high %v651, %v651
  %v672 = vunpack.c.l.s4 1966171168
  %v673 = vunpack.c.0.s8 %v672
  %v674 = vlaneseq
  %v675 = vshrl.u32 %v674, 7
  %v676 = vsub.s32 %v673, %v675
  %v677 = vrot.slane %v651, %v676
  %v679 = vunpack.c.l.s4 1966171168
  %v680 = vunpack.c.0.s8 %v679
  %v681 = vlaneseq
  %v682 = vshrl.u32 %v681, 7
  %v683 = vsub.s32 %v680, %v682
  %v684 = vrot.slane %v670, %v683
  %v685 = vcombine.high %v677, %v677
  %v686 = vcombine.high %v684, %v684
  %v688 = vunpack.c.l.s4 1966171168
  %v689 = vunpack.c.0.s8 %v688
  %v690 = vlaneseq
  %v691 = vshrl.u32 %v690, 7
  %v692 = vsub.s32 %v689, %v691
  %v693 = vrot.slane %v677, %v692
  %v695 = vunpack.c.l.s4 1966171168
  %v696 = vunpack.c.0.s8 %v695
  %v697 = vlaneseq
  %v698 = vshrl.u32 %v697, 7
  %v699 = vsub.s32 %v696, %v698
  %v700 = vrot.slane %v684, %v699
  %v702 = vunpack.c.l.s4 1966171168
  %v703 = vunpack.c.0.s8 %v702
  %v704 = vlaneseq
  %v705 = vshrl.u32 %v704, 7
  %v706 = vsub.s32 %v703, %v705
  %v707 = vrot.slane %v685, %v706
  %v709 = vunpack.c.l.s4 1966171168
  %v710 = vunpack.c.0.s8 %v709
  %v711 = vlaneseq
  %v712 = vshrl.u32 %v711, 7
  %v713 = vsub.s32 %v710, %v712
  %v714 = vrot.slane %v686, %v713
  %v715 = vcombine.high %v693, %v693
  %v716 = vcombine.high %v700, %v700
  %v717 = vcombine.high %v707, %v707
  %v718 = vcombine.high %v714, %v714
  %v719 = vlaneseq
  %v720 = vshrl.u32 %v719, 7
  %v721 = vsub.s32 0, %v720
  %v722 = vrot.slane %v693, %v721
  %v723 = vlaneseq
  %v724 = vshrl.u32 %v723, 7
  %v725 = vsub.s32 0, %v724
  %v726 = vrot.slane %v707, %v725
  %v727 = vlaneseq
  %v728 = vshrl.u32 %v727, 7
  %v729 = vsub.s32 0, %v728
  %v730 = vrot.slane %v715, %v729
  %v731 = vlaneseq
  %v732 = vshrl.u32 %v731, 7
  %v733 = vsub.s32 0, %v732
  %v734 = vrot.slane %v717, %v733
  %v735 = vlaneseq
  %v736 = vshrl.u32 %v735, 7
  %v737 = vsub.s32 0, %v736
  %v738 = vrot.slane %v700, %v737
  %v739 = vlaneseq
  %v740 = vshrl.u32 %v739, 7
  %v741 = vsub.s32 0, %v740
  %v742 = vrot.slane %v714, %v741
  %v743 = vlaneseq
  %v744 = vshrl.u32 %v743, 7
  %v745 = vsub.s32 0, %v744
  %v746 = vrot.slane %v716, %v745
  %v747 = vlaneseq
  %v748 = vshrl.u32 %v747, 7
  %v749 = vsub.s32 0, %v748
  %v750 = vrot.slane %v718, %v749
  %v759 = vadd.f32 %v661, %v722
  %v760 = vadd.f32 %v662, %v726
  %v761 = vadd.f32 %v663, %v730
  %v762 = vadd.f32 %v664, %v734
  %v763 = vadd.f32 %v665, %v738
  %v764 = vadd.f32 %v666, %v742
  %v765 = vadd.f32 %v667, %v746
  %v766 = vadd.f32 %v668, %v750
  %v767 = vtanh.pop %v759
  %v768 = vtanh.pop %v760
  %v769 = vtanh.pop %v761
  %v770 = vtanh.pop %v762
  %v771 = vtanh.pop %v763
  %v772 = vtanh.pop %v764
  %v773 = vtanh.pop %v765
  %v774 = vtanh.pop %v766
  %v775 = vld [vmem:[%s12] sm:$0x1]
  %v777 = vlaneseq
  %v778 = vshrl.u32 %v777, 7
  %v779 = vsub.s32 0, %v778
  %v780 = vrot.slane %v775, %v779
  %v782 = vmul.f32 %v767, %v780
  %v783 = vmul.f32 %v768, %v780
  %v784 = vmul.f32 %v769, %v780
  %v785 = vmul.f32 %v770, %v780
  %v786 = vmul.f32 %v771, %v780
  %v787 = vmul.f32 %v772, %v780
  %v788 = vmul.f32 %v773, %v780
  %v789 = vmul.f32 %v774, %v780
  %v790 = vsel %vm134, %v782, 0.0
  %791 = vadd.xlane.f32.xlu0 %v790
  %v792 = vpop.xlane.xlu0 %791
  %v793 = vsel %vm134, %v783, 0.0
  %794 = vadd.xlane.f32.xlu0 %v793
  %v795 = vpop.xlane.xlu0 %794
  %v796 = vsel %vm134, %v784, 0.0
  %797 = vadd.xlane.f32.xlu0 %v796
  %v798 = vpop.xlane.xlu0 %797
  %v799 = vsel %vm134, %v785, 0.0
  %800 = vadd.xlane.f32.xlu0 %v799
  %v801 = vpop.xlane.xlu0 %800
  %v802 = vsel %vm134, %v786, 0.0
  %803 = vadd.xlane.f32.xlu0 %v802
  %v804 = vpop.xlane.xlu0 %803
  %v805 = vsel %vm134, %v787, 0.0
  %806 = vadd.xlane.f32.xlu0 %v805
  %v807 = vpop.xlane.xlu0 %806
  %v808 = vsel %vm134, %v788, 0.0
  %809 = vadd.xlane.f32.xlu0 %v808
  %v810 = vpop.xlane.xlu0 %809
  %v811 = vsel %vm134, %v789, 0.0
  %812 = vadd.xlane.f32.xlu0 %v811
  %v813 = vpop.xlane.xlu0 %812
  %v814 = vld [vmem:[#allocation4] sm:$0xff]
  %v816 = vlaneseq
  %v817 = vshrl.u32 %v816, 7
  %v818 = vsub.s32 0, %v817
  %v819 = vrot.slane %v814, %v818
  %821 = vbcast.lane.b32.xlu0 %v819, 256
  %v822 = vpop.permute.xlu0 %821
  %v823 = vlaneseq
  %v824 = vshrl.u32 %v823, 7
  %v825 = vsub.s32 1, %v824
  %v826 = vrot.slane %v814, %v825
  %828 = vbcast.lane.b32.xlu0 %v826, 256
  %v829 = vpop.permute.xlu0 %828
  %v830 = vlaneseq
  %v831 = vshrl.u32 %v830, 7
  %v832 = vsub.s32 2, %v831
  %v833 = vrot.slane %v814, %v832
  %835 = vbcast.lane.b32.xlu0 %v833, 256
  %v836 = vpop.permute.xlu0 %835
  %v837 = vlaneseq
  %v838 = vshrl.u32 %v837, 7
  %v839 = vsub.s32 3, %v838
  %v840 = vrot.slane %v814, %v839
  %842 = vbcast.lane.b32.xlu0 %v840, 256
  %v843 = vpop.permute.xlu0 %842
  %v844 = vlaneseq
  %v845 = vshrl.u32 %v844, 7
  %v846 = vsub.s32 4, %v845
  %v847 = vrot.slane %v814, %v846
  %849 = vbcast.lane.b32.xlu0 %v847, 256
  %v850 = vpop.permute.xlu0 %849
  %v851 = vlaneseq
  %v852 = vshrl.u32 %v851, 7
  %v853 = vsub.s32 5, %v852
  %v854 = vrot.slane %v814, %v853
  %856 = vbcast.lane.b32.xlu0 %v854, 256
  %v857 = vpop.permute.xlu0 %856
  %v858 = vlaneseq
  %v859 = vshrl.u32 %v858, 7
  %v860 = vsub.s32 6, %v859
  %v861 = vrot.slane %v814, %v860
  %863 = vbcast.lane.b32.xlu0 %v861, 256
  %v864 = vpop.permute.xlu0 %863
  %v865 = vlaneseq
  %v866 = vshrl.u32 %v865, 7
  %v867 = vsub.s32 7, %v866
  %v868 = vrot.slane %v814, %v867
  %870 = vbcast.lane.b32.xlu0 %v868, 256
  %v871 = vpop.permute.xlu0 %870
  %v880 = vadd.f32 %v792, %v822
  %v881 = vadd.f32 %v795, %v829
  %v882 = vadd.f32 %v798, %v836
  %v883 = vadd.f32 %v801, %v843
  %v884 = vadd.f32 %v804, %v850
  %v885 = vadd.f32 %v807, %v857
  %v886 = vadd.f32 %v810, %v864
  %v887 = vadd.f32 %v813, %v871
  %v888 = vmul.f32 %v880, 1.442695
  %v889 = vpow.pop %v888
  %v890 = vmul.f32 %v881, 1.442695
  %v891 = vpow.pop %v890
  %v892 = vmul.f32 %v882, 1.442695
  %v893 = vpow.pop %v892
  %v894 = vmul.f32 %v883, 1.442695
  %v895 = vpow.pop %v894
  %v896 = vmul.f32 %v884, 1.442695
  %v897 = vpow.pop %v896
  %v898 = vmul.f32 %v885, 1.442695
  %v899 = vpow.pop %v898
  %v900 = vmul.f32 %v886, 1.442695
  %v901 = vpow.pop %v900
  %v902 = vmul.f32 %v887, 1.442695
  %v903 = vpow.pop %v902
  %912 = vset.pattern.permute.xlu0 0
  %913 = vperm.xlu0 %912, %v889
  %v914 = vpop.permute.xlu0 %913
  %915 = vset.pattern.permute.xlu0 0
  %916 = vperm.xlu0 %915, %v891
  %v917 = vpop.permute.xlu0 %916
  %918 = vset.pattern.permute.xlu0 0
  %919 = vperm.xlu0 %918, %v893
  %v920 = vpop.permute.xlu0 %919
  %921 = vset.pattern.permute.xlu0 0
  %922 = vperm.xlu0 %921, %v895
  %v923 = vpop.permute.xlu0 %922
  %924 = vset.pattern.permute.xlu0 0
  %925 = vperm.xlu0 %924, %v897
  %v926 = vpop.permute.xlu0 %925
  %927 = vset.pattern.permute.xlu0 0
  %928 = vperm.xlu0 %927, %v899
  %v929 = vpop.permute.xlu0 %928
  %930 = vset.pattern.permute.xlu0 0
  %931 = vperm.xlu0 %930, %v901
  %v932 = vpop.permute.xlu0 %931
  %933 = vset.pattern.permute.xlu0 0
  %934 = vperm.xlu0 %933, %v903
  %v935 = vpop.permute.xlu0 %934
  %v936 = vlaneseq
  %v937 = vand.u32 %v936, 127
  %v938 = vlaneseq
  %v939 = vshrl.u32 %v938, 7
  %v940 = vsub.s32 %v937, %v939
  %v941 = vrot.slane %v914, %v940
  %v942 = vlaneseq
  %v943 = vshrl.u32 %v942, 7
  %v944 = vsub.s32 %v937, %v943
  %v945 = vrot.slane %v917, %v944
  %v946 = vlaneseq
  %v947 = vshrl.u32 %v946, 7
  %v948 = vsub.s32 %v937, %v947
  %v949 = vrot.slane %v920, %v948
  %v950 = vlaneseq
  %v951 = vshrl.u32 %v950, 7
  %v952 = vsub.s32 %v937, %v951
  %v953 = vrot.slane %v923, %v952
  %v954 = vlaneseq
  %v955 = vshrl.u32 %v954, 7
  %v956 = vsub.s32 %v937, %v955
  %v957 = vrot.slane %v926, %v956
  %v958 = vlaneseq
  %v959 = vshrl.u32 %v958, 7
  %v960 = vsub.s32 %v937, %v959
  %v961 = vrot.slane %v929, %v960
  %v962 = vlaneseq
  %v963 = vshrl.u32 %v962, 7
  %v964 = vsub.s32 %v937, %v963
  %v965 = vrot.slane %v932, %v964
  %v966 = vlaneseq
  %v967 = vshrl.u32 %v966, 7
  %v968 = vsub.s32 %v937, %v967
  %v969 = vrot.slane %v935, %v968
  %vm970 = vcmask 1041409
  %v971 = vsel %vm970, %v945, %v941
  %vm972 = vcmask 1042434
  %v973 = vsel %vm972, %v949, %v971
  %vm974 = vcmask 1043459
  %v975 = vsel %vm974, %v953, %v973
  %vm976 = vcmask 1044484
  %v977 = vsel %vm976, %v957, %v975
  %vm978 = vcmask 1045509
  %v979 = vsel %vm978, %v961, %v977
  %vm980 = vcmask 1046534
  %v981 = vsel %vm980, %v965, %v979
  %vm982 = vcmask 1047559
  %v983 = vsel %vm982, %v969, %v981
  %v985 = vsel %vm452, %v983, 0.0
  %986 = vadd.xlane.f32.xlu0 %v985
  %v987 = vpop.xlane.xlu0 %986
  %v988 = vmax.f32 %v987, 1e-30
  %v989 = vrcp.pop %v988
  %v991 = vlaneseq
  %v992 = vshrl.u32 %v991, 7
  %v993 = vsub.s32 0, %v992
  %v994 = vrot.slane %v989, %v993
  %v995 = vlaneseq
  %v996 = vshrl.u32 %v995, 7
  %v997 = vsub.s32 1, %v996
  %v998 = vrot.slane %v989, %v997
  %v999 = vlaneseq
  %v1000 = vshrl.u32 %v999, 7
  %v1001 = vsub.s32 2, %v1000
  %v1002 = vrot.slane %v989, %v1001
  %v1003 = vlaneseq
  %v1004 = vshrl.u32 %v1003, 7
  %v1005 = vsub.s32 3, %v1004
  %v1006 = vrot.slane %v989, %v1005
  %v1007 = vlaneseq
  %v1008 = vshrl.u32 %v1007, 7
  %v1009 = vsub.s32 4, %v1008
  %v1010 = vrot.slane %v989, %v1009
  %v1011 = vlaneseq
  %v1012 = vshrl.u32 %v1011, 7
  %v1013 = vsub.s32 5, %v1012
  %v1014 = vrot.slane %v989, %v1013
  %v1015 = vlaneseq
  %v1016 = vshrl.u32 %v1015, 7
  %v1017 = vsub.s32 6, %v1016
  %v1018 = vrot.slane %v989, %v1017
  %v1019 = vlaneseq
  %v1020 = vshrl.u32 %v1019, 7
  %v1021 = vsub.s32 7, %v1020
  %v1022 = vrot.slane %v989, %v1021
  %v1031 = vmul.f32 %v889, %v994
  %v1032 = vmul.f32 %v891, %v998
  %v1033 = vmul.f32 %v893, %v1002
  %v1034 = vmul.f32 %v895, %v1006
  %v1035 = vmul.f32 %v897, %v1010
  %v1036 = vmul.f32 %v899, %v1014
  %v1037 = vmul.f32 %v901, %v1018
  %v1038 = vmul.f32 %v903, %v1022
  %v1039 = vpack.c.bf16 %v1031, %v1031
  %v1040 = vpack.c.bf16 %v1032, %v1032
  %v1041 = vpack.c.bf16 %v1033, %v1033
  %v1042 = vpack.c.bf16 %v1034, %v1034
  %v1043 = vpack.c.bf16 %v1035, %v1035
  %v1044 = vpack.c.bf16 %v1036, %v1036
  %v1045 = vpack.c.bf16 %v1037, %v1037
  %v1046 = vpack.c.bf16 %v1038, %v1038
  %v1047 = vld [vmem:[%s2] sm:$0xf]
  %v1048 = vld [vmem:[%s2 + $0x4] sm:$0xf]
  %v1049 = vld [vmem:[%s2 + $0x8] sm:$0xf]
  %v1050 = vld [vmem:[%s2 + $0xc] sm:$0xf]
  %v1051 = vld [vmem:[%s2 + $0x10] sm:$0xf]
  %v1052 = vld [vmem:[%s2 + $0x14] sm:$0xf]
  %v1053 = vld [vmem:[%s2 + $0x18] sm:$0xf]
  %v1054 = vld [vmem:[%s2 + $0x1c] sm:$0xf]
  %v1056 = vunpack.c.l.b16 %v1039
  %1057 = vset.pattern.permute.xlu0 0
  %1058 = vperm.xlu0 %1057, %v1056
  %v1059 = vpop.permute.xlu0 %1058
  %v1060 = vlaneseq
  %v1061 = vshrl.u32 %v1060, 7
  %v1062 = vsub.s32 %v937, %v1061
  %v1063 = vrot.slane %v1059, %v1062
  %v1064 = vpack.c.b16 %v1063, %v1063
  %v1066 = vsel %vm452, %v1064, 0
  %vm1068 = vcmask 1043456
  %v1070 = vsel %vm1068, %v1047, 0
  %1072 = vmatprep.subr.bf16.mxu0 0
  %1073 = vmatpush1.bf16.msra.mxu0 0
  %1074 = vmatprep.subr.bf16.mxu0 0
  %1075 = vmatpush1.bf16.msra.mxu0 0
  %1076 = vmatprep.subr.bf16.mxu0 0
  %1077 = vmatpush1.bf16.msra.mxu0 0
  %1078 = vmatprep.subr.bf16.mxu0 0
  %1079 = vmatpush1.bf16.msra.mxu0 0
  %1080 = vmatprep.subr.bf16.mxu0 0
  %1081 = vmatpush1.bf16.msra.mxu0 0
  %1082 = vmatprep.subr.bf16.mxu0 0
  %1083 = vmatpush1.bf16.msra.mxu0 0
  %1084 = vmatprep.subr.bf16.mxu0 0
  %1085 = vmatpush1.bf16.msra.mxu0 0
  %1086 = vmatprep.subr.bf16.mxu0 0
  %1087 = vmatpush1.bf16.msra.mxu0 %v1070
  %1088 = vmatprep.subr.bf16.mxu0 0
  %1089 = vmatpush2.bf16.msra.mxu0 0
  %1090 = vmatprep.subr.bf16.mxu0 0
  %1091 = vmatpush2.bf16.msra.mxu0 0
  %1092 = vmatprep.subr.bf16.mxu0 0
  %1093 = vmatpush2.bf16.msra.mxu0 0
  %1094 = vmatprep.subr.bf16.mxu0 0
  %1095 = vmatpush2.bf16.msra.mxu0 0
  %1096 = vmatprep.subr.bf16.mxu0 0
  %1097 = vmatpush2.bf16.msra.mxu0 0
  %1098 = vmatprep.subr.bf16.mxu0 0
  %1099 = vmatpush2.bf16.msra.mxu0 0
  %1100 = vmatprep.subr.bf16.mxu0 0
  %1101 = vmatpush2.bf16.msra.mxu0 0
  %1102 = vmatprep.subr.bf16.mxu0 0
  %1103 = vmatpush2.bf16.msra.mxu0 0
  %1104 = vmatprep.mubr.bf16.mxu0 0
  %1105 = vmatmul.mubr.bf16.gmra.mxu0 %v1066
  %v1106 = vpop.f32.mrf.mxu0
  %v1107 = vadd.f32 0.0, %v1106
  %v1108 = vpop.f32.mrf.mxu0
  %v1109 = vpop.f32.mrf.mxu0
  %v1110 = vpop.f32.mrf.mxu0
  %1111 = vdwg.mxu0
  %v1113 = vunpack.c.l.b16 %v1040
  %1114 = vset.pattern.permute.xlu0 0
  %1115 = vperm.xlu0 %1114, %v1113
  %v1116 = vpop.permute.xlu0 %1115
  %v1117 = vlaneseq
  %v1118 = vshrl.u32 %v1117, 7
  %v1119 = vsub.s32 %v937, %v1118
  %v1120 = vrot.slane %v1116, %v1119
  %v1121 = vpack.c.b16 %v1120, %v1120
  %v1123 = vsel %vm452, %v1121, 0
  %v1126 = vsel %vm1068, %v1048, 0
  %1128 = vmatprep.subr.bf16.mxu0 0
  %1129 = vmatpush1.bf16.msra.mxu0 0
  %1130 = vmatprep.subr.bf16.mxu0 0
  %1131 = vmatpush1.bf16.msra.mxu0 0
  %1132 = vmatprep.subr.bf16.mxu0 0
  %1133 = vmatpush1.bf16.msra.mxu0 0
  %1134 = vmatprep.subr.bf16.mxu0 0
  %1135 = vmatpush1.bf16.msra.mxu0 0
  %1136 = vmatprep.subr.bf16.mxu0 0
  %1137 = vmatpush1.bf16.msra.mxu0 0
  %1138 = vmatprep.subr.bf16.mxu0 0
  %1139 = vmatpush1.bf16.msra.mxu0 0
  %1140 = vmatprep.subr.bf16.mxu0 0
  %1141 = vmatpush1.bf16.msra.mxu0 0
  %1142 = vmatprep.subr.bf16.mxu0 0
  %1143 = vmatpush1.bf16.msra.mxu0 %v1126
  %1144 = vmatprep.subr.bf16.mxu0 0
  %1145 = vmatpush2.bf16.msra.mxu0 0
  %1146 = vmatprep.subr.bf16.mxu0 0
  %1147 = vmatpush2.bf16.msra.mxu0 0
  %1148 = vmatprep.subr.bf16.mxu0 0
  %1149 = vmatpush2.bf16.msra.mxu0 0
  %1150 = vmatprep.subr.bf16.mxu0 0
  %1151 = vmatpush2.bf16.msra.mxu0 0
  %1152 = vmatprep.subr.bf16.mxu0 0
  %1153 = vmatpush2.bf16.msra.mxu0 0
  %1154 = vmatprep.subr.bf16.mxu0 0
  %1155 = vmatpush2.bf16.msra.mxu0 0
  %1156 = vmatprep.subr.bf16.mxu0 0
  %1157 = vmatpush2.bf16.msra.mxu0 0
  %1158 = vmatprep.subr.bf16.mxu0 0
  %1159 = vmatpush2.bf16.msra.mxu0 0
  %1160 = vmatprep.mubr.bf16.mxu0 0
  %1161 = vmatmul.mubr.bf16.gmra.mxu0 %v1123
  %v1162 = vpop.f32.mrf.mxu0
  %v1163 = vadd.f32 0.0, %v1162
  %v1164 = vpop.f32.mrf.mxu0
  %v1165 = vpop.f32.mrf.mxu0
  %v1166 = vpop.f32.mrf.mxu0
  %1167 = vdwg.mxu0
  %v1169 = vunpack.c.l.b16 %v1041
  %1170 = vset.pattern.permute.xlu0 0
  %1171 = vperm.xlu0 %1170, %v1169
  %v1172 = vpop.permute.xlu0 %1171
  %v1173 = vlaneseq
  %v1174 = vshrl.u32 %v1173, 7
  %v1175 = vsub.s32 %v937, %v1174
  %v1176 = vrot.slane %v1172, %v1175
  %v1177 = vpack.c.b16 %v1176, %v1176
  %v1179 = vsel %vm452, %v1177, 0
  %v1182 = vsel %vm1068, %v1049, 0
  %1184 = vmatprep.subr.bf16.mxu0 0
  %1185 = vmatpush1.bf16.msra.mxu0 0
  %1186 = vmatprep.subr.bf16.mxu0 0
  %1187 = vmatpush1.bf16.msra.mxu0 0
  %1188 = vmatprep.subr.bf16.mxu0 0
  %1189 = vmatpush1.bf16.msra.mxu0 0
  %1190 = vmatprep.subr.bf16.mxu0 0
  %1191 = vmatpush1.bf16.msra.mxu0 0
  %1192 = vmatprep.subr.bf16.mxu0 0
  %1193 = vmatpush1.bf16.msra.mxu0 0
  %1194 = vmatprep.subr.bf16.mxu0 0
  %1195 = vmatpush1.bf16.msra.mxu0 0
  %1196 = vmatprep.subr.bf16.mxu0 0
  %1197 = vmatpush1.bf16.msra.mxu0 0
  %1198 = vmatprep.subr.bf16.mxu0 0
  %1199 = vmatpush1.bf16.msra.mxu0 %v1182
  %1200 = vmatprep.subr.bf16.mxu0 0
  %1201 = vmatpush2.bf16.msra.mxu0 0
  %1202 = vmatprep.subr.bf16.mxu0 0
  %1203 = vmatpush2.bf16.msra.mxu0 0
  %1204 = vmatprep.subr.bf16.mxu0 0
  %1205 = vmatpush2.bf16.msra.mxu0 0
  %1206 = vmatprep.subr.bf16.mxu0 0
  %1207 = vmatpush2.bf16.msra.mxu0 0
  %1208 = vmatprep.subr.bf16.mxu0 0
  %1209 = vmatpush2.bf16.msra.mxu0 0
  %1210 = vmatprep.subr.bf16.mxu0 0
  %1211 = vmatpush2.bf16.msra.mxu0 0
  %1212 = vmatprep.subr.bf16.mxu0 0
  %1213 = vmatpush2.bf16.msra.mxu0 0
  %1214 = vmatprep.subr.bf16.mxu0 0
  %1215 = vmatpush2.bf16.msra.mxu0 0
  %1216 = vmatprep.mubr.bf16.mxu0 0
  %1217 = vmatmul.mubr.bf16.gmra.mxu0 %v1179
  %v1218 = vpop.f32.mrf.mxu0
  %v1219 = vadd.f32 0.0, %v1218
  %v1220 = vpop.f32.mrf.mxu0
  %v1221 = vpop.f32.mrf.mxu0
  %v1222 = vpop.f32.mrf.mxu0
  %1223 = vdwg.mxu0
  %v1225 = vunpack.c.l.b16 %v1042
  %1226 = vset.pattern.permute.xlu0 0
  %1227 = vperm.xlu0 %1226, %v1225
  %v1228 = vpop.permute.xlu0 %1227
  %v1229 = vlaneseq
  %v1230 = vshrl.u32 %v1229, 7
  %v1231 = vsub.s32 %v937, %v1230
  %v1232 = vrot.slane %v1228, %v1231
  %v1233 = vpack.c.b16 %v1232, %v1232
  %v1235 = vsel %vm452, %v1233, 0
  %v1238 = vsel %vm1068, %v1050, 0
  %1240 = vmatprep.subr.bf16.mxu0 0
  %1241 = vmatpush1.bf16.msra.mxu0 0
  %1242 = vmatprep.subr.bf16.mxu0 0
  %1243 = vmatpush1.bf16.msra.mxu0 0
  %1244 = vmatprep.subr.bf16.mxu0 0
  %1245 = vmatpush1.bf16.msra.mxu0 0
  %1246 = vmatprep.subr.bf16.mxu0 0
  %1247 = vmatpush1.bf16.msra.mxu0 0
  %1248 = vmatprep.subr.bf16.mxu0 0
  %1249 = vmatpush1.bf16.msra.mxu0 0
  %1250 = vmatprep.subr.bf16.mxu0 0
  %1251 = vmatpush1.bf16.msra.mxu0 0
  %1252 = vmatprep.subr.bf16.mxu0 0
  %1253 = vmatpush1.bf16.msra.mxu0 0
  %1254 = vmatprep.subr.bf16.mxu0 0
  %1255 = vmatpush1.bf16.msra.mxu0 %v1238
  %1256 = vmatprep.subr.bf16.mxu0 0
  %1257 = vmatpush2.bf16.msra.mxu0 0
  %1258 = vmatprep.subr.bf16.mxu0 0
  %1259 = vmatpush2.bf16.msra.mxu0 0
  %1260 = vmatprep.subr.bf16.mxu0 0
  %1261 = vmatpush2.bf16.msra.mxu0 0
  %1262 = vmatprep.subr.bf16.mxu0 0
  %1263 = vmatpush2.bf16.msra.mxu0 0
  %1264 = vmatprep.subr.bf16.mxu0 0
  %1265 = vmatpush2.bf16.msra.mxu0 0
  %1266 = vmatprep.subr.bf16.mxu0 0
  %1267 = vmatpush2.bf16.msra.mxu0 0
  %1268 = vmatprep.subr.bf16.mxu0 0
  %1269 = vmatpush2.bf16.msra.mxu0 0
  %1270 = vmatprep.subr.bf16.mxu0 0
  %1271 = vmatpush2.bf16.msra.mxu0 0
  %1272 = vmatprep.mubr.bf16.mxu0 0
  %1273 = vmatmul.mubr.bf16.gmra.mxu0 %v1235
  %v1274 = vpop.f32.mrf.mxu0
  %v1275 = vadd.f32 0.0, %v1274
  %v1276 = vpop.f32.mrf.mxu0
  %v1277 = vpop.f32.mrf.mxu0
  %v1278 = vpop.f32.mrf.mxu0
  %1279 = vdwg.mxu0
  %v1281 = vunpack.c.l.b16 %v1043
  %1282 = vset.pattern.permute.xlu0 0
  %1283 = vperm.xlu0 %1282, %v1281
  %v1284 = vpop.permute.xlu0 %1283
  %v1285 = vlaneseq
  %v1286 = vshrl.u32 %v1285, 7
  %v1287 = vsub.s32 %v937, %v1286
  %v1288 = vrot.slane %v1284, %v1287
  %v1289 = vpack.c.b16 %v1288, %v1288
  %v1291 = vsel %vm452, %v1289, 0
  %v1294 = vsel %vm1068, %v1051, 0
  %1296 = vmatprep.subr.bf16.mxu0 0
  %1297 = vmatpush1.bf16.msra.mxu0 0
  %1298 = vmatprep.subr.bf16.mxu0 0
  %1299 = vmatpush1.bf16.msra.mxu0 0
  %1300 = vmatprep.subr.bf16.mxu0 0
  %1301 = vmatpush1.bf16.msra.mxu0 0
  %1302 = vmatprep.subr.bf16.mxu0 0
  %1303 = vmatpush1.bf16.msra.mxu0 0
  %1304 = vmatprep.subr.bf16.mxu0 0
  %1305 = vmatpush1.bf16.msra.mxu0 0
  %1306 = vmatprep.subr.bf16.mxu0 0
  %1307 = vmatpush1.bf16.msra.mxu0 0
  %1308 = vmatprep.subr.bf16.mxu0 0
  %1309 = vmatpush1.bf16.msra.mxu0 0
  %1310 = vmatprep.subr.bf16.mxu0 0
  %1311 = vmatpush1.bf16.msra.mxu0 %v1294
  %1312 = vmatprep.subr.bf16.mxu0 0
  %1313 = vmatpush2.bf16.msra.mxu0 0
  %1314 = vmatprep.subr.bf16.mxu0 0
  %1315 = vmatpush2.bf16.msra.mxu0 0
  %1316 = vmatprep.subr.bf16.mxu0 0
  %1317 = vmatpush2.bf16.msra.mxu0 0
  %1318 = vmatprep.subr.bf16.mxu0 0
  %1319 = vmatpush2.bf16.msra.mxu0 0
  %1320 = vmatprep.subr.bf16.mxu0 0
  %1321 = vmatpush2.bf16.msra.mxu0 0
  %1322 = vmatprep.subr.bf16.mxu0 0
  %1323 = vmatpush2.bf16.msra.mxu0 0
  %1324 = vmatprep.subr.bf16.mxu0 0
  %1325 = vmatpush2.bf16.msra.mxu0 0
  %1326 = vmatprep.subr.bf16.mxu0 0
  %1327 = vmatpush2.bf16.msra.mxu0 0
  %1328 = vmatprep.mubr.bf16.mxu0 0
  %1329 = vmatmul.mubr.bf16.gmra.mxu0 %v1291
  %v1330 = vpop.f32.mrf.mxu0
  %v1331 = vadd.f32 0.0, %v1330
  %v1332 = vpop.f32.mrf.mxu0
  %v1333 = vpop.f32.mrf.mxu0
  %v1334 = vpop.f32.mrf.mxu0
  %1335 = vdwg.mxu0
  %v1337 = vunpack.c.l.b16 %v1044
  %1338 = vset.pattern.permute.xlu0 0
  %1339 = vperm.xlu0 %1338, %v1337
  %v1340 = vpop.permute.xlu0 %1339
  %v1341 = vlaneseq
  %v1342 = vshrl.u32 %v1341, 7
  %v1343 = vsub.s32 %v937, %v1342
  %v1344 = vrot.slane %v1340, %v1343
  %v1345 = vpack.c.b16 %v1344, %v1344
  %v1347 = vsel %vm452, %v1345, 0
  %v1350 = vsel %vm1068, %v1052, 0
  %1352 = vmatprep.subr.bf16.mxu0 0
  %1353 = vmatpush1.bf16.msra.mxu0 0
  %1354 = vmatprep.subr.bf16.mxu0 0
  %1355 = vmatpush1.bf16.msra.mxu0 0
  %1356 = vmatprep.subr.bf16.mxu0 0
  %1357 = vmatpush1.bf16.msra.mxu0 0
  %1358 = vmatprep.subr.bf16.mxu0 0
  %1359 = vmatpush1.bf16.msra.mxu0 0
  %1360 = vmatprep.subr.bf16.mxu0 0
  %1361 = vmatpush1.bf16.msra.mxu0 0
  %1362 = vmatprep.subr.bf16.mxu0 0
  %1363 = vmatpush1.bf16.msra.mxu0 0
  %1364 = vmatprep.subr.bf16.mxu0 0
  %1365 = vmatpush1.bf16.msra.mxu0 0
  %1366 = vmatprep.subr.bf16.mxu0 0
  %1367 = vmatpush1.bf16.msra.mxu0 %v1350
  %1368 = vmatprep.subr.bf16.mxu0 0
  %1369 = vmatpush2.bf16.msra.mxu0 0
  %1370 = vmatprep.subr.bf16.mxu0 0
  %1371 = vmatpush2.bf16.msra.mxu0 0
  %1372 = vmatprep.subr.bf16.mxu0 0
  %1373 = vmatpush2.bf16.msra.mxu0 0
  %1374 = vmatprep.subr.bf16.mxu0 0
  %1375 = vmatpush2.bf16.msra.mxu0 0
  %1376 = vmatprep.subr.bf16.mxu0 0
  %1377 = vmatpush2.bf16.msra.mxu0 0
  %1378 = vmatprep.subr.bf16.mxu0 0
  %1379 = vmatpush2.bf16.msra.mxu0 0
  %1380 = vmatprep.subr.bf16.mxu0 0
  %1381 = vmatpush2.bf16.msra.mxu0 0
  %1382 = vmatprep.subr.bf16.mxu0 0
  %1383 = vmatpush2.bf16.msra.mxu0 0
  %1384 = vmatprep.mubr.bf16.mxu0 0
  %1385 = vmatmul.mubr.bf16.gmra.mxu0 %v1347
  %v1386 = vpop.f32.mrf.mxu0
  %v1387 = vadd.f32 0.0, %v1386
  %v1388 = vpop.f32.mrf.mxu0
  %v1389 = vpop.f32.mrf.mxu0
  %v1390 = vpop.f32.mrf.mxu0
  %1391 = vdwg.mxu0
  %v1393 = vunpack.c.l.b16 %v1045
  %1394 = vset.pattern.permute.xlu0 0
  %1395 = vperm.xlu0 %1394, %v1393
  %v1396 = vpop.permute.xlu0 %1395
  %v1397 = vlaneseq
  %v1398 = vshrl.u32 %v1397, 7
  %v1399 = vsub.s32 %v937, %v1398
  %v1400 = vrot.slane %v1396, %v1399
  %v1401 = vpack.c.b16 %v1400, %v1400
  %v1403 = vsel %vm452, %v1401, 0
  %v1406 = vsel %vm1068, %v1053, 0
  %1408 = vmatprep.subr.bf16.mxu0 0
  %1409 = vmatpush1.bf16.msra.mxu0 0
  %1410 = vmatprep.subr.bf16.mxu0 0
  %1411 = vmatpush1.bf16.msra.mxu0 0
  %1412 = vmatprep.subr.bf16.mxu0 0
  %1413 = vmatpush1.bf16.msra.mxu0 0
  %1414 = vmatprep.subr.bf16.mxu0 0
  %1415 = vmatpush1.bf16.msra.mxu0 0
  %1416 = vmatprep.subr.bf16.mxu0 0
  %1417 = vmatpush1.bf16.msra.mxu0 0
  %1418 = vmatprep.subr.bf16.mxu0 0
  %1419 = vmatpush1.bf16.msra.mxu0 0
  %1420 = vmatprep.subr.bf16.mxu0 0
  %1421 = vmatpush1.bf16.msra.mxu0 0
  %1422 = vmatprep.subr.bf16.mxu0 0
  %1423 = vmatpush1.bf16.msra.mxu0 %v1406
  %1424 = vmatprep.subr.bf16.mxu0 0
  %1425 = vmatpush2.bf16.msra.mxu0 0
  %1426 = vmatprep.subr.bf16.mxu0 0
  %1427 = vmatpush2.bf16.msra.mxu0 0
  %1428 = vmatprep.subr.bf16.mxu0 0
  %1429 = vmatpush2.bf16.msra.mxu0 0
  %1430 = vmatprep.subr.bf16.mxu0 0
  %1431 = vmatpush2.bf16.msra.mxu0 0
  %1432 = vmatprep.subr.bf16.mxu0 0
  %1433 = vmatpush2.bf16.msra.mxu0 0
  %1434 = vmatprep.subr.bf16.mxu0 0
  %1435 = vmatpush2.bf16.msra.mxu0 0
  %1436 = vmatprep.subr.bf16.mxu0 0
  %1437 = vmatpush2.bf16.msra.mxu0 0
  %1438 = vmatprep.subr.bf16.mxu0 0
  %1439 = vmatpush2.bf16.msra.mxu0 0
  %1440 = vmatprep.mubr.bf16.mxu0 0
  %1441 = vmatmul.mubr.bf16.gmra.mxu0 %v1403
  %v1442 = vpop.f32.mrf.mxu0
  %v1443 = vadd.f32 0.0, %v1442
  %v1444 = vpop.f32.mrf.mxu0
  %v1445 = vpop.f32.mrf.mxu0
  %v1446 = vpop.f32.mrf.mxu0
  %1447 = vdwg.mxu0
  %v1449 = vunpack.c.l.b16 %v1046
  %1450 = vset.pattern.permute.xlu0 0
  %1451 = vperm.xlu0 %1450, %v1449
  %v1452 = vpop.permute.xlu0 %1451
  %v1453 = vlaneseq
  %v1454 = vshrl.u32 %v1453, 7
  %v1455 = vsub.s32 %v937, %v1454
  %v1456 = vrot.slane %v1452, %v1455
  %v1457 = vpack.c.b16 %v1456, %v1456
  %v1459 = vsel %vm452, %v1457, 0
  %v1462 = vsel %vm1068, %v1054, 0
  %1464 = vmatprep.subr.bf16.mxu0 0
  %1465 = vmatpush1.bf16.msra.mxu0 0
  %1466 = vmatprep.subr.bf16.mxu0 0
  %1467 = vmatpush1.bf16.msra.mxu0 0
  %1468 = vmatprep.subr.bf16.mxu0 0
  %1469 = vmatpush1.bf16.msra.mxu0 0
  %1470 = vmatprep.subr.bf16.mxu0 0
  %1471 = vmatpush1.bf16.msra.mxu0 0
  %1472 = vmatprep.subr.bf16.mxu0 0
  %1473 = vmatpush1.bf16.msra.mxu0 0
  %1474 = vmatprep.subr.bf16.mxu0 0
  %1475 = vmatpush1.bf16.msra.mxu0 0
  %1476 = vmatprep.subr.bf16.mxu0 0
  %1477 = vmatpush1.bf16.msra.mxu0 0
  %1478 = vmatprep.subr.bf16.mxu0 0
  %1479 = vmatpush1.bf16.msra.mxu0 %v1462
  %1480 = vmatprep.subr.bf16.mxu0 0
  %1481 = vmatpush2.bf16.msra.mxu0 0
  %1482 = vmatprep.subr.bf16.mxu0 0
  %1483 = vmatpush2.bf16.msra.mxu0 0
  %1484 = vmatprep.subr.bf16.mxu0 0
  %1485 = vmatpush2.bf16.msra.mxu0 0
  %1486 = vmatprep.subr.bf16.mxu0 0
  %1487 = vmatpush2.bf16.msra.mxu0 0
  %1488 = vmatprep.subr.bf16.mxu0 0
  %1489 = vmatpush2.bf16.msra.mxu0 0
  %1490 = vmatprep.subr.bf16.mxu0 0
  %1491 = vmatpush2.bf16.msra.mxu0 0
  %1492 = vmatprep.subr.bf16.mxu0 0
  %1493 = vmatpush2.bf16.msra.mxu0 0
  %1494 = vmatprep.subr.bf16.mxu0 0
  %1495 = vmatpush2.bf16.msra.mxu0 0
  %1496 = vmatprep.mubr.bf16.mxu0 0
  %1497 = vmatmul.mubr.bf16.gmra.mxu0 %v1459
  %v1498 = vpop.f32.mrf.mxu0
  %v1499 = vadd.f32 0.0, %v1498
  %v1500 = vpop.f32.mrf.mxu0
  %v1501 = vpop.f32.mrf.mxu0
  %v1502 = vpop.f32.mrf.mxu0
  %1503 = vdwg.mxu0
  %v1504 = vld [vmem:[%s15] sm:$0xff]
  %v1505 = vld [vmem:[%s15 + $0x8] sm:$0xff]
  %v1506 = vld [vmem:[%s15 + $0x10] sm:$0xff]
  %v1507 = vld [vmem:[%s15 + $0x18] sm:$0xff]
  %v1508 = vld [vmem:[%s16] sm:$0x1]
  %v1510 = vlaneseq
  %v1511 = vshrl.u32 %v1510, 7
  %v1512 = vsub.s32 0, %v1511
  %v1513 = vrot.slane %v1508, %v1512
  %v1523 = vrot.slane %v1163, 7
  %v1524 = vsel %vm970, %v1523, %v1107
  %v1525 = vrot.slane %v1219, 6
  %v1526 = vsel %vm972, %v1525, %v1524
  %v1527 = vrot.slane %v1275, 5
  %v1528 = vsel %vm974, %v1527, %v1526
  %v1529 = vrot.slane %v1331, 4
  %v1530 = vsel %vm976, %v1529, %v1528
  %v1531 = vrot.slane %v1387, 3
  %v1532 = vsel %vm978, %v1531, %v1530
  %v1533 = vrot.slane %v1443, 2
  %v1534 = vsel %vm980, %v1533, %v1532
  %v1535 = vrot.slane %v1499, 1
  %v1536 = vsel %vm982, %v1535, %v1534
  %v1537 = vsel %vm134, %v1536, 0
  %1539 = vmatprep.subr.mxu0 0.0
  %1540 = vmatpush1.msra.mxu0 0.0
  %1541 = vmatprep.subr.mxu0 0.0
  %1542 = vmatpush1.msra.mxu0 0.0
  %1543 = vmatprep.subr.mxu0 0.0
  %1544 = vmatpush1.msra.mxu0 0.0
  %1545 = vmatprep.subr.mxu0 0.0
  %1546 = vmatpush1.msra.mxu0 0.0
  %1547 = vmatprep.subr.mxu0 0.0
  %1548 = vmatpush1.msra.mxu0 0.0
  %1549 = vmatprep.subr.mxu0 0.0
  %1550 = vmatpush1.msra.mxu0 0.0
  %1551 = vmatprep.subr.mxu0 0.0
  %1552 = vmatpush1.msra.mxu0 0.0
  %1553 = vmatprep.subr.mxu0 0.0
  %1554 = vmatpush1.msra.mxu0 0.0
  %1555 = vmatprep.subr.mxu0 0.0
  %1556 = vmatpush1.msra.mxu0 0.0
  %1557 = vmatprep.subr.mxu0 0.0
  %1558 = vmatpush1.msra.mxu0 0.0
  %1559 = vmatprep.subr.mxu0 0.0
  %1560 = vmatpush1.msra.mxu0 0.0
  %1561 = vmatprep.subr.mxu0 0.0
  %1562 = vmatpush1.msra.mxu0 0.0
  %1563 = vmatprep.subr.mxu0 0.0
  %1564 = vmatpush1.msra.mxu0 %v1507
  %1565 = vmatprep.subr.mxu0 0.0
  %1566 = vmatpush1.msra.mxu0 %v1506
  %1567 = vmatprep.subr.mxu0 0.0
  %1568 = vmatpush1.msra.mxu0 %v1505
  %1569 = vmatprep.subr.mxu0 0.0
  %1570 = vmatpush1.msra.mxu0 %v1504
  %1571 = vmatprep.subr.mxu0 0.0
  %1572 = vmatpush2.msra.mxu0 0.0
  %1573 = vmatprep.subr.mxu0 0.0
  %1574 = vmatpush2.msra.mxu0 0.0
  %1575 = vmatprep.subr.mxu0 0.0
  %1576 = vmatpush2.msra.mxu0 0.0
  %1577 = vmatprep.subr.mxu0 0.0
  %1578 = vmatpush2.msra.mxu0 0.0
  %1579 = vmatprep.subr.mxu0 0.0
  %1580 = vmatpush2.msra.mxu0 0.0
  %1581 = vmatprep.subr.mxu0 0.0
  %1582 = vmatpush2.msra.mxu0 0.0
  %1583 = vmatprep.subr.mxu0 0.0
  %1584 = vmatpush2.msra.mxu0 0.0
  %1585 = vmatprep.subr.mxu0 0.0
  %1586 = vmatpush2.msra.mxu0 0.0
  %1587 = vmatprep.subr.mxu0 0.0
  %1588 = vmatpush2.msra.mxu0 0.0
  %1589 = vmatprep.subr.mxu0 0.0
  %1590 = vmatpush2.msra.mxu0 0.0
  %1591 = vmatprep.subr.mxu0 0.0
  %1592 = vmatpush2.msra.mxu0 0.0
  %1593 = vmatprep.subr.mxu0 0.0
  %1594 = vmatpush2.msra.mxu0 0.0
  %1595 = vmatprep.subr.mxu0 0.0
  %1596 = vmatpush2.msra.mxu0 0.0
  %1597 = vmatprep.subr.mxu0 0.0
  %1598 = vmatpush2.msra.mxu0 0.0
  %1599 = vmatprep.subr.mxu0 0.0
  %1600 = vmatpush2.msra.mxu0 0.0
  %1601 = vmatprep.subr.mxu0 0.0
  %1602 = vmatpush2.msra.mxu0 0.0
  %1603 = vmatprep.mubr.f32.mxu0 0.0
  %1604 = vmatmul.mubr.f32.gmra.mxu0 %v1537
  %v1605 = vpop.f32.mrf.mxu0
  %v1606 = vadd.f32 %v1513, %v1605
  %v1607 = vpop.f32.mrf.mxu0
  %1608 = vdwg.mxu0
  %v1609 = vadd.f32 %v1606, %v660
  %v1610 = vxor.u32 %v1609, 2147483648
  %v1611 = vmul.f32 %v1610, 1.442695
  %v1612 = vpow.pop %v1611
  %v1613 = vadd.f32 %v1612, 1.0
  %v1614 = vrcp.pop %v1613
  %v1615 = vmul.f32 1.0, %v1614
  %1617 = vrot.lane.b32.xlu0 %v660, 64
  %v1618 = vpop.permute.xlu0 %1617
  %v1620 = vmul.f32 %v1615, %v1618
  %1622 = vrot.lane.b32.xlu0 %v1620, 64
  %v1623 = vpop.permute.xlu0 %1622
  %v1625 = vadd.f32 %v1606, %v1623
  %v1626 = vtanh.pop %v1625
  %v1627 = vsub.f32 1.0, %v1615
  %1629 = vrot.lane.b32.xlu0 %v1626, 96
  %v1630 = vpop.permute.xlu0 %1629
  %v1632 = vmul.f32 %v1627, %v1630
  %v1633 = vmul.f32 %v1615, %v568
  %v1634 = vadd.f32 %v1632, %v1633
  %v1635 = vpack.c.bf16 %v1634, %v1634
  %v1637 = vunpack.c.l.b16 %v1635
  %v1638 = vpack.c.b16 %v1637, %v1637
  %1639 = vrot.lane.b32.xlu0 %v1638, 96
  %v1640 = vpop.permute.xlu0 %1639
  %1642 = vst.msk [vmem:[#allocation5 + $0x4] sm:$0xf] %vm89, %v1640
  %v1643 = vpack.c.bf16 %v1107, %v1107
  %v1644 = vpack.c.bf16 %v1163, %v1163
  %v1645 = vpack.c.bf16 %v1219, %v1219
  %v1646 = vpack.c.bf16 %v1275, %v1275
  %v1647 = vpack.c.bf16 %v1331, %v1331
  %v1648 = vpack.c.bf16 %v1387, %v1387
  %v1649 = vpack.c.bf16 %v1443, %v1443
  %v1650 = vpack.c.bf16 %v1499, %v1499
  %v1659 = vunpack.c.l.b16 %v1643
  %v1660 = vunpack.c.l.b16 %v1644
  %v1661 = vunpack.c.l.b16 %v1645
  %v1662 = vunpack.c.l.b16 %v1646
  %v1663 = vunpack.c.l.b16 %v1647
  %v1664 = vunpack.c.l.b16 %v1648
  %v1665 = vunpack.c.l.b16 %v1649
  %v1666 = vunpack.c.l.b16 %v1650
  %v1667 = vpack.c.b16 %v1659, %v1659
  %v1668 = vpack.c.b16 %v1660, %v1660
  %v1669 = vpack.c.b16 %v1661, %v1661
  %v1670 = vpack.c.b16 %v1662, %v1662
  %v1671 = vpack.c.b16 %v1663, %v1663
  %v1672 = vpack.c.b16 %v1664, %v1664
  %v1673 = vpack.c.b16 %v1665, %v1665
  %v1674 = vpack.c.b16 %v1666, %v1666
  %v1675 = vunpack.c.l.b16 %v1667
  %v1676 = vunpack.c.l.b16 %v1668
  %v1677 = vunpack.c.l.b16 %v1669
  %v1678 = vunpack.c.l.b16 %v1670
  %v1679 = vunpack.c.l.b16 %v1671
  %v1680 = vunpack.c.l.b16 %v1672
  %v1681 = vunpack.c.l.b16 %v1673
  %v1682 = vunpack.c.l.b16 %v1674
  %v1683 = vrot.slane %v1676, 7
  %v1684 = vsel %vm970, %v1683, %v1675
  %v1685 = vrot.slane %v1677, 6
  %v1686 = vsel %vm972, %v1685, %v1684
  %v1687 = vrot.slane %v1678, 5
  %v1688 = vsel %vm974, %v1687, %v1686
  %v1689 = vrot.slane %v1679, 4
  %v1690 = vsel %vm976, %v1689, %v1688
  %v1691 = vrot.slane %v1680, 3
  %v1692 = vsel %vm978, %v1691, %v1690
  %v1693 = vrot.slane %v1681, 2
  %v1694 = vsel %vm980, %v1693, %v1692
  %v1695 = vrot.slane %v1682, 1
  %v1696 = vsel %vm982, %v1695, %v1694
  %v1697 = vpack.c.b16 %v1696, %v1696
  %1699 = vst.msk [vmem:[#allocation5 + $0x8] sm:$0xf] %vm89, %v1697
  %s1700 = scalar_lea.vmem [#allocation2], 8
  %v1701 = vld [vmem:[%s1700] sm:$0xff]
  %v1702 = vld [vmem:[%s8] sm:$0xff]
  %v1703 = vld [vmem:[%s8 + $0x8] sm:$0xff]
  %v1704 = vld [vmem:[%s8 + $0x10] sm:$0xff]
  %v1705 = vld [vmem:[%s8 + $0x18] sm:$0xff]
  %v1706 = vld [vmem:[%s9] sm:$0x1]
  %v1708 = vlaneseq
  %v1709 = vshrl.u32 %v1708, 7
  %v1710 = vsub.s32 0, %v1709
  %v1711 = vrot.slane %v1706, %v1710
  %1714 = vrot.lane.b32.xlu0 %v1634, 96
  %v1715 = vpop.permute.xlu0 %1714
  %v1716 = vsel %vm134, %v1715, 0
  %1718 = vmatprep.subr.mxu0 0.0
  %1719 = vmatpush1.msra.mxu0 0.0
  %1720 = vmatprep.subr.mxu0 0.0
  %1721 = vmatpush1.msra.mxu0 0.0
  %1722 = vmatprep.subr.mxu0 0.0
  %1723 = vmatpush1.msra.mxu0 0.0
  %1724 = vmatprep.subr.mxu0 0.0
  %1725 = vmatpush1.msra.mxu0 0.0
  %1726 = vmatprep.subr.mxu0 0.0
  %1727 = vmatpush1.msra.mxu0 0.0
  %1728 = vmatprep.subr.mxu0 0.0
  %1729 = vmatpush1.msra.mxu0 0.0
  %1730 = vmatprep.subr.mxu0 0.0
  %1731 = vmatpush1.msra.mxu0 0.0
  %1732 = vmatprep.subr.mxu0 0.0
  %1733 = vmatpush1.msra.mxu0 0.0
  %1734 = vmatprep.subr.mxu0 0.0
  %1735 = vmatpush1.msra.mxu0 0.0
  %1736 = vmatprep.subr.mxu0 0.0
  %1737 = vmatpush1.msra.mxu0 0.0
  %1738 = vmatprep.subr.mxu0 0.0
  %1739 = vmatpush1.msra.mxu0 0.0
  %1740 = vmatprep.subr.mxu0 0.0
  %1741 = vmatpush1.msra.mxu0 0.0
  %1742 = vmatprep.subr.mxu0 0.0
  %1743 = vmatpush1.msra.mxu0 %v1705
  %1744 = vmatprep.subr.mxu0 0.0
  %1745 = vmatpush1.msra.mxu0 %v1704
  %1746 = vmatprep.subr.mxu0 0.0
  %1747 = vmatpush1.msra.mxu0 %v1703
  %1748 = vmatprep.subr.mxu0 0.0
  %1749 = vmatpush1.msra.mxu0 %v1702
  %1750 = vmatprep.subr.mxu0 0.0
  %1751 = vmatpush2.msra.mxu0 0.0
  %1752 = vmatprep.subr.mxu0 0.0
  %1753 = vmatpush2.msra.mxu0 0.0
  %1754 = vmatprep.subr.mxu0 0.0
  %1755 = vmatpush2.msra.mxu0 0.0
  %1756 = vmatprep.subr.mxu0 0.0
  %1757 = vmatpush2.msra.mxu0 0.0
  %1758 = vmatprep.subr.mxu0 0.0
  %1759 = vmatpush2.msra.mxu0 0.0
  %1760 = vmatprep.subr.mxu0 0.0
  %1761 = vmatpush2.msra.mxu0 0.0
  %1762 = vmatprep.subr.mxu0 0.0
  %1763 = vmatpush2.msra.mxu0 0.0
  %1764 = vmatprep.subr.mxu0 0.0
  %1765 = vmatpush2.msra.mxu0 0.0
  %1766 = vmatprep.subr.mxu0 0.0
  %1767 = vmatpush2.msra.mxu0 0.0
  %1768 = vmatprep.subr.mxu0 0.0
  %1769 = vmatpush2.msra.mxu0 0.0
  %1770 = vmatprep.subr.mxu0 0.0
  %1771 = vmatpush2.msra.mxu0 0.0
  %1772 = vmatprep.subr.mxu0 0.0
  %1773 = vmatpush2.msra.mxu0 0.0
  %1774 = vmatprep.subr.mxu0 0.0
  %1775 = vmatpush2.msra.mxu0 0.0
  %1776 = vmatprep.subr.mxu0 0.0
  %1777 = vmatpush2.msra.mxu0 0.0
  %1778 = vmatprep.subr.mxu0 0.0
  %1779 = vmatpush2.msra.mxu0 0.0
  %1780 = vmatprep.subr.mxu0 0.0
  %1781 = vmatpush2.msra.mxu0 0.0
  %1782 = vmatprep.mubr.f32.mxu0 0.0
  %1783 = vmatmul.mubr.f32.gmra.mxu0 %v1716
  %v1784 = vpop.f32.mrf.mxu0
  %v1785 = vadd.f32 %v1711, %v1784
  %v1786 = vpop.f32.mrf.mxu0
  %1787 = vdwg.mxu0
  %v1788 = vadd.f32 %v1701, %v1785
  %v1789 = vxor.u32 %v1788, 2147483648
  %v1790 = vmul.f32 %v1789, 1.442695
  %v1791 = vpow.pop %v1790
  %v1792 = vadd.f32 %v1791, 1.0
  %v1793 = vrcp.pop %v1792
  %v1794 = vmul.f32 1.0, %v1793
  %1796 = vrot.lane.b32.xlu0 %v1785, 64
  %v1797 = vpop.permute.xlu0 %1796
  %v1799 = vmul.f32 %v1794, %v1797
  %1801 = vrot.lane.b32.xlu0 %v1799, 64
  %v1802 = vpop.permute.xlu0 %1801
  %v1804 = vadd.f32 %v1701, %v1802
  %v1805 = vtanh.pop %v1804
  %v1806 = vsub.f32 1.0, %v1794
  %1808 = vrot.lane.b32.xlu0 %v1805, 96
  %v1809 = vpop.permute.xlu0 %1808
  %v1811 = vmul.f32 %v1806, %v1809
  %v1812 = vmul.f32 %v1794, %v1634
  %v1813 = vadd.f32 %v1811, %v1812
  %v1814 = vld [vmem:[%s13] sm:$0xff]
  %v1815 = vld [vmem:[%s13 + $0x8] sm:$0xff]
  %v1816 = vld [vmem:[%s13 + $0x10] sm:$0xff]
  %v1817 = vld [vmem:[%s13 + $0x18] sm:$0xff]
  %v1818 = vld [vmem:[%s13 + $0x20] sm:$0xff]
  %v1819 = vld [vmem:[%s13 + $0x28] sm:$0xff]
  %v1820 = vld [vmem:[%s13 + $0x30] sm:$0xff]
  %v1821 = vld [vmem:[%s13 + $0x38] sm:$0xff]
  %1823 = vrot.lane.b32.xlu0 %v1813, 96
  %v1824 = vpop.permute.xlu0 %1823
  %v1825 = vsel %vm134, %v1824, 0
  %1827 = vmatprep.subr.mxu0 0.0
  %1828 = vmatpush1.msra.mxu0 0.0
  %1829 = vmatprep.subr.mxu0 0.0
  %1830 = vmatpush1.msra.mxu0 0.0
  %1831 = vmatprep.subr.mxu0 0.0
  %1832 = vmatpush1.msra.mxu0 0.0
  %1833 = vmatprep.subr.mxu0 0.0
  %1834 = vmatpush1.msra.mxu0 0.0
  %1835 = vmatprep.subr.mxu0 0.0
  %1836 = vmatpush1.msra.mxu0 0.0
  %1837 = vmatprep.subr.mxu0 0.0
  %1838 = vmatpush1.msra.mxu0 0.0
  %1839 = vmatprep.subr.mxu0 0.0
  %1840 = vmatpush1.msra.mxu0 0.0
  %1841 = vmatprep.subr.mxu0 0.0
  %1842 = vmatpush1.msra.mxu0 0.0
  %1843 = vmatprep.subr.mxu0 0.0
  %1844 = vmatpush1.msra.mxu0 0.0
  %1845 = vmatprep.subr.mxu0 0.0
  %1846 = vmatpush1.msra.mxu0 0.0
  %1847 = vmatprep.subr.mxu0 0.0
  %1848 = vmatpush1.msra.mxu0 0.0
  %1849 = vmatprep.subr.mxu0 0.0
  %1850 = vmatpush1.msra.mxu0 0.0
  %1851 = vmatprep.subr.mxu0 %v1821
  %1852 = vmatpush1.msra.mxu0 %v1820
  %1853 = vmatprep.subr.mxu0 %v1819
  %1854 = vmatpush1.msra.mxu0 %v1818
  %1855 = vmatprep.subr.mxu0 %v1817
  %1856 = vmatpush1.msra.mxu0 %v1816
  %1857 = vmatprep.subr.mxu0 %v1815
  %1858 = vmatpush1.msra.mxu0 %v1814
  %1859 = vmatprep.subr.mxu0 0.0
  %1860 = vmatpush2.msra.mxu0 0.0
  %1861 = vmatprep.subr.mxu0 0.0
  %1862 = vmatpush2.msra.mxu0 0.0
  %1863 = vmatprep.subr.mxu0 0.0
  %1864 = vmatpush2.msra.mxu0 0.0
  %1865 = vmatprep.subr.mxu0 0.0
  %1866 = vmatpush2.msra.mxu0 0.0
  %1867 = vmatprep.subr.mxu0 0.0
  %1868 = vmatpush2.msra.mxu0 0.0
  %1869 = vmatprep.subr.mxu0 0.0
  %1870 = vmatpush2.msra.mxu0 0.0
  %1871 = vmatprep.subr.mxu0 0.0
  %1872 = vmatpush2.msra.mxu0 0.0
  %1873 = vmatprep.subr.mxu0 0.0
  %1874 = vmatpush2.msra.mxu0 0.0
  %1875 = vmatprep.subr.mxu0 0.0
  %1876 = vmatpush2.msra.mxu0 0.0
  %1877 = vmatprep.subr.mxu0 0.0
  %1878 = vmatpush2.msra.mxu0 0.0
  %1879 = vmatprep.subr.mxu0 0.0
  %1880 = vmatpush2.msra.mxu0 0.0
  %1881 = vmatprep.subr.mxu0 0.0
  %1882 = vmatpush2.msra.mxu0 0.0
  %1883 = vmatprep.subr.mxu0 0.0
  %1884 = vmatpush2.msra.mxu0 0.0
  %1885 = vmatprep.subr.mxu0 0.0
  %1886 = vmatpush2.msra.mxu0 0.0
  %1887 = vmatprep.subr.mxu0 0.0
  %1888 = vmatpush2.msra.mxu0 0.0
  %1889 = vmatprep.subr.mxu0 0.0
  %1890 = vmatpush2.msra.mxu0 0.0
  %1891 = vmatprep.mubr.f32.mxu0 0.0
  %1892 = vmatmul.mubr.f32.gmra.mxu0 %v1825
  %v1893 = vpop.f32.mrf.mxu0
  %v1894 = vadd.f32 0.0, %v1893
  %v1895 = vpop.f32.mrf.mxu0
  %v1896 = vadd.f32 0.0, %v1895
  %1897 = vdwg.mxu0
  %v1898 = vld [vmem:[%s14] sm:$0x1]
  %v1900 = vlaneseq
  %v1901 = vshrl.u32 %v1900, 7
  %v1902 = vsub.s32 0, %v1901
  %v1903 = vrot.slane %v1898, %v1902
  %v1905 = vadd.f32 %v1894, %v1903
  %v1906 = vld [vmem:[#allocation3] sm:$0xff]
  %v1907 = vld [vmem:[#allocation3 + $0x8] sm:$0xff]
  %v1908 = vld [vmem:[#allocation3 + $0x10] sm:$0xff]
  %v1909 = vld [vmem:[#allocation3 + $0x18] sm:$0xff]
  %v1910 = vld [vmem:[#allocation3 + $0x20] sm:$0xff]
  %v1911 = vld [vmem:[#allocation3 + $0x28] sm:$0xff]
  %v1912 = vld [vmem:[#allocation3 + $0x30] sm:$0xff]
  %v1913 = vld [vmem:[#allocation3 + $0x38] sm:$0xff]
  %v1915 = vcombine.high %v1896, %v1896
  %v1917 = vunpack.c.l.s4 1966171168
  %v1918 = vunpack.c.0.s8 %v1917
  %v1919 = vlaneseq
  %v1920 = vshrl.u32 %v1919, 7
  %v1921 = vsub.s32 %v1918, %v1920
  %v1922 = vrot.slane %v1896, %v1921
  %v1924 = vunpack.c.l.s4 1966171168
  %v1925 = vunpack.c.0.s8 %v1924
  %v1926 = vlaneseq
  %v1927 = vshrl.u32 %v1926, 7
  %v1928 = vsub.s32 %v1925, %v1927
  %v1929 = vrot.slane %v1915, %v1928
  %v1930 = vcombine.high %v1922, %v1922
  %v1931 = vcombine.high %v1929, %v1929
  %v1933 = vunpack.c.l.s4 1966171168
  %v1934 = vunpack.c.0.s8 %v1933
  %v1935 = vlaneseq
  %v1936 = vshrl.u32 %v1935, 7
  %v1937 = vsub.s32 %v1934, %v1936
  %v1938 = vrot.slane %v1922, %v1937
  %v1940 = vunpack.c.l.s4 1966171168
  %v1941 = vunpack.c.0.s8 %v1940
  %v1942 = vlaneseq
  %v1943 = vshrl.u32 %v1942, 7
  %v1944 = vsub.s32 %v1941, %v1943
  %v1945 = vrot.slane %v1929, %v1944
  %v1947 = vunpack.c.l.s4 1966171168
  %v1948 = vunpack.c.0.s8 %v1947
  %v1949 = vlaneseq
  %v1950 = vshrl.u32 %v1949, 7
  %v1951 = vsub.s32 %v1948, %v1950
  %v1952 = vrot.slane %v1930, %v1951
  %v1954 = vunpack.c.l.s4 1966171168
  %v1955 = vunpack.c.0.s8 %v1954
  %v1956 = vlaneseq
  %v1957 = vshrl.u32 %v1956, 7
  %v1958 = vsub.s32 %v1955, %v1957
  %v1959 = vrot.slane %v1931, %v1958
  %v1960 = vcombine.high %v1938, %v1938
  %v1961 = vcombine.high %v1945, %v1945
  %v1962 = vcombine.high %v1952, %v1952
  %v1963 = vcombine.high %v1959, %v1959
  %v1964 = vlaneseq
  %v1965 = vshrl.u32 %v1964, 7
  %v1966 = vsub.s32 0, %v1965
  %v1967 = vrot.slane %v1938, %v1966
  %v1968 = vlaneseq
  %v1969 = vshrl.u32 %v1968, 7
  %v1970 = vsub.s32 0, %v1969
  %v1971 = vrot.slane %v1952, %v1970
  %v1972 = vlaneseq
  %v1973 = vshrl.u32 %v1972, 7
  %v1974 = vsub.s32 0, %v1973
  %v1975 = vrot.slane %v1960, %v1974
  %v1976 = vlaneseq
  %v1977 = vshrl.u32 %v1976, 7
  %v1978 = vsub.s32 0, %v1977
  %v1979 = vrot.slane %v1962, %v1978
  %v1980 = vlaneseq
  %v1981 = vshrl.u32 %v1980, 7
  %v1982 = vsub.s32 0, %v1981
  %v1983 = vrot.slane %v1945, %v1982
  %v1984 = vlaneseq
  %v1985 = vshrl.u32 %v1984, 7
  %v1986 = vsub.s32 0, %v1985
  %v1987 = vrot.slane %v1959, %v1986
  %v1988 = vlaneseq
  %v1989 = vshrl.u32 %v1988, 7
  %v1990 = vsub.s32 0, %v1989
  %v1991 = vrot.slane %v1961, %v1990
  %v1992 = vlaneseq
  %v1993 = vshrl.u32 %v1992, 7
  %v1994 = vsub.s32 0, %v1993
  %v1995 = vrot.slane %v1963, %v1994
  %v2004 = vadd.f32 %v1906, %v1967
  %v2005 = vadd.f32 %v1907, %v1971
  %v2006 = vadd.f32 %v1908, %v1975
  %v2007 = vadd.f32 %v1909, %v1979
  %v2008 = vadd.f32 %v1910, %v1983
  %v2009 = vadd.f32 %v1911, %v1987
  %v2010 = vadd.f32 %v1912, %v1991
  %v2011 = vadd.f32 %v1913, %v1995
  %v2012 = vtanh.pop %v2004
  %v2013 = vtanh.pop %v2005
  %v2014 = vtanh.pop %v2006
  %v2015 = vtanh.pop %v2007
  %v2016 = vtanh.pop %v2008
  %v2017 = vtanh.pop %v2009
  %v2018 = vtanh.pop %v2010
  %v2019 = vtanh.pop %v2011
  %v2020 = vld [vmem:[%s12] sm:$0x1]
  %v2022 = vlaneseq
  %v2023 = vshrl.u32 %v2022, 7
  %v2024 = vsub.s32 0, %v2023
  %v2025 = vrot.slane %v2020, %v2024
  %v2027 = vmul.f32 %v2012, %v2025
  %v2028 = vmul.f32 %v2013, %v2025
  %v2029 = vmul.f32 %v2014, %v2025
  %v2030 = vmul.f32 %v2015, %v2025
  %v2031 = vmul.f32 %v2016, %v2025
  %v2032 = vmul.f32 %v2017, %v2025
  %v2033 = vmul.f32 %v2018, %v2025
  %v2034 = vmul.f32 %v2019, %v2025
  %v2035 = vsel %vm134, %v2027, 0.0
  %2036 = vadd.xlane.f32.xlu0 %v2035
  %v2037 = vpop.xlane.xlu0 %2036
  %v2038 = vsel %vm134, %v2028, 0.0
  %2039 = vadd.xlane.f32.xlu0 %v2038
  %v2040 = vpop.xlane.xlu0 %2039
  %v2041 = vsel %vm134, %v2029, 0.0
  %2042 = vadd.xlane.f32.xlu0 %v2041
  %v2043 = vpop.xlane.xlu0 %2042
  %v2044 = vsel %vm134, %v2030, 0.0
  %2045 = vadd.xlane.f32.xlu0 %v2044
  %v2046 = vpop.xlane.xlu0 %2045
  %v2047 = vsel %vm134, %v2031, 0.0
  %2048 = vadd.xlane.f32.xlu0 %v2047
  %v2049 = vpop.xlane.xlu0 %2048
  %v2050 = vsel %vm134, %v2032, 0.0
  %2051 = vadd.xlane.f32.xlu0 %v2050
  %v2052 = vpop.xlane.xlu0 %2051
  %v2053 = vsel %vm134, %v2033, 0.0
  %2054 = vadd.xlane.f32.xlu0 %v2053
  %v2055 = vpop.xlane.xlu0 %2054
  %v2056 = vsel %vm134, %v2034, 0.0
  %2057 = vadd.xlane.f32.xlu0 %v2056
  %v2058 = vpop.xlane.xlu0 %2057
  %v2059 = vld [vmem:[#allocation4] sm:$0xff]
  %v2061 = vlaneseq
  %v2062 = vshrl.u32 %v2061, 7
  %v2063 = vsub.s32 0, %v2062
  %v2064 = vrot.slane %v2059, %v2063
  %2066 = vbcast.lane.b32.xlu0 %v2064, 256
  %v2067 = vpop.permute.xlu0 %2066
  %v2068 = vlaneseq
  %v2069 = vshrl.u32 %v2068, 7
  %v2070 = vsub.s32 1, %v2069
  %v2071 = vrot.slane %v2059, %v2070
  %2073 = vbcast.lane.b32.xlu0 %v2071, 256
  %v2074 = vpop.permute.xlu0 %2073
  %v2075 = vlaneseq
  %v2076 = vshrl.u32 %v2075, 7
  %v2077 = vsub.s32 2, %v2076
  %v2078 = vrot.slane %v2059, %v2077
  %2080 = vbcast.lane.b32.xlu0 %v2078, 256
  %v2081 = vpop.permute.xlu0 %2080
  %v2082 = vlaneseq
  %v2083 = vshrl.u32 %v2082, 7
  %v2084 = vsub.s32 3, %v2083
  %v2085 = vrot.slane %v2059, %v2084
  %2087 = vbcast.lane.b32.xlu0 %v2085, 256
  %v2088 = vpop.permute.xlu0 %2087
  %v2089 = vlaneseq
  %v2090 = vshrl.u32 %v2089, 7
  %v2091 = vsub.s32 4, %v2090
  %v2092 = vrot.slane %v2059, %v2091
  %2094 = vbcast.lane.b32.xlu0 %v2092, 256
  %v2095 = vpop.permute.xlu0 %2094
  %v2096 = vlaneseq
  %v2097 = vshrl.u32 %v2096, 7
  %v2098 = vsub.s32 5, %v2097
  %v2099 = vrot.slane %v2059, %v2098
  %2101 = vbcast.lane.b32.xlu0 %v2099, 256
  %v2102 = vpop.permute.xlu0 %2101
  %v2103 = vlaneseq
  %v2104 = vshrl.u32 %v2103, 7
  %v2105 = vsub.s32 6, %v2104
  %v2106 = vrot.slane %v2059, %v2105
  %2108 = vbcast.lane.b32.xlu0 %v2106, 256
  %v2109 = vpop.permute.xlu0 %2108
  %v2110 = vlaneseq
  %v2111 = vshrl.u32 %v2110, 7
  %v2112 = vsub.s32 7, %v2111
  %v2113 = vrot.slane %v2059, %v2112
  %2115 = vbcast.lane.b32.xlu0 %v2113, 256
  %v2116 = vpop.permute.xlu0 %2115
  %v2125 = vadd.f32 %v2037, %v2067
  %v2126 = vadd.f32 %v2040, %v2074
  %v2127 = vadd.f32 %v2043, %v2081
  %v2128 = vadd.f32 %v2046, %v2088
  %v2129 = vadd.f32 %v2049, %v2095
  %v2130 = vadd.f32 %v2052, %v2102
  %v2131 = vadd.f32 %v2055, %v2109
  %v2132 = vadd.f32 %v2058, %v2116
  %v2133 = vmul.f32 %v2125, 1.442695
  %v2134 = vpow.pop %v2133
  %v2135 = vmul.f32 %v2126, 1.442695
  %v2136 = vpow.pop %v2135
  %v2137 = vmul.f32 %v2127, 1.442695
  %v2138 = vpow.pop %v2137
  %v2139 = vmul.f32 %v2128, 1.442695
  %v2140 = vpow.pop %v2139
  %v2141 = vmul.f32 %v2129, 1.442695
  %v2142 = vpow.pop %v2141
  %v2143 = vmul.f32 %v2130, 1.442695
  %v2144 = vpow.pop %v2143
  %v2145 = vmul.f32 %v2131, 1.442695
  %v2146 = vpow.pop %v2145
  %v2147 = vmul.f32 %v2132, 1.442695
  %v2148 = vpow.pop %v2147
  %2157 = vset.pattern.permute.xlu0 0
  %2158 = vperm.xlu0 %2157, %v2134
  %v2159 = vpop.permute.xlu0 %2158
  %2160 = vset.pattern.permute.xlu0 0
  %2161 = vperm.xlu0 %2160, %v2136
  %v2162 = vpop.permute.xlu0 %2161
  %2163 = vset.pattern.permute.xlu0 0
  %2164 = vperm.xlu0 %2163, %v2138
  %v2165 = vpop.permute.xlu0 %2164
  %2166 = vset.pattern.permute.xlu0 0
  %2167 = vperm.xlu0 %2166, %v2140
  %v2168 = vpop.permute.xlu0 %2167
  %2169 = vset.pattern.permute.xlu0 0
  %2170 = vperm.xlu0 %2169, %v2142
  %v2171 = vpop.permute.xlu0 %2170
  %2172 = vset.pattern.permute.xlu0 0
  %2173 = vperm.xlu0 %2172, %v2144
  %v2174 = vpop.permute.xlu0 %2173
  %2175 = vset.pattern.permute.xlu0 0
  %2176 = vperm.xlu0 %2175, %v2146
  %v2177 = vpop.permute.xlu0 %2176
  %2178 = vset.pattern.permute.xlu0 0
  %2179 = vperm.xlu0 %2178, %v2148
  %v2180 = vpop.permute.xlu0 %2179
  %v2181 = vlaneseq
  %v2182 = vshrl.u32 %v2181, 7
  %v2183 = vsub.s32 %v937, %v2182
  %v2184 = vrot.slane %v2159, %v2183
  %v2185 = vlaneseq
  %v2186 = vshrl.u32 %v2185, 7
  %v2187 = vsub.s32 %v937, %v2186
  %v2188 = vrot.slane %v2162, %v2187
  %v2189 = vlaneseq
  %v2190 = vshrl.u32 %v2189, 7
  %v2191 = vsub.s32 %v937, %v2190
  %v2192 = vrot.slane %v2165, %v2191
  %v2193 = vlaneseq
  %v2194 = vshrl.u32 %v2193, 7
  %v2195 = vsub.s32 %v937, %v2194
  %v2196 = vrot.slane %v2168, %v2195
  %v2197 = vlaneseq
  %v2198 = vshrl.u32 %v2197, 7
  %v2199 = vsub.s32 %v937, %v2198
  %v2200 = vrot.slane %v2171, %v2199
  %v2201 = vlaneseq
  %v2202 = vshrl.u32 %v2201, 7
  %v2203 = vsub.s32 %v937, %v2202
  %v2204 = vrot.slane %v2174, %v2203
  %v2205 = vlaneseq
  %v2206 = vshrl.u32 %v2205, 7
  %v2207 = vsub.s32 %v937, %v2206
  %v2208 = vrot.slane %v2177, %v2207
  %v2209 = vlaneseq
  %v2210 = vshrl.u32 %v2209, 7
  %v2211 = vsub.s32 %v937, %v2210
  %v2212 = vrot.slane %v2180, %v2211
  %v2213 = vsel %vm970, %v2188, %v2184
  %v2214 = vsel %vm972, %v2192, %v2213
  %v2215 = vsel %vm974, %v2196, %v2214
  %v2216 = vsel %vm976, %v2200, %v2215
  %v2217 = vsel %vm978, %v2204, %v2216
  %v2218 = vsel %vm980, %v2208, %v2217
  %v2219 = vsel %vm982, %v2212, %v2218
  %v2221 = vsel %vm452, %v2219, 0.0
  %2222 = vadd.xlane.f32.xlu0 %v2221
  %v2223 = vpop.xlane.xlu0 %2222
  %v2224 = vmax.f32 %v2223, 1e-30
  %v2225 = vrcp.pop %v2224
  %v2227 = vlaneseq
  %v2228 = vshrl.u32 %v2227, 7
  %v2229 = vsub.s32 0, %v2228
  %v2230 = vrot.slane %v2225, %v2229
  %v2231 = vlaneseq
  %v2232 = vshrl.u32 %v2231, 7
  %v2233 = vsub.s32 1, %v2232
  %v2234 = vrot.slane %v2225, %v2233
  %v2235 = vlaneseq
  %v2236 = vshrl.u32 %v2235, 7
  %v2237 = vsub.s32 2, %v2236
  %v2238 = vrot.slane %v2225, %v2237
  %v2239 = vlaneseq
  %v2240 = vshrl.u32 %v2239, 7
  %v2241 = vsub.s32 3, %v2240
  %v2242 = vrot.slane %v2225, %v2241
  %v2243 = vlaneseq
  %v2244 = vshrl.u32 %v2243, 7
  %v2245 = vsub.s32 4, %v2244
  %v2246 = vrot.slane %v2225, %v2245
  %v2247 = vlaneseq
  %v2248 = vshrl.u32 %v2247, 7
  %v2249 = vsub.s32 5, %v2248
  %v2250 = vrot.slane %v2225, %v2249
  %v2251 = vlaneseq
  %v2252 = vshrl.u32 %v2251, 7
  %v2253 = vsub.s32 6, %v2252
  %v2254 = vrot.slane %v2225, %v2253
  %v2255 = vlaneseq
  %v2256 = vshrl.u32 %v2255, 7
  %v2257 = vsub.s32 7, %v2256
  %v2258 = vrot.slane %v2225, %v2257
  %v2267 = vmul.f32 %v2134, %v2230
  %v2268 = vmul.f32 %v2136, %v2234
  %v2269 = vmul.f32 %v2138, %v2238
  %v2270 = vmul.f32 %v2140, %v2242
  %v2271 = vmul.f32 %v2142, %v2246
  %v2272 = vmul.f32 %v2144, %v2250
  %v2273 = vmul.f32 %v2146, %v2254
  %v2274 = vmul.f32 %v2148, %v2258
  %v2275 = vpack.c.bf16 %v2267, %v2267
  %v2276 = vpack.c.bf16 %v2268, %v2268
  %v2277 = vpack.c.bf16 %v2269, %v2269
  %v2278 = vpack.c.bf16 %v2270, %v2270
  %v2279 = vpack.c.bf16 %v2271, %v2271
  %v2280 = vpack.c.bf16 %v2272, %v2272
  %v2281 = vpack.c.bf16 %v2273, %v2273
  %v2282 = vpack.c.bf16 %v2274, %v2274
  %v2283 = vld [vmem:[%s2] sm:$0xf]
  %v2284 = vld [vmem:[%s2 + $0x4] sm:$0xf]
  %v2285 = vld [vmem:[%s2 + $0x8] sm:$0xf]
  %v2286 = vld [vmem:[%s2 + $0xc] sm:$0xf]
  %v2287 = vld [vmem:[%s2 + $0x10] sm:$0xf]
  %v2288 = vld [vmem:[%s2 + $0x14] sm:$0xf]
  %v2289 = vld [vmem:[%s2 + $0x18] sm:$0xf]
  %v2290 = vld [vmem:[%s2 + $0x1c] sm:$0xf]
  %v2292 = vunpack.c.l.b16 %v2275
  %2293 = vset.pattern.permute.xlu0 0
  %2294 = vperm.xlu0 %2293, %v2292
  %v2295 = vpop.permute.xlu0 %2294
  %v2296 = vlaneseq
  %v2297 = vshrl.u32 %v2296, 7
  %v2298 = vsub.s32 %v937, %v2297
  %v2299 = vrot.slane %v2295, %v2298
  %v2300 = vpack.c.b16 %v2299, %v2299
  %v2302 = vsel %vm452, %v2300, 0
  %v2305 = vsel %vm1068, %v2283, 0
  %2307 = vmatprep.subr.bf16.mxu0 0
  %2308 = vmatpush1.bf16.msra.mxu0 0
  %2309 = vmatprep.subr.bf16.mxu0 0
  %2310 = vmatpush1.bf16.msra.mxu0 0
  %2311 = vmatprep.subr.bf16.mxu0 0
  %2312 = vmatpush1.bf16.msra.mxu0 0
  %2313 = vmatprep.subr.bf16.mxu0 0
  %2314 = vmatpush1.bf16.msra.mxu0 0
  %2315 = vmatprep.subr.bf16.mxu0 0
  %2316 = vmatpush1.bf16.msra.mxu0 0
  %2317 = vmatprep.subr.bf16.mxu0 0
  %2318 = vmatpush1.bf16.msra.mxu0 0
  %2319 = vmatprep.subr.bf16.mxu0 0
  %2320 = vmatpush1.bf16.msra.mxu0 0
  %2321 = vmatprep.subr.bf16.mxu0 0
  %2322 = vmatpush1.bf16.msra.mxu0 %v2305
  %2323 = vmatprep.subr.bf16.mxu0 0
  %2324 = vmatpush2.bf16.msra.mxu0 0
  %2325 = vmatprep.subr.bf16.mxu0 0
  %2326 = vmatpush2.bf16.msra.mxu0 0
  %2327 = vmatprep.subr.bf16.mxu0 0
  %2328 = vmatpush2.bf16.msra.mxu0 0
  %2329 = vmatprep.subr.bf16.mxu0 0
  %2330 = vmatpush2.bf16.msra.mxu0 0
  %2331 = vmatprep.subr.bf16.mxu0 0
  %2332 = vmatpush2.bf16.msra.mxu0 0
  %2333 = vmatprep.subr.bf16.mxu0 0
  %2334 = vmatpush2.bf16.msra.mxu0 0
  %2335 = vmatprep.subr.bf16.mxu0 0
  %2336 = vmatpush2.bf16.msra.mxu0 0
  %2337 = vmatprep.subr.bf16.mxu0 0
  %2338 = vmatpush2.bf16.msra.mxu0 0
  %2339 = vmatprep.mubr.bf16.mxu0 0
  %2340 = vmatmul.mubr.bf16.gmra.mxu0 %v2302
  %v2341 = vpop.f32.mrf.mxu0
  %v2342 = vadd.f32 0.0, %v2341
  %v2343 = vpop.f32.mrf.mxu0
  %v2344 = vpop.f32.mrf.mxu0
  %v2345 = vpop.f32.mrf.mxu0
  %2346 = vdwg.mxu0
  %v2348 = vunpack.c.l.b16 %v2276
  %2349 = vset.pattern.permute.xlu0 0
  %2350 = vperm.xlu0 %2349, %v2348
  %v2351 = vpop.permute.xlu0 %2350
  %v2352 = vlaneseq
  %v2353 = vshrl.u32 %v2352, 7
  %v2354 = vsub.s32 %v937, %v2353
  %v2355 = vrot.slane %v2351, %v2354
  %v2356 = vpack.c.b16 %v2355, %v2355
  %v2358 = vsel %vm452, %v2356, 0
  %v2361 = vsel %vm1068, %v2284, 0
  %2363 = vmatprep.subr.bf16.mxu0 0
  %2364 = vmatpush1.bf16.msra.mxu0 0
  %2365 = vmatprep.subr.bf16.mxu0 0
  %2366 = vmatpush1.bf16.msra.mxu0 0
  %2367 = vmatprep.subr.bf16.mxu0 0
  %2368 = vmatpush1.bf16.msra.mxu0 0
  %2369 = vmatprep.subr.bf16.mxu0 0
  %2370 = vmatpush1.bf16.msra.mxu0 0
  %2371 = vmatprep.subr.bf16.mxu0 0
  %2372 = vmatpush1.bf16.msra.mxu0 0
  %2373 = vmatprep.subr.bf16.mxu0 0
  %2374 = vmatpush1.bf16.msra.mxu0 0
  %2375 = vmatprep.subr.bf16.mxu0 0
  %2376 = vmatpush1.bf16.msra.mxu0 0
  %2377 = vmatprep.subr.bf16.mxu0 0
  %2378 = vmatpush1.bf16.msra.mxu0 %v2361
  %2379 = vmatprep.subr.bf16.mxu0 0
  %2380 = vmatpush2.bf16.msra.mxu0 0
  %2381 = vmatprep.subr.bf16.mxu0 0
  %2382 = vmatpush2.bf16.msra.mxu0 0
  %2383 = vmatprep.subr.bf16.mxu0 0
  %2384 = vmatpush2.bf16.msra.mxu0 0
  %2385 = vmatprep.subr.bf16.mxu0 0
  %2386 = vmatpush2.bf16.msra.mxu0 0
  %2387 = vmatprep.subr.bf16.mxu0 0
  %2388 = vmatpush2.bf16.msra.mxu0 0
  %2389 = vmatprep.subr.bf16.mxu0 0
  %2390 = vmatpush2.bf16.msra.mxu0 0
  %2391 = vmatprep.subr.bf16.mxu0 0
  %2392 = vmatpush2.bf16.msra.mxu0 0
  %2393 = vmatprep.subr.bf16.mxu0 0
  %2394 = vmatpush2.bf16.msra.mxu0 0
  %2395 = vmatprep.mubr.bf16.mxu0 0
  %2396 = vmatmul.mubr.bf16.gmra.mxu0 %v2358
  %v2397 = vpop.f32.mrf.mxu0
  %v2398 = vadd.f32 0.0, %v2397
  %v2399 = vpop.f32.mrf.mxu0
  %v2400 = vpop.f32.mrf.mxu0
  %v2401 = vpop.f32.mrf.mxu0
  %2402 = vdwg.mxu0
  %v2404 = vunpack.c.l.b16 %v2277
  %2405 = vset.pattern.permute.xlu0 0
  %2406 = vperm.xlu0 %2405, %v2404
  %v2407 = vpop.permute.xlu0 %2406
  %v2408 = vlaneseq
  %v2409 = vshrl.u32 %v2408, 7
  %v2410 = vsub.s32 %v937, %v2409
  %v2411 = vrot.slane %v2407, %v2410
  %v2412 = vpack.c.b16 %v2411, %v2411
  %v2414 = vsel %vm452, %v2412, 0
  %v2417 = vsel %vm1068, %v2285, 0
  %2419 = vmatprep.subr.bf16.mxu0 0
  %2420 = vmatpush1.bf16.msra.mxu0 0
  %2421 = vmatprep.subr.bf16.mxu0 0
  %2422 = vmatpush1.bf16.msra.mxu0 0
  %2423 = vmatprep.subr.bf16.mxu0 0
  %2424 = vmatpush1.bf16.msra.mxu0 0
  %2425 = vmatprep.subr.bf16.mxu0 0
  %2426 = vmatpush1.bf16.msra.mxu0 0
  %2427 = vmatprep.subr.bf16.mxu0 0
  %2428 = vmatpush1.bf16.msra.mxu0 0
  %2429 = vmatprep.subr.bf16.mxu0 0
  %2430 = vmatpush1.bf16.msra.mxu0 0
  %2431 = vmatprep.subr.bf16.mxu0 0
  %2432 = vmatpush1.bf16.msra.mxu0 0
  %2433 = vmatprep.subr.bf16.mxu0 0
  %2434 = vmatpush1.bf16.msra.mxu0 %v2417
  %2435 = vmatprep.subr.bf16.mxu0 0
  %2436 = vmatpush2.bf16.msra.mxu0 0
  %2437 = vmatprep.subr.bf16.mxu0 0
  %2438 = vmatpush2.bf16.msra.mxu0 0
  %2439 = vmatprep.subr.bf16.mxu0 0
  %2440 = vmatpush2.bf16.msra.mxu0 0
  %2441 = vmatprep.subr.bf16.mxu0 0
  %2442 = vmatpush2.bf16.msra.mxu0 0
  %2443 = vmatprep.subr.bf16.mxu0 0
  %2444 = vmatpush2.bf16.msra.mxu0 0
  %2445 = vmatprep.subr.bf16.mxu0 0
  %2446 = vmatpush2.bf16.msra.mxu0 0
  %2447 = vmatprep.subr.bf16.mxu0 0
  %2448 = vmatpush2.bf16.msra.mxu0 0
  %2449 = vmatprep.subr.bf16.mxu0 0
  %2450 = vmatpush2.bf16.msra.mxu0 0
  %2451 = vmatprep.mubr.bf16.mxu0 0
  %2452 = vmatmul.mubr.bf16.gmra.mxu0 %v2414
  %v2453 = vpop.f32.mrf.mxu0
  %v2454 = vadd.f32 0.0, %v2453
  %v2455 = vpop.f32.mrf.mxu0
  %v2456 = vpop.f32.mrf.mxu0
  %v2457 = vpop.f32.mrf.mxu0
  %2458 = vdwg.mxu0
  %v2460 = vunpack.c.l.b16 %v2278
  %2461 = vset.pattern.permute.xlu0 0
  %2462 = vperm.xlu0 %2461, %v2460
  %v2463 = vpop.permute.xlu0 %2462
  %v2464 = vlaneseq
  %v2465 = vshrl.u32 %v2464, 7
  %v2466 = vsub.s32 %v937, %v2465
  %v2467 = vrot.slane %v2463, %v2466
  %v2468 = vpack.c.b16 %v2467, %v2467
  %v2470 = vsel %vm452, %v2468, 0
  %v2473 = vsel %vm1068, %v2286, 0
  %2475 = vmatprep.subr.bf16.mxu0 0
  %2476 = vmatpush1.bf16.msra.mxu0 0
  %2477 = vmatprep.subr.bf16.mxu0 0
  %2478 = vmatpush1.bf16.msra.mxu0 0
  %2479 = vmatprep.subr.bf16.mxu0 0
  %2480 = vmatpush1.bf16.msra.mxu0 0
  %2481 = vmatprep.subr.bf16.mxu0 0
  %2482 = vmatpush1.bf16.msra.mxu0 0
  %2483 = vmatprep.subr.bf16.mxu0 0
  %2484 = vmatpush1.bf16.msra.mxu0 0
  %2485 = vmatprep.subr.bf16.mxu0 0
  %2486 = vmatpush1.bf16.msra.mxu0 0
  %2487 = vmatprep.subr.bf16.mxu0 0
  %2488 = vmatpush1.bf16.msra.mxu0 0
  %2489 = vmatprep.subr.bf16.mxu0 0
  %2490 = vmatpush1.bf16.msra.mxu0 %v2473
  %2491 = vmatprep.subr.bf16.mxu0 0
  %2492 = vmatpush2.bf16.msra.mxu0 0
  %2493 = vmatprep.subr.bf16.mxu0 0
  %2494 = vmatpush2.bf16.msra.mxu0 0
  %2495 = vmatprep.subr.bf16.mxu0 0
  %2496 = vmatpush2.bf16.msra.mxu0 0
  %2497 = vmatprep.subr.bf16.mxu0 0
  %2498 = vmatpush2.bf16.msra.mxu0 0
  %2499 = vmatprep.subr.bf16.mxu0 0
  %2500 = vmatpush2.bf16.msra.mxu0 0
  %2501 = vmatprep.subr.bf16.mxu0 0
  %2502 = vmatpush2.bf16.msra.mxu0 0
  %2503 = vmatprep.subr.bf16.mxu0 0
  %2504 = vmatpush2.bf16.msra.mxu0 0
  %2505 = vmatprep.subr.bf16.mxu0 0
  %2506 = vmatpush2.bf16.msra.mxu0 0
  %2507 = vmatprep.mubr.bf16.mxu0 0
  %2508 = vmatmul.mubr.bf16.gmra.mxu0 %v2470
  %v2509 = vpop.f32.mrf.mxu0
  %v2510 = vadd.f32 0.0, %v2509
  %v2511 = vpop.f32.mrf.mxu0
  %v2512 = vpop.f32.mrf.mxu0
  %v2513 = vpop.f32.mrf.mxu0
  %2514 = vdwg.mxu0
  %v2516 = vunpack.c.l.b16 %v2279
  %2517 = vset.pattern.permute.xlu0 0
  %2518 = vperm.xlu0 %2517, %v2516
  %v2519 = vpop.permute.xlu0 %2518
  %v2520 = vlaneseq
  %v2521 = vshrl.u32 %v2520, 7
  %v2522 = vsub.s32 %v937, %v2521
  %v2523 = vrot.slane %v2519, %v2522
  %v2524 = vpack.c.b16 %v2523, %v2523
  %v2526 = vsel %vm452, %v2524, 0
  %v2529 = vsel %vm1068, %v2287, 0
  %2531 = vmatprep.subr.bf16.mxu0 0
  %2532 = vmatpush1.bf16.msra.mxu0 0
  %2533 = vmatprep.subr.bf16.mxu0 0
  %2534 = vmatpush1.bf16.msra.mxu0 0
  %2535 = vmatprep.subr.bf16.mxu0 0
  %2536 = vmatpush1.bf16.msra.mxu0 0
  %2537 = vmatprep.subr.bf16.mxu0 0
  %2538 = vmatpush1.bf16.msra.mxu0 0
  %2539 = vmatprep.subr.bf16.mxu0 0
  %2540 = vmatpush1.bf16.msra.mxu0 0
  %2541 = vmatprep.subr.bf16.mxu0 0
  %2542 = vmatpush1.bf16.msra.mxu0 0
  %2543 = vmatprep.subr.bf16.mxu0 0
  %2544 = vmatpush1.bf16.msra.mxu0 0
  %2545 = vmatprep.subr.bf16.mxu0 0
  %2546 = vmatpush1.bf16.msra.mxu0 %v2529
  %2547 = vmatprep.subr.bf16.mxu0 0
  %2548 = vmatpush2.bf16.msra.mxu0 0
  %2549 = vmatprep.subr.bf16.mxu0 0
  %2550 = vmatpush2.bf16.msra.mxu0 0
  %2551 = vmatprep.subr.bf16.mxu0 0
  %2552 = vmatpush2.bf16.msra.mxu0 0
  %2553 = vmatprep.subr.bf16.mxu0 0
  %2554 = vmatpush2.bf16.msra.mxu0 0
  %2555 = vmatprep.subr.bf16.mxu0 0
  %2556 = vmatpush2.bf16.msra.mxu0 0
  %2557 = vmatprep.subr.bf16.mxu0 0
  %2558 = vmatpush2.bf16.msra.mxu0 0
  %2559 = vmatprep.subr.bf16.mxu0 0
  %2560 = vmatpush2.bf16.msra.mxu0 0
  %2561 = vmatprep.subr.bf16.mxu0 0
  %2562 = vmatpush2.bf16.msra.mxu0 0
  %2563 = vmatprep.mubr.bf16.mxu0 0
  %2564 = vmatmul.mubr.bf16.gmra.mxu0 %v2526
  %v2565 = vpop.f32.mrf.mxu0
  %v2566 = vadd.f32 0.0, %v2565
  %v2567 = vpop.f32.mrf.mxu0
  %v2568 = vpop.f32.mrf.mxu0
  %v2569 = vpop.f32.mrf.mxu0
  %2570 = vdwg.mxu0
  %v2572 = vunpack.c.l.b16 %v2280
  %2573 = vset.pattern.permute.xlu0 0
  %2574 = vperm.xlu0 %2573, %v2572
  %v2575 = vpop.permute.xlu0 %2574
  %v2576 = vlaneseq
  %v2577 = vshrl.u32 %v2576, 7
  %v2578 = vsub.s32 %v937, %v2577
  %v2579 = vrot.slane %v2575, %v2578
  %v2580 = vpack.c.b16 %v2579, %v2579
  %v2582 = vsel %vm452, %v2580, 0
  %v2585 = vsel %vm1068, %v2288, 0
  %2587 = vmatprep.subr.bf16.mxu0 0
  %2588 = vmatpush1.bf16.msra.mxu0 0
  %2589 = vmatprep.subr.bf16.mxu0 0
  %2590 = vmatpush1.bf16.msra.mxu0 0
  %2591 = vmatprep.subr.bf16.mxu0 0
  %2592 = vmatpush1.bf16.msra.mxu0 0
  %2593 = vmatprep.subr.bf16.mxu0 0
  %2594 = vmatpush1.bf16.msra.mxu0 0
  %2595 = vmatprep.subr.bf16.mxu0 0
  %2596 = vmatpush1.bf16.msra.mxu0 0
  %2597 = vmatprep.subr.bf16.mxu0 0
  %2598 = vmatpush1.bf16.msra.mxu0 0
  %2599 = vmatprep.subr.bf16.mxu0 0
  %2600 = vmatpush1.bf16.msra.mxu0 0
  %2601 = vmatprep.subr.bf16.mxu0 0
  %2602 = vmatpush1.bf16.msra.mxu0 %v2585
  %2603 = vmatprep.subr.bf16.mxu0 0
  %2604 = vmatpush2.bf16.msra.mxu0 0
  %2605 = vmatprep.subr.bf16.mxu0 0
  %2606 = vmatpush2.bf16.msra.mxu0 0
  %2607 = vmatprep.subr.bf16.mxu0 0
  %2608 = vmatpush2.bf16.msra.mxu0 0
  %2609 = vmatprep.subr.bf16.mxu0 0
  %2610 = vmatpush2.bf16.msra.mxu0 0
  %2611 = vmatprep.subr.bf16.mxu0 0
  %2612 = vmatpush2.bf16.msra.mxu0 0
  %2613 = vmatprep.subr.bf16.mxu0 0
  %2614 = vmatpush2.bf16.msra.mxu0 0
  %2615 = vmatprep.subr.bf16.mxu0 0
  %2616 = vmatpush2.bf16.msra.mxu0 0
  %2617 = vmatprep.subr.bf16.mxu0 0
  %2618 = vmatpush2.bf16.msra.mxu0 0
  %2619 = vmatprep.mubr.bf16.mxu0 0
  %2620 = vmatmul.mubr.bf16.gmra.mxu0 %v2582
  %v2621 = vpop.f32.mrf.mxu0
  %v2622 = vadd.f32 0.0, %v2621
  %v2623 = vpop.f32.mrf.mxu0
  %v2624 = vpop.f32.mrf.mxu0
  %v2625 = vpop.f32.mrf.mxu0
  %2626 = vdwg.mxu0
  %v2628 = vunpack.c.l.b16 %v2281
  %2629 = vset.pattern.permute.xlu0 0
  %2630 = vperm.xlu0 %2629, %v2628
  %v2631 = vpop.permute.xlu0 %2630
  %v2632 = vlaneseq
  %v2633 = vshrl.u32 %v2632, 7
  %v2634 = vsub.s32 %v937, %v2633
  %v2635 = vrot.slane %v2631, %v2634
  %v2636 = vpack.c.b16 %v2635, %v2635
  %v2638 = vsel %vm452, %v2636, 0
  %v2641 = vsel %vm1068, %v2289, 0
  %2643 = vmatprep.subr.bf16.mxu0 0
  %2644 = vmatpush1.bf16.msra.mxu0 0
  %2645 = vmatprep.subr.bf16.mxu0 0
  %2646 = vmatpush1.bf16.msra.mxu0 0
  %2647 = vmatprep.subr.bf16.mxu0 0
  %2648 = vmatpush1.bf16.msra.mxu0 0
  %2649 = vmatprep.subr.bf16.mxu0 0
  %2650 = vmatpush1.bf16.msra.mxu0 0
  %2651 = vmatprep.subr.bf16.mxu0 0
  %2652 = vmatpush1.bf16.msra.mxu0 0
  %2653 = vmatprep.subr.bf16.mxu0 0
  %2654 = vmatpush1.bf16.msra.mxu0 0
  %2655 = vmatprep.subr.bf16.mxu0 0
  %2656 = vmatpush1.bf16.msra.mxu0 0
  %2657 = vmatprep.subr.bf16.mxu0 0
  %2658 = vmatpush1.bf16.msra.mxu0 %v2641
  %2659 = vmatprep.subr.bf16.mxu0 0
  %2660 = vmatpush2.bf16.msra.mxu0 0
  %2661 = vmatprep.subr.bf16.mxu0 0
  %2662 = vmatpush2.bf16.msra.mxu0 0
  %2663 = vmatprep.subr.bf16.mxu0 0
  %2664 = vmatpush2.bf16.msra.mxu0 0
  %2665 = vmatprep.subr.bf16.mxu0 0
  %2666 = vmatpush2.bf16.msra.mxu0 0
  %2667 = vmatprep.subr.bf16.mxu0 0
  %2668 = vmatpush2.bf16.msra.mxu0 0
  %2669 = vmatprep.subr.bf16.mxu0 0
  %2670 = vmatpush2.bf16.msra.mxu0 0
  %2671 = vmatprep.subr.bf16.mxu0 0
  %2672 = vmatpush2.bf16.msra.mxu0 0
  %2673 = vmatprep.subr.bf16.mxu0 0
  %2674 = vmatpush2.bf16.msra.mxu0 0
  %2675 = vmatprep.mubr.bf16.mxu0 0
  %2676 = vmatmul.mubr.bf16.gmra.mxu0 %v2638
  %v2677 = vpop.f32.mrf.mxu0
  %v2678 = vadd.f32 0.0, %v2677
  %v2679 = vpop.f32.mrf.mxu0
  %v2680 = vpop.f32.mrf.mxu0
  %v2681 = vpop.f32.mrf.mxu0
  %2682 = vdwg.mxu0
  %v2684 = vunpack.c.l.b16 %v2282
  %2685 = vset.pattern.permute.xlu0 0
  %2686 = vperm.xlu0 %2685, %v2684
  %v2687 = vpop.permute.xlu0 %2686
  %v2688 = vlaneseq
  %v2689 = vshrl.u32 %v2688, 7
  %v2690 = vsub.s32 %v937, %v2689
  %v2691 = vrot.slane %v2687, %v2690
  %v2692 = vpack.c.b16 %v2691, %v2691
  %v2694 = vsel %vm452, %v2692, 0
  %v2697 = vsel %vm1068, %v2290, 0
  %2699 = vmatprep.subr.bf16.mxu0 0
  %2700 = vmatpush1.bf16.msra.mxu0 0
  %2701 = vmatprep.subr.bf16.mxu0 0
  %2702 = vmatpush1.bf16.msra.mxu0 0
  %2703 = vmatprep.subr.bf16.mxu0 0
  %2704 = vmatpush1.bf16.msra.mxu0 0
  %2705 = vmatprep.subr.bf16.mxu0 0
  %2706 = vmatpush1.bf16.msra.mxu0 0
  %2707 = vmatprep.subr.bf16.mxu0 0
  %2708 = vmatpush1.bf16.msra.mxu0 0
  %2709 = vmatprep.subr.bf16.mxu0 0
  %2710 = vmatpush1.bf16.msra.mxu0 0
  %2711 = vmatprep.subr.bf16.mxu0 0
  %2712 = vmatpush1.bf16.msra.mxu0 0
  %2713 = vmatprep.subr.bf16.mxu0 0
  %2714 = vmatpush1.bf16.msra.mxu0 %v2697
  %2715 = vmatprep.subr.bf16.mxu0 0
  %2716 = vmatpush2.bf16.msra.mxu0 0
  %2717 = vmatprep.subr.bf16.mxu0 0
  %2718 = vmatpush2.bf16.msra.mxu0 0
  %2719 = vmatprep.subr.bf16.mxu0 0
  %2720 = vmatpush2.bf16.msra.mxu0 0
  %2721 = vmatprep.subr.bf16.mxu0 0
  %2722 = vmatpush2.bf16.msra.mxu0 0
  %2723 = vmatprep.subr.bf16.mxu0 0
  %2724 = vmatpush2.bf16.msra.mxu0 0
  %2725 = vmatprep.subr.bf16.mxu0 0
  %2726 = vmatpush2.bf16.msra.mxu0 0
  %2727 = vmatprep.subr.bf16.mxu0 0
  %2728 = vmatpush2.bf16.msra.mxu0 0
  %2729 = vmatprep.subr.bf16.mxu0 0
  %2730 = vmatpush2.bf16.msra.mxu0 0
  %2731 = vmatprep.mubr.bf16.mxu0 0
  %2732 = vmatmul.mubr.bf16.gmra.mxu0 %v2694
  %v2733 = vpop.f32.mrf.mxu0
  %v2734 = vadd.f32 0.0, %v2733
  %v2735 = vpop.f32.mrf.mxu0
  %v2736 = vpop.f32.mrf.mxu0
  %v2737 = vpop.f32.mrf.mxu0
  %2738 = vdwg.mxu0
  %v2739 = vld [vmem:[%s15] sm:$0xff]
  %v2740 = vld [vmem:[%s15 + $0x8] sm:$0xff]
  %v2741 = vld [vmem:[%s15 + $0x10] sm:$0xff]
  %v2742 = vld [vmem:[%s15 + $0x18] sm:$0xff]
  %v2743 = vld [vmem:[%s16] sm:$0x1]
  %v2745 = vlaneseq
  %v2746 = vshrl.u32 %v2745, 7
  %v2747 = vsub.s32 0, %v2746
  %v2748 = vrot.slane %v2743, %v2747
  %v2758 = vrot.slane %v2398, 7
  %v2759 = vsel %vm970, %v2758, %v2342
  %v2760 = vrot.slane %v2454, 6
  %v2761 = vsel %vm972, %v2760, %v2759
  %v2762 = vrot.slane %v2510, 5
  %v2763 = vsel %vm974, %v2762, %v2761
  %v2764 = vrot.slane %v2566, 4
  %v2765 = vsel %vm976, %v2764, %v2763
  %v2766 = vrot.slane %v2622, 3
  %v2767 = vsel %vm978, %v2766, %v2765
  %v2768 = vrot.slane %v2678, 2
  %v2769 = vsel %vm980, %v2768, %v2767
  %v2770 = vrot.slane %v2734, 1
  %v2771 = vsel %vm982, %v2770, %v2769
  %v2772 = vsel %vm134, %v2771, 0
  %2774 = vmatprep.subr.mxu0 0.0
  %2775 = vmatpush1.msra.mxu0 0.0
  %2776 = vmatprep.subr.mxu0 0.0
  %2777 = vmatpush1.msra.mxu0 0.0
  %2778 = vmatprep.subr.mxu0 0.0
  %2779 = vmatpush1.msra.mxu0 0.0
  %2780 = vmatprep.subr.mxu0 0.0
  %2781 = vmatpush1.msra.mxu0 0.0
  %2782 = vmatprep.subr.mxu0 0.0
  %2783 = vmatpush1.msra.mxu0 0.0
  %2784 = vmatprep.subr.mxu0 0.0
  %2785 = vmatpush1.msra.mxu0 0.0
  %2786 = vmatprep.subr.mxu0 0.0
  %2787 = vmatpush1.msra.mxu0 0.0
  %2788 = vmatprep.subr.mxu0 0.0
  %2789 = vmatpush1.msra.mxu0 0.0
  %2790 = vmatprep.subr.mxu0 0.0
  %2791 = vmatpush1.msra.mxu0 0.0
  %2792 = vmatprep.subr.mxu0 0.0
  %2793 = vmatpush1.msra.mxu0 0.0
  %2794 = vmatprep.subr.mxu0 0.0
  %2795 = vmatpush1.msra.mxu0 0.0
  %2796 = vmatprep.subr.mxu0 0.0
  %2797 = vmatpush1.msra.mxu0 0.0
  %2798 = vmatprep.subr.mxu0 0.0
  %2799 = vmatpush1.msra.mxu0 %v2742
  %2800 = vmatprep.subr.mxu0 0.0
  %2801 = vmatpush1.msra.mxu0 %v2741
  %2802 = vmatprep.subr.mxu0 0.0
  %2803 = vmatpush1.msra.mxu0 %v2740
  %2804 = vmatprep.subr.mxu0 0.0
  %2805 = vmatpush1.msra.mxu0 %v2739
  %2806 = vmatprep.subr.mxu0 0.0
  %2807 = vmatpush2.msra.mxu0 0.0
  %2808 = vmatprep.subr.mxu0 0.0
  %2809 = vmatpush2.msra.mxu0 0.0
  %2810 = vmatprep.subr.mxu0 0.0
  %2811 = vmatpush2.msra.mxu0 0.0
  %2812 = vmatprep.subr.mxu0 0.0
  %2813 = vmatpush2.msra.mxu0 0.0
  %2814 = vmatprep.subr.mxu0 0.0
  %2815 = vmatpush2.msra.mxu0 0.0
  %2816 = vmatprep.subr.mxu0 0.0
  %2817 = vmatpush2.msra.mxu0 0.0
  %2818 = vmatprep.subr.mxu0 0.0
  %2819 = vmatpush2.msra.mxu0 0.0
  %2820 = vmatprep.subr.mxu0 0.0
  %2821 = vmatpush2.msra.mxu0 0.0
  %2822 = vmatprep.subr.mxu0 0.0
  %2823 = vmatpush2.msra.mxu0 0.0
  %2824 = vmatprep.subr.mxu0 0.0
  %2825 = vmatpush2.msra.mxu0 0.0
  %2826 = vmatprep.subr.mxu0 0.0
  %2827 = vmatpush2.msra.mxu0 0.0
  %2828 = vmatprep.subr.mxu0 0.0
  %2829 = vmatpush2.msra.mxu0 0.0
  %2830 = vmatprep.subr.mxu0 0.0
  %2831 = vmatpush2.msra.mxu0 0.0
  %2832 = vmatprep.subr.mxu0 0.0
  %2833 = vmatpush2.msra.mxu0 0.0
  %2834 = vmatprep.subr.mxu0 0.0
  %2835 = vmatpush2.msra.mxu0 0.0
  %2836 = vmatprep.subr.mxu0 0.0
  %2837 = vmatpush2.msra.mxu0 0.0
  %2838 = vmatprep.mubr.f32.mxu0 0.0
  %2839 = vmatmul.mubr.f32.gmra.mxu0 %v2772
  %v2840 = vpop.f32.mrf.mxu0
  %v2841 = vadd.f32 %v2748, %v2840
  %v2842 = vpop.f32.mrf.mxu0
  %2843 = vdwg.mxu0
  %v2844 = vadd.f32 %v2841, %v1905
  %v2845 = vxor.u32 %v2844, 2147483648
  %v2846 = vmul.f32 %v2845, 1.442695
  %v2847 = vpow.pop %v2846
  %v2848 = vadd.f32 %v2847, 1.0
  %v2849 = vrcp.pop %v2848
  %v2850 = vmul.f32 1.0, %v2849
  %2852 = vrot.lane.b32.xlu0 %v1905, 64
  %v2853 = vpop.permute.xlu0 %2852
  %v2855 = vmul.f32 %v2850, %v2853
  %2857 = vrot.lane.b32.xlu0 %v2855, 64
  %v2858 = vpop.permute.xlu0 %2857
  %v2860 = vadd.f32 %v2841, %v2858
  %v2861 = vtanh.pop %v2860
  %v2862 = vsub.f32 1.0, %v2850
  %2864 = vrot.lane.b32.xlu0 %v2861, 96
  %v2865 = vpop.permute.xlu0 %2864
  %v2867 = vmul.f32 %v2862, %v2865
  %v2868 = vmul.f32 %v2850, %v1813
  %v2869 = vadd.f32 %v2867, %v2868
  %v2870 = vpack.c.bf16 %v2869, %v2869
  %v2872 = vunpack.c.l.b16 %v2870
  %v2873 = vpack.c.b16 %v2872, %v2872
  %2874 = vrot.lane.b32.xlu0 %v2873, 96
  %v2875 = vpop.permute.xlu0 %2874
  %2877 = vst.msk [vmem:[#allocation5 + $0x10] sm:$0xf] %vm89, %v2875
  %v2878 = vpack.c.bf16 %v2342, %v2342
  %v2879 = vpack.c.bf16 %v2398, %v2398
  %v2880 = vpack.c.bf16 %v2454, %v2454
  %v2881 = vpack.c.bf16 %v2510, %v2510
  %v2882 = vpack.c.bf16 %v2566, %v2566
  %v2883 = vpack.c.bf16 %v2622, %v2622
  %v2884 = vpack.c.bf16 %v2678, %v2678
  %v2885 = vpack.c.bf16 %v2734, %v2734
  %v2894 = vunpack.c.l.b16 %v2878
  %v2895 = vunpack.c.l.b16 %v2879
  %v2896 = vunpack.c.l.b16 %v2880
  %v2897 = vunpack.c.l.b16 %v2881
  %v2898 = vunpack.c.l.b16 %v2882
  %v2899 = vunpack.c.l.b16 %v2883
  %v2900 = vunpack.c.l.b16 %v2884
  %v2901 = vunpack.c.l.b16 %v2885
  %v2902 = vpack.c.b16 %v2894, %v2894
  %v2903 = vpack.c.b16 %v2895, %v2895
  %v2904 = vpack.c.b16 %v2896, %v2896
  %v2905 = vpack.c.b16 %v2897, %v2897
  %v2906 = vpack.c.b16 %v2898, %v2898
  %v2907 = vpack.c.b16 %v2899, %v2899
  %v2908 = vpack.c.b16 %v2900, %v2900
  %v2909 = vpack.c.b16 %v2901, %v2901
  %v2910 = vunpack.c.l.b16 %v2902
  %v2911 = vunpack.c.l.b16 %v2903
  %v2912 = vunpack.c.l.b16 %v2904
  %v2913 = vunpack.c.l.b16 %v2905
  %v2914 = vunpack.c.l.b16 %v2906
  %v2915 = vunpack.c.l.b16 %v2907
  %v2916 = vunpack.c.l.b16 %v2908
  %v2917 = vunpack.c.l.b16 %v2909
  %v2918 = vrot.slane %v2911, 7
  %v2919 = vsel %vm970, %v2918, %v2910
  %v2920 = vrot.slane %v2912, 6
  %v2921 = vsel %vm972, %v2920, %v2919
  %v2922 = vrot.slane %v2913, 5
  %v2923 = vsel %vm974, %v2922, %v2921
  %v2924 = vrot.slane %v2914, 4
  %v2925 = vsel %vm976, %v2924, %v2923
  %v2926 = vrot.slane %v2915, 3
  %v2927 = vsel %vm978, %v2926, %v2925
  %v2928 = vrot.slane %v2916, 2
  %v2929 = vsel %vm980, %v2928, %v2927
  %v2930 = vrot.slane %v2917, 1
  %v2931 = vsel %vm982, %v2930, %v2929
  %v2932 = vpack.c.b16 %v2931, %v2931
  %2934 = vst.msk [vmem:[#allocation5 + $0x14] sm:$0xf] %vm89, %v2932
  %s2935 = scalar_lea.vmem [#allocation2], 16
  %v2936 = vld [vmem:[%s2935] sm:$0xff]
  %v2937 = vld [vmem:[%s8] sm:$0xff]
  %v2938 = vld [vmem:[%s8 + $0x8] sm:$0xff]
  %v2939 = vld [vmem:[%s8 + $0x10] sm:$0xff]
  %v2940 = vld [vmem:[%s8 + $0x18] sm:$0xff]
  %v2941 = vld [vmem:[%s9] sm:$0x1]
  %v2943 = vlaneseq
  %v2944 = vshrl.u32 %v2943, 7
  %v2945 = vsub.s32 0, %v2944
  %v2946 = vrot.slane %v2941, %v2945
  %2949 = vrot.lane.b32.xlu0 %v2869, 96
  %v2950 = vpop.permute.xlu0 %2949
  %v2951 = vsel %vm134, %v2950, 0
  %2953 = vmatprep.subr.mxu0 0.0
  %2954 = vmatpush1.msra.mxu0 0.0
  %2955 = vmatprep.subr.mxu0 0.0
  %2956 = vmatpush1.msra.mxu0 0.0
  %2957 = vmatprep.subr.mxu0 0.0
  %2958 = vmatpush1.msra.mxu0 0.0
  %2959 = vmatprep.subr.mxu0 0.0
  %2960 = vmatpush1.msra.mxu0 0.0
  %2961 = vmatprep.subr.mxu0 0.0
  %2962 = vmatpush1.msra.mxu0 0.0
  %2963 = vmatprep.subr.mxu0 0.0
  %2964 = vmatpush1.msra.mxu0 0.0
  %2965 = vmatprep.subr.mxu0 0.0
  %2966 = vmatpush1.msra.mxu0 0.0
  %2967 = vmatprep.subr.mxu0 0.0
  %2968 = vmatpush1.msra.mxu0 0.0
  %2969 = vmatprep.subr.mxu0 0.0
  %2970 = vmatpush1.msra.mxu0 0.0
  %2971 = vmatprep.subr.mxu0 0.0
  %2972 = vmatpush1.msra.mxu0 0.0
  %2973 = vmatprep.subr.mxu0 0.0
  %2974 = vmatpush1.msra.mxu0 0.0
  %2975 = vmatprep.subr.mxu0 0.0
  %2976 = vmatpush1.msra.mxu0 0.0
  %2977 = vmatprep.subr.mxu0 0.0
  %2978 = vmatpush1.msra.mxu0 %v2940
  %2979 = vmatprep.subr.mxu0 0.0
  %2980 = vmatpush1.msra.mxu0 %v2939
  %2981 = vmatprep.subr.mxu0 0.0
  %2982 = vmatpush1.msra.mxu0 %v2938
  %2983 = vmatprep.subr.mxu0 0.0
  %2984 = vmatpush1.msra.mxu0 %v2937
  %2985 = vmatprep.subr.mxu0 0.0
  %2986 = vmatpush2.msra.mxu0 0.0
  %2987 = vmatprep.subr.mxu0 0.0
  %2988 = vmatpush2.msra.mxu0 0.0
  %2989 = vmatprep.subr.mxu0 0.0
  %2990 = vmatpush2.msra.mxu0 0.0
  %2991 = vmatprep.subr.mxu0 0.0
  %2992 = vmatpush2.msra.mxu0 0.0
  %2993 = vmatprep.subr.mxu0 0.0
  %2994 = vmatpush2.msra.mxu0 0.0
  %2995 = vmatprep.subr.mxu0 0.0
  %2996 = vmatpush2.msra.mxu0 0.0
  %2997 = vmatprep.subr.mxu0 0.0
  %2998 = vmatpush2.msra.mxu0 0.0
  %2999 = vmatprep.subr.mxu0 0.0
  %3000 = vmatpush2.msra.mxu0 0.0
  %3001 = vmatprep.subr.mxu0 0.0
  %3002 = vmatpush2.msra.mxu0 0.0
  %3003 = vmatprep.subr.mxu0 0.0
  %3004 = vmatpush2.msra.mxu0 0.0
  %3005 = vmatprep.subr.mxu0 0.0
  %3006 = vmatpush2.msra.mxu0 0.0
  %3007 = vmatprep.subr.mxu0 0.0
  %3008 = vmatpush2.msra.mxu0 0.0
  %3009 = vmatprep.subr.mxu0 0.0
  %3010 = vmatpush2.msra.mxu0 0.0
  %3011 = vmatprep.subr.mxu0 0.0
  %3012 = vmatpush2.msra.mxu0 0.0
  %3013 = vmatprep.subr.mxu0 0.0
  %3014 = vmatpush2.msra.mxu0 0.0
  %3015 = vmatprep.subr.mxu0 0.0
  %3016 = vmatpush2.msra.mxu0 0.0
  %3017 = vmatprep.mubr.f32.mxu0 0.0
  %3018 = vmatmul.mubr.f32.gmra.mxu0 %v2951
  %v3019 = vpop.f32.mrf.mxu0
  %v3020 = vadd.f32 %v2946, %v3019
  %v3021 = vpop.f32.mrf.mxu0
  %3022 = vdwg.mxu0
  %v3023 = vadd.f32 %v2936, %v3020
  %v3024 = vxor.u32 %v3023, 2147483648
  %v3025 = vmul.f32 %v3024, 1.442695
  %v3026 = vpow.pop %v3025
  %v3027 = vadd.f32 %v3026, 1.0
  %v3028 = vrcp.pop %v3027
  %v3029 = vmul.f32 1.0, %v3028
  %3031 = vrot.lane.b32.xlu0 %v3020, 64
  %v3032 = vpop.permute.xlu0 %3031
  %v3034 = vmul.f32 %v3029, %v3032
  %3036 = vrot.lane.b32.xlu0 %v3034, 64
  %v3037 = vpop.permute.xlu0 %3036
  %v3039 = vadd.f32 %v2936, %v3037
  %v3040 = vtanh.pop %v3039
  %v3041 = vsub.f32 1.0, %v3029
  %3043 = vrot.lane.b32.xlu0 %v3040, 96
  %v3044 = vpop.permute.xlu0 %3043
  %v3046 = vmul.f32 %v3041, %v3044
  %v3047 = vmul.f32 %v3029, %v2869
  %v3048 = vadd.f32 %v3046, %v3047
  %v3049 = vld [vmem:[%s13] sm:$0xff]
  %v3050 = vld [vmem:[%s13 + $0x8] sm:$0xff]
  %v3051 = vld [vmem:[%s13 + $0x10] sm:$0xff]
  %v3052 = vld [vmem:[%s13 + $0x18] sm:$0xff]
  %v3053 = vld [vmem:[%s13 + $0x20] sm:$0xff]
  %v3054 = vld [vmem:[%s13 + $0x28] sm:$0xff]
  %v3055 = vld [vmem:[%s13 + $0x30] sm:$0xff]
  %v3056 = vld [vmem:[%s13 + $0x38] sm:$0xff]
  %3058 = vrot.lane.b32.xlu0 %v3048, 96
  %v3059 = vpop.permute.xlu0 %3058
  %v3060 = vsel %vm134, %v3059, 0
  %3062 = vmatprep.subr.mxu0 0.0
  %3063 = vmatpush1.msra.mxu0 0.0
  %3064 = vmatprep.subr.mxu0 0.0
  %3065 = vmatpush1.msra.mxu0 0.0
  %3066 = vmatprep.subr.mxu0 0.0
  %3067 = vmatpush1.msra.mxu0 0.0
  %3068 = vmatprep.subr.mxu0 0.0
  %3069 = vmatpush1.msra.mxu0 0.0
  %3070 = vmatprep.subr.mxu0 0.0
  %3071 = vmatpush1.msra.mxu0 0.0
  %3072 = vmatprep.subr.mxu0 0.0
  %3073 = vmatpush1.msra.mxu0 0.0
  %3074 = vmatprep.subr.mxu0 0.0
  %3075 = vmatpush1.msra.mxu0 0.0
  %3076 = vmatprep.subr.mxu0 0.0
  %3077 = vmatpush1.msra.mxu0 0.0
  %3078 = vmatprep.subr.mxu0 0.0
  %3079 = vmatpush1.msra.mxu0 0.0
  %3080 = vmatprep.subr.mxu0 0.0
  %3081 = vmatpush1.msra.mxu0 0.0
  %3082 = vmatprep.subr.mxu0 0.0
  %3083 = vmatpush1.msra.mxu0 0.0
  %3084 = vmatprep.subr.mxu0 0.0
  %3085 = vmatpush1.msra.mxu0 0.0
  %3086 = vmatprep.subr.mxu0 %v3056
  %3087 = vmatpush1.msra.mxu0 %v3055
  %3088 = vmatprep.subr.mxu0 %v3054
  %3089 = vmatpush1.msra.mxu0 %v3053
  %3090 = vmatprep.subr.mxu0 %v3052
  %3091 = vmatpush1.msra.mxu0 %v3051
  %3092 = vmatprep.subr.mxu0 %v3050
  %3093 = vmatpush1.msra.mxu0 %v3049
  %3094 = vmatprep.subr.mxu0 0.0
  %3095 = vmatpush2.msra.mxu0 0.0
  %3096 = vmatprep.subr.mxu0 0.0
  %3097 = vmatpush2.msra.mxu0 0.0
  %3098 = vmatprep.subr.mxu0 0.0
  %3099 = vmatpush2.msra.mxu0 0.0
  %3100 = vmatprep.subr.mxu0 0.0
  %3101 = vmatpush2.msra.mxu0 0.0
  %3102 = vmatprep.subr.mxu0 0.0
  %3103 = vmatpush2.msra.mxu0 0.0
  %3104 = vmatprep.subr.mxu0 0.0
  %3105 = vmatpush2.msra.mxu0 0.0
  %3106 = vmatprep.subr.mxu0 0.0
  %3107 = vmatpush2.msra.mxu0 0.0
  %3108 = vmatprep.subr.mxu0 0.0
  %3109 = vmatpush2.msra.mxu0 0.0
  %3110 = vmatprep.subr.mxu0 0.0
  %3111 = vmatpush2.msra.mxu0 0.0
  %3112 = vmatprep.subr.mxu0 0.0
  %3113 = vmatpush2.msra.mxu0 0.0
  %3114 = vmatprep.subr.mxu0 0.0
  %3115 = vmatpush2.msra.mxu0 0.0
  %3116 = vmatprep.subr.mxu0 0.0
  %3117 = vmatpush2.msra.mxu0 0.0
  %3118 = vmatprep.subr.mxu0 0.0
  %3119 = vmatpush2.msra.mxu0 0.0
  %3120 = vmatprep.subr.mxu0 0.0
  %3121 = vmatpush2.msra.mxu0 0.0
  %3122 = vmatprep.subr.mxu0 0.0
  %3123 = vmatpush2.msra.mxu0 0.0
  %3124 = vmatprep.subr.mxu0 0.0
  %3125 = vmatpush2.msra.mxu0 0.0
  %3126 = vmatprep.mubr.f32.mxu0 0.0
  %3127 = vmatmul.mubr.f32.gmra.mxu0 %v3060
  %v3128 = vpop.f32.mrf.mxu0
  %v3129 = vadd.f32 0.0, %v3128
  %v3130 = vpop.f32.mrf.mxu0
  %v3131 = vadd.f32 0.0, %v3130
  %3132 = vdwg.mxu0
  %v3133 = vld [vmem:[%s14] sm:$0x1]
  %v3135 = vlaneseq
  %v3136 = vshrl.u32 %v3135, 7
  %v3137 = vsub.s32 0, %v3136
  %v3138 = vrot.slane %v3133, %v3137
  %v3140 = vadd.f32 %v3129, %v3138
  %v3141 = vld [vmem:[#allocation3] sm:$0xff]
  %v3142 = vld [vmem:[#allocation3 + $0x8] sm:$0xff]
  %v3143 = vld [vmem:[#allocation3 + $0x10] sm:$0xff]
  %v3144 = vld [vmem:[#allocation3 + $0x18] sm:$0xff]
  %v3145 = vld [vmem:[#allocation3 + $0x20] sm:$0xff]
  %v3146 = vld [vmem:[#allocation3 + $0x28] sm:$0xff]
  %v3147 = vld [vmem:[#allocation3 + $0x30] sm:$0xff]
  %v3148 = vld [vmem:[#allocation3 + $0x38] sm:$0xff]
  %v3150 = vcombine.high %v3131, %v3131
  %v3152 = vunpack.c.l.s4 1966171168
  %v3153 = vunpack.c.0.s8 %v3152
  %v3154 = vlaneseq
  %v3155 = vshrl.u32 %v3154, 7
  %v3156 = vsub.s32 %v3153, %v3155
  %v3157 = vrot.slane %v3131, %v3156
  %v3159 = vunpack.c.l.s4 1966171168
  %v3160 = vunpack.c.0.s8 %v3159
  %v3161 = vlaneseq
  %v3162 = vshrl.u32 %v3161, 7
  %v3163 = vsub.s32 %v3160, %v3162
  %v3164 = vrot.slane %v3150, %v3163
  %v3165 = vcombine.high %v3157, %v3157
  %v3166 = vcombine.high %v3164, %v3164
  %v3168 = vunpack.c.l.s4 1966171168
  %v3169 = vunpack.c.0.s8 %v3168
  %v3170 = vlaneseq
  %v3171 = vshrl.u32 %v3170, 7
  %v3172 = vsub.s32 %v3169, %v3171
  %v3173 = vrot.slane %v3157, %v3172
  %v3175 = vunpack.c.l.s4 1966171168
  %v3176 = vunpack.c.0.s8 %v3175
  %v3177 = vlaneseq
  %v3178 = vshrl.u32 %v3177, 7
  %v3179 = vsub.s32 %v3176, %v3178
  %v3180 = vrot.slane %v3164, %v3179
  %v3182 = vunpack.c.l.s4 1966171168
  %v3183 = vunpack.c.0.s8 %v3182
  %v3184 = vlaneseq
  %v3185 = vshrl.u32 %v3184, 7
  %v3186 = vsub.s32 %v3183, %v3185
  %v3187 = vrot.slane %v3165, %v3186
  %v3189 = vunpack.c.l.s4 1966171168
  %v3190 = vunpack.c.0.s8 %v3189
  %v3191 = vlaneseq
  %v3192 = vshrl.u32 %v3191, 7
  %v3193 = vsub.s32 %v3190, %v3192
  %v3194 = vrot.slane %v3166, %v3193
  %v3195 = vcombine.high %v3173, %v3173
  %v3196 = vcombine.high %v3180, %v3180
  %v3197 = vcombine.high %v3187, %v3187
  %v3198 = vcombine.high %v3194, %v3194
  %v3199 = vlaneseq
  %v3200 = vshrl.u32 %v3199, 7
  %v3201 = vsub.s32 0, %v3200
  %v3202 = vrot.slane %v3173, %v3201
  %v3203 = vlaneseq
  %v3204 = vshrl.u32 %v3203, 7
  %v3205 = vsub.s32 0, %v3204
  %v3206 = vrot.slane %v3187, %v3205
  %v3207 = vlaneseq
  %v3208 = vshrl.u32 %v3207, 7
  %v3209 = vsub.s32 0, %v3208
  %v3210 = vrot.slane %v3195, %v3209
  %v3211 = vlaneseq
  %v3212 = vshrl.u32 %v3211, 7
  %v3213 = vsub.s32 0, %v3212
  %v3214 = vrot.slane %v3197, %v3213
  %v3215 = vlaneseq
  %v3216 = vshrl.u32 %v3215, 7
  %v3217 = vsub.s32 0, %v3216
  %v3218 = vrot.slane %v3180, %v3217
  %v3219 = vlaneseq
  %v3220 = vshrl.u32 %v3219, 7
  %v3221 = vsub.s32 0, %v3220
  %v3222 = vrot.slane %v3194, %v3221
  %v3223 = vlaneseq
  %v3224 = vshrl.u32 %v3223, 7
  %v3225 = vsub.s32 0, %v3224
  %v3226 = vrot.slane %v3196, %v3225
  %v3227 = vlaneseq
  %v3228 = vshrl.u32 %v3227, 7
  %v3229 = vsub.s32 0, %v3228
  %v3230 = vrot.slane %v3198, %v3229
  %v3239 = vadd.f32 %v3141, %v3202
  %v3240 = vadd.f32 %v3142, %v3206
  %v3241 = vadd.f32 %v3143, %v3210
  %v3242 = vadd.f32 %v3144, %v3214
  %v3243 = vadd.f32 %v3145, %v3218
  %v3244 = vadd.f32 %v3146, %v3222
  %v3245 = vadd.f32 %v3147, %v3226
  %v3246 = vadd.f32 %v3148, %v3230
  %v3247 = vtanh.pop %v3239
  %v3248 = vtanh.pop %v3240
  %v3249 = vtanh.pop %v3241
  %v3250 = vtanh.pop %v3242
  %v3251 = vtanh.pop %v3243
  %v3252 = vtanh.pop %v3244
  %v3253 = vtanh.pop %v3245
  %v3254 = vtanh.pop %v3246
  %v3255 = vld [vmem:[%s12] sm:$0x1]
  %v3257 = vlaneseq
  %v3258 = vshrl.u32 %v3257, 7
  %v3259 = vsub.s32 0, %v3258
  %v3260 = vrot.slane %v3255, %v3259
  %v3262 = vmul.f32 %v3247, %v3260
  %v3263 = vmul.f32 %v3248, %v3260
  %v3264 = vmul.f32 %v3249, %v3260
  %v3265 = vmul.f32 %v3250, %v3260
  %v3266 = vmul.f32 %v3251, %v3260
  %v3267 = vmul.f32 %v3252, %v3260
  %v3268 = vmul.f32 %v3253, %v3260
  %v3269 = vmul.f32 %v3254, %v3260
  %v3270 = vsel %vm134, %v3262, 0.0
  %3271 = vadd.xlane.f32.xlu0 %v3270
  %v3272 = vpop.xlane.xlu0 %3271
  %v3273 = vsel %vm134, %v3263, 0.0
  %3274 = vadd.xlane.f32.xlu0 %v3273
  %v3275 = vpop.xlane.xlu0 %3274
  %v3276 = vsel %vm134, %v3264, 0.0
  %3277 = vadd.xlane.f32.xlu0 %v3276
  %v3278 = vpop.xlane.xlu0 %3277
  %v3279 = vsel %vm134, %v3265, 0.0
  %3280 = vadd.xlane.f32.xlu0 %v3279
  %v3281 = vpop.xlane.xlu0 %3280
  %v3282 = vsel %vm134, %v3266, 0.0
  %3283 = vadd.xlane.f32.xlu0 %v3282
  %v3284 = vpop.xlane.xlu0 %3283
  %v3285 = vsel %vm134, %v3267, 0.0
  %3286 = vadd.xlane.f32.xlu0 %v3285
  %v3287 = vpop.xlane.xlu0 %3286
  %v3288 = vsel %vm134, %v3268, 0.0
  %3289 = vadd.xlane.f32.xlu0 %v3288
  %v3290 = vpop.xlane.xlu0 %3289
  %v3291 = vsel %vm134, %v3269, 0.0
  %3292 = vadd.xlane.f32.xlu0 %v3291
  %v3293 = vpop.xlane.xlu0 %3292
  %v3294 = vld [vmem:[#allocation4] sm:$0xff]
  %v3296 = vlaneseq
  %v3297 = vshrl.u32 %v3296, 7
  %v3298 = vsub.s32 0, %v3297
  %v3299 = vrot.slane %v3294, %v3298
  %3301 = vbcast.lane.b32.xlu0 %v3299, 256
  %v3302 = vpop.permute.xlu0 %3301
  %v3303 = vlaneseq
  %v3304 = vshrl.u32 %v3303, 7
  %v3305 = vsub.s32 1, %v3304
  %v3306 = vrot.slane %v3294, %v3305
  %3308 = vbcast.lane.b32.xlu0 %v3306, 256
  %v3309 = vpop.permute.xlu0 %3308
  %v3310 = vlaneseq
  %v3311 = vshrl.u32 %v3310, 7
  %v3312 = vsub.s32 2, %v3311
  %v3313 = vrot.slane %v3294, %v3312
  %3315 = vbcast.lane.b32.xlu0 %v3313, 256
  %v3316 = vpop.permute.xlu0 %3315
  %v3317 = vlaneseq
  %v3318 = vshrl.u32 %v3317, 7
  %v3319 = vsub.s32 3, %v3318
  %v3320 = vrot.slane %v3294, %v3319
  %3322 = vbcast.lane.b32.xlu0 %v3320, 256
  %v3323 = vpop.permute.xlu0 %3322
  %v3324 = vlaneseq
  %v3325 = vshrl.u32 %v3324, 7
  %v3326 = vsub.s32 4, %v3325
  %v3327 = vrot.slane %v3294, %v3326
  %3329 = vbcast.lane.b32.xlu0 %v3327, 256
  %v3330 = vpop.permute.xlu0 %3329
  %v3331 = vlaneseq
  %v3332 = vshrl.u32 %v3331, 7
  %v3333 = vsub.s32 5, %v3332
  %v3334 = vrot.slane %v3294, %v3333
  %3336 = vbcast.lane.b32.xlu0 %v3334, 256
  %v3337 = vpop.permute.xlu0 %3336
  %v3338 = vlaneseq
  %v3339 = vshrl.u32 %v3338, 7
  %v3340 = vsub.s32 6, %v3339
  %v3341 = vrot.slane %v3294, %v3340
  %3343 = vbcast.lane.b32.xlu0 %v3341, 256
  %v3344 = vpop.permute.xlu0 %3343
  %v3345 = vlaneseq
  %v3346 = vshrl.u32 %v3345, 7
  %v3347 = vsub.s32 7, %v3346
  %v3348 = vrot.slane %v3294, %v3347
  %3350 = vbcast.lane.b32.xlu0 %v3348, 256
  %v3351 = vpop.permute.xlu0 %3350
  %v3360 = vadd.f32 %v3272, %v3302
  %v3361 = vadd.f32 %v3275, %v3309
  %v3362 = vadd.f32 %v3278, %v3316
  %v3363 = vadd.f32 %v3281, %v3323
  %v3364 = vadd.f32 %v3284, %v3330
  %v3365 = vadd.f32 %v3287, %v3337
  %v3366 = vadd.f32 %v3290, %v3344
  %v3367 = vadd.f32 %v3293, %v3351
  %v3368 = vmul.f32 %v3360, 1.442695
  %v3369 = vpow.pop %v3368
  %v3370 = vmul.f32 %v3361, 1.442695
  %v3371 = vpow.pop %v3370
  %v3372 = vmul.f32 %v3362, 1.442695
  %v3373 = vpow.pop %v3372
  %v3374 = vmul.f32 %v3363, 1.442695
  %v3375 = vpow.pop %v3374
  %v3376 = vmul.f32 %v3364, 1.442695
  %v3377 = vpow.pop %v3376
  %v3378 = vmul.f32 %v3365, 1.442695
  %v3379 = vpow.pop %v3378
  %v3380 = vmul.f32 %v3366, 1.442695
  %v3381 = vpow.pop %v3380
  %v3382 = vmul.f32 %v3367, 1.442695
  %v3383 = vpow.pop %v3382
  %3392 = vset.pattern.permute.xlu0 0
  %3393 = vperm.xlu0 %3392, %v3369
  %v3394 = vpop.permute.xlu0 %3393
  %3395 = vset.pattern.permute.xlu0 0
  %3396 = vperm.xlu0 %3395, %v3371
  %v3397 = vpop.permute.xlu0 %3396
  %3398 = vset.pattern.permute.xlu0 0
  %3399 = vperm.xlu0 %3398, %v3373
  %v3400 = vpop.permute.xlu0 %3399
  %3401 = vset.pattern.permute.xlu0 0
  %3402 = vperm.xlu0 %3401, %v3375
  %v3403 = vpop.permute.xlu0 %3402
  %3404 = vset.pattern.permute.xlu0 0
  %3405 = vperm.xlu0 %3404, %v3377
  %v3406 = vpop.permute.xlu0 %3405
  %3407 = vset.pattern.permute.xlu0 0
  %3408 = vperm.xlu0 %3407, %v3379
  %v3409 = vpop.permute.xlu0 %3408
  %3410 = vset.pattern.permute.xlu0 0
  %3411 = vperm.xlu0 %3410, %v3381
  %v3412 = vpop.permute.xlu0 %3411
  %3413 = vset.pattern.permute.xlu0 0
  %3414 = vperm.xlu0 %3413, %v3383
  %v3415 = vpop.permute.xlu0 %3414
  %v3416 = vlaneseq
  %v3417 = vshrl.u32 %v3416, 7
  %v3418 = vsub.s32 %v937, %v3417
  %v3419 = vrot.slane %v3394, %v3418
  %v3420 = vlaneseq
  %v3421 = vshrl.u32 %v3420, 7
  %v3422 = vsub.s32 %v937, %v3421
  %v3423 = vrot.slane %v3397, %v3422
  %v3424 = vlaneseq
  %v3425 = vshrl.u32 %v3424, 7
  %v3426 = vsub.s32 %v937, %v3425
  %v3427 = vrot.slane %v3400, %v3426
  %v3428 = vlaneseq
  %v3429 = vshrl.u32 %v3428, 7
  %v3430 = vsub.s32 %v937, %v3429
  %v3431 = vrot.slane %v3403, %v3430
  %v3432 = vlaneseq
  %v3433 = vshrl.u32 %v3432, 7
  %v3434 = vsub.s32 %v937, %v3433
  %v3435 = vrot.slane %v3406, %v3434
  %v3436 = vlaneseq
  %v3437 = vshrl.u32 %v3436, 7
  %v3438 = vsub.s32 %v937, %v3437
  %v3439 = vrot.slane %v3409, %v3438
  %v3440 = vlaneseq
  %v3441 = vshrl.u32 %v3440, 7
  %v3442 = vsub.s32 %v937, %v3441
  %v3443 = vrot.slane %v3412, %v3442
  %v3444 = vlaneseq
  %v3445 = vshrl.u32 %v3444, 7
  %v3446 = vsub.s32 %v937, %v3445
  %v3447 = vrot.slane %v3415, %v3446
  %v3448 = vsel %vm970, %v3423, %v3419
  %v3449 = vsel %vm972, %v3427, %v3448
  %v3450 = vsel %vm974, %v3431, %v3449
  %v3451 = vsel %vm976, %v3435, %v3450
  %v3452 = vsel %vm978, %v3439, %v3451
  %v3453 = vsel %vm980, %v3443, %v3452
  %v3454 = vsel %vm982, %v3447, %v3453
  %v3456 = vsel %vm452, %v3454, 0.0
  %3457 = vadd.xlane.f32.xlu0 %v3456
  %v3458 = vpop.xlane.xlu0 %3457
  %v3459 = vmax.f32 %v3458, 1e-30
  %v3460 = vrcp.pop %v3459
  %v3462 = vlaneseq
  %v3463 = vshrl.u32 %v3462, 7
  %v3464 = vsub.s32 0, %v3463
  %v3465 = vrot.slane %v3460, %v3464
  %v3466 = vlaneseq
  %v3467 = vshrl.u32 %v3466, 7
  %v3468 = vsub.s32 1, %v3467
  %v3469 = vrot.slane %v3460, %v3468
  %v3470 = vlaneseq
  %v3471 = vshrl.u32 %v3470, 7
  %v3472 = vsub.s32 2, %v3471
  %v3473 = vrot.slane %v3460, %v3472
  %v3474 = vlaneseq
  %v3475 = vshrl.u32 %v3474, 7
  %v3476 = vsub.s32 3, %v3475
  %v3477 = vrot.slane %v3460, %v3476
  %v3478 = vlaneseq
  %v3479 = vshrl.u32 %v3478, 7
  %v3480 = vsub.s32 4, %v3479
  %v3481 = vrot.slane %v3460, %v3480
  %v3482 = vlaneseq
  %v3483 = vshrl.u32 %v3482, 7
  %v3484 = vsub.s32 5, %v3483
  %v3485 = vrot.slane %v3460, %v3484
  %v3486 = vlaneseq
  %v3487 = vshrl.u32 %v3486, 7
  %v3488 = vsub.s32 6, %v3487
  %v3489 = vrot.slane %v3460, %v3488
  %v3490 = vlaneseq
  %v3491 = vshrl.u32 %v3490, 7
  %v3492 = vsub.s32 7, %v3491
  %v3493 = vrot.slane %v3460, %v3492
  %v3502 = vmul.f32 %v3369, %v3465
  %v3503 = vmul.f32 %v3371, %v3469
  %v3504 = vmul.f32 %v3373, %v3473
  %v3505 = vmul.f32 %v3375, %v3477
  %v3506 = vmul.f32 %v3377, %v3481
  %v3507 = vmul.f32 %v3379, %v3485
  %v3508 = vmul.f32 %v3381, %v3489
  %v3509 = vmul.f32 %v3383, %v3493
  %v3510 = vpack.c.bf16 %v3502, %v3502
  %v3511 = vpack.c.bf16 %v3503, %v3503
  %v3512 = vpack.c.bf16 %v3504, %v3504
  %v3513 = vpack.c.bf16 %v3505, %v3505
  %v3514 = vpack.c.bf16 %v3506, %v3506
  %v3515 = vpack.c.bf16 %v3507, %v3507
  %v3516 = vpack.c.bf16 %v3508, %v3508
  %v3517 = vpack.c.bf16 %v3509, %v3509
  %v3518 = vld [vmem:[%s2] sm:$0xf]
  %v3519 = vld [vmem:[%s2 + $0x4] sm:$0xf]
  %v3520 = vld [vmem:[%s2 + $0x8] sm:$0xf]
  %v3521 = vld [vmem:[%s2 + $0xc] sm:$0xf]
  %v3522 = vld [vmem:[%s2 + $0x10] sm:$0xf]
  %v3523 = vld [vmem:[%s2 + $0x14] sm:$0xf]
  %v3524 = vld [vmem:[%s2 + $0x18] sm:$0xf]
  %v3525 = vld [vmem:[%s2 + $0x1c] sm:$0xf]
  %v3527 = vunpack.c.l.b16 %v3510
  %3528 = vset.pattern.permute.xlu0 0
  %3529 = vperm.xlu0 %3528, %v3527
  %v3530 = vpop.permute.xlu0 %3529
  %v3531 = vlaneseq
  %v3532 = vshrl.u32 %v3531, 7
  %v3533 = vsub.s32 %v937, %v3532
  %v3534 = vrot.slane %v3530, %v3533
  %v3535 = vpack.c.b16 %v3534, %v3534
  %v3537 = vsel %vm452, %v3535, 0
  %v3540 = vsel %vm1068, %v3518, 0
  %3542 = vmatprep.subr.bf16.mxu0 0
  %3543 = vmatpush1.bf16.msra.mxu0 0
  %3544 = vmatprep.subr.bf16.mxu0 0
  %3545 = vmatpush1.bf16.msra.mxu0 0
  %3546 = vmatprep.subr.bf16.mxu0 0
  %3547 = vmatpush1.bf16.msra.mxu0 0
  %3548 = vmatprep.subr.bf16.mxu0 0
  %3549 = vmatpush1.bf16.msra.mxu0 0
  %3550 = vmatprep.subr.bf16.mxu0 0
  %3551 = vmatpush1.bf16.msra.mxu0 0
  %3552 = vmatprep.subr.bf16.mxu0 0
  %3553 = vmatpush1.bf16.msra.mxu0 0
  %3554 = vmatprep.subr.bf16.mxu0 0
  %3555 = vmatpush1.bf16.msra.mxu0 0
  %3556 = vmatprep.subr.bf16.mxu0 0
  %3557 = vmatpush1.bf16.msra.mxu0 %v3540
  %3558 = vmatprep.subr.bf16.mxu0 0
  %3559 = vmatpush2.bf16.msra.mxu0 0
  %3560 = vmatprep.subr.bf16.mxu0 0
  %3561 = vmatpush2.bf16.msra.mxu0 0
  %3562 = vmatprep.subr.bf16.mxu0 0
  %3563 = vmatpush2.bf16.msra.mxu0 0
  %3564 = vmatprep.subr.bf16.mxu0 0
  %3565 = vmatpush2.bf16.msra.mxu0 0
  %3566 = vmatprep.subr.bf16.mxu0 0
  %3567 = vmatpush2.bf16.msra.mxu0 0
  %3568 = vmatprep.subr.bf16.mxu0 0
  %3569 = vmatpush2.bf16.msra.mxu0 0
  %3570 = vmatprep.subr.bf16.mxu0 0
  %3571 = vmatpush2.bf16.msra.mxu0 0
  %3572 = vmatprep.subr.bf16.mxu0 0
  %3573 = vmatpush2.bf16.msra.mxu0 0
  %3574 = vmatprep.mubr.bf16.mxu0 0
  %3575 = vmatmul.mubr.bf16.gmra.mxu0 %v3537
  %v3576 = vpop.f32.mrf.mxu0
  %v3577 = vadd.f32 0.0, %v3576
  %v3578 = vpop.f32.mrf.mxu0
  %v3579 = vpop.f32.mrf.mxu0
  %v3580 = vpop.f32.mrf.mxu0
  %3581 = vdwg.mxu0
  %v3583 = vunpack.c.l.b16 %v3511
  %3584 = vset.pattern.permute.xlu0 0
  %3585 = vperm.xlu0 %3584, %v3583
  %v3586 = vpop.permute.xlu0 %3585
  %v3587 = vlaneseq
  %v3588 = vshrl.u32 %v3587, 7
  %v3589 = vsub.s32 %v937, %v3588
  %v3590 = vrot.slane %v3586, %v3589
  %v3591 = vpack.c.b16 %v3590, %v3590
  %v3593 = vsel %vm452, %v3591, 0
  %v3596 = vsel %vm1068, %v3519, 0
  %3598 = vmatprep.subr.bf16.mxu0 0
  %3599 = vmatpush1.bf16.msra.mxu0 0
  %3600 = vmatprep.subr.bf16.mxu0 0
  %3601 = vmatpush1.bf16.msra.mxu0 0
  %3602 = vmatprep.subr.bf16.mxu0 0
  %3603 = vmatpush1.bf16.msra.mxu0 0
  %3604 = vmatprep.subr.bf16.mxu0 0
  %3605 = vmatpush1.bf16.msra.mxu0 0
  %3606 = vmatprep.subr.bf16.mxu0 0
  %3607 = vmatpush1.bf16.msra.mxu0 0
  %3608 = vmatprep.subr.bf16.mxu0 0
  %3609 = vmatpush1.bf16.msra.mxu0 0
  %3610 = vmatprep.subr.bf16.mxu0 0
  %3611 = vmatpush1.bf16.msra.mxu0 0
  %3612 = vmatprep.subr.bf16.mxu0 0
  %3613 = vmatpush1.bf16.msra.mxu0 %v3596
  %3614 = vmatprep.subr.bf16.mxu0 0
  %3615 = vmatpush2.bf16.msra.mxu0 0
  %3616 = vmatprep.subr.bf16.mxu0 0
  %3617 = vmatpush2.bf16.msra.mxu0 0
  %3618 = vmatprep.subr.bf16.mxu0 0
  %3619 = vmatpush2.bf16.msra.mxu0 0
  %3620 = vmatprep.subr.bf16.mxu0 0
  %3621 = vmatpush2.bf16.msra.mxu0 0
  %3622 = vmatprep.subr.bf16.mxu0 0
  %3623 = vmatpush2.bf16.msra.mxu0 0
  %3624 = vmatprep.subr.bf16.mxu0 0
  %3625 = vmatpush2.bf16.msra.mxu0 0
  %3626 = vmatprep.subr.bf16.mxu0 0
  %3627 = vmatpush2.bf16.msra.mxu0 0
  %3628 = vmatprep.subr.bf16.mxu0 0
  %3629 = vmatpush2.bf16.msra.mxu0 0
  %3630 = vmatprep.mubr.bf16.mxu0 0
  %3631 = vmatmul.mubr.bf16.gmra.mxu0 %v3593
  %v3632 = vpop.f32.mrf.mxu0
  %v3633 = vadd.f32 0.0, %v3632
  %v3634 = vpop.f32.mrf.mxu0
  %v3635 = vpop.f32.mrf.mxu0
  %v3636 = vpop.f32.mrf.mxu0
  %3637 = vdwg.mxu0
  %v3639 = vunpack.c.l.b16 %v3512
  %3640 = vset.pattern.permute.xlu0 0
  %3641 = vperm.xlu0 %3640, %v3639
  %v3642 = vpop.permute.xlu0 %3641
  %v3643 = vlaneseq
  %v3644 = vshrl.u32 %v3643, 7
  %v3645 = vsub.s32 %v937, %v3644
  %v3646 = vrot.slane %v3642, %v3645
  %v3647 = vpack.c.b16 %v3646, %v3646
  %v3649 = vsel %vm452, %v3647, 0
  %v3652 = vsel %vm1068, %v3520, 0
  %3654 = vmatprep.subr.bf16.mxu0 0
  %3655 = vmatpush1.bf16.msra.mxu0 0
  %3656 = vmatprep.subr.bf16.mxu0 0
  %3657 = vmatpush1.bf16.msra.mxu0 0
  %3658 = vmatprep.subr.bf16.mxu0 0
  %3659 = vmatpush1.bf16.msra.mxu0 0
  %3660 = vmatprep.subr.bf16.mxu0 0
  %3661 = vmatpush1.bf16.msra.mxu0 0
  %3662 = vmatprep.subr.bf16.mxu0 0
  %3663 = vmatpush1.bf16.msra.mxu0 0
  %3664 = vmatprep.subr.bf16.mxu0 0
  %3665 = vmatpush1.bf16.msra.mxu0 0
  %3666 = vmatprep.subr.bf16.mxu0 0
  %3667 = vmatpush1.bf16.msra.mxu0 0
  %3668 = vmatprep.subr.bf16.mxu0 0
  %3669 = vmatpush1.bf16.msra.mxu0 %v3652
  %3670 = vmatprep.subr.bf16.mxu0 0
  %3671 = vmatpush2.bf16.msra.mxu0 0
  %3672 = vmatprep.subr.bf16.mxu0 0
  %3673 = vmatpush2.bf16.msra.mxu0 0
  %3674 = vmatprep.subr.bf16.mxu0 0
  %3675 = vmatpush2.bf16.msra.mxu0 0
  %3676 = vmatprep.subr.bf16.mxu0 0
  %3677 = vmatpush2.bf16.msra.mxu0 0
  %3678 = vmatprep.subr.bf16.mxu0 0
  %3679 = vmatpush2.bf16.msra.mxu0 0
  %3680 = vmatprep.subr.bf16.mxu0 0
  %3681 = vmatpush2.bf16.msra.mxu0 0
  %3682 = vmatprep.subr.bf16.mxu0 0
  %3683 = vmatpush2.bf16.msra.mxu0 0
  %3684 = vmatprep.subr.bf16.mxu0 0
  %3685 = vmatpush2.bf16.msra.mxu0 0
  %3686 = vmatprep.mubr.bf16.mxu0 0
  %3687 = vmatmul.mubr.bf16.gmra.mxu0 %v3649
  %v3688 = vpop.f32.mrf.mxu0
  %v3689 = vadd.f32 0.0, %v3688
  %v3690 = vpop.f32.mrf.mxu0
  %v3691 = vpop.f32.mrf.mxu0
  %v3692 = vpop.f32.mrf.mxu0
  %3693 = vdwg.mxu0
  %v3695 = vunpack.c.l.b16 %v3513
  %3696 = vset.pattern.permute.xlu0 0
  %3697 = vperm.xlu0 %3696, %v3695
  %v3698 = vpop.permute.xlu0 %3697
  %v3699 = vlaneseq
  %v3700 = vshrl.u32 %v3699, 7
  %v3701 = vsub.s32 %v937, %v3700
  %v3702 = vrot.slane %v3698, %v3701
  %v3703 = vpack.c.b16 %v3702, %v3702
  %v3705 = vsel %vm452, %v3703, 0
  %v3708 = vsel %vm1068, %v3521, 0
  %3710 = vmatprep.subr.bf16.mxu0 0
  %3711 = vmatpush1.bf16.msra.mxu0 0
  %3712 = vmatprep.subr.bf16.mxu0 0
  %3713 = vmatpush1.bf16.msra.mxu0 0
  %3714 = vmatprep.subr.bf16.mxu0 0
  %3715 = vmatpush1.bf16.msra.mxu0 0
  %3716 = vmatprep.subr.bf16.mxu0 0
  %3717 = vmatpush1.bf16.msra.mxu0 0
  %3718 = vmatprep.subr.bf16.mxu0 0
  %3719 = vmatpush1.bf16.msra.mxu0 0
  %3720 = vmatprep.subr.bf16.mxu0 0
  %3721 = vmatpush1.bf16.msra.mxu0 0
  %3722 = vmatprep.subr.bf16.mxu0 0
  %3723 = vmatpush1.bf16.msra.mxu0 0
  %3724 = vmatprep.subr.bf16.mxu0 0
  %3725 = vmatpush1.bf16.msra.mxu0 %v3708
  %3726 = vmatprep.subr.bf16.mxu0 0
  %3727 = vmatpush2.bf16.msra.mxu0 0
  %3728 = vmatprep.subr.bf16.mxu0 0
  %3729 = vmatpush2.bf16.msra.mxu0 0
  %3730 = vmatprep.subr.bf16.mxu0 0
  %3731 = vmatpush2.bf16.msra.mxu0 0
  %3732 = vmatprep.subr.bf16.mxu0 0
  %3733 = vmatpush2.bf16.msra.mxu0 0
  %3734 = vmatprep.subr.bf16.mxu0 0
  %3735 = vmatpush2.bf16.msra.mxu0 0
  %3736 = vmatprep.subr.bf16.mxu0 0
  %3737 = vmatpush2.bf16.msra.mxu0 0
  %3738 = vmatprep.subr.bf16.mxu0 0
  %3739 = vmatpush2.bf16.msra.mxu0 0
  %3740 = vmatprep.subr.bf16.mxu0 0
  %3741 = vmatpush2.bf16.msra.mxu0 0
  %3742 = vmatprep.mubr.bf16.mxu0 0
  %3743 = vmatmul.mubr.bf16.gmra.mxu0 %v3705
  %v3744 = vpop.f32.mrf.mxu0
  %v3745 = vadd.f32 0.0, %v3744
  %v3746 = vpop.f32.mrf.mxu0
  %v3747 = vpop.f32.mrf.mxu0
  %v3748 = vpop.f32.mrf.mxu0
  %3749 = vdwg.mxu0
  %v3751 = vunpack.c.l.b16 %v3514
  %3752 = vset.pattern.permute.xlu0 0
  %3753 = vperm.xlu0 %3752, %v3751
  %v3754 = vpop.permute.xlu0 %3753
  %v3755 = vlaneseq
  %v3756 = vshrl.u32 %v3755, 7
  %v3757 = vsub.s32 %v937, %v3756
  %v3758 = vrot.slane %v3754, %v3757
  %v3759 = vpack.c.b16 %v3758, %v3758
  %v3761 = vsel %vm452, %v3759, 0
  %v3764 = vsel %vm1068, %v3522, 0
  %3766 = vmatprep.subr.bf16.mxu0 0
  %3767 = vmatpush1.bf16.msra.mxu0 0
  %3768 = vmatprep.subr.bf16.mxu0 0
  %3769 = vmatpush1.bf16.msra.mxu0 0
  %3770 = vmatprep.subr.bf16.mxu0 0
  %3771 = vmatpush1.bf16.msra.mxu0 0
  %3772 = vmatprep.subr.bf16.mxu0 0
  %3773 = vmatpush1.bf16.msra.mxu0 0
  %3774 = vmatprep.subr.bf16.mxu0 0
  %3775 = vmatpush1.bf16.msra.mxu0 0
  %3776 = vmatprep.subr.bf16.mxu0 0
  %3777 = vmatpush1.bf16.msra.mxu0 0
  %3778 = vmatprep.subr.bf16.mxu0 0
  %3779 = vmatpush1.bf16.msra.mxu0 0
  %3780 = vmatprep.subr.bf16.mxu0 0
  %3781 = vmatpush1.bf16.msra.mxu0 %v3764
  %3782 = vmatprep.subr.bf16.mxu0 0
  %3783 = vmatpush2.bf16.msra.mxu0 0
  %3784 = vmatprep.subr.bf16.mxu0 0
  %3785 = vmatpush2.bf16.msra.mxu0 0
  %3786 = vmatprep.subr.bf16.mxu0 0
  %3787 = vmatpush2.bf16.msra.mxu0 0
  %3788 = vmatprep.subr.bf16.mxu0 0
  %3789 = vmatpush2.bf16.msra.mxu0 0
  %3790 = vmatprep.subr.bf16.mxu0 0
  %3791 = vmatpush2.bf16.msra.mxu0 0
  %3792 = vmatprep.subr.bf16.mxu0 0
  %3793 = vmatpush2.bf16.msra.mxu0 0
  %3794 = vmatprep.subr.bf16.mxu0 0
  %3795 = vmatpush2.bf16.msra.mxu0 0
  %3796 = vmatprep.subr.bf16.mxu0 0
  %3797 = vmatpush2.bf16.msra.mxu0 0
  %3798 = vmatprep.mubr.bf16.mxu0 0
  %3799 = vmatmul.mubr.bf16.gmra.mxu0 %v3761
  %v3800 = vpop.f32.mrf.mxu0
  %v3801 = vadd.f32 0.0, %v3800
  %v3802 = vpop.f32.mrf.mxu0
  %v3803 = vpop.f32.mrf.mxu0
  %v3804 = vpop.f32.mrf.mxu0
  %3805 = vdwg.mxu0
  %v3807 = vunpack.c.l.b16 %v3515
  %3808 = vset.pattern.permute.xlu0 0
  %3809 = vperm.xlu0 %3808, %v3807
  %v3810 = vpop.permute.xlu0 %3809
  %v3811 = vlaneseq
  %v3812 = vshrl.u32 %v3811, 7
  %v3813 = vsub.s32 %v937, %v3812
  %v3814 = vrot.slane %v3810, %v3813
  %v3815 = vpack.c.b16 %v3814, %v3814
  %v3817 = vsel %vm452, %v3815, 0
  %v3820 = vsel %vm1068, %v3523, 0
  %3822 = vmatprep.subr.bf16.mxu0 0
  %3823 = vmatpush1.bf16.msra.mxu0 0
  %3824 = vmatprep.subr.bf16.mxu0 0
  %3825 = vmatpush1.bf16.msra.mxu0 0
  %3826 = vmatprep.subr.bf16.mxu0 0
  %3827 = vmatpush1.bf16.msra.mxu0 0
  %3828 = vmatprep.subr.bf16.mxu0 0
  %3829 = vmatpush1.bf16.msra.mxu0 0
  %3830 = vmatprep.subr.bf16.mxu0 0
  %3831 = vmatpush1.bf16.msra.mxu0 0
  %3832 = vmatprep.subr.bf16.mxu0 0
  %3833 = vmatpush1.bf16.msra.mxu0 0
  %3834 = vmatprep.subr.bf16.mxu0 0
  %3835 = vmatpush1.bf16.msra.mxu0 0
  %3836 = vmatprep.subr.bf16.mxu0 0
  %3837 = vmatpush1.bf16.msra.mxu0 %v3820
  %3838 = vmatprep.subr.bf16.mxu0 0
  %3839 = vmatpush2.bf16.msra.mxu0 0
  %3840 = vmatprep.subr.bf16.mxu0 0
  %3841 = vmatpush2.bf16.msra.mxu0 0
  %3842 = vmatprep.subr.bf16.mxu0 0
  %3843 = vmatpush2.bf16.msra.mxu0 0
  %3844 = vmatprep.subr.bf16.mxu0 0
  %3845 = vmatpush2.bf16.msra.mxu0 0
  %3846 = vmatprep.subr.bf16.mxu0 0
  %3847 = vmatpush2.bf16.msra.mxu0 0
  %3848 = vmatprep.subr.bf16.mxu0 0
  %3849 = vmatpush2.bf16.msra.mxu0 0
  %3850 = vmatprep.subr.bf16.mxu0 0
  %3851 = vmatpush2.bf16.msra.mxu0 0
  %3852 = vmatprep.subr.bf16.mxu0 0
  %3853 = vmatpush2.bf16.msra.mxu0 0
  %3854 = vmatprep.mubr.bf16.mxu0 0
  %3855 = vmatmul.mubr.bf16.gmra.mxu0 %v3817
  %v3856 = vpop.f32.mrf.mxu0
  %v3857 = vadd.f32 0.0, %v3856
  %v3858 = vpop.f32.mrf.mxu0
  %v3859 = vpop.f32.mrf.mxu0
  %v3860 = vpop.f32.mrf.mxu0
  %3861 = vdwg.mxu0
  %v3863 = vunpack.c.l.b16 %v3516
  %3864 = vset.pattern.permute.xlu0 0
  %3865 = vperm.xlu0 %3864, %v3863
  %v3866 = vpop.permute.xlu0 %3865
  %v3867 = vlaneseq
  %v3868 = vshrl.u32 %v3867, 7
  %v3869 = vsub.s32 %v937, %v3868
  %v3870 = vrot.slane %v3866, %v3869
  %v3871 = vpack.c.b16 %v3870, %v3870
  %v3873 = vsel %vm452, %v3871, 0
  %v3876 = vsel %vm1068, %v3524, 0
  %3878 = vmatprep.subr.bf16.mxu0 0
  %3879 = vmatpush1.bf16.msra.mxu0 0
  %3880 = vmatprep.subr.bf16.mxu0 0
  %3881 = vmatpush1.bf16.msra.mxu0 0
  %3882 = vmatprep.subr.bf16.mxu0 0
  %3883 = vmatpush1.bf16.msra.mxu0 0
  %3884 = vmatprep.subr.bf16.mxu0 0
  %3885 = vmatpush1.bf16.msra.mxu0 0
  %3886 = vmatprep.subr.bf16.mxu0 0
  %3887 = vmatpush1.bf16.msra.mxu0 0
  %3888 = vmatprep.subr.bf16.mxu0 0
  %3889 = vmatpush1.bf16.msra.mxu0 0
  %3890 = vmatprep.subr.bf16.mxu0 0
  %3891 = vmatpush1.bf16.msra.mxu0 0
  %3892 = vmatprep.subr.bf16.mxu0 0
  %3893 = vmatpush1.bf16.msra.mxu0 %v3876
  %3894 = vmatprep.subr.bf16.mxu0 0
  %3895 = vmatpush2.bf16.msra.mxu0 0
  %3896 = vmatprep.subr.bf16.mxu0 0
  %3897 = vmatpush2.bf16.msra.mxu0 0
  %3898 = vmatprep.subr.bf16.mxu0 0
  %3899 = vmatpush2.bf16.msra.mxu0 0
  %3900 = vmatprep.subr.bf16.mxu0 0
  %3901 = vmatpush2.bf16.msra.mxu0 0
  %3902 = vmatprep.subr.bf16.mxu0 0
  %3903 = vmatpush2.bf16.msra.mxu0 0
  %3904 = vmatprep.subr.bf16.mxu0 0
  %3905 = vmatpush2.bf16.msra.mxu0 0
  %3906 = vmatprep.subr.bf16.mxu0 0
  %3907 = vmatpush2.bf16.msra.mxu0 0
  %3908 = vmatprep.subr.bf16.mxu0 0
  %3909 = vmatpush2.bf16.msra.mxu0 0
  %3910 = vmatprep.mubr.bf16.mxu0 0
  %3911 = vmatmul.mubr.bf16.gmra.mxu0 %v3873
  %v3912 = vpop.f32.mrf.mxu0
  %v3913 = vadd.f32 0.0, %v3912
  %v3914 = vpop.f32.mrf.mxu0
  %v3915 = vpop.f32.mrf.mxu0
  %v3916 = vpop.f32.mrf.mxu0
  %3917 = vdwg.mxu0
  %v3919 = vunpack.c.l.b16 %v3517
  %3920 = vset.pattern.permute.xlu0 0
  %3921 = vperm.xlu0 %3920, %v3919
  %v3922 = vpop.permute.xlu0 %3921
  %v3923 = vlaneseq
  %v3924 = vshrl.u32 %v3923, 7
  %v3925 = vsub.s32 %v937, %v3924
  %v3926 = vrot.slane %v3922, %v3925
  %v3927 = vpack.c.b16 %v3926, %v3926
  %v3929 = vsel %vm452, %v3927, 0
  %v3932 = vsel %vm1068, %v3525, 0
  %3934 = vmatprep.subr.bf16.mxu0 0
  %3935 = vmatpush1.bf16.msra.mxu0 0
  %3936 = vmatprep.subr.bf16.mxu0 0
  %3937 = vmatpush1.bf16.msra.mxu0 0
  %3938 = vmatprep.subr.bf16.mxu0 0
  %3939 = vmatpush1.bf16.msra.mxu0 0
  %3940 = vmatprep.subr.bf16.mxu0 0
  %3941 = vmatpush1.bf16.msra.mxu0 0
  %3942 = vmatprep.subr.bf16.mxu0 0
  %3943 = vmatpush1.bf16.msra.mxu0 0
  %3944 = vmatprep.subr.bf16.mxu0 0
  %3945 = vmatpush1.bf16.msra.mxu0 0
  %3946 = vmatprep.subr.bf16.mxu0 0
  %3947 = vmatpush1.bf16.msra.mxu0 0
  %3948 = vmatprep.subr.bf16.mxu0 0
  %3949 = vmatpush1.bf16.msra.mxu0 %v3932
  %3950 = vmatprep.subr.bf16.mxu0 0
  %3951 = vmatpush2.bf16.msra.mxu0 0
  %3952 = vmatprep.subr.bf16.mxu0 0
  %3953 = vmatpush2.bf16.msra.mxu0 0
  %3954 = vmatprep.subr.bf16.mxu0 0
  %3955 = vmatpush2.bf16.msra.mxu0 0
  %3956 = vmatprep.subr.bf16.mxu0 0
  %3957 = vmatpush2.bf16.msra.mxu0 0
  %3958 = vmatprep.subr.bf16.mxu0 0
  %3959 = vmatpush2.bf16.msra.mxu0 0
  %3960 = vmatprep.subr.bf16.mxu0 0
  %3961 = vmatpush2.bf16.msra.mxu0 0
  %3962 = vmatprep.subr.bf16.mxu0 0
  %3963 = vmatpush2.bf16.msra.mxu0 0
  %3964 = vmatprep.subr.bf16.mxu0 0
  %3965 = vmatpush2.bf16.msra.mxu0 0
  %3966 = vmatprep.mubr.bf16.mxu0 0
  %3967 = vmatmul.mubr.bf16.gmra.mxu0 %v3929
  %v3968 = vpop.f32.mrf.mxu0
  %v3969 = vadd.f32 0.0, %v3968
  %v3970 = vpop.f32.mrf.mxu0
  %v3971 = vpop.f32.mrf.mxu0
  %v3972 = vpop.f32.mrf.mxu0
  %3973 = vdwg.mxu0
  %v3974 = vld [vmem:[%s15] sm:$0xff]
  %v3975 = vld [vmem:[%s15 + $0x8] sm:$0xff]
  %v3976 = vld [vmem:[%s15 + $0x10] sm:$0xff]
  %v3977 = vld [vmem:[%s15 + $0x18] sm:$0xff]
  %v3978 = vld [vmem:[%s16] sm:$0x1]
  %v3980 = vlaneseq
  %v3981 = vshrl.u32 %v3980, 7
  %v3982 = vsub.s32 0, %v3981
  %v3983 = vrot.slane %v3978, %v3982
  %v3993 = vrot.slane %v3633, 7
  %v3994 = vsel %vm970, %v3993, %v3577
  %v3995 = vrot.slane %v3689, 6
  %v3996 = vsel %vm972, %v3995, %v3994
  %v3997 = vrot.slane %v3745, 5
  %v3998 = vsel %vm974, %v3997, %v3996
  %v3999 = vrot.slane %v3801, 4
  %v4000 = vsel %vm976, %v3999, %v3998
  %v4001 = vrot.slane %v3857, 3
  %v4002 = vsel %vm978, %v4001, %v4000
  %v4003 = vrot.slane %v3913, 2
  %v4004 = vsel %vm980, %v4003, %v4002
  %v4005 = vrot.slane %v3969, 1
  %v4006 = vsel %vm982, %v4005, %v4004
  %v4007 = vsel %vm134, %v4006, 0
  %4009 = vmatprep.subr.mxu0 0.0
  %4010 = vmatpush1.msra.mxu0 0.0
  %4011 = vmatprep.subr.mxu0 0.0
  %4012 = vmatpush1.msra.mxu0 0.0
  %4013 = vmatprep.subr.mxu0 0.0
  %4014 = vmatpush1.msra.mxu0 0.0
  %4015 = vmatprep.subr.mxu0 0.0
  %4016 = vmatpush1.msra.mxu0 0.0
  %4017 = vmatprep.subr.mxu0 0.0
  %4018 = vmatpush1.msra.mxu0 0.0
  %4019 = vmatprep.subr.mxu0 0.0
  %4020 = vmatpush1.msra.mxu0 0.0
  %4021 = vmatprep.subr.mxu0 0.0
  %4022 = vmatpush1.msra.mxu0 0.0
  %4023 = vmatprep.subr.mxu0 0.0
  %4024 = vmatpush1.msra.mxu0 0.0
  %4025 = vmatprep.subr.mxu0 0.0
  %4026 = vmatpush1.msra.mxu0 0.0
  %4027 = vmatprep.subr.mxu0 0.0
  %4028 = vmatpush1.msra.mxu0 0.0
  %4029 = vmatprep.subr.mxu0 0.0
  %4030 = vmatpush1.msra.mxu0 0.0
  %4031 = vmatprep.subr.mxu0 0.0
  %4032 = vmatpush1.msra.mxu0 0.0
  %4033 = vmatprep.subr.mxu0 0.0
  %4034 = vmatpush1.msra.mxu0 %v3977
  %4035 = vmatprep.subr.mxu0 0.0
  %4036 = vmatpush1.msra.mxu0 %v3976
  %4037 = vmatprep.subr.mxu0 0.0
  %4038 = vmatpush1.msra.mxu0 %v3975
  %4039 = vmatprep.subr.mxu0 0.0
  %4040 = vmatpush1.msra.mxu0 %v3974
  %4041 = vmatprep.subr.mxu0 0.0
  %4042 = vmatpush2.msra.mxu0 0.0
  %4043 = vmatprep.subr.mxu0 0.0
  %4044 = vmatpush2.msra.mxu0 0.0
  %4045 = vmatprep.subr.mxu0 0.0
  %4046 = vmatpush2.msra.mxu0 0.0
  %4047 = vmatprep.subr.mxu0 0.0
  %4048 = vmatpush2.msra.mxu0 0.0
  %4049 = vmatprep.subr.mxu0 0.0
  %4050 = vmatpush2.msra.mxu0 0.0
  %4051 = vmatprep.subr.mxu0 0.0
  %4052 = vmatpush2.msra.mxu0 0.0
  %4053 = vmatprep.subr.mxu0 0.0
  %4054 = vmatpush2.msra.mxu0 0.0
  %4055 = vmatprep.subr.mxu0 0.0
  %4056 = vmatpush2.msra.mxu0 0.0
  %4057 = vmatprep.subr.mxu0 0.0
  %4058 = vmatpush2.msra.mxu0 0.0
  %4059 = vmatprep.subr.mxu0 0.0
  %4060 = vmatpush2.msra.mxu0 0.0
  %4061 = vmatprep.subr.mxu0 0.0
  %4062 = vmatpush2.msra.mxu0 0.0
  %4063 = vmatprep.subr.mxu0 0.0
  %4064 = vmatpush2.msra.mxu0 0.0
  %4065 = vmatprep.subr.mxu0 0.0
  %4066 = vmatpush2.msra.mxu0 0.0
  %4067 = vmatprep.subr.mxu0 0.0
  %4068 = vmatpush2.msra.mxu0 0.0
  %4069 = vmatprep.subr.mxu0 0.0
  %4070 = vmatpush2.msra.mxu0 0.0
  %4071 = vmatprep.subr.mxu0 0.0
  %4072 = vmatpush2.msra.mxu0 0.0
  %4073 = vmatprep.mubr.f32.mxu0 0.0
  %4074 = vmatmul.mubr.f32.gmra.mxu0 %v4007
  %v4075 = vpop.f32.mrf.mxu0
  %v4076 = vadd.f32 %v3983, %v4075
  %v4077 = vpop.f32.mrf.mxu0
  %4078 = vdwg.mxu0
  %v4079 = vadd.f32 %v4076, %v3140
  %v4080 = vxor.u32 %v4079, 2147483648
  %v4081 = vmul.f32 %v4080, 1.442695
  %v4082 = vpow.pop %v4081
  %v4083 = vadd.f32 %v4082, 1.0
  %v4084 = vrcp.pop %v4083
  %v4085 = vmul.f32 1.0, %v4084
  %4087 = vrot.lane.b32.xlu0 %v3140, 64
  %v4088 = vpop.permute.xlu0 %4087
  %v4090 = vmul.f32 %v4085, %v4088
  %4092 = vrot.lane.b32.xlu0 %v4090, 64
  %v4093 = vpop.permute.xlu0 %4092
  %v4095 = vadd.f32 %v4076, %v4093
  %v4096 = vtanh.pop %v4095
  %v4097 = vsub.f32 1.0, %v4085
  %4099 = vrot.lane.b32.xlu0 %v4096, 96
  %v4100 = vpop.permute.xlu0 %4099
  %v4102 = vmul.f32 %v4097, %v4100
  %v4103 = vmul.f32 %v4085, %v3048
  %v4104 = vadd.f32 %v4102, %v4103
  %v4105 = vpack.c.bf16 %v4104, %v4104
  %v4107 = vunpack.c.l.b16 %v4105
  %v4108 = vpack.c.b16 %v4107, %v4107
  %4109 = vrot.lane.b32.xlu0 %v4108, 96
  %v4110 = vpop.permute.xlu0 %4109
  %4112 = vst.msk [vmem:[#allocation5 + $0x1c] sm:$0xf] %vm89, %v4110
  %v4113 = vpack.c.bf16 %v3577, %v3577
  %v4114 = vpack.c.bf16 %v3633, %v3633
  %v4115 = vpack.c.bf16 %v3689, %v3689
  %v4116 = vpack.c.bf16 %v3745, %v3745
  %v4117 = vpack.c.bf16 %v3801, %v3801
  %v4118 = vpack.c.bf16 %v3857, %v3857
  %v4119 = vpack.c.bf16 %v3913, %v3913
  %v4120 = vpack.c.bf16 %v3969, %v3969
  %v4129 = vunpack.c.l.b16 %v4113
  %v4130 = vunpack.c.l.b16 %v4114
  %v4131 = vunpack.c.l.b16 %v4115
  %v4132 = vunpack.c.l.b16 %v4116
  %v4133 = vunpack.c.l.b16 %v4117
  %v4134 = vunpack.c.l.b16 %v4118
  %v4135 = vunpack.c.l.b16 %v4119
  %v4136 = vunpack.c.l.b16 %v4120
  %v4137 = vpack.c.b16 %v4129, %v4129
  %v4138 = vpack.c.b16 %v4130, %v4130
  %v4139 = vpack.c.b16 %v4131, %v4131
  %v4140 = vpack.c.b16 %v4132, %v4132
  %v4141 = vpack.c.b16 %v4133, %v4133
  %v4142 = vpack.c.b16 %v4134, %v4134
  %v4143 = vpack.c.b16 %v4135, %v4135
  %v4144 = vpack.c.b16 %v4136, %v4136
  %v4145 = vunpack.c.l.b16 %v4137
  %v4146 = vunpack.c.l.b16 %v4138
  %v4147 = vunpack.c.l.b16 %v4139
  %v4148 = vunpack.c.l.b16 %v4140
  %v4149 = vunpack.c.l.b16 %v4141
  %v4150 = vunpack.c.l.b16 %v4142
  %v4151 = vunpack.c.l.b16 %v4143
  %v4152 = vunpack.c.l.b16 %v4144
  %v4153 = vrot.slane %v4146, 7
  %v4154 = vsel %vm970, %v4153, %v4145
  %v4155 = vrot.slane %v4147, 6
  %v4156 = vsel %vm972, %v4155, %v4154
  %v4157 = vrot.slane %v4148, 5
  %v4158 = vsel %vm974, %v4157, %v4156
  %v4159 = vrot.slane %v4149, 4
  %v4160 = vsel %vm976, %v4159, %v4158
  %v4161 = vrot.slane %v4150, 3
  %v4162 = vsel %vm978, %v4161, %v4160
  %v4163 = vrot.slane %v4151, 2
  %v4164 = vsel %vm980, %v4163, %v4162
  %v4165 = vrot.slane %v4152, 1
  %v4166 = vsel %vm982, %v4165, %v4164
  %v4167 = vpack.c.b16 %v4166, %v4166
  %4169 = vst.msk [vmem:[#allocation5 + $0x20] sm:$0xf] %vm89, %v4167
  %s4170 = scalar_lea.vmem [#allocation2], 24
  %v4171 = vld [vmem:[%s4170] sm:$0xff]
  %v4172 = vld [vmem:[%s8] sm:$0xff]
  %v4173 = vld [vmem:[%s8 + $0x8] sm:$0xff]
  %v4174 = vld [vmem:[%s8 + $0x10] sm:$0xff]
  %v4175 = vld [vmem:[%s8 + $0x18] sm:$0xff]
  %v4176 = vld [vmem:[%s9] sm:$0x1]
  %v4178 = vlaneseq
  %v4179 = vshrl.u32 %v4178, 7
  %v4180 = vsub.s32 0, %v4179
  %v4181 = vrot.slane %v4176, %v4180
  %4184 = vrot.lane.b32.xlu0 %v4104, 96
  %v4185 = vpop.permute.xlu0 %4184
  %v4186 = vsel %vm134, %v4185, 0
  %4188 = vmatprep.subr.mxu0 0.0
  %4189 = vmatpush1.msra.mxu0 0.0
  %4190 = vmatprep.subr.mxu0 0.0
  %4191 = vmatpush1.msra.mxu0 0.0
  %4192 = vmatprep.subr.mxu0 0.0
  %4193 = vmatpush1.msra.mxu0 0.0
  %4194 = vmatprep.subr.mxu0 0.0
  %4195 = vmatpush1.msra.mxu0 0.0
  %4196 = vmatprep.subr.mxu0 0.0
  %4197 = vmatpush1.msra.mxu0 0.0
  %4198 = vmatprep.subr.mxu0 0.0
  %4199 = vmatpush1.msra.mxu0 0.0
  %4200 = vmatprep.subr.mxu0 0.0
  %4201 = vmatpush1.msra.mxu0 0.0
  %4202 = vmatprep.subr.mxu0 0.0
  %4203 = vmatpush1.msra.mxu0 0.0
  %4204 = vmatprep.subr.mxu0 0.0
  %4205 = vmatpush1.msra.mxu0 0.0
  %4206 = vmatprep.subr.mxu0 0.0
  %4207 = vmatpush1.msra.mxu0 0.0
  %4208 = vmatprep.subr.mxu0 0.0
  %4209 = vmatpush1.msra.mxu0 0.0
  %4210 = vmatprep.subr.mxu0 0.0
  %4211 = vmatpush1.msra.mxu0 0.0
  %4212 = vmatprep.subr.mxu0 0.0
  %4213 = vmatpush1.msra.mxu0 %v4175
  %4214 = vmatprep.subr.mxu0 0.0
  %4215 = vmatpush1.msra.mxu0 %v4174
  %4216 = vmatprep.subr.mxu0 0.0
  %4217 = vmatpush1.msra.mxu0 %v4173
  %4218 = vmatprep.subr.mxu0 0.0
  %4219 = vmatpush1.msra.mxu0 %v4172
  %4220 = vmatprep.subr.mxu0 0.0
  %4221 = vmatpush2.msra.mxu0 0.0
  %4222 = vmatprep.subr.mxu0 0.0
  %4223 = vmatpush2.msra.mxu0 0.0
  %4224 = vmatprep.subr.mxu0 0.0
  %4225 = vmatpush2.msra.mxu0 0.0
  %4226 = vmatprep.subr.mxu0 0.0
  %4227 = vmatpush2.msra.mxu0 0.0
  %4228 = vmatprep.subr.mxu0 0.0
  %4229 = vmatpush2.msra.mxu0 0.0
  %4230 = vmatprep.subr.mxu0 0.0
  %4231 = vmatpush2.msra.mxu0 0.0
  %4232 = vmatprep.subr.mxu0 0.0
  %4233 = vmatpush2.msra.mxu0 0.0
  %4234 = vmatprep.subr.mxu0 0.0
  %4235 = vmatpush2.msra.mxu0 0.0
  %4236 = vmatprep.subr.mxu0 0.0
  %4237 = vmatpush2.msra.mxu0 0.0
  %4238 = vmatprep.subr.mxu0 0.0
  %4239 = vmatpush2.msra.mxu0 0.0
  %4240 = vmatprep.subr.mxu0 0.0
  %4241 = vmatpush2.msra.mxu0 0.0
  %4242 = vmatprep.subr.mxu0 0.0
  %4243 = vmatpush2.msra.mxu0 0.0
  %4244 = vmatprep.subr.mxu0 0.0
  %4245 = vmatpush2.msra.mxu0 0.0
  %4246 = vmatprep.subr.mxu0 0.0
  %4247 = vmatpush2.msra.mxu0 0.0
  %4248 = vmatprep.subr.mxu0 0.0
  %4249 = vmatpush2.msra.mxu0 0.0
  %4250 = vmatprep.subr.mxu0 0.0
  %4251 = vmatpush2.msra.mxu0 0.0
  %4252 = vmatprep.mubr.f32.mxu0 0.0
  %4253 = vmatmul.mubr.f32.gmra.mxu0 %v4186
  %v4254 = vpop.f32.mrf.mxu0
  %v4255 = vadd.f32 %v4181, %v4254
  %v4256 = vpop.f32.mrf.mxu0
  %4257 = vdwg.mxu0
  %v4258 = vadd.f32 %v4171, %v4255
  %v4259 = vxor.u32 %v4258, 2147483648
  %v4260 = vmul.f32 %v4259, 1.442695
  %v4261 = vpow.pop %v4260
  %v4262 = vadd.f32 %v4261, 1.0
  %v4263 = vrcp.pop %v4262
  %v4264 = vmul.f32 1.0, %v4263
  %4266 = vrot.lane.b32.xlu0 %v4255, 64
  %v4267 = vpop.permute.xlu0 %4266
  %v4269 = vmul.f32 %v4264, %v4267
  %4271 = vrot.lane.b32.xlu0 %v4269, 64
  %v4272 = vpop.permute.xlu0 %4271
  %v4274 = vadd.f32 %v4171, %v4272
  %v4275 = vtanh.pop %v4274
  %v4276 = vsub.f32 1.0, %v4264
  %4278 = vrot.lane.b32.xlu0 %v4275, 96
  %v4279 = vpop.permute.xlu0 %4278
  %v4281 = vmul.f32 %v4276, %v4279
  %v4282 = vmul.f32 %v4264, %v4104
  %v4283 = vadd.f32 %v4281, %v4282
  %v4284 = vld [vmem:[%s13] sm:$0xff]
  %v4285 = vld [vmem:[%s13 + $0x8] sm:$0xff]
  %v4286 = vld [vmem:[%s13 + $0x10] sm:$0xff]
  %v4287 = vld [vmem:[%s13 + $0x18] sm:$0xff]
  %v4288 = vld [vmem:[%s13 + $0x20] sm:$0xff]
  %v4289 = vld [vmem:[%s13 + $0x28] sm:$0xff]
  %v4290 = vld [vmem:[%s13 + $0x30] sm:$0xff]
  %v4291 = vld [vmem:[%s13 + $0x38] sm:$0xff]
  %4293 = vrot.lane.b32.xlu0 %v4283, 96
  %v4294 = vpop.permute.xlu0 %4293
  %v4295 = vsel %vm134, %v4294, 0
  %4297 = vmatprep.subr.mxu0 0.0
  %4298 = vmatpush1.msra.mxu0 0.0
  %4299 = vmatprep.subr.mxu0 0.0
  %4300 = vmatpush1.msra.mxu0 0.0
  %4301 = vmatprep.subr.mxu0 0.0
  %4302 = vmatpush1.msra.mxu0 0.0
  %4303 = vmatprep.subr.mxu0 0.0
  %4304 = vmatpush1.msra.mxu0 0.0
  %4305 = vmatprep.subr.mxu0 0.0
  %4306 = vmatpush1.msra.mxu0 0.0
  %4307 = vmatprep.subr.mxu0 0.0
  %4308 = vmatpush1.msra.mxu0 0.0
  %4309 = vmatprep.subr.mxu0 0.0
  %4310 = vmatpush1.msra.mxu0 0.0
  %4311 = vmatprep.subr.mxu0 0.0
  %4312 = vmatpush1.msra.mxu0 0.0
  %4313 = vmatprep.subr.mxu0 0.0
  %4314 = vmatpush1.msra.mxu0 0.0
  %4315 = vmatprep.subr.mxu0 0.0
  %4316 = vmatpush1.msra.mxu0 0.0
  %4317 = vmatprep.subr.mxu0 0.0
  %4318 = vmatpush1.msra.mxu0 0.0
  %4319 = vmatprep.subr.mxu0 0.0
  %4320 = vmatpush1.msra.mxu0 0.0
  %4321 = vmatprep.subr.mxu0 %v4291
  %4322 = vmatpush1.msra.mxu0 %v4290
  %4323 = vmatprep.subr.mxu0 %v4289
  %4324 = vmatpush1.msra.mxu0 %v4288
  %4325 = vmatprep.subr.mxu0 %v4287
  %4326 = vmatpush1.msra.mxu0 %v4286
  %4327 = vmatprep.subr.mxu0 %v4285
  %4328 = vmatpush1.msra.mxu0 %v4284
  %4329 = vmatprep.subr.mxu0 0.0
  %4330 = vmatpush2.msra.mxu0 0.0
  %4331 = vmatprep.subr.mxu0 0.0
  %4332 = vmatpush2.msra.mxu0 0.0
  %4333 = vmatprep.subr.mxu0 0.0
  %4334 = vmatpush2.msra.mxu0 0.0
  %4335 = vmatprep.subr.mxu0 0.0
  %4336 = vmatpush2.msra.mxu0 0.0
  %4337 = vmatprep.subr.mxu0 0.0
  %4338 = vmatpush2.msra.mxu0 0.0
  %4339 = vmatprep.subr.mxu0 0.0
  %4340 = vmatpush2.msra.mxu0 0.0
  %4341 = vmatprep.subr.mxu0 0.0
  %4342 = vmatpush2.msra.mxu0 0.0
  %4343 = vmatprep.subr.mxu0 0.0
  %4344 = vmatpush2.msra.mxu0 0.0
  %4345 = vmatprep.subr.mxu0 0.0
  %4346 = vmatpush2.msra.mxu0 0.0
  %4347 = vmatprep.subr.mxu0 0.0
  %4348 = vmatpush2.msra.mxu0 0.0
  %4349 = vmatprep.subr.mxu0 0.0
  %4350 = vmatpush2.msra.mxu0 0.0
  %4351 = vmatprep.subr.mxu0 0.0
  %4352 = vmatpush2.msra.mxu0 0.0
  %4353 = vmatprep.subr.mxu0 0.0
  %4354 = vmatpush2.msra.mxu0 0.0
  %4355 = vmatprep.subr.mxu0 0.0
  %4356 = vmatpush2.msra.mxu0 0.0
  %4357 = vmatprep.subr.mxu0 0.0
  %4358 = vmatpush2.msra.mxu0 0.0
  %4359 = vmatprep.subr.mxu0 0.0
  %4360 = vmatpush2.msra.mxu0 0.0
  %4361 = vmatprep.mubr.f32.mxu0 0.0
  %4362 = vmatmul.mubr.f32.gmra.mxu0 %v4295
  %v4363 = vpop.f32.mrf.mxu0
  %v4364 = vadd.f32 0.0, %v4363
  %v4365 = vpop.f32.mrf.mxu0
  %v4366 = vadd.f32 0.0, %v4365
  %4367 = vdwg.mxu0
  %v4368 = vld [vmem:[%s14] sm:$0x1]
  %v4370 = vlaneseq
  %v4371 = vshrl.u32 %v4370, 7
  %v4372 = vsub.s32 0, %v4371
  %v4373 = vrot.slane %v4368, %v4372
  %v4375 = vadd.f32 %v4364, %v4373
  %v4376 = vld [vmem:[#allocation3] sm:$0xff]
  %v4377 = vld [vmem:[#allocation3 + $0x8] sm:$0xff]
  %v4378 = vld [vmem:[#allocation3 + $0x10] sm:$0xff]
  %v4379 = vld [vmem:[#allocation3 + $0x18] sm:$0xff]
  %v4380 = vld [vmem:[#allocation3 + $0x20] sm:$0xff]
  %v4381 = vld [vmem:[#allocation3 + $0x28] sm:$0xff]
  %v4382 = vld [vmem:[#allocation3 + $0x30] sm:$0xff]
  %v4383 = vld [vmem:[#allocation3 + $0x38] sm:$0xff]
  %v4385 = vcombine.high %v4366, %v4366
  %v4387 = vunpack.c.l.s4 1966171168
  %v4388 = vunpack.c.0.s8 %v4387
  %v4389 = vlaneseq
  %v4390 = vshrl.u32 %v4389, 7
  %v4391 = vsub.s32 %v4388, %v4390
  %v4392 = vrot.slane %v4366, %v4391
  %v4394 = vunpack.c.l.s4 1966171168
  %v4395 = vunpack.c.0.s8 %v4394
  %v4396 = vlaneseq
  %v4397 = vshrl.u32 %v4396, 7
  %v4398 = vsub.s32 %v4395, %v4397
  %v4399 = vrot.slane %v4385, %v4398
  %v4400 = vcombine.high %v4392, %v4392
  %v4401 = vcombine.high %v4399, %v4399
  %v4403 = vunpack.c.l.s4 1966171168
  %v4404 = vunpack.c.0.s8 %v4403
  %v4405 = vlaneseq
  %v4406 = vshrl.u32 %v4405, 7
  %v4407 = vsub.s32 %v4404, %v4406
  %v4408 = vrot.slane %v4392, %v4407
  %v4410 = vunpack.c.l.s4 1966171168
  %v4411 = vunpack.c.0.s8 %v4410
  %v4412 = vlaneseq
  %v4413 = vshrl.u32 %v4412, 7
  %v4414 = vsub.s32 %v4411, %v4413
  %v4415 = vrot.slane %v4399, %v4414
  %v4417 = vunpack.c.l.s4 1966171168
  %v4418 = vunpack.c.0.s8 %v4417
  %v4419 = vlaneseq
  %v4420 = vshrl.u32 %v4419, 7
  %v4421 = vsub.s32 %v4418, %v4420
  %v4422 = vrot.slane %v4400, %v4421
  %v4424 = vunpack.c.l.s4 1966171168
  %v4425 = vunpack.c.0.s8 %v4424
  %v4426 = vlaneseq
  %v4427 = vshrl.u32 %v4426, 7
  %v4428 = vsub.s32 %v4425, %v4427
  %v4429 = vrot.slane %v4401, %v4428
  %v4430 = vcombine.high %v4408, %v4408
  %v4431 = vcombine.high %v4415, %v4415
  %v4432 = vcombine.high %v4422, %v4422
  %v4433 = vcombine.high %v4429, %v4429
  %v4434 = vlaneseq
  %v4435 = vshrl.u32 %v4434, 7
  %v4436 = vsub.s32 0, %v4435
  %v4437 = vrot.slane %v4408, %v4436
  %v4438 = vlaneseq
  %v4439 = vshrl.u32 %v4438, 7
  %v4440 = vsub.s32 0, %v4439
  %v4441 = vrot.slane %v4422, %v4440
  %v4442 = vlaneseq
  %v4443 = vshrl.u32 %v4442, 7
  %v4444 = vsub.s32 0, %v4443
  %v4445 = vrot.slane %v4430, %v4444
  %v4446 = vlaneseq
  %v4447 = vshrl.u32 %v4446, 7
  %v4448 = vsub.s32 0, %v4447
  %v4449 = vrot.slane %v4432, %v4448
  %v4450 = vlaneseq
  %v4451 = vshrl.u32 %v4450, 7
  %v4452 = vsub.s32 0, %v4451
  %v4453 = vrot.slane %v4415, %v4452
  %v4454 = vlaneseq
  %v4455 = vshrl.u32 %v4454, 7
  %v4456 = vsub.s32 0, %v4455
  %v4457 = vrot.slane %v4429, %v4456
  %v4458 = vlaneseq
  %v4459 = vshrl.u32 %v4458, 7
  %v4460 = vsub.s32 0, %v4459
  %v4461 = vrot.slane %v4431, %v4460
  %v4462 = vlaneseq
  %v4463 = vshrl.u32 %v4462, 7
  %v4464 = vsub.s32 0, %v4463
  %v4465 = vrot.slane %v4433, %v4464
  %v4474 = vadd.f32 %v4376, %v4437
  %v4475 = vadd.f32 %v4377, %v4441
  %v4476 = vadd.f32 %v4378, %v4445
  %v4477 = vadd.f32 %v4379, %v4449
  %v4478 = vadd.f32 %v4380, %v4453
  %v4479 = vadd.f32 %v4381, %v4457
  %v4480 = vadd.f32 %v4382, %v4461
  %v4481 = vadd.f32 %v4383, %v4465
  %v4482 = vtanh.pop %v4474
  %v4483 = vtanh.pop %v4475
  %v4484 = vtanh.pop %v4476
  %v4485 = vtanh.pop %v4477
  %v4486 = vtanh.pop %v4478
  %v4487 = vtanh.pop %v4479
  %v4488 = vtanh.pop %v4480
  %v4489 = vtanh.pop %v4481
  %v4490 = vld [vmem:[%s12] sm:$0x1]
  %v4492 = vlaneseq
  %v4493 = vshrl.u32 %v4492, 7
  %v4494 = vsub.s32 0, %v4493
  %v4495 = vrot.slane %v4490, %v4494
  %v4497 = vmul.f32 %v4482, %v4495
  %v4498 = vmul.f32 %v4483, %v4495
  %v4499 = vmul.f32 %v4484, %v4495
  %v4500 = vmul.f32 %v4485, %v4495
  %v4501 = vmul.f32 %v4486, %v4495
  %v4502 = vmul.f32 %v4487, %v4495
  %v4503 = vmul.f32 %v4488, %v4495
  %v4504 = vmul.f32 %v4489, %v4495
  %v4505 = vsel %vm134, %v4497, 0.0
  %4506 = vadd.xlane.f32.xlu0 %v4505
  %v4507 = vpop.xlane.xlu0 %4506
  %v4508 = vsel %vm134, %v4498, 0.0
  %4509 = vadd.xlane.f32.xlu0 %v4508
  %v4510 = vpop.xlane.xlu0 %4509
  %v4511 = vsel %vm134, %v4499, 0.0
  %4512 = vadd.xlane.f32.xlu0 %v4511
  %v4513 = vpop.xlane.xlu0 %4512
  %v4514 = vsel %vm134, %v4500, 0.0
  %4515 = vadd.xlane.f32.xlu0 %v4514
  %v4516 = vpop.xlane.xlu0 %4515
  %v4517 = vsel %vm134, %v4501, 0.0
  %4518 = vadd.xlane.f32.xlu0 %v4517
  %v4519 = vpop.xlane.xlu0 %4518
  %v4520 = vsel %vm134, %v4502, 0.0
  %4521 = vadd.xlane.f32.xlu0 %v4520
  %v4522 = vpop.xlane.xlu0 %4521
  %v4523 = vsel %vm134, %v4503, 0.0
  %4524 = vadd.xlane.f32.xlu0 %v4523
  %v4525 = vpop.xlane.xlu0 %4524
  %v4526 = vsel %vm134, %v4504, 0.0
  %4527 = vadd.xlane.f32.xlu0 %v4526
  %v4528 = vpop.xlane.xlu0 %4527
  %v4529 = vld [vmem:[#allocation4] sm:$0xff]
  %v4531 = vlaneseq
  %v4532 = vshrl.u32 %v4531, 7
  %v4533 = vsub.s32 0, %v4532
  %v4534 = vrot.slane %v4529, %v4533
  %4536 = vbcast.lane.b32.xlu0 %v4534, 256
  %v4537 = vpop.permute.xlu0 %4536
  %v4538 = vlaneseq
  %v4539 = vshrl.u32 %v4538, 7
  %v4540 = vsub.s32 1, %v4539
  %v4541 = vrot.slane %v4529, %v4540
  %4543 = vbcast.lane.b32.xlu0 %v4541, 256
  %v4544 = vpop.permute.xlu0 %4543
  %v4545 = vlaneseq
  %v4546 = vshrl.u32 %v4545, 7
  %v4547 = vsub.s32 2, %v4546
  %v4548 = vrot.slane %v4529, %v4547
  %4550 = vbcast.lane.b32.xlu0 %v4548, 256
  %v4551 = vpop.permute.xlu0 %4550
  %v4552 = vlaneseq
  %v4553 = vshrl.u32 %v4552, 7
  %v4554 = vsub.s32 3, %v4553
  %v4555 = vrot.slane %v4529, %v4554
  %4557 = vbcast.lane.b32.xlu0 %v4555, 256
  %v4558 = vpop.permute.xlu0 %4557
  %v4559 = vlaneseq
  %v4560 = vshrl.u32 %v4559, 7
  %v4561 = vsub.s32 4, %v4560
  %v4562 = vrot.slane %v4529, %v4561
  %4564 = vbcast.lane.b32.xlu0 %v4562, 256
  %v4565 = vpop.permute.xlu0 %4564
  %v4566 = vlaneseq
  %v4567 = vshrl.u32 %v4566, 7
  %v4568 = vsub.s32 5, %v4567
  %v4569 = vrot.slane %v4529, %v4568
  %4571 = vbcast.lane.b32.xlu0 %v4569, 256
  %v4572 = vpop.permute.xlu0 %4571
  %v4573 = vlaneseq
  %v4574 = vshrl.u32 %v4573, 7
  %v4575 = vsub.s32 6, %v4574
  %v4576 = vrot.slane %v4529, %v4575
  %4578 = vbcast.lane.b32.xlu0 %v4576, 256
  %v4579 = vpop.permute.xlu0 %4578
  %v4580 = vlaneseq
  %v4581 = vshrl.u32 %v4580, 7
  %v4582 = vsub.s32 7, %v4581
  %v4583 = vrot.slane %v4529, %v4582
  %4585 = vbcast.lane.b32.xlu0 %v4583, 256
  %v4586 = vpop.permute.xlu0 %4585
  %v4595 = vadd.f32 %v4507, %v4537
  %v4596 = vadd.f32 %v4510, %v4544
  %v4597 = vadd.f32 %v4513, %v4551
  %v4598 = vadd.f32 %v4516, %v4558
  %v4599 = vadd.f32 %v4519, %v4565
  %v4600 = vadd.f32 %v4522, %v4572
  %v4601 = vadd.f32 %v4525, %v4579
  %v4602 = vadd.f32 %v4528, %v4586
  %v4603 = vmul.f32 %v4595, 1.442695
  %v4604 = vpow.pop %v4603
  %v4605 = vmul.f32 %v4596, 1.442695
  %v4606 = vpow.pop %v4605
  %v4607 = vmul.f32 %v4597, 1.442695
  %v4608 = vpow.pop %v4607
  %v4609 = vmul.f32 %v4598, 1.442695
  %v4610 = vpow.pop %v4609
  %v4611 = vmul.f32 %v4599, 1.442695
  %v4612 = vpow.pop %v4611
  %v4613 = vmul.f32 %v4600, 1.442695
  %v4614 = vpow.pop %v4613
  %v4615 = vmul.f32 %v4601, 1.442695
  %v4616 = vpow.pop %v4615
  %v4617 = vmul.f32 %v4602, 1.442695
  %v4618 = vpow.pop %v4617
  %4627 = vset.pattern.permute.xlu0 0
  %4628 = vperm.xlu0 %4627, %v4604
  %v4629 = vpop.permute.xlu0 %4628
  %4630 = vset.pattern.permute.xlu0 0
  %4631 = vperm.xlu0 %4630, %v4606
  %v4632 = vpop.permute.xlu0 %4631
  %4633 = vset.pattern.permute.xlu0 0
  %4634 = vperm.xlu0 %4633, %v4608
  %v4635 = vpop.permute.xlu0 %4634
  %4636 = vset.pattern.permute.xlu0 0
  %4637 = vperm.xlu0 %4636, %v4610
  %v4638 = vpop.permute.xlu0 %4637
  %4639 = vset.pattern.permute.xlu0 0
  %4640 = vperm.xlu0 %4639, %v4612
  %v4641 = vpop.permute.xlu0 %4640
  %4642 = vset.pattern.permute.xlu0 0
  %4643 = vperm.xlu0 %4642, %v4614
  %v4644 = vpop.permute.xlu0 %4643
  %4645 = vset.pattern.permute.xlu0 0
  %4646 = vperm.xlu0 %4645, %v4616
  %v4647 = vpop.permute.xlu0 %4646
  %4648 = vset.pattern.permute.xlu0 0
  %4649 = vperm.xlu0 %4648, %v4618
  %v4650 = vpop.permute.xlu0 %4649
  %v4651 = vlaneseq
  %v4652 = vshrl.u32 %v4651, 7
  %v4653 = vsub.s32 %v937, %v4652
  %v4654 = vrot.slane %v4629, %v4653
  %v4655 = vlaneseq
  %v4656 = vshrl.u32 %v4655, 7
  %v4657 = vsub.s32 %v937, %v4656
  %v4658 = vrot.slane %v4632, %v4657
  %v4659 = vlaneseq
  %v4660 = vshrl.u32 %v4659, 7
  %v4661 = vsub.s32 %v937, %v4660
  %v4662 = vrot.slane %v4635, %v4661
  %v4663 = vlaneseq
  %v4664 = vshrl.u32 %v4663, 7
  %v4665 = vsub.s32 %v937, %v4664
  %v4666 = vrot.slane %v4638, %v4665
  %v4667 = vlaneseq
  %v4668 = vshrl.u32 %v4667, 7
  %v4669 = vsub.s32 %v937, %v4668
  %v4670 = vrot.slane %v4641, %v4669
  %v4671 = vlaneseq
  %v4672 = vshrl.u32 %v4671, 7
  %v4673 = vsub.s32 %v937, %v4672
  %v4674 = vrot.slane %v4644, %v4673
  %v4675 = vlaneseq
  %v4676 = vshrl.u32 %v4675, 7
  %v4677 = vsub.s32 %v937, %v4676
  %v4678 = vrot.slane %v4647, %v4677
  %v4679 = vlaneseq
  %v4680 = vshrl.u32 %v4679, 7
  %v4681 = vsub.s32 %v937, %v4680
  %v4682 = vrot.slane %v4650, %v4681
  %v4683 = vsel %vm970, %v4658, %v4654
  %v4684 = vsel %vm972, %v4662, %v4683
  %v4685 = vsel %vm974, %v4666, %v4684
  %v4686 = vsel %vm976, %v4670, %v4685
  %v4687 = vsel %vm978, %v4674, %v4686
  %v4688 = vsel %vm980, %v4678, %v4687
  %v4689 = vsel %vm982, %v4682, %v4688
  %v4691 = vsel %vm452, %v4689, 0.0
  %4692 = vadd.xlane.f32.xlu0 %v4691
  %v4693 = vpop.xlane.xlu0 %4692
  %v4694 = vmax.f32 %v4693, 1e-30
  %v4695 = vrcp.pop %v4694
  %v4697 = vlaneseq
  %v4698 = vshrl.u32 %v4697, 7
  %v4699 = vsub.s32 0, %v4698
  %v4700 = vrot.slane %v4695, %v4699
  %v4701 = vlaneseq
  %v4702 = vshrl.u32 %v4701, 7
  %v4703 = vsub.s32 1, %v4702
  %v4704 = vrot.slane %v4695, %v4703
  %v4705 = vlaneseq
  %v4706 = vshrl.u32 %v4705, 7
  %v4707 = vsub.s32 2, %v4706
  %v4708 = vrot.slane %v4695, %v4707
  %v4709 = vlaneseq
  %v4710 = vshrl.u32 %v4709, 7
  %v4711 = vsub.s32 3, %v4710
  %v4712 = vrot.slane %v4695, %v4711
  %v4713 = vlaneseq
  %v4714 = vshrl.u32 %v4713, 7
  %v4715 = vsub.s32 4, %v4714
  %v4716 = vrot.slane %v4695, %v4715
  %v4717 = vlaneseq
  %v4718 = vshrl.u32 %v4717, 7
  %v4719 = vsub.s32 5, %v4718
  %v4720 = vrot.slane %v4695, %v4719
  %v4721 = vlaneseq
  %v4722 = vshrl.u32 %v4721, 7
  %v4723 = vsub.s32 6, %v4722
  %v4724 = vrot.slane %v4695, %v4723
  %v4725 = vlaneseq
  %v4726 = vshrl.u32 %v4725, 7
  %v4727 = vsub.s32 7, %v4726
  %v4728 = vrot.slane %v4695, %v4727
  %v4737 = vmul.f32 %v4604, %v4700
  %v4738 = vmul.f32 %v4606, %v4704
  %v4739 = vmul.f32 %v4608, %v4708
  %v4740 = vmul.f32 %v4610, %v4712
  %v4741 = vmul.f32 %v4612, %v4716
  %v4742 = vmul.f32 %v4614, %v4720
  %v4743 = vmul.f32 %v4616, %v4724
  %v4744 = vmul.f32 %v4618, %v4728
  %v4745 = vpack.c.bf16 %v4737, %v4737
  %v4746 = vpack.c.bf16 %v4738, %v4738
  %v4747 = vpack.c.bf16 %v4739, %v4739
  %v4748 = vpack.c.bf16 %v4740, %v4740
  %v4749 = vpack.c.bf16 %v4741, %v4741
  %v4750 = vpack.c.bf16 %v4742, %v4742
  %v4751 = vpack.c.bf16 %v4743, %v4743
  %v4752 = vpack.c.bf16 %v4744, %v4744
  %v4753 = vld [vmem:[%s2] sm:$0xf]
  %v4754 = vld [vmem:[%s2 + $0x4] sm:$0xf]
  %v4755 = vld [vmem:[%s2 + $0x8] sm:$0xf]
  %v4756 = vld [vmem:[%s2 + $0xc] sm:$0xf]
  %v4757 = vld [vmem:[%s2 + $0x10] sm:$0xf]
  %v4758 = vld [vmem:[%s2 + $0x14] sm:$0xf]
  %v4759 = vld [vmem:[%s2 + $0x18] sm:$0xf]
  %v4760 = vld [vmem:[%s2 + $0x1c] sm:$0xf]
  %v4762 = vunpack.c.l.b16 %v4745
  %4763 = vset.pattern.permute.xlu0 0
  %4764 = vperm.xlu0 %4763, %v4762
  %v4765 = vpop.permute.xlu0 %4764
  %v4766 = vlaneseq
  %v4767 = vshrl.u32 %v4766, 7
  %v4768 = vsub.s32 %v937, %v4767
  %v4769 = vrot.slane %v4765, %v4768
  %v4770 = vpack.c.b16 %v4769, %v4769
  %v4772 = vsel %vm452, %v4770, 0
  %v4775 = vsel %vm1068, %v4753, 0
  %4777 = vmatprep.subr.bf16.mxu0 0
  %4778 = vmatpush1.bf16.msra.mxu0 0
  %4779 = vmatprep.subr.bf16.mxu0 0
  %4780 = vmatpush1.bf16.msra.mxu0 0
  %4781 = vmatprep.subr.bf16.mxu0 0
  %4782 = vmatpush1.bf16.msra.mxu0 0
  %4783 = vmatprep.subr.bf16.mxu0 0
  %4784 = vmatpush1.bf16.msra.mxu0 0
  %4785 = vmatprep.subr.bf16.mxu0 0
  %4786 = vmatpush1.bf16.msra.mxu0 0
  %4787 = vmatprep.subr.bf16.mxu0 0
  %4788 = vmatpush1.bf16.msra.mxu0 0
  %4789 = vmatprep.subr.bf16.mxu0 0
  %4790 = vmatpush1.bf16.msra.mxu0 0
  %4791 = vmatprep.subr.bf16.mxu0 0
  %4792 = vmatpush1.bf16.msra.mxu0 %v4775
  %4793 = vmatprep.subr.bf16.mxu0 0
  %4794 = vmatpush2.bf16.msra.mxu0 0
  %4795 = vmatprep.subr.bf16.mxu0 0
  %4796 = vmatpush2.bf16.msra.mxu0 0
  %4797 = vmatprep.subr.bf16.mxu0 0
  %4798 = vmatpush2.bf16.msra.mxu0 0
  %4799 = vmatprep.subr.bf16.mxu0 0
  %4800 = vmatpush2.bf16.msra.mxu0 0
  %4801 = vmatprep.subr.bf16.mxu0 0
  %4802 = vmatpush2.bf16.msra.mxu0 0
  %4803 = vmatprep.subr.bf16.mxu0 0
  %4804 = vmatpush2.bf16.msra.mxu0 0
  %4805 = vmatprep.subr.bf16.mxu0 0
  %4806 = vmatpush2.bf16.msra.mxu0 0
  %4807 = vmatprep.subr.bf16.mxu0 0
  %4808 = vmatpush2.bf16.msra.mxu0 0
  %4809 = vmatprep.mubr.bf16.mxu0 0
  %4810 = vmatmul.mubr.bf16.gmra.mxu0 %v4772
  %v4811 = vpop.f32.mrf.mxu0
  %v4812 = vadd.f32 0.0, %v4811
  %v4813 = vpop.f32.mrf.mxu0
  %v4814 = vpop.f32.mrf.mxu0
  %v4815 = vpop.f32.mrf.mxu0
  %4816 = vdwg.mxu0
  %v4818 = vunpack.c.l.b16 %v4746
  %4819 = vset.pattern.permute.xlu0 0
  %4820 = vperm.xlu0 %4819, %v4818
  %v4821 = vpop.permute.xlu0 %4820
  %v4822 = vlaneseq
  %v4823 = vshrl.u32 %v4822, 7
  %v4824 = vsub.s32 %v937, %v4823
  %v4825 = vrot.slane %v4821, %v4824
  %v4826 = vpack.c.b16 %v4825, %v4825
  %v4828 = vsel %vm452, %v4826, 0
  %v4831 = vsel %vm1068, %v4754, 0
  %4833 = vmatprep.subr.bf16.mxu0 0
  %4834 = vmatpush1.bf16.msra.mxu0 0
  %4835 = vmatprep.subr.bf16.mxu0 0
  %4836 = vmatpush1.bf16.msra.mxu0 0
  %4837 = vmatprep.subr.bf16.mxu0 0
  %4838 = vmatpush1.bf16.msra.mxu0 0
  %4839 = vmatprep.subr.bf16.mxu0 0
  %4840 = vmatpush1.bf16.msra.mxu0 0
  %4841 = vmatprep.subr.bf16.mxu0 0
  %4842 = vmatpush1.bf16.msra.mxu0 0
  %4843 = vmatprep.subr.bf16.mxu0 0
  %4844 = vmatpush1.bf16.msra.mxu0 0
  %4845 = vmatprep.subr.bf16.mxu0 0
  %4846 = vmatpush1.bf16.msra.mxu0 0
  %4847 = vmatprep.subr.bf16.mxu0 0
  %4848 = vmatpush1.bf16.msra.mxu0 %v4831
  %4849 = vmatprep.subr.bf16.mxu0 0
  %4850 = vmatpush2.bf16.msra.mxu0 0
  %4851 = vmatprep.subr.bf16.mxu0 0
  %4852 = vmatpush2.bf16.msra.mxu0 0
  %4853 = vmatprep.subr.bf16.mxu0 0
  %4854 = vmatpush2.bf16.msra.mxu0 0
  %4855 = vmatprep.subr.bf16.mxu0 0
  %4856 = vmatpush2.bf16.msra.mxu0 0
  %4857 = vmatprep.subr.bf16.mxu0 0
  %4858 = vmatpush2.bf16.msra.mxu0 0
  %4859 = vmatprep.subr.bf16.mxu0 0
  %4860 = vmatpush2.bf16.msra.mxu0 0
  %4861 = vmatprep.subr.bf16.mxu0 0
  %4862 = vmatpush2.bf16.msra.mxu0 0
  %4863 = vmatprep.subr.bf16.mxu0 0
  %4864 = vmatpush2.bf16.msra.mxu0 0
  %4865 = vmatprep.mubr.bf16.mxu0 0
  %4866 = vmatmul.mubr.bf16.gmra.mxu0 %v4828
  %v4867 = vpop.f32.mrf.mxu0
  %v4868 = vadd.f32 0.0, %v4867
  %v4869 = vpop.f32.mrf.mxu0
  %v4870 = vpop.f32.mrf.mxu0
  %v4871 = vpop.f32.mrf.mxu0
  %4872 = vdwg.mxu0
  %v4874 = vunpack.c.l.b16 %v4747
  %4875 = vset.pattern.permute.xlu0 0
  %4876 = vperm.xlu0 %4875, %v4874
  %v4877 = vpop.permute.xlu0 %4876
  %v4878 = vlaneseq
  %v4879 = vshrl.u32 %v4878, 7
  %v4880 = vsub.s32 %v937, %v4879
  %v4881 = vrot.slane %v4877, %v4880
  %v4882 = vpack.c.b16 %v4881, %v4881
  %v4884 = vsel %vm452, %v4882, 0
  %v4887 = vsel %vm1068, %v4755, 0
  %4889 = vmatprep.subr.bf16.mxu0 0
  %4890 = vmatpush1.bf16.msra.mxu0 0
  %4891 = vmatprep.subr.bf16.mxu0 0
  %4892 = vmatpush1.bf16.msra.mxu0 0
  %4893 = vmatprep.subr.bf16.mxu0 0
  %4894 = vmatpush1.bf16.msra.mxu0 0
  %4895 = vmatprep.subr.bf16.mxu0 0
  %4896 = vmatpush1.bf16.msra.mxu0 0
  %4897 = vmatprep.subr.bf16.mxu0 0
  %4898 = vmatpush1.bf16.msra.mxu0 0
  %4899 = vmatprep.subr.bf16.mxu0 0
  %4900 = vmatpush1.bf16.msra.mxu0 0
  %4901 = vmatprep.subr.bf16.mxu0 0
  %4902 = vmatpush1.bf16.msra.mxu0 0
  %4903 = vmatprep.subr.bf16.mxu0 0
  %4904 = vmatpush1.bf16.msra.mxu0 %v4887
  %4905 = vmatprep.subr.bf16.mxu0 0
  %4906 = vmatpush2.bf16.msra.mxu0 0
  %4907 = vmatprep.subr.bf16.mxu0 0
  %4908 = vmatpush2.bf16.msra.mxu0 0
  %4909 = vmatprep.subr.bf16.mxu0 0
  %4910 = vmatpush2.bf16.msra.mxu0 0
  %4911 = vmatprep.subr.bf16.mxu0 0
  %4912 = vmatpush2.bf16.msra.mxu0 0
  %4913 = vmatprep.subr.bf16.mxu0 0
  %4914 = vmatpush2.bf16.msra.mxu0 0
  %4915 = vmatprep.subr.bf16.mxu0 0
  %4916 = vmatpush2.bf16.msra.mxu0 0
  %4917 = vmatprep.subr.bf16.mxu0 0
  %4918 = vmatpush2.bf16.msra.mxu0 0
  %4919 = vmatprep.subr.bf16.mxu0 0
  %4920 = vmatpush2.bf16.msra.mxu0 0
  %4921 = vmatprep.mubr.bf16.mxu0 0
  %4922 = vmatmul.mubr.bf16.gmra.mxu0 %v4884
  %v4923 = vpop.f32.mrf.mxu0
  %v4924 = vadd.f32 0.0, %v4923
  %v4925 = vpop.f32.mrf.mxu0
  %v4926 = vpop.f32.mrf.mxu0
  %v4927 = vpop.f32.mrf.mxu0
  %4928 = vdwg.mxu0
  %v4930 = vunpack.c.l.b16 %v4748
  %4931 = vset.pattern.permute.xlu0 0
  %4932 = vperm.xlu0 %4931, %v4930
  %v4933 = vpop.permute.xlu0 %4932
  %v4934 = vlaneseq
  %v4935 = vshrl.u32 %v4934, 7
  %v4936 = vsub.s32 %v937, %v4935
  %v4937 = vrot.slane %v4933, %v4936
  %v4938 = vpack.c.b16 %v4937, %v4937
  %v4940 = vsel %vm452, %v4938, 0
  %v4943 = vsel %vm1068, %v4756, 0
  %4945 = vmatprep.subr.bf16.mxu0 0
  %4946 = vmatpush1.bf16.msra.mxu0 0
  %4947 = vmatprep.subr.bf16.mxu0 0
  %4948 = vmatpush1.bf16.msra.mxu0 0
  %4949 = vmatprep.subr.bf16.mxu0 0
  %4950 = vmatpush1.bf16.msra.mxu0 0
  %4951 = vmatprep.subr.bf16.mxu0 0
  %4952 = vmatpush1.bf16.msra.mxu0 0
  %4953 = vmatprep.subr.bf16.mxu0 0
  %4954 = vmatpush1.bf16.msra.mxu0 0
  %4955 = vmatprep.subr.bf16.mxu0 0
  %4956 = vmatpush1.bf16.msra.mxu0 0
  %4957 = vmatprep.subr.bf16.mxu0 0
  %4958 = vmatpush1.bf16.msra.mxu0 0
  %4959 = vmatprep.subr.bf16.mxu0 0
  %4960 = vmatpush1.bf16.msra.mxu0 %v4943
  %4961 = vmatprep.subr.bf16.mxu0 0
  %4962 = vmatpush2.bf16.msra.mxu0 0
  %4963 = vmatprep.subr.bf16.mxu0 0
  %4964 = vmatpush2.bf16.msra.mxu0 0
  %4965 = vmatprep.subr.bf16.mxu0 0
  %4966 = vmatpush2.bf16.msra.mxu0 0
  %4967 = vmatprep.subr.bf16.mxu0 0
  %4968 = vmatpush2.bf16.msra.mxu0 0
  %4969 = vmatprep.subr.bf16.mxu0 0
  %4970 = vmatpush2.bf16.msra.mxu0 0
  %4971 = vmatprep.subr.bf16.mxu0 0
  %4972 = vmatpush2.bf16.msra.mxu0 0
  %4973 = vmatprep.subr.bf16.mxu0 0
  %4974 = vmatpush2.bf16.msra.mxu0 0
  %4975 = vmatprep.subr.bf16.mxu0 0
  %4976 = vmatpush2.bf16.msra.mxu0 0
  %4977 = vmatprep.mubr.bf16.mxu0 0
  %4978 = vmatmul.mubr.bf16.gmra.mxu0 %v4940
  %v4979 = vpop.f32.mrf.mxu0
  %v4980 = vadd.f32 0.0, %v4979
  %v4981 = vpop.f32.mrf.mxu0
  %v4982 = vpop.f32.mrf.mxu0
  %v4983 = vpop.f32.mrf.mxu0
  %4984 = vdwg.mxu0
  %v4986 = vunpack.c.l.b16 %v4749
  %4987 = vset.pattern.permute.xlu0 0
  %4988 = vperm.xlu0 %4987, %v4986
  %v4989 = vpop.permute.xlu0 %4988
  %v4990 = vlaneseq
  %v4991 = vshrl.u32 %v4990, 7
  %v4992 = vsub.s32 %v937, %v4991
  %v4993 = vrot.slane %v4989, %v4992
  %v4994 = vpack.c.b16 %v4993, %v4993
  %v4996 = vsel %vm452, %v4994, 0
  %v4999 = vsel %vm1068, %v4757, 0
  %5001 = vmatprep.subr.bf16.mxu0 0
  %5002 = vmatpush1.bf16.msra.mxu0 0
  %5003 = vmatprep.subr.bf16.mxu0 0
  %5004 = vmatpush1.bf16.msra.mxu0 0
  %5005 = vmatprep.subr.bf16.mxu0 0
  %5006 = vmatpush1.bf16.msra.mxu0 0
  %5007 = vmatprep.subr.bf16.mxu0 0
  %5008 = vmatpush1.bf16.msra.mxu0 0
  %5009 = vmatprep.subr.bf16.mxu0 0
  %5010 = vmatpush1.bf16.msra.mxu0 0
  %5011 = vmatprep.subr.bf16.mxu0 0
  %5012 = vmatpush1.bf16.msra.mxu0 0
  %5013 = vmatprep.subr.bf16.mxu0 0
  %5014 = vmatpush1.bf16.msra.mxu0 0
  %5015 = vmatprep.subr.bf16.mxu0 0
  %5016 = vmatpush1.bf16.msra.mxu0 %v4999
  %5017 = vmatprep.subr.bf16.mxu0 0
  %5018 = vmatpush2.bf16.msra.mxu0 0
  %5019 = vmatprep.subr.bf16.mxu0 0
  %5020 = vmatpush2.bf16.msra.mxu0 0
  %5021 = vmatprep.subr.bf16.mxu0 0
  %5022 = vmatpush2.bf16.msra.mxu0 0
  %5023 = vmatprep.subr.bf16.mxu0 0
  %5024 = vmatpush2.bf16.msra.mxu0 0
  %5025 = vmatprep.subr.bf16.mxu0 0
  %5026 = vmatpush2.bf16.msra.mxu0 0
  %5027 = vmatprep.subr.bf16.mxu0 0
  %5028 = vmatpush2.bf16.msra.mxu0 0
  %5029 = vmatprep.subr.bf16.mxu0 0
  %5030 = vmatpush2.bf16.msra.mxu0 0
  %5031 = vmatprep.subr.bf16.mxu0 0
  %5032 = vmatpush2.bf16.msra.mxu0 0
  %5033 = vmatprep.mubr.bf16.mxu0 0
  %5034 = vmatmul.mubr.bf16.gmra.mxu0 %v4996
  %v5035 = vpop.f32.mrf.mxu0
  %v5036 = vadd.f32 0.0, %v5035
  %v5037 = vpop.f32.mrf.mxu0
  %v5038 = vpop.f32.mrf.mxu0
  %v5039 = vpop.f32.mrf.mxu0
  %5040 = vdwg.mxu0
  %v5042 = vunpack.c.l.b16 %v4750
  %5043 = vset.pattern.permute.xlu0 0
  %5044 = vperm.xlu0 %5043, %v5042
  %v5045 = vpop.permute.xlu0 %5044
  %v5046 = vlaneseq
  %v5047 = vshrl.u32 %v5046, 7
  %v5048 = vsub.s32 %v937, %v5047
  %v5049 = vrot.slane %v5045, %v5048
  %v5050 = vpack.c.b16 %v5049, %v5049
  %v5052 = vsel %vm452, %v5050, 0
  %v5055 = vsel %vm1068, %v4758, 0
  %5057 = vmatprep.subr.bf16.mxu0 0
  %5058 = vmatpush1.bf16.msra.mxu0 0
  %5059 = vmatprep.subr.bf16.mxu0 0
  %5060 = vmatpush1.bf16.msra.mxu0 0
  %5061 = vmatprep.subr.bf16.mxu0 0
  %5062 = vmatpush1.bf16.msra.mxu0 0
  %5063 = vmatprep.subr.bf16.mxu0 0
  %5064 = vmatpush1.bf16.msra.mxu0 0
  %5065 = vmatprep.subr.bf16.mxu0 0
  %5066 = vmatpush1.bf16.msra.mxu0 0
  %5067 = vmatprep.subr.bf16.mxu0 0
  %5068 = vmatpush1.bf16.msra.mxu0 0
  %5069 = vmatprep.subr.bf16.mxu0 0
  %5070 = vmatpush1.bf16.msra.mxu0 0
  %5071 = vmatprep.subr.bf16.mxu0 0
  %5072 = vmatpush1.bf16.msra.mxu0 %v5055
  %5073 = vmatprep.subr.bf16.mxu0 0
  %5074 = vmatpush2.bf16.msra.mxu0 0
  %5075 = vmatprep.subr.bf16.mxu0 0
  %5076 = vmatpush2.bf16.msra.mxu0 0
  %5077 = vmatprep.subr.bf16.mxu0 0
  %5078 = vmatpush2.bf16.msra.mxu0 0
  %5079 = vmatprep.subr.bf16.mxu0 0
  %5080 = vmatpush2.bf16.msra.mxu0 0
  %5081 = vmatprep.subr.bf16.mxu0 0
  %5082 = vmatpush2.bf16.msra.mxu0 0
  %5083 = vmatprep.subr.bf16.mxu0 0
  %5084 = vmatpush2.bf16.msra.mxu0 0
  %5085 = vmatprep.subr.bf16.mxu0 0
  %5086 = vmatpush2.bf16.msra.mxu0 0
  %5087 = vmatprep.subr.bf16.mxu0 0
  %5088 = vmatpush2.bf16.msra.mxu0 0
  %5089 = vmatprep.mubr.bf16.mxu0 0
  %5090 = vmatmul.mubr.bf16.gmra.mxu0 %v5052
  %v5091 = vpop.f32.mrf.mxu0
  %v5092 = vadd.f32 0.0, %v5091
  %v5093 = vpop.f32.mrf.mxu0
  %v5094 = vpop.f32.mrf.mxu0
  %v5095 = vpop.f32.mrf.mxu0
  %5096 = vdwg.mxu0
  %v5098 = vunpack.c.l.b16 %v4751
  %5099 = vset.pattern.permute.xlu0 0
  %5100 = vperm.xlu0 %5099, %v5098
  %v5101 = vpop.permute.xlu0 %5100
  %v5102 = vlaneseq
  %v5103 = vshrl.u32 %v5102, 7
  %v5104 = vsub.s32 %v937, %v5103
  %v5105 = vrot.slane %v5101, %v5104
  %v5106 = vpack.c.b16 %v5105, %v5105
  %v5108 = vsel %vm452, %v5106, 0
  %v5111 = vsel %vm1068, %v4759, 0
  %5113 = vmatprep.subr.bf16.mxu0 0
  %5114 = vmatpush1.bf16.msra.mxu0 0
  %5115 = vmatprep.subr.bf16.mxu0 0
  %5116 = vmatpush1.bf16.msra.mxu0 0
  %5117 = vmatprep.subr.bf16.mxu0 0
  %5118 = vmatpush1.bf16.msra.mxu0 0
  %5119 = vmatprep.subr.bf16.mxu0 0
  %5120 = vmatpush1.bf16.msra.mxu0 0
  %5121 = vmatprep.subr.bf16.mxu0 0
  %5122 = vmatpush1.bf16.msra.mxu0 0
  %5123 = vmatprep.subr.bf16.mxu0 0
  %5124 = vmatpush1.bf16.msra.mxu0 0
  %5125 = vmatprep.subr.bf16.mxu0 0
  %5126 = vmatpush1.bf16.msra.mxu0 0
  %5127 = vmatprep.subr.bf16.mxu0 0
  %5128 = vmatpush1.bf16.msra.mxu0 %v5111
  %5129 = vmatprep.subr.bf16.mxu0 0
  %5130 = vmatpush2.bf16.msra.mxu0 0
  %5131 = vmatprep.subr.bf16.mxu0 0
  %5132 = vmatpush2.bf16.msra.mxu0 0
  %5133 = vmatprep.subr.bf16.mxu0 0
  %5134 = vmatpush2.bf16.msra.mxu0 0
  %5135 = vmatprep.subr.bf16.mxu0 0
  %5136 = vmatpush2.bf16.msra.mxu0 0
  %5137 = vmatprep.subr.bf16.mxu0 0
  %5138 = vmatpush2.bf16.msra.mxu0 0
  %5139 = vmatprep.subr.bf16.mxu0 0
  %5140 = vmatpush2.bf16.msra.mxu0 0
  %5141 = vmatprep.subr.bf16.mxu0 0
  %5142 = vmatpush2.bf16.msra.mxu0 0
  %5143 = vmatprep.subr.bf16.mxu0 0
  %5144 = vmatpush2.bf16.msra.mxu0 0
  %5145 = vmatprep.mubr.bf16.mxu0 0
  %5146 = vmatmul.mubr.bf16.gmra.mxu0 %v5108
  %v5147 = vpop.f32.mrf.mxu0
  %v5148 = vadd.f32 0.0, %v5147
  %v5149 = vpop.f32.mrf.mxu0
  %v5150 = vpop.f32.mrf.mxu0
  %v5151 = vpop.f32.mrf.mxu0
  %5152 = vdwg.mxu0
  %v5154 = vunpack.c.l.b16 %v4752
  %5155 = vset.pattern.permute.xlu0 0
  %5156 = vperm.xlu0 %5155, %v5154
  %v5157 = vpop.permute.xlu0 %5156
  %v5158 = vlaneseq
  %v5159 = vshrl.u32 %v5158, 7
  %v5160 = vsub.s32 %v937, %v5159
  %v5161 = vrot.slane %v5157, %v5160
  %v5162 = vpack.c.b16 %v5161, %v5161
  %v5164 = vsel %vm452, %v5162, 0
  %v5167 = vsel %vm1068, %v4760, 0
  %5169 = vmatprep.subr.bf16.mxu0 0
  %5170 = vmatpush1.bf16.msra.mxu0 0
  %5171 = vmatprep.subr.bf16.mxu0 0
  %5172 = vmatpush1.bf16.msra.mxu0 0
  %5173 = vmatprep.subr.bf16.mxu0 0
  %5174 = vmatpush1.bf16.msra.mxu0 0
  %5175 = vmatprep.subr.bf16.mxu0 0
  %5176 = vmatpush1.bf16.msra.mxu0 0
  %5177 = vmatprep.subr.bf16.mxu0 0
  %5178 = vmatpush1.bf16.msra.mxu0 0
  %5179 = vmatprep.subr.bf16.mxu0 0
  %5180 = vmatpush1.bf16.msra.mxu0 0
  %5181 = vmatprep.subr.bf16.mxu0 0
  %5182 = vmatpush1.bf16.msra.mxu0 0
  %5183 = vmatprep.subr.bf16.mxu0 0
  %5184 = vmatpush1.bf16.msra.mxu0 %v5167
  %5185 = vmatprep.subr.bf16.mxu0 0
  %5186 = vmatpush2.bf16.msra.mxu0 0
  %5187 = vmatprep.subr.bf16.mxu0 0
  %5188 = vmatpush2.bf16.msra.mxu0 0
  %5189 = vmatprep.subr.bf16.mxu0 0
  %5190 = vmatpush2.bf16.msra.mxu0 0
  %5191 = vmatprep.subr.bf16.mxu0 0
  %5192 = vmatpush2.bf16.msra.mxu0 0
  %5193 = vmatprep.subr.bf16.mxu0 0
  %5194 = vmatpush2.bf16.msra.mxu0 0
  %5195 = vmatprep.subr.bf16.mxu0 0
  %5196 = vmatpush2.bf16.msra.mxu0 0
  %5197 = vmatprep.subr.bf16.mxu0 0
  %5198 = vmatpush2.bf16.msra.mxu0 0
  %5199 = vmatprep.subr.bf16.mxu0 0
  %5200 = vmatpush2.bf16.msra.mxu0 0
  %5201 = vmatprep.mubr.bf16.mxu0 0
  %5202 = vmatmul.mubr.bf16.gmra.mxu0 %v5164
  %v5203 = vpop.f32.mrf.mxu0
  %v5204 = vadd.f32 0.0, %v5203
  %v5205 = vpop.f32.mrf.mxu0
  %v5206 = vpop.f32.mrf.mxu0
  %v5207 = vpop.f32.mrf.mxu0
  %5208 = vdwg.mxu0
  %v5209 = vld [vmem:[%s15] sm:$0xff]
  %v5210 = vld [vmem:[%s15 + $0x8] sm:$0xff]
  %v5211 = vld [vmem:[%s15 + $0x10] sm:$0xff]
  %v5212 = vld [vmem:[%s15 + $0x18] sm:$0xff]
  %v5213 = vld [vmem:[%s16] sm:$0x1]
  %v5215 = vlaneseq
  %v5216 = vshrl.u32 %v5215, 7
  %v5217 = vsub.s32 0, %v5216
  %v5218 = vrot.slane %v5213, %v5217
  %v5228 = vrot.slane %v4868, 7
  %v5229 = vsel %vm970, %v5228, %v4812
  %v5230 = vrot.slane %v4924, 6
  %v5231 = vsel %vm972, %v5230, %v5229
  %v5232 = vrot.slane %v4980, 5
  %v5233 = vsel %vm974, %v5232, %v5231
  %v5234 = vrot.slane %v5036, 4
  %v5235 = vsel %vm976, %v5234, %v5233
  %v5236 = vrot.slane %v5092, 3
  %v5237 = vsel %vm978, %v5236, %v5235
  %v5238 = vrot.slane %v5148, 2
  %v5239 = vsel %vm980, %v5238, %v5237
  %v5240 = vrot.slane %v5204, 1
  %v5241 = vsel %vm982, %v5240, %v5239
  %v5242 = vsel %vm134, %v5241, 0
  %5244 = vmatprep.subr.mxu0 0.0
  %5245 = vmatpush1.msra.mxu0 0.0
  %5246 = vmatprep.subr.mxu0 0.0
  %5247 = vmatpush1.msra.mxu0 0.0
  %5248 = vmatprep.subr.mxu0 0.0
  %5249 = vmatpush1.msra.mxu0 0.0
  %5250 = vmatprep.subr.mxu0 0.0
  %5251 = vmatpush1.msra.mxu0 0.0
  %5252 = vmatprep.subr.mxu0 0.0
  %5253 = vmatpush1.msra.mxu0 0.0
  %5254 = vmatprep.subr.mxu0 0.0
  %5255 = vmatpush1.msra.mxu0 0.0
  %5256 = vmatprep.subr.mxu0 0.0
  %5257 = vmatpush1.msra.mxu0 0.0
  %5258 = vmatprep.subr.mxu0 0.0
  %5259 = vmatpush1.msra.mxu0 0.0
  %5260 = vmatprep.subr.mxu0 0.0
  %5261 = vmatpush1.msra.mxu0 0.0
  %5262 = vmatprep.subr.mxu0 0.0
  %5263 = vmatpush1.msra.mxu0 0.0
  %5264 = vmatprep.subr.mxu0 0.0
  %5265 = vmatpush1.msra.mxu0 0.0
  %5266 = vmatprep.subr.mxu0 0.0
  %5267 = vmatpush1.msra.mxu0 0.0
  %5268 = vmatprep.subr.mxu0 0.0
  %5269 = vmatpush1.msra.mxu0 %v5212
  %5270 = vmatprep.subr.mxu0 0.0
  %5271 = vmatpush1.msra.mxu0 %v5211
  %5272 = vmatprep.subr.mxu0 0.0
  %5273 = vmatpush1.msra.mxu0 %v5210
  %5274 = vmatprep.subr.mxu0 0.0
  %5275 = vmatpush1.msra.mxu0 %v5209
  %5276 = vmatprep.subr.mxu0 0.0
  %5277 = vmatpush2.msra.mxu0 0.0
  %5278 = vmatprep.subr.mxu0 0.0
  %5279 = vmatpush2.msra.mxu0 0.0
  %5280 = vmatprep.subr.mxu0 0.0
  %5281 = vmatpush2.msra.mxu0 0.0
  %5282 = vmatprep.subr.mxu0 0.0
  %5283 = vmatpush2.msra.mxu0 0.0
  %5284 = vmatprep.subr.mxu0 0.0
  %5285 = vmatpush2.msra.mxu0 0.0
  %5286 = vmatprep.subr.mxu0 0.0
  %5287 = vmatpush2.msra.mxu0 0.0
  %5288 = vmatprep.subr.mxu0 0.0
  %5289 = vmatpush2.msra.mxu0 0.0
  %5290 = vmatprep.subr.mxu0 0.0
  %5291 = vmatpush2.msra.mxu0 0.0
  %5292 = vmatprep.subr.mxu0 0.0
  %5293 = vmatpush2.msra.mxu0 0.0
  %5294 = vmatprep.subr.mxu0 0.0
  %5295 = vmatpush2.msra.mxu0 0.0
  %5296 = vmatprep.subr.mxu0 0.0
  %5297 = vmatpush2.msra.mxu0 0.0
  %5298 = vmatprep.subr.mxu0 0.0
  %5299 = vmatpush2.msra.mxu0 0.0
  %5300 = vmatprep.subr.mxu0 0.0
  %5301 = vmatpush2.msra.mxu0 0.0
  %5302 = vmatprep.subr.mxu0 0.0
  %5303 = vmatpush2.msra.mxu0 0.0
  %5304 = vmatprep.subr.mxu0 0.0
  %5305 = vmatpush2.msra.mxu0 0.0
  %5306 = vmatprep.subr.mxu0 0.0
  %5307 = vmatpush2.msra.mxu0 0.0
  %5308 = vmatprep.mubr.f32.mxu0 0.0
  %5309 = vmatmul.mubr.f32.gmra.mxu0 %v5242
  %v5310 = vpop.f32.mrf.mxu0
  %v5311 = vadd.f32 %v5218, %v5310
  %v5312 = vpop.f32.mrf.mxu0
  %5313 = vdwg.mxu0
  %v5314 = vadd.f32 %v5311, %v4375
  %v5315 = vxor.u32 %v5314, 2147483648
  %v5316 = vmul.f32 %v5315, 1.442695
  %v5317 = vpow.pop %v5316
  %v5318 = vadd.f32 %v5317, 1.0
  %v5319 = vrcp.pop %v5318
  %v5320 = vmul.f32 1.0, %v5319
  %5322 = vrot.lane.b32.xlu0 %v4375, 64
  %v5323 = vpop.permute.xlu0 %5322
  %v5325 = vmul.f32 %v5320, %v5323
  %5327 = vrot.lane.b32.xlu0 %v5325, 64
  %v5328 = vpop.permute.xlu0 %5327
  %v5330 = vadd.f32 %v5311, %v5328
  %v5331 = vtanh.pop %v5330
  %v5332 = vsub.f32 1.0, %v5320
  %5334 = vrot.lane.b32.xlu0 %v5331, 96
  %v5335 = vpop.permute.xlu0 %5334
  %v5337 = vmul.f32 %v5332, %v5335
  %v5338 = vmul.f32 %v5320, %v4283
  %v5339 = vadd.f32 %v5337, %v5338
  %v5340 = vpack.c.bf16 %v5339, %v5339
  %v5342 = vunpack.c.l.b16 %v5340
  %v5343 = vpack.c.b16 %v5342, %v5342
  %5344 = vrot.lane.b32.xlu0 %v5343, 96
  %v5345 = vpop.permute.xlu0 %5344
  %5347 = vst.msk [vmem:[#allocation5 + $0x28] sm:$0xf] %vm89, %v5345
  %v5348 = vpack.c.bf16 %v4812, %v4812
  %v5349 = vpack.c.bf16 %v4868, %v4868
  %v5350 = vpack.c.bf16 %v4924, %v4924
  %v5351 = vpack.c.bf16 %v4980, %v4980
  %v5352 = vpack.c.bf16 %v5036, %v5036
  %v5353 = vpack.c.bf16 %v5092, %v5092
  %v5354 = vpack.c.bf16 %v5148, %v5148
  %v5355 = vpack.c.bf16 %v5204, %v5204
  %v5364 = vunpack.c.l.b16 %v5348
  %v5365 = vunpack.c.l.b16 %v5349
  %v5366 = vunpack.c.l.b16 %v5350
  %v5367 = vunpack.c.l.b16 %v5351
  %v5368 = vunpack.c.l.b16 %v5352
  %v5369 = vunpack.c.l.b16 %v5353
  %v5370 = vunpack.c.l.b16 %v5354
  %v5371 = vunpack.c.l.b16 %v5355
  %v5372 = vpack.c.b16 %v5364, %v5364
  %v5373 = vpack.c.b16 %v5365, %v5365
  %v5374 = vpack.c.b16 %v5366, %v5366
  %v5375 = vpack.c.b16 %v5367, %v5367
  %v5376 = vpack.c.b16 %v5368, %v5368
  %v5377 = vpack.c.b16 %v5369, %v5369
  %v5378 = vpack.c.b16 %v5370, %v5370
  %v5379 = vpack.c.b16 %v5371, %v5371
  %v5380 = vunpack.c.l.b16 %v5372
  %v5381 = vunpack.c.l.b16 %v5373
  %v5382 = vunpack.c.l.b16 %v5374
  %v5383 = vunpack.c.l.b16 %v5375
  %v5384 = vunpack.c.l.b16 %v5376
  %v5385 = vunpack.c.l.b16 %v5377
  %v5386 = vunpack.c.l.b16 %v5378
  %v5387 = vunpack.c.l.b16 %v5379
  %v5388 = vrot.slane %v5381, 7
  %v5389 = vsel %vm970, %v5388, %v5380
  %v5390 = vrot.slane %v5382, 6
  %v5391 = vsel %vm972, %v5390, %v5389
  %v5392 = vrot.slane %v5383, 5
  %v5393 = vsel %vm974, %v5392, %v5391
  %v5394 = vrot.slane %v5384, 4
  %v5395 = vsel %vm976, %v5394, %v5393
  %v5396 = vrot.slane %v5385, 3
  %v5397 = vsel %vm978, %v5396, %v5395
  %v5398 = vrot.slane %v5386, 2
  %v5399 = vsel %vm980, %v5398, %v5397
  %v5400 = vrot.slane %v5387, 1
  %v5401 = vsel %vm982, %v5400, %v5399
  %v5402 = vpack.c.b16 %v5401, %v5401
  %5404 = vst.msk [vmem:[#allocation5 + $0x2c] sm:$0xf] %vm89, %v5402
  %s5405 = scalar_lea.vmem [#allocation2], 32
  %v5406 = vld [vmem:[%s5405] sm:$0xff]
  %v5407 = vld [vmem:[%s8] sm:$0xff]
  %v5408 = vld [vmem:[%s8 + $0x8] sm:$0xff]
  %v5409 = vld [vmem:[%s8 + $0x10] sm:$0xff]
  %v5410 = vld [vmem:[%s8 + $0x18] sm:$0xff]
  %v5411 = vld [vmem:[%s9] sm:$0x1]
  %v5413 = vlaneseq
  %v5414 = vshrl.u32 %v5413, 7
  %v5415 = vsub.s32 0, %v5414
  %v5416 = vrot.slane %v5411, %v5415
  %5419 = vrot.lane.b32.xlu0 %v5339, 96
  %v5420 = vpop.permute.xlu0 %5419
  %v5421 = vsel %vm134, %v5420, 0
  %5423 = vmatprep.subr.mxu0 0.0
  %5424 = vmatpush1.msra.mxu0 0.0
  %5425 = vmatprep.subr.mxu0 0.0
  %5426 = vmatpush1.msra.mxu0 0.0
  %5427 = vmatprep.subr.mxu0 0.0
  %5428 = vmatpush1.msra.mxu0 0.0
  %5429 = vmatprep.subr.mxu0 0.0
  %5430 = vmatpush1.msra.mxu0 0.0
  %5431 = vmatprep.subr.mxu0 0.0
  %5432 = vmatpush1.msra.mxu0 0.0
  %5433 = vmatprep.subr.mxu0 0.0
  %5434 = vmatpush1.msra.mxu0 0.0
  %5435 = vmatprep.subr.mxu0 0.0
  %5436 = vmatpush1.msra.mxu0 0.0
  %5437 = vmatprep.subr.mxu0 0.0
  %5438 = vmatpush1.msra.mxu0 0.0
  %5439 = vmatprep.subr.mxu0 0.0
  %5440 = vmatpush1.msra.mxu0 0.0
  %5441 = vmatprep.subr.mxu0 0.0
  %5442 = vmatpush1.msra.mxu0 0.0
  %5443 = vmatprep.subr.mxu0 0.0
  %5444 = vmatpush1.msra.mxu0 0.0
  %5445 = vmatprep.subr.mxu0 0.0
  %5446 = vmatpush1.msra.mxu0 0.0
  %5447 = vmatprep.subr.mxu0 0.0
  %5448 = vmatpush1.msra.mxu0 %v5410
  %5449 = vmatprep.subr.mxu0 0.0
  %5450 = vmatpush1.msra.mxu0 %v5409
  %5451 = vmatprep.subr.mxu0 0.0
  %5452 = vmatpush1.msra.mxu0 %v5408
  %5453 = vmatprep.subr.mxu0 0.0
  %5454 = vmatpush1.msra.mxu0 %v5407
  %5455 = vmatprep.subr.mxu0 0.0
  %5456 = vmatpush2.msra.mxu0 0.0
  %5457 = vmatprep.subr.mxu0 0.0
  %5458 = vmatpush2.msra.mxu0 0.0
  %5459 = vmatprep.subr.mxu0 0.0
  %5460 = vmatpush2.msra.mxu0 0.0
  %5461 = vmatprep.subr.mxu0 0.0
  %5462 = vmatpush2.msra.mxu0 0.0
  %5463 = vmatprep.subr.mxu0 0.0
  %5464 = vmatpush2.msra.mxu0 0.0
  %5465 = vmatprep.subr.mxu0 0.0
  %5466 = vmatpush2.msra.mxu0 0.0
  %5467 = vmatprep.subr.mxu0 0.0
  %5468 = vmatpush2.msra.mxu0 0.0
  %5469 = vmatprep.subr.mxu0 0.0
  %5470 = vmatpush2.msra.mxu0 0.0
  %5471 = vmatprep.subr.mxu0 0.0
  %5472 = vmatpush2.msra.mxu0 0.0
  %5473 = vmatprep.subr.mxu0 0.0
  %5474 = vmatpush2.msra.mxu0 0.0
  %5475 = vmatprep.subr.mxu0 0.0
  %5476 = vmatpush2.msra.mxu0 0.0
  %5477 = vmatprep.subr.mxu0 0.0
  %5478 = vmatpush2.msra.mxu0 0.0
  %5479 = vmatprep.subr.mxu0 0.0
  %5480 = vmatpush2.msra.mxu0 0.0
  %5481 = vmatprep.subr.mxu0 0.0
  %5482 = vmatpush2.msra.mxu0 0.0
  %5483 = vmatprep.subr.mxu0 0.0
  %5484 = vmatpush2.msra.mxu0 0.0
  %5485 = vmatprep.subr.mxu0 0.0
  %5486 = vmatpush2.msra.mxu0 0.0
  %5487 = vmatprep.mubr.f32.mxu0 0.0
  %5488 = vmatmul.mubr.f32.gmra.mxu0 %v5421
  %v5489 = vpop.f32.mrf.mxu0
  %v5490 = vadd.f32 %v5416, %v5489
  %v5491 = vpop.f32.mrf.mxu0
  %5492 = vdwg.mxu0
  %v5493 = vadd.f32 %v5406, %v5490
  %v5494 = vxor.u32 %v5493, 2147483648
  %v5495 = vmul.f32 %v5494, 1.442695
  %v5496 = vpow.pop %v5495
  %v5497 = vadd.f32 %v5496, 1.0
  %v5498 = vrcp.pop %v5497
  %v5499 = vmul.f32 1.0, %v5498
  %5501 = vrot.lane.b32.xlu0 %v5490, 64
  %v5502 = vpop.permute.xlu0 %5501
  %v5504 = vmul.f32 %v5499, %v5502
  %5506 = vrot.lane.b32.xlu0 %v5504, 64
  %v5507 = vpop.permute.xlu0 %5506
  %v5509 = vadd.f32 %v5406, %v5507
  %v5510 = vtanh.pop %v5509
  %v5511 = vsub.f32 1.0, %v5499
  %5513 = vrot.lane.b32.xlu0 %v5510, 96
  %v5514 = vpop.permute.xlu0 %5513
  %v5516 = vmul.f32 %v5511, %v5514
  %v5517 = vmul.f32 %v5499, %v5339
  %v5518 = vadd.f32 %v5516, %v5517
  %v5519 = vld [vmem:[%s13] sm:$0xff]
  %v5520 = vld [vmem:[%s13 + $0x8] sm:$0xff]
  %v5521 = vld [vmem:[%s13 + $0x10] sm:$0xff]
  %v5522 = vld [vmem:[%s13 + $0x18] sm:$0xff]
  %v5523 = vld [vmem:[%s13 + $0x20] sm:$0xff]
  %v5524 = vld [vmem:[%s13 + $0x28] sm:$0xff]
  %v5525 = vld [vmem:[%s13 + $0x30] sm:$0xff]
  %v5526 = vld [vmem:[%s13 + $0x38] sm:$0xff]
  %5528 = vrot.lane.b32.xlu0 %v5518, 96
  %v5529 = vpop.permute.xlu0 %5528
  %v5530 = vsel %vm134, %v5529, 0
  %5532 = vmatprep.subr.mxu0 0.0
  %5533 = vmatpush1.msra.mxu0 0.0
  %5534 = vmatprep.subr.mxu0 0.0
  %5535 = vmatpush1.msra.mxu0 0.0
  %5536 = vmatprep.subr.mxu0 0.0
  %5537 = vmatpush1.msra.mxu0 0.0
  %5538 = vmatprep.subr.mxu0 0.0
  %5539 = vmatpush1.msra.mxu0 0.0
  %5540 = vmatprep.subr.mxu0 0.0
  %5541 = vmatpush1.msra.mxu0 0.0
  %5542 = vmatprep.subr.mxu0 0.0
  %5543 = vmatpush1.msra.mxu0 0.0
  %5544 = vmatprep.subr.mxu0 0.0
  %5545 = vmatpush1.msra.mxu0 0.0
  %5546 = vmatprep.subr.mxu0 0.0
  %5547 = vmatpush1.msra.mxu0 0.0
  %5548 = vmatprep.subr.mxu0 0.0
  %5549 = vmatpush1.msra.mxu0 0.0
  %5550 = vmatprep.subr.mxu0 0.0
  %5551 = vmatpush1.msra.mxu0 0.0
  %5552 = vmatprep.subr.mxu0 0.0
  %5553 = vmatpush1.msra.mxu0 0.0
  %5554 = vmatprep.subr.mxu0 0.0
  %5555 = vmatpush1.msra.mxu0 0.0
  %5556 = vmatprep.subr.mxu0 %v5526
  %5557 = vmatpush1.msra.mxu0 %v5525
  %5558 = vmatprep.subr.mxu0 %v5524
  %5559 = vmatpush1.msra.mxu0 %v5523
  %5560 = vmatprep.subr.mxu0 %v5522
  %5561 = vmatpush1.msra.mxu0 %v5521
  %5562 = vmatprep.subr.mxu0 %v5520
  %5563 = vmatpush1.msra.mxu0 %v5519
  %5564 = vmatprep.subr.mxu0 0.0
  %5565 = vmatpush2.msra.mxu0 0.0
  %5566 = vmatprep.subr.mxu0 0.0
  %5567 = vmatpush2.msra.mxu0 0.0
  %5568 = vmatprep.subr.mxu0 0.0
  %5569 = vmatpush2.msra.mxu0 0.0
  %5570 = vmatprep.subr.mxu0 0.0
  %5571 = vmatpush2.msra.mxu0 0.0
  %5572 = vmatprep.subr.mxu0 0.0
  %5573 = vmatpush2.msra.mxu0 0.0
  %5574 = vmatprep.subr.mxu0 0.0
  %5575 = vmatpush2.msra.mxu0 0.0
  %5576 = vmatprep.subr.mxu0 0.0
  %5577 = vmatpush2.msra.mxu0 0.0
  %5578 = vmatprep.subr.mxu0 0.0
  %5579 = vmatpush2.msra.mxu0 0.0
  %5580 = vmatprep.subr.mxu0 0.0
  %5581 = vmatpush2.msra.mxu0 0.0
  %5582 = vmatprep.subr.mxu0 0.0
  %5583 = vmatpush2.msra.mxu0 0.0
  %5584 = vmatprep.subr.mxu0 0.0
  %5585 = vmatpush2.msra.mxu0 0.0
  %5586 = vmatprep.subr.mxu0 0.0
  %5587 = vmatpush2.msra.mxu0 0.0
  %5588 = vmatprep.subr.mxu0 0.0
  %5589 = vmatpush2.msra.mxu0 0.0
  %5590 = vmatprep.subr.mxu0 0.0
  %5591 = vmatpush2.msra.mxu0 0.0
  %5592 = vmatprep.subr.mxu0 0.0
  %5593 = vmatpush2.msra.mxu0 0.0
  %5594 = vmatprep.subr.mxu0 0.0
  %5595 = vmatpush2.msra.mxu0 0.0
  %5596 = vmatprep.mubr.f32.mxu0 0.0
  %5597 = vmatmul.mubr.f32.gmra.mxu0 %v5530
  %v5598 = vpop.f32.mrf.mxu0
  %v5599 = vadd.f32 0.0, %v5598
  %v5600 = vpop.f32.mrf.mxu0
  %v5601 = vadd.f32 0.0, %v5600
  %5602 = vdwg.mxu0
  %v5603 = vld [vmem:[%s14] sm:$0x1]
  %v5605 = vlaneseq
  %v5606 = vshrl.u32 %v5605, 7
  %v5607 = vsub.s32 0, %v5606
  %v5608 = vrot.slane %v5603, %v5607
  %v5610 = vadd.f32 %v5599, %v5608
  %v5611 = vld [vmem:[#allocation3] sm:$0xff]
  %v5612 = vld [vmem:[#allocation3 + $0x8] sm:$0xff]
  %v5613 = vld [vmem:[#allocation3 + $0x10] sm:$0xff]
  %v5614 = vld [vmem:[#allocation3 + $0x18] sm:$0xff]
  %v5615 = vld [vmem:[#allocation3 + $0x20] sm:$0xff]
  %v5616 = vld [vmem:[#allocation3 + $0x28] sm:$0xff]
  %v5617 = vld [vmem:[#allocation3 + $0x30] sm:$0xff]
  %v5618 = vld [vmem:[#allocation3 + $0x38] sm:$0xff]
  %v5620 = vcombine.high %v5601, %v5601
  %v5622 = vunpack.c.l.s4 1966171168
  %v5623 = vunpack.c.0.s8 %v5622
  %v5624 = vlaneseq
  %v5625 = vshrl.u32 %v5624, 7
  %v5626 = vsub.s32 %v5623, %v5625
  %v5627 = vrot.slane %v5601, %v5626
  %v5629 = vunpack.c.l.s4 1966171168
  %v5630 = vunpack.c.0.s8 %v5629
  %v5631 = vlaneseq
  %v5632 = vshrl.u32 %v5631, 7
  %v5633 = vsub.s32 %v5630, %v5632
  %v5634 = vrot.slane %v5620, %v5633
  %v5635 = vcombine.high %v5627, %v5627
  %v5636 = vcombine.high %v5634, %v5634
  %v5638 = vunpack.c.l.s4 1966171168
  %v5639 = vunpack.c.0.s8 %v5638
  %v5640 = vlaneseq
  %v5641 = vshrl.u32 %v5640, 7
  %v5642 = vsub.s32 %v5639, %v5641
  %v5643 = vrot.slane %v5627, %v5642
  %v5645 = vunpack.c.l.s4 1966171168
  %v5646 = vunpack.c.0.s8 %v5645
  %v5647 = vlaneseq
  %v5648 = vshrl.u32 %v5647, 7
  %v5649 = vsub.s32 %v5646, %v5648
  %v5650 = vrot.slane %v5634, %v5649
  %v5652 = vunpack.c.l.s4 1966171168
  %v5653 = vunpack.c.0.s8 %v5652
  %v5654 = vlaneseq
  %v5655 = vshrl.u32 %v5654, 7
  %v5656 = vsub.s32 %v5653, %v5655
  %v5657 = vrot.slane %v5635, %v5656
  %v5659 = vunpack.c.l.s4 1966171168
  %v5660 = vunpack.c.0.s8 %v5659
  %v5661 = vlaneseq
  %v5662 = vshrl.u32 %v5661, 7
  %v5663 = vsub.s32 %v5660, %v5662
  %v5664 = vrot.slane %v5636, %v5663
  %v5665 = vcombine.high %v5643, %v5643
  %v5666 = vcombine.high %v5650, %v5650
  %v5667 = vcombine.high %v5657, %v5657
  %v5668 = vcombine.high %v5664, %v5664
  %v5669 = vlaneseq
  %v5670 = vshrl.u32 %v5669, 7
  %v5671 = vsub.s32 0, %v5670
  %v5672 = vrot.slane %v5643, %v5671
  %v5673 = vlaneseq
  %v5674 = vshrl.u32 %v5673, 7
  %v5675 = vsub.s32 0, %v5674
  %v5676 = vrot.slane %v5657, %v5675
  %v5677 = vlaneseq
  %v5678 = vshrl.u32 %v5677, 7
  %v5679 = vsub.s32 0, %v5678
  %v5680 = vrot.slane %v5665, %v5679
  %v5681 = vlaneseq
  %v5682 = vshrl.u32 %v5681, 7
  %v5683 = vsub.s32 0, %v5682
  %v5684 = vrot.slane %v5667, %v5683
  %v5685 = vlaneseq
  %v5686 = vshrl.u32 %v5685, 7
  %v5687 = vsub.s32 0, %v5686
  %v5688 = vrot.slane %v5650, %v5687
  %v5689 = vlaneseq
  %v5690 = vshrl.u32 %v5689, 7
  %v5691 = vsub.s32 0, %v5690
  %v5692 = vrot.slane %v5664, %v5691
  %v5693 = vlaneseq
  %v5694 = vshrl.u32 %v5693, 7
  %v5695 = vsub.s32 0, %v5694
  %v5696 = vrot.slane %v5666, %v5695
  %v5697 = vlaneseq
  %v5698 = vshrl.u32 %v5697, 7
  %v5699 = vsub.s32 0, %v5698
  %v5700 = vrot.slane %v5668, %v5699
  %v5709 = vadd.f32 %v5611, %v5672
  %v5710 = vadd.f32 %v5612, %v5676
  %v5711 = vadd.f32 %v5613, %v5680
  %v5712 = vadd.f32 %v5614, %v5684
  %v5713 = vadd.f32 %v5615, %v5688
  %v5714 = vadd.f32 %v5616, %v5692
  %v5715 = vadd.f32 %v5617, %v5696
  %v5716 = vadd.f32 %v5618, %v5700
  %v5717 = vtanh.pop %v5709
  %v5718 = vtanh.pop %v5710
  %v5719 = vtanh.pop %v5711
  %v5720 = vtanh.pop %v5712
  %v5721 = vtanh.pop %v5713
  %v5722 = vtanh.pop %v5714
  %v5723 = vtanh.pop %v5715
  %v5724 = vtanh.pop %v5716
  %v5725 = vld [vmem:[%s12] sm:$0x1]
  %v5727 = vlaneseq
  %v5728 = vshrl.u32 %v5727, 7
  %v5729 = vsub.s32 0, %v5728
  %v5730 = vrot.slane %v5725, %v5729
  %v5732 = vmul.f32 %v5717, %v5730
  %v5733 = vmul.f32 %v5718, %v5730
  %v5734 = vmul.f32 %v5719, %v5730
  %v5735 = vmul.f32 %v5720, %v5730
  %v5736 = vmul.f32 %v5721, %v5730
  %v5737 = vmul.f32 %v5722, %v5730
  %v5738 = vmul.f32 %v5723, %v5730
  %v5739 = vmul.f32 %v5724, %v5730
  %v5740 = vsel %vm134, %v5732, 0.0
  %5741 = vadd.xlane.f32.xlu0 %v5740
  %v5742 = vpop.xlane.xlu0 %5741
  %v5743 = vsel %vm134, %v5733, 0.0
  %5744 = vadd.xlane.f32.xlu0 %v5743
  %v5745 = vpop.xlane.xlu0 %5744
  %v5746 = vsel %vm134, %v5734, 0.0
  %5747 = vadd.xlane.f32.xlu0 %v5746
  %v5748 = vpop.xlane.xlu0 %5747
  %v5749 = vsel %vm134, %v5735, 0.0
  %5750 = vadd.xlane.f32.xlu0 %v5749
  %v5751 = vpop.xlane.xlu0 %5750
  %v5752 = vsel %vm134, %v5736, 0.0
  %5753 = vadd.xlane.f32.xlu0 %v5752
  %v5754 = vpop.xlane.xlu0 %5753
  %v5755 = vsel %vm134, %v5737, 0.0
  %5756 = vadd.xlane.f32.xlu0 %v5755
  %v5757 = vpop.xlane.xlu0 %5756
  %v5758 = vsel %vm134, %v5738, 0.0
  %5759 = vadd.xlane.f32.xlu0 %v5758
  %v5760 = vpop.xlane.xlu0 %5759
  %v5761 = vsel %vm134, %v5739, 0.0
  %5762 = vadd.xlane.f32.xlu0 %v5761
  %v5763 = vpop.xlane.xlu0 %5762
  %v5764 = vld [vmem:[#allocation4] sm:$0xff]
  %v5766 = vlaneseq
  %v5767 = vshrl.u32 %v5766, 7
  %v5768 = vsub.s32 0, %v5767
  %v5769 = vrot.slane %v5764, %v5768
  %5771 = vbcast.lane.b32.xlu0 %v5769, 256
  %v5772 = vpop.permute.xlu0 %5771
  %v5773 = vlaneseq
  %v5774 = vshrl.u32 %v5773, 7
  %v5775 = vsub.s32 1, %v5774
  %v5776 = vrot.slane %v5764, %v5775
  %5778 = vbcast.lane.b32.xlu0 %v5776, 256
  %v5779 = vpop.permute.xlu0 %5778
  %v5780 = vlaneseq
  %v5781 = vshrl.u32 %v5780, 7
  %v5782 = vsub.s32 2, %v5781
  %v5783 = vrot.slane %v5764, %v5782
  %5785 = vbcast.lane.b32.xlu0 %v5783, 256
  %v5786 = vpop.permute.xlu0 %5785
  %v5787 = vlaneseq
  %v5788 = vshrl.u32 %v5787, 7
  %v5789 = vsub.s32 3, %v5788
  %v5790 = vrot.slane %v5764, %v5789
  %5792 = vbcast.lane.b32.xlu0 %v5790, 256
  %v5793 = vpop.permute.xlu0 %5792
  %v5794 = vlaneseq
  %v5795 = vshrl.u32 %v5794, 7
  %v5796 = vsub.s32 4, %v5795
  %v5797 = vrot.slane %v5764, %v5796
  %5799 = vbcast.lane.b32.xlu0 %v5797, 256
  %v5800 = vpop.permute.xlu0 %5799
  %v5801 = vlaneseq
  %v5802 = vshrl.u32 %v5801, 7
  %v5803 = vsub.s32 5, %v5802
  %v5804 = vrot.slane %v5764, %v5803
  %5806 = vbcast.lane.b32.xlu0 %v5804, 256
  %v5807 = vpop.permute.xlu0 %5806
  %v5808 = vlaneseq
  %v5809 = vshrl.u32 %v5808, 7
  %v5810 = vsub.s32 6, %v5809
  %v5811 = vrot.slane %v5764, %v5810
  %5813 = vbcast.lane.b32.xlu0 %v5811, 256
  %v5814 = vpop.permute.xlu0 %5813
  %v5815 = vlaneseq
  %v5816 = vshrl.u32 %v5815, 7
  %v5817 = vsub.s32 7, %v5816
  %v5818 = vrot.slane %v5764, %v5817
  %5820 = vbcast.lane.b32.xlu0 %v5818, 256
  %v5821 = vpop.permute.xlu0 %5820
  %v5830 = vadd.f32 %v5742, %v5772
  %v5831 = vadd.f32 %v5745, %v5779
  %v5832 = vadd.f32 %v5748, %v5786
  %v5833 = vadd.f32 %v5751, %v5793
  %v5834 = vadd.f32 %v5754, %v5800
  %v5835 = vadd.f32 %v5757, %v5807
  %v5836 = vadd.f32 %v5760, %v5814
  %v5837 = vadd.f32 %v5763, %v5821
  %v5838 = vmul.f32 %v5830, 1.442695
  %v5839 = vpow.pop %v5838
  %v5840 = vmul.f32 %v5831, 1.442695
  %v5841 = vpow.pop %v5840
  %v5842 = vmul.f32 %v5832, 1.442695
  %v5843 = vpow.pop %v5842
  %v5844 = vmul.f32 %v5833, 1.442695
  %v5845 = vpow.pop %v5844
  %v5846 = vmul.f32 %v5834, 1.442695
  %v5847 = vpow.pop %v5846
  %v5848 = vmul.f32 %v5835, 1.442695
  %v5849 = vpow.pop %v5848
  %v5850 = vmul.f32 %v5836, 1.442695
  %v5851 = vpow.pop %v5850
  %v5852 = vmul.f32 %v5837, 1.442695
  %v5853 = vpow.pop %v5852
  %5862 = vset.pattern.permute.xlu0 0
  %5863 = vperm.xlu0 %5862, %v5839
  %v5864 = vpop.permute.xlu0 %5863
  %5865 = vset.pattern.permute.xlu0 0
  %5866 = vperm.xlu0 %5865, %v5841
  %v5867 = vpop.permute.xlu0 %5866
  %5868 = vset.pattern.permute.xlu0 0
  %5869 = vperm.xlu0 %5868, %v5843
  %v5870 = vpop.permute.xlu0 %5869
  %5871 = vset.pattern.permute.xlu0 0
  %5872 = vperm.xlu0 %5871, %v5845
  %v5873 = vpop.permute.xlu0 %5872
  %5874 = vset.pattern.permute.xlu0 0
  %5875 = vperm.xlu0 %5874, %v5847
  %v5876 = vpop.permute.xlu0 %5875
  %5877 = vset.pattern.permute.xlu0 0
  %5878 = vperm.xlu0 %5877, %v5849
  %v5879 = vpop.permute.xlu0 %5878
  %5880 = vset.pattern.permute.xlu0 0
  %5881 = vperm.xlu0 %5880, %v5851
  %v5882 = vpop.permute.xlu0 %5881
  %5883 = vset.pattern.permute.xlu0 0
  %5884 = vperm.xlu0 %5883, %v5853
  %v5885 = vpop.permute.xlu0 %5884
  %v5886 = vlaneseq
  %v5887 = vshrl.u32 %v5886, 7
  %v5888 = vsub.s32 %v937, %v5887
  %v5889 = vrot.slane %v5864, %v5888
  %v5890 = vlaneseq
  %v5891 = vshrl.u32 %v5890, 7
  %v5892 = vsub.s32 %v937, %v5891
  %v5893 = vrot.slane %v5867, %v5892
  %v5894 = vlaneseq
  %v5895 = vshrl.u32 %v5894, 7
  %v5896 = vsub.s32 %v937, %v5895
  %v5897 = vrot.slane %v5870, %v5896
  %v5898 = vlaneseq
  %v5899 = vshrl.u32 %v5898, 7
  %v5900 = vsub.s32 %v937, %v5899
  %v5901 = vrot.slane %v5873, %v5900
  %v5902 = vlaneseq
  %v5903 = vshrl.u32 %v5902, 7
  %v5904 = vsub.s32 %v937, %v5903
  %v5905 = vrot.slane %v5876, %v5904
  %v5906 = vlaneseq
  %v5907 = vshrl.u32 %v5906, 7
  %v5908 = vsub.s32 %v937, %v5907
  %v5909 = vrot.slane %v5879, %v5908
  %v5910 = vlaneseq
  %v5911 = vshrl.u32 %v5910, 7
  %v5912 = vsub.s32 %v937, %v5911
  %v5913 = vrot.slane %v5882, %v5912
  %v5914 = vlaneseq
  %v5915 = vshrl.u32 %v5914, 7
  %v5916 = vsub.s32 %v937, %v5915
  %v5917 = vrot.slane %v5885, %v5916
  %v5918 = vsel %vm970, %v5893, %v5889
  %v5919 = vsel %vm972, %v5897, %v5918
  %v5920 = vsel %vm974, %v5901, %v5919
  %v5921 = vsel %vm976, %v5905, %v5920
  %v5922 = vsel %vm978, %v5909, %v5921
  %v5923 = vsel %vm980, %v5913, %v5922
  %v5924 = vsel %vm982, %v5917, %v5923
  %v5926 = vsel %vm452, %v5924, 0.0
  %5927 = vadd.xlane.f32.xlu0 %v5926
  %v5928 = vpop.xlane.xlu0 %5927
  %v5929 = vmax.f32 %v5928, 1e-30
  %v5930 = vrcp.pop %v5929
  %v5932 = vlaneseq
  %v5933 = vshrl.u32 %v5932, 7
  %v5934 = vsub.s32 0, %v5933
  %v5935 = vrot.slane %v5930, %v5934
  %v5936 = vlaneseq
  %v5937 = vshrl.u32 %v5936, 7
  %v5938 = vsub.s32 1, %v5937
  %v5939 = vrot.slane %v5930, %v5938
  %v5940 = vlaneseq
  %v5941 = vshrl.u32 %v5940, 7
  %v5942 = vsub.s32 2, %v5941
  %v5943 = vrot.slane %v5930, %v5942
  %v5944 = vlaneseq
  %v5945 = vshrl.u32 %v5944, 7
  %v5946 = vsub.s32 3, %v5945
  %v5947 = vrot.slane %v5930, %v5946
  %v5948 = vlaneseq
  %v5949 = vshrl.u32 %v5948, 7
  %v5950 = vsub.s32 4, %v5949
  %v5951 = vrot.slane %v5930, %v5950
  %v5952 = vlaneseq
  %v5953 = vshrl.u32 %v5952, 7
  %v5954 = vsub.s32 5, %v5953
  %v5955 = vrot.slane %v5930, %v5954
  %v5956 = vlaneseq
  %v5957 = vshrl.u32 %v5956, 7
  %v5958 = vsub.s32 6, %v5957
  %v5959 = vrot.slane %v5930, %v5958
  %v5960 = vlaneseq
  %v5961 = vshrl.u32 %v5960, 7
  %v5962 = vsub.s32 7, %v5961
  %v5963 = vrot.slane %v5930, %v5962
  %v5972 = vmul.f32 %v5839, %v5935
  %v5973 = vmul.f32 %v5841, %v5939
  %v5974 = vmul.f32 %v5843, %v5943
  %v5975 = vmul.f32 %v5845, %v5947
  %v5976 = vmul.f32 %v5847, %v5951
  %v5977 = vmul.f32 %v5849, %v5955
  %v5978 = vmul.f32 %v5851, %v5959
  %v5979 = vmul.f32 %v5853, %v5963
  %v5980 = vpack.c.bf16 %v5972, %v5972
  %v5981 = vpack.c.bf16 %v5973, %v5973
  %v5982 = vpack.c.bf16 %v5974, %v5974
  %v5983 = vpack.c.bf16 %v5975, %v5975
  %v5984 = vpack.c.bf16 %v5976, %v5976
  %v5985 = vpack.c.bf16 %v5977, %v5977
  %v5986 = vpack.c.bf16 %v5978, %v5978
  %v5987 = vpack.c.bf16 %v5979, %v5979
  %v5988 = vld [vmem:[%s2] sm:$0xf]
  %v5989 = vld [vmem:[%s2 + $0x4] sm:$0xf]
  %v5990 = vld [vmem:[%s2 + $0x8] sm:$0xf]
  %v5991 = vld [vmem:[%s2 + $0xc] sm:$0xf]
  %v5992 = vld [vmem:[%s2 + $0x10] sm:$0xf]
  %v5993 = vld [vmem:[%s2 + $0x14] sm:$0xf]
  %v5994 = vld [vmem:[%s2 + $0x18] sm:$0xf]
  %v5995 = vld [vmem:[%s2 + $0x1c] sm:$0xf]
  %v5997 = vunpack.c.l.b16 %v5980
  %5998 = vset.pattern.permute.xlu0 0
  %5999 = vperm.xlu0 %5998, %v5997
  %v6000 = vpop.permute.xlu0 %5999
  %v6001 = vlaneseq
  %v6002 = vshrl.u32 %v6001, 7
  %v6003 = vsub.s32 %v937, %v6002
  %v6004 = vrot.slane %v6000, %v6003
  %v6005 = vpack.c.b16 %v6004, %v6004
  %v6007 = vsel %vm452, %v6005, 0
  %v6010 = vsel %vm1068, %v5988, 0
  %6012 = vmatprep.subr.bf16.mxu0 0
  %6013 = vmatpush1.bf16.msra.mxu0 0
  %6014 = vmatprep.subr.bf16.mxu0 0
  %6015 = vmatpush1.bf16.msra.mxu0 0
  %6016 = vmatprep.subr.bf16.mxu0 0
  %6017 = vmatpush1.bf16.msra.mxu0 0
  %6018 = vmatprep.subr.bf16.mxu0 0
  %6019 = vmatpush1.bf16.msra.mxu0 0
  %6020 = vmatprep.subr.bf16.mxu0 0
  %6021 = vmatpush1.bf16.msra.mxu0 0
  %6022 = vmatprep.subr.bf16.mxu0 0
  %6023 = vmatpush1.bf16.msra.mxu0 0
  %6024 = vmatprep.subr.bf16.mxu0 0
  %6025 = vmatpush1.bf16.msra.mxu0 0
  %6026 = vmatprep.subr.bf16.mxu0 0
  %6027 = vmatpush1.bf16.msra.mxu0 %v6010
  %6028 = vmatprep.subr.bf16.mxu0 0
  %6029 = vmatpush2.bf16.msra.mxu0 0
  %6030 = vmatprep.subr.bf16.mxu0 0
  %6031 = vmatpush2.bf16.msra.mxu0 0
  %6032 = vmatprep.subr.bf16.mxu0 0
  %6033 = vmatpush2.bf16.msra.mxu0 0
  %6034 = vmatprep.subr.bf16.mxu0 0
  %6035 = vmatpush2.bf16.msra.mxu0 0
  %6036 = vmatprep.subr.bf16.mxu0 0
  %6037 = vmatpush2.bf16.msra.mxu0 0
  %6038 = vmatprep.subr.bf16.mxu0 0
  %6039 = vmatpush2.bf16.msra.mxu0 0
  %6040 = vmatprep.subr.bf16.mxu0 0
  %6041 = vmatpush2.bf16.msra.mxu0 0
  %6042 = vmatprep.subr.bf16.mxu0 0
  %6043 = vmatpush2.bf16.msra.mxu0 0
  %6044 = vmatprep.mubr.bf16.mxu0 0
  %6045 = vmatmul.mubr.bf16.gmra.mxu0 %v6007
  %v6046 = vpop.f32.mrf.mxu0
  %v6047 = vadd.f32 0.0, %v6046
  %v6048 = vpop.f32.mrf.mxu0
  %v6049 = vpop.f32.mrf.mxu0
  %v6050 = vpop.f32.mrf.mxu0
  %6051 = vdwg.mxu0
  %v6053 = vunpack.c.l.b16 %v5981
  %6054 = vset.pattern.permute.xlu0 0
  %6055 = vperm.xlu0 %6054, %v6053
  %v6056 = vpop.permute.xlu0 %6055
  %v6057 = vlaneseq
  %v6058 = vshrl.u32 %v6057, 7
  %v6059 = vsub.s32 %v937, %v6058
  %v6060 = vrot.slane %v6056, %v6059
  %v6061 = vpack.c.b16 %v6060, %v6060
  %v6063 = vsel %vm452, %v6061, 0
  %v6066 = vsel %vm1068, %v5989, 0
  %6068 = vmatprep.subr.bf16.mxu0 0
  %6069 = vmatpush1.bf16.msra.mxu0 0
  %6070 = vmatprep.subr.bf16.mxu0 0
  %6071 = vmatpush1.bf16.msra.mxu0 0
  %6072 = vmatprep.subr.bf16.mxu0 0
  %6073 = vmatpush1.bf16.msra.mxu0 0
  %6074 = vmatprep.subr.bf16.mxu0 0
  %6075 = vmatpush1.bf16.msra.mxu0 0
  %6076 = vmatprep.subr.bf16.mxu0 0
  %6077 = vmatpush1.bf16.msra.mxu0 0
  %6078 = vmatprep.subr.bf16.mxu0 0
  %6079 = vmatpush1.bf16.msra.mxu0 0
  %6080 = vmatprep.subr.bf16.mxu0 0
  %6081 = vmatpush1.bf16.msra.mxu0 0
  %6082 = vmatprep.subr.bf16.mxu0 0
  %6083 = vmatpush1.bf16.msra.mxu0 %v6066
  %6084 = vmatprep.subr.bf16.mxu0 0
  %6085 = vmatpush2.bf16.msra.mxu0 0
  %6086 = vmatprep.subr.bf16.mxu0 0
  %6087 = vmatpush2.bf16.msra.mxu0 0
  %6088 = vmatprep.subr.bf16.mxu0 0
  %6089 = vmatpush2.bf16.msra.mxu0 0
  %6090 = vmatprep.subr.bf16.mxu0 0
  %6091 = vmatpush2.bf16.msra.mxu0 0
  %6092 = vmatprep.subr.bf16.mxu0 0
  %6093 = vmatpush2.bf16.msra.mxu0 0
  %6094 = vmatprep.subr.bf16.mxu0 0
  %6095 = vmatpush2.bf16.msra.mxu0 0
  %6096 = vmatprep.subr.bf16.mxu0 0
  %6097 = vmatpush2.bf16.msra.mxu0 0
  %6098 = vmatprep.subr.bf16.mxu0 0
  %6099 = vmatpush2.bf16.msra.mxu0 0
  %6100 = vmatprep.mubr.bf16.mxu0 0
  %6101 = vmatmul.mubr.bf16.gmra.mxu0 %v6063
  %v6102 = vpop.f32.mrf.mxu0
  %v6103 = vadd.f32 0.0, %v6102
  %v6104 = vpop.f32.mrf.mxu0
  %v6105 = vpop.f32.mrf.mxu0
  %v6106 = vpop.f32.mrf.mxu0
  %6107 = vdwg.mxu0
  %v6109 = vunpack.c.l.b16 %v5982
  %6110 = vset.pattern.permute.xlu0 0
  %6111 = vperm.xlu0 %6110, %v6109
  %v6112 = vpop.permute.xlu0 %6111
  %v6113 = vlaneseq
  %v6114 = vshrl.u32 %v6113, 7
  %v6115 = vsub.s32 %v937, %v6114
  %v6116 = vrot.slane %v6112, %v6115
  %v6117 = vpack.c.b16 %v6116, %v6116
  %v6119 = vsel %vm452, %v6117, 0
  %v6122 = vsel %vm1068, %v5990, 0
  %6124 = vmatprep.subr.bf16.mxu0 0
  %6125 = vmatpush1.bf16.msra.mxu0 0
  %6126 = vmatprep.subr.bf16.mxu0 0
  %6127 = vmatpush1.bf16.msra.mxu0 0
  %6128 = vmatprep.subr.bf16.mxu0 0
  %6129 = vmatpush1.bf16.msra.mxu0 0
  %6130 = vmatprep.subr.bf16.mxu0 0
  %6131 = vmatpush1.bf16.msra.mxu0 0
  %6132 = vmatprep.subr.bf16.mxu0 0
  %6133 = vmatpush1.bf16.msra.mxu0 0
  %6134 = vmatprep.subr.bf16.mxu0 0
  %6135 = vmatpush1.bf16.msra.mxu0 0
  %6136 = vmatprep.subr.bf16.mxu0 0
  %6137 = vmatpush1.bf16.msra.mxu0 0
  %6138 = vmatprep.subr.bf16.mxu0 0
  %6139 = vmatpush1.bf16.msra.mxu0 %v6122
  %6140 = vmatprep.subr.bf16.mxu0 0
  %6141 = vmatpush2.bf16.msra.mxu0 0
  %6142 = vmatprep.subr.bf16.mxu0 0
  %6143 = vmatpush2.bf16.msra.mxu0 0
  %6144 = vmatprep.subr.bf16.mxu0 0
  %6145 = vmatpush2.bf16.msra.mxu0 0
  %6146 = vmatprep.subr.bf16.mxu0 0
  %6147 = vmatpush2.bf16.msra.mxu0 0
  %6148 = vmatprep.subr.bf16.mxu0 0
  %6149 = vmatpush2.bf16.msra.mxu0 0
  %6150 = vmatprep.subr.bf16.mxu0 0
  %6151 = vmatpush2.bf16.msra.mxu0 0
  %6152 = vmatprep.subr.bf16.mxu0 0
  %6153 = vmatpush2.bf16.msra.mxu0 0
  %6154 = vmatprep.subr.bf16.mxu0 0
  %6155 = vmatpush2.bf16.msra.mxu0 0
  %6156 = vmatprep.mubr.bf16.mxu0 0
  %6157 = vmatmul.mubr.bf16.gmra.mxu0 %v6119
  %v6158 = vpop.f32.mrf.mxu0
  %v6159 = vadd.f32 0.0, %v6158
  %v6160 = vpop.f32.mrf.mxu0
  %v6161 = vpop.f32.mrf.mxu0
  %v6162 = vpop.f32.mrf.mxu0
  %6163 = vdwg.mxu0
  %v6165 = vunpack.c.l.b16 %v5983
  %6166 = vset.pattern.permute.xlu0 0
  %6167 = vperm.xlu0 %6166, %v6165
  %v6168 = vpop.permute.xlu0 %6167
  %v6169 = vlaneseq
  %v6170 = vshrl.u32 %v6169, 7
  %v6171 = vsub.s32 %v937, %v6170
  %v6172 = vrot.slane %v6168, %v6171
  %v6173 = vpack.c.b16 %v6172, %v6172
  %v6175 = vsel %vm452, %v6173, 0
  %v6178 = vsel %vm1068, %v5991, 0
  %6180 = vmatprep.subr.bf16.mxu0 0
  %6181 = vmatpush1.bf16.msra.mxu0 0
  %6182 = vmatprep.subr.bf16.mxu0 0
  %6183 = vmatpush1.bf16.msra.mxu0 0
  %6184 = vmatprep.subr.bf16.mxu0 0
  %6185 = vmatpush1.bf16.msra.mxu0 0
  %6186 = vmatprep.subr.bf16.mxu0 0
  %6187 = vmatpush1.bf16.msra.mxu0 0
  %6188 = vmatprep.subr.bf16.mxu0 0
  %6189 = vmatpush1.bf16.msra.mxu0 0
  %6190 = vmatprep.subr.bf16.mxu0 0
  %6191 = vmatpush1.bf16.msra.mxu0 0
  %6192 = vmatprep.subr.bf16.mxu0 0
  %6193 = vmatpush1.bf16.msra.mxu0 0
  %6194 = vmatprep.subr.bf16.mxu0 0
  %6195 = vmatpush1.bf16.msra.mxu0 %v6178
  %6196 = vmatprep.subr.bf16.mxu0 0
  %6197 = vmatpush2.bf16.msra.mxu0 0
  %6198 = vmatprep.subr.bf16.mxu0 0
  %6199 = vmatpush2.bf16.msra.mxu0 0
  %6200 = vmatprep.subr.bf16.mxu0 0
  %6201 = vmatpush2.bf16.msra.mxu0 0
  %6202 = vmatprep.subr.bf16.mxu0 0
  %6203 = vmatpush2.bf16.msra.mxu0 0
  %6204 = vmatprep.subr.bf16.mxu0 0
  %6205 = vmatpush2.bf16.msra.mxu0 0
  %6206 = vmatprep.subr.bf16.mxu0 0
  %6207 = vmatpush2.bf16.msra.mxu0 0
  %6208 = vmatprep.subr.bf16.mxu0 0
  %6209 = vmatpush2.bf16.msra.mxu0 0
  %6210 = vmatprep.subr.bf16.mxu0 0
  %6211 = vmatpush2.bf16.msra.mxu0 0
  %6212 = vmatprep.mubr.bf16.mxu0 0
  %6213 = vmatmul.mubr.bf16.gmra.mxu0 %v6175
  %v6214 = vpop.f32.mrf.mxu0
  %v6215 = vadd.f32 0.0, %v6214
  %v6216 = vpop.f32.mrf.mxu0
  %v6217 = vpop.f32.mrf.mxu0
  %v6218 = vpop.f32.mrf.mxu0
  %6219 = vdwg.mxu0
  %v6221 = vunpack.c.l.b16 %v5984
  %6222 = vset.pattern.permute.xlu0 0
  %6223 = vperm.xlu0 %6222, %v6221
  %v6224 = vpop.permute.xlu0 %6223
  %v6225 = vlaneseq
  %v6226 = vshrl.u32 %v6225, 7
  %v6227 = vsub.s32 %v937, %v6226
  %v6228 = vrot.slane %v6224, %v6227
  %v6229 = vpack.c.b16 %v6228, %v6228
  %v6231 = vsel %vm452, %v6229, 0
  %v6234 = vsel %vm1068, %v5992, 0
  %6236 = vmatprep.subr.bf16.mxu0 0
  %6237 = vmatpush1.bf16.msra.mxu0 0
  %6238 = vmatprep.subr.bf16.mxu0 0
  %6239 = vmatpush1.bf16.msra.mxu0 0
  %6240 = vmatprep.subr.bf16.mxu0 0
  %6241 = vmatpush1.bf16.msra.mxu0 0
  %6242 = vmatprep.subr.bf16.mxu0 0
  %6243 = vmatpush1.bf16.msra.mxu0 0
  %6244 = vmatprep.subr.bf16.mxu0 0
  %6245 = vmatpush1.bf16.msra.mxu0 0
  %6246 = vmatprep.subr.bf16.mxu0 0
  %6247 = vmatpush1.bf16.msra.mxu0 0
  %6248 = vmatprep.subr.bf16.mxu0 0
  %6249 = vmatpush1.bf16.msra.mxu0 0
  %6250 = vmatprep.subr.bf16.mxu0 0
  %6251 = vmatpush1.bf16.msra.mxu0 %v6234
  %6252 = vmatprep.subr.bf16.mxu0 0
  %6253 = vmatpush2.bf16.msra.mxu0 0
  %6254 = vmatprep.subr.bf16.mxu0 0
  %6255 = vmatpush2.bf16.msra.mxu0 0
  %6256 = vmatprep.subr.bf16.mxu0 0
  %6257 = vmatpush2.bf16.msra.mxu0 0
  %6258 = vmatprep.subr.bf16.mxu0 0
  %6259 = vmatpush2.bf16.msra.mxu0 0
  %6260 = vmatprep.subr.bf16.mxu0 0
  %6261 = vmatpush2.bf16.msra.mxu0 0
  %6262 = vmatprep.subr.bf16.mxu0 0
  %6263 = vmatpush2.bf16.msra.mxu0 0
  %6264 = vmatprep.subr.bf16.mxu0 0
  %6265 = vmatpush2.bf16.msra.mxu0 0
  %6266 = vmatprep.subr.bf16.mxu0 0
  %6267 = vmatpush2.bf16.msra.mxu0 0
  %6268 = vmatprep.mubr.bf16.mxu0 0
  %6269 = vmatmul.mubr.bf16.gmra.mxu0 %v6231
  %v6270 = vpop.f32.mrf.mxu0
  %v6271 = vadd.f32 0.0, %v6270
  %v6272 = vpop.f32.mrf.mxu0
  %v6273 = vpop.f32.mrf.mxu0
  %v6274 = vpop.f32.mrf.mxu0
  %6275 = vdwg.mxu0
  %v6277 = vunpack.c.l.b16 %v5985
  %6278 = vset.pattern.permute.xlu0 0
  %6279 = vperm.xlu0 %6278, %v6277
  %v6280 = vpop.permute.xlu0 %6279
  %v6281 = vlaneseq
  %v6282 = vshrl.u32 %v6281, 7
  %v6283 = vsub.s32 %v937, %v6282
  %v6284 = vrot.slane %v6280, %v6283
  %v6285 = vpack.c.b16 %v6284, %v6284
  %v6287 = vsel %vm452, %v6285, 0
  %v6290 = vsel %vm1068, %v5993, 0
  %6292 = vmatprep.subr.bf16.mxu0 0
  %6293 = vmatpush1.bf16.msra.mxu0 0
  %6294 = vmatprep.subr.bf16.mxu0 0
  %6295 = vmatpush1.bf16.msra.mxu0 0
  %6296 = vmatprep.subr.bf16.mxu0 0
  %6297 = vmatpush1.bf16.msra.mxu0 0
  %6298 = vmatprep.subr.bf16.mxu0 0
  %6299 = vmatpush1.bf16.msra.mxu0 0
  %6300 = vmatprep.subr.bf16.mxu0 0
  %6301 = vmatpush1.bf16.msra.mxu0 0
  %6302 = vmatprep.subr.bf16.mxu0 0
  %6303 = vmatpush1.bf16.msra.mxu0 0
  %6304 = vmatprep.subr.bf16.mxu0 0
  %6305 = vmatpush1.bf16.msra.mxu0 0
  %6306 = vmatprep.subr.bf16.mxu0 0
  %6307 = vmatpush1.bf16.msra.mxu0 %v6290
  %6308 = vmatprep.subr.bf16.mxu0 0
  %6309 = vmatpush2.bf16.msra.mxu0 0
  %6310 = vmatprep.subr.bf16.mxu0 0
  %6311 = vmatpush2.bf16.msra.mxu0 0
  %6312 = vmatprep.subr.bf16.mxu0 0
  %6313 = vmatpush2.bf16.msra.mxu0 0
  %6314 = vmatprep.subr.bf16.mxu0 0
  %6315 = vmatpush2.bf16.msra.mxu0 0
  %6316 = vmatprep.subr.bf16.mxu0 0
  %6317 = vmatpush2.bf16.msra.mxu0 0
  %6318 = vmatprep.subr.bf16.mxu0 0
  %6319 = vmatpush2.bf16.msra.mxu0 0
  %6320 = vmatprep.subr.bf16.mxu0 0
  %6321 = vmatpush2.bf16.msra.mxu0 0
  %6322 = vmatprep.subr.bf16.mxu0 0
  %6323 = vmatpush2.bf16.msra.mxu0 0
  %6324 = vmatprep.mubr.bf16.mxu0 0
  %6325 = vmatmul.mubr.bf16.gmra.mxu0 %v6287
  %v6326 = vpop.f32.mrf.mxu0
  %v6327 = vadd.f32 0.0, %v6326
  %v6328 = vpop.f32.mrf.mxu0
  %v6329 = vpop.f32.mrf.mxu0
  %v6330 = vpop.f32.mrf.mxu0
  %6331 = vdwg.mxu0
  %v6333 = vunpack.c.l.b16 %v5986
  %6334 = vset.pattern.permute.xlu0 0
  %6335 = vperm.xlu0 %6334, %v6333
  %v6336 = vpop.permute.xlu0 %6335
  %v6337 = vlaneseq
  %v6338 = vshrl.u32 %v6337, 7
  %v6339 = vsub.s32 %v937, %v6338
  %v6340 = vrot.slane %v6336, %v6339
  %v6341 = vpack.c.b16 %v6340, %v6340
  %v6343 = vsel %vm452, %v6341, 0
  %v6346 = vsel %vm1068, %v5994, 0
  %6348 = vmatprep.subr.bf16.mxu0 0
  %6349 = vmatpush1.bf16.msra.mxu0 0
  %6350 = vmatprep.subr.bf16.mxu0 0
  %6351 = vmatpush1.bf16.msra.mxu0 0
  %6352 = vmatprep.subr.bf16.mxu0 0
  %6353 = vmatpush1.bf16.msra.mxu0 0
  %6354 = vmatprep.subr.bf16.mxu0 0
  %6355 = vmatpush1.bf16.msra.mxu0 0
  %6356 = vmatprep.subr.bf16.mxu0 0
  %6357 = vmatpush1.bf16.msra.mxu0 0
  %6358 = vmatprep.subr.bf16.mxu0 0
  %6359 = vmatpush1.bf16.msra.mxu0 0
  %6360 = vmatprep.subr.bf16.mxu0 0
  %6361 = vmatpush1.bf16.msra.mxu0 0
  %6362 = vmatprep.subr.bf16.mxu0 0
  %6363 = vmatpush1.bf16.msra.mxu0 %v6346
  %6364 = vmatprep.subr.bf16.mxu0 0
  %6365 = vmatpush2.bf16.msra.mxu0 0
  %6366 = vmatprep.subr.bf16.mxu0 0
  %6367 = vmatpush2.bf16.msra.mxu0 0
  %6368 = vmatprep.subr.bf16.mxu0 0
  %6369 = vmatpush2.bf16.msra.mxu0 0
  %6370 = vmatprep.subr.bf16.mxu0 0
  %6371 = vmatpush2.bf16.msra.mxu0 0
  %6372 = vmatprep.subr.bf16.mxu0 0
  %6373 = vmatpush2.bf16.msra.mxu0 0
  %6374 = vmatprep.subr.bf16.mxu0 0
  %6375 = vmatpush2.bf16.msra.mxu0 0
  %6376 = vmatprep.subr.bf16.mxu0 0
  %6377 = vmatpush2.bf16.msra.mxu0 0
  %6378 = vmatprep.subr.bf16.mxu0 0
  %6379 = vmatpush2.bf16.msra.mxu0 0
  %6380 = vmatprep.mubr.bf16.mxu0 0
  %6381 = vmatmul.mubr.bf16.gmra.mxu0 %v6343
  %v6382 = vpop.f32.mrf.mxu0
  %v6383 = vadd.f32 0.0, %v6382
  %v6384 = vpop.f32.mrf.mxu0
  %v6385 = vpop.f32.mrf.mxu0
  %v6386 = vpop.f32.mrf.mxu0
  %6387 = vdwg.mxu0
  %v6389 = vunpack.c.l.b16 %v5987
  %6390 = vset.pattern.permute.xlu0 0
  %6391 = vperm.xlu0 %6390, %v6389
  %v6392 = vpop.permute.xlu0 %6391
  %v6393 = vlaneseq
  %v6394 = vshrl.u32 %v6393, 7
  %v6395 = vsub.s32 %v937, %v6394
  %v6396 = vrot.slane %v6392, %v6395
  %v6397 = vpack.c.b16 %v6396, %v6396
  %v6399 = vsel %vm452, %v6397, 0
  %v6402 = vsel %vm1068, %v5995, 0
  %6404 = vmatprep.subr.bf16.mxu0 0
  %6405 = vmatpush1.bf16.msra.mxu0 0
  %6406 = vmatprep.subr.bf16.mxu0 0
  %6407 = vmatpush1.bf16.msra.mxu0 0
  %6408 = vmatprep.subr.bf16.mxu0 0
  %6409 = vmatpush1.bf16.msra.mxu0 0
  %6410 = vmatprep.subr.bf16.mxu0 0
  %6411 = vmatpush1.bf16.msra.mxu0 0
  %6412 = vmatprep.subr.bf16.mxu0 0
  %6413 = vmatpush1.bf16.msra.mxu0 0
  %6414 = vmatprep.subr.bf16.mxu0 0
  %6415 = vmatpush1.bf16.msra.mxu0 0
  %6416 = vmatprep.subr.bf16.mxu0 0
  %6417 = vmatpush1.bf16.msra.mxu0 0
  %6418 = vmatprep.subr.bf16.mxu0 0
  %6419 = vmatpush1.bf16.msra.mxu0 %v6402
  %6420 = vmatprep.subr.bf16.mxu0 0
  %6421 = vmatpush2.bf16.msra.mxu0 0
  %6422 = vmatprep.subr.bf16.mxu0 0
  %6423 = vmatpush2.bf16.msra.mxu0 0
  %6424 = vmatprep.subr.bf16.mxu0 0
  %6425 = vmatpush2.bf16.msra.mxu0 0
  %6426 = vmatprep.subr.bf16.mxu0 0
  %6427 = vmatpush2.bf16.msra.mxu0 0
  %6428 = vmatprep.subr.bf16.mxu0 0
  %6429 = vmatpush2.bf16.msra.mxu0 0
  %6430 = vmatprep.subr.bf16.mxu0 0
  %6431 = vmatpush2.bf16.msra.mxu0 0
  %6432 = vmatprep.subr.bf16.mxu0 0
  %6433 = vmatpush2.bf16.msra.mxu0 0
  %6434 = vmatprep.subr.bf16.mxu0 0
  %6435 = vmatpush2.bf16.msra.mxu0 0
  %6436 = vmatprep.mubr.bf16.mxu0 0
  %6437 = vmatmul.mubr.bf16.gmra.mxu0 %v6399
  %v6438 = vpop.f32.mrf.mxu0
  %v6439 = vadd.f32 0.0, %v6438
  %v6440 = vpop.f32.mrf.mxu0
  %v6441 = vpop.f32.mrf.mxu0
  %v6442 = vpop.f32.mrf.mxu0
  %6443 = vdwg.mxu0
  %v6444 = vld [vmem:[%s15] sm:$0xff]
  %v6445 = vld [vmem:[%s15 + $0x8] sm:$0xff]
  %v6446 = vld [vmem:[%s15 + $0x10] sm:$0xff]
  %v6447 = vld [vmem:[%s15 + $0x18] sm:$0xff]
  %v6448 = vld [vmem:[%s16] sm:$0x1]
  %v6450 = vlaneseq
  %v6451 = vshrl.u32 %v6450, 7
  %v6452 = vsub.s32 0, %v6451
  %v6453 = vrot.slane %v6448, %v6452
  %v6463 = vrot.slane %v6103, 7
  %v6464 = vsel %vm970, %v6463, %v6047
  %v6465 = vrot.slane %v6159, 6
  %v6466 = vsel %vm972, %v6465, %v6464
  %v6467 = vrot.slane %v6215, 5
  %v6468 = vsel %vm974, %v6467, %v6466
  %v6469 = vrot.slane %v6271, 4
  %v6470 = vsel %vm976, %v6469, %v6468
  %v6471 = vrot.slane %v6327, 3
  %v6472 = vsel %vm978, %v6471, %v6470
  %v6473 = vrot.slane %v6383, 2
  %v6474 = vsel %vm980, %v6473, %v6472
  %v6475 = vrot.slane %v6439, 1
  %v6476 = vsel %vm982, %v6475, %v6474
  %v6477 = vsel %vm134, %v6476, 0
  %6479 = vmatprep.subr.mxu0 0.0
  %6480 = vmatpush1.msra.mxu0 0.0
  %6481 = vmatprep.subr.mxu0 0.0
  %6482 = vmatpush1.msra.mxu0 0.0
  %6483 = vmatprep.subr.mxu0 0.0
  %6484 = vmatpush1.msra.mxu0 0.0
  %6485 = vmatprep.subr.mxu0 0.0
  %6486 = vmatpush1.msra.mxu0 0.0
  %6487 = vmatprep.subr.mxu0 0.0
  %6488 = vmatpush1.msra.mxu0 0.0
  %6489 = vmatprep.subr.mxu0 0.0
  %6490 = vmatpush1.msra.mxu0 0.0
  %6491 = vmatprep.subr.mxu0 0.0
  %6492 = vmatpush1.msra.mxu0 0.0
  %6493 = vmatprep.subr.mxu0 0.0
  %6494 = vmatpush1.msra.mxu0 0.0
  %6495 = vmatprep.subr.mxu0 0.0
  %6496 = vmatpush1.msra.mxu0 0.0
  %6497 = vmatprep.subr.mxu0 0.0
  %6498 = vmatpush1.msra.mxu0 0.0
  %6499 = vmatprep.subr.mxu0 0.0
  %6500 = vmatpush1.msra.mxu0 0.0
  %6501 = vmatprep.subr.mxu0 0.0
  %6502 = vmatpush1.msra.mxu0 0.0
  %6503 = vmatprep.subr.mxu0 0.0
  %6504 = vmatpush1.msra.mxu0 %v6447
  %6505 = vmatprep.subr.mxu0 0.0
  %6506 = vmatpush1.msra.mxu0 %v6446
  %6507 = vmatprep.subr.mxu0 0.0
  %6508 = vmatpush1.msra.mxu0 %v6445
  %6509 = vmatprep.subr.mxu0 0.0
  %6510 = vmatpush1.msra.mxu0 %v6444
  %6511 = vmatprep.subr.mxu0 0.0
  %6512 = vmatpush2.msra.mxu0 0.0
  %6513 = vmatprep.subr.mxu0 0.0
  %6514 = vmatpush2.msra.mxu0 0.0
  %6515 = vmatprep.subr.mxu0 0.0
  %6516 = vmatpush2.msra.mxu0 0.0
  %6517 = vmatprep.subr.mxu0 0.0
  %6518 = vmatpush2.msra.mxu0 0.0
  %6519 = vmatprep.subr.mxu0 0.0
  %6520 = vmatpush2.msra.mxu0 0.0
  %6521 = vmatprep.subr.mxu0 0.0
  %6522 = vmatpush2.msra.mxu0 0.0
  %6523 = vmatprep.subr.mxu0 0.0
  %6524 = vmatpush2.msra.mxu0 0.0
  %6525 = vmatprep.subr.mxu0 0.0
  %6526 = vmatpush2.msra.mxu0 0.0
  %6527 = vmatprep.subr.mxu0 0.0
  %6528 = vmatpush2.msra.mxu0 0.0
  %6529 = vmatprep.subr.mxu0 0.0
  %6530 = vmatpush2.msra.mxu0 0.0
  %6531 = vmatprep.subr.mxu0 0.0
  %6532 = vmatpush2.msra.mxu0 0.0
  %6533 = vmatprep.subr.mxu0 0.0
  %6534 = vmatpush2.msra.mxu0 0.0
  %6535 = vmatprep.subr.mxu0 0.0
  %6536 = vmatpush2.msra.mxu0 0.0
  %6537 = vmatprep.subr.mxu0 0.0
  %6538 = vmatpush2.msra.mxu0 0.0
  %6539 = vmatprep.subr.mxu0 0.0
  %6540 = vmatpush2.msra.mxu0 0.0
  %6541 = vmatprep.subr.mxu0 0.0
  %6542 = vmatpush2.msra.mxu0 0.0
  %6543 = vmatprep.mubr.f32.mxu0 0.0
  %6544 = vmatmul.mubr.f32.gmra.mxu0 %v6477
  %v6545 = vpop.f32.mrf.mxu0
  %v6546 = vadd.f32 %v6453, %v6545
  %v6547 = vpop.f32.mrf.mxu0
  %6548 = vdwg.mxu0
  %v6549 = vadd.f32 %v6546, %v5610
  %v6550 = vxor.u32 %v6549, 2147483648
  %v6551 = vmul.f32 %v6550, 1.442695
  %v6552 = vpow.pop %v6551
  %v6553 = vadd.f32 %v6552, 1.0
  %v6554 = vrcp.pop %v6553
  %v6555 = vmul.f32 1.0, %v6554
  %6557 = vrot.lane.b32.xlu0 %v5610, 64
  %v6558 = vpop.permute.xlu0 %6557
  %v6560 = vmul.f32 %v6555, %v6558
  %6562 = vrot.lane.b32.xlu0 %v6560, 64
  %v6563 = vpop.permute.xlu0 %6562
  %v6565 = vadd.f32 %v6546, %v6563
  %v6566 = vtanh.pop %v6565
  %v6567 = vsub.f32 1.0, %v6555
  %6569 = vrot.lane.b32.xlu0 %v6566, 96
  %v6570 = vpop.permute.xlu0 %6569
  %v6572 = vmul.f32 %v6567, %v6570
  %v6573 = vmul.f32 %v6555, %v5518
  %v6574 = vadd.f32 %v6572, %v6573
  %v6575 = vpack.c.bf16 %v6574, %v6574
  %v6577 = vunpack.c.l.b16 %v6575
  %v6578 = vpack.c.b16 %v6577, %v6577
  %6579 = vrot.lane.b32.xlu0 %v6578, 96
  %v6580 = vpop.permute.xlu0 %6579
  %6582 = vst.msk [vmem:[#allocation5 + $0x34] sm:$0xf] %vm89, %v6580
  %v6583 = vpack.c.bf16 %v6047, %v6047
  %v6584 = vpack.c.bf16 %v6103, %v6103
  %v6585 = vpack.c.bf16 %v6159, %v6159
  %v6586 = vpack.c.bf16 %v6215, %v6215
  %v6587 = vpack.c.bf16 %v6271, %v6271
  %v6588 = vpack.c.bf16 %v6327, %v6327
  %v6589 = vpack.c.bf16 %v6383, %v6383
  %v6590 = vpack.c.bf16 %v6439, %v6439
  %v6599 = vunpack.c.l.b16 %v6583
  %v6600 = vunpack.c.l.b16 %v6584
  %v6601 = vunpack.c.l.b16 %v6585
  %v6602 = vunpack.c.l.b16 %v6586
  %v6603 = vunpack.c.l.b16 %v6587
  %v6604 = vunpack.c.l.b16 %v6588
  %v6605 = vunpack.c.l.b16 %v6589
  %v6606 = vunpack.c.l.b16 %v6590
  %v6607 = vpack.c.b16 %v6599, %v6599
  %v6608 = vpack.c.b16 %v6600, %v6600
  %v6609 = vpack.c.b16 %v6601, %v6601
  %v6610 = vpack.c.b16 %v6602, %v6602
  %v6611 = vpack.c.b16 %v6603, %v6603
  %v6612 = vpack.c.b16 %v6604, %v6604
  %v6613 = vpack.c.b16 %v6605, %v6605
  %v6614 = vpack.c.b16 %v6606, %v6606
  %v6615 = vunpack.c.l.b16 %v6607
  %v6616 = vunpack.c.l.b16 %v6608
  %v6617 = vunpack.c.l.b16 %v6609
  %v6618 = vunpack.c.l.b16 %v6610
  %v6619 = vunpack.c.l.b16 %v6611
  %v6620 = vunpack.c.l.b16 %v6612
  %v6621 = vunpack.c.l.b16 %v6613
  %v6622 = vunpack.c.l.b16 %v6614
  %v6623 = vrot.slane %v6616, 7
  %v6624 = vsel %vm970, %v6623, %v6615
  %v6625 = vrot.slane %v6617, 6
  %v6626 = vsel %vm972, %v6625, %v6624
  %v6627 = vrot.slane %v6618, 5
  %v6628 = vsel %vm974, %v6627, %v6626
  %v6629 = vrot.slane %v6619, 4
  %v6630 = vsel %vm976, %v6629, %v6628
  %v6631 = vrot.slane %v6620, 3
  %v6632 = vsel %vm978, %v6631, %v6630
  %v6633 = vrot.slane %v6621, 2
  %v6634 = vsel %vm980, %v6633, %v6632
  %v6635 = vrot.slane %v6622, 1
  %v6636 = vsel %vm982, %v6635, %v6634
  %v6637 = vpack.c.b16 %v6636, %v6636
  %6639 = vst.msk [vmem:[#allocation5 + $0x38] sm:$0xf] %vm89, %v6637
  %s6640 = scalar_lea.vmem [#allocation2], 40
  %v6641 = vld [vmem:[%s6640] sm:$0xff]
  %v6642 = vld [vmem:[%s8] sm:$0xff]
  %v6643 = vld [vmem:[%s8 + $0x8] sm:$0xff]
  %v6644 = vld [vmem:[%s8 + $0x10] sm:$0xff]
  %v6645 = vld [vmem:[%s8 + $0x18] sm:$0xff]
  %v6646 = vld [vmem:[%s9] sm:$0x1]
  %v6648 = vlaneseq
  %v6649 = vshrl.u32 %v6648, 7
  %v6650 = vsub.s32 0, %v6649
  %v6651 = vrot.slane %v6646, %v6650
  %6654 = vrot.lane.b32.xlu0 %v6574, 96
  %v6655 = vpop.permute.xlu0 %6654
  %v6656 = vsel %vm134, %v6655, 0
  %6658 = vmatprep.subr.mxu0 0.0
  %6659 = vmatpush1.msra.mxu0 0.0
  %6660 = vmatprep.subr.mxu0 0.0
  %6661 = vmatpush1.msra.mxu0 0.0
  %6662 = vmatprep.subr.mxu0 0.0
  %6663 = vmatpush1.msra.mxu0 0.0
  %6664 = vmatprep.subr.mxu0 0.0
  %6665 = vmatpush1.msra.mxu0 0.0
  %6666 = vmatprep.subr.mxu0 0.0
  %6667 = vmatpush1.msra.mxu0 0.0
  %6668 = vmatprep.subr.mxu0 0.0
  %6669 = vmatpush1.msra.mxu0 0.0
  %6670 = vmatprep.subr.mxu0 0.0
  %6671 = vmatpush1.msra.mxu0 0.0
  %6672 = vmatprep.subr.mxu0 0.0
  %6673 = vmatpush1.msra.mxu0 0.0
  %6674 = vmatprep.subr.mxu0 0.0
  %6675 = vmatpush1.msra.mxu0 0.0
  %6676 = vmatprep.subr.mxu0 0.0
  %6677 = vmatpush1.msra.mxu0 0.0
  %6678 = vmatprep.subr.mxu0 0.0
  %6679 = vmatpush1.msra.mxu0 0.0
  %6680 = vmatprep.subr.mxu0 0.0
  %6681 = vmatpush1.msra.mxu0 0.0
  %6682 = vmatprep.subr.mxu0 0.0
  %6683 = vmatpush1.msra.mxu0 %v6645
  %6684 = vmatprep.subr.mxu0 0.0
  %6685 = vmatpush1.msra.mxu0 %v6644
  %6686 = vmatprep.subr.mxu0 0.0
  %6687 = vmatpush1.msra.mxu0 %v6643
  %6688 = vmatprep.subr.mxu0 0.0
  %6689 = vmatpush1.msra.mxu0 %v6642
  %6690 = vmatprep.subr.mxu0 0.0
  %6691 = vmatpush2.msra.mxu0 0.0
  %6692 = vmatprep.subr.mxu0 0.0
  %6693 = vmatpush2.msra.mxu0 0.0
  %6694 = vmatprep.subr.mxu0 0.0
  %6695 = vmatpush2.msra.mxu0 0.0
  %6696 = vmatprep.subr.mxu0 0.0
  %6697 = vmatpush2.msra.mxu0 0.0
  %6698 = vmatprep.subr.mxu0 0.0
  %6699 = vmatpush2.msra.mxu0 0.0
  %6700 = vmatprep.subr.mxu0 0.0
  %6701 = vmatpush2.msra.mxu0 0.0
  %6702 = vmatprep.subr.mxu0 0.0
  %6703 = vmatpush2.msra.mxu0 0.0
  %6704 = vmatprep.subr.mxu0 0.0
  %6705 = vmatpush2.msra.mxu0 0.0
  %6706 = vmatprep.subr.mxu0 0.0
  %6707 = vmatpush2.msra.mxu0 0.0
  %6708 = vmatprep.subr.mxu0 0.0
  %6709 = vmatpush2.msra.mxu0 0.0
  %6710 = vmatprep.subr.mxu0 0.0
  %6711 = vmatpush2.msra.mxu0 0.0
  %6712 = vmatprep.subr.mxu0 0.0
  %6713 = vmatpush2.msra.mxu0 0.0
  %6714 = vmatprep.subr.mxu0 0.0
  %6715 = vmatpush2.msra.mxu0 0.0
  %6716 = vmatprep.subr.mxu0 0.0
  %6717 = vmatpush2.msra.mxu0 0.0
  %6718 = vmatprep.subr.mxu0 0.0
  %6719 = vmatpush2.msra.mxu0 0.0
  %6720 = vmatprep.subr.mxu0 0.0
  %6721 = vmatpush2.msra.mxu0 0.0
  %6722 = vmatprep.mubr.f32.mxu0 0.0
  %6723 = vmatmul.mubr.f32.gmra.mxu0 %v6656
  %v6724 = vpop.f32.mrf.mxu0
  %v6725 = vadd.f32 %v6651, %v6724
  %v6726 = vpop.f32.mrf.mxu0
  %6727 = vdwg.mxu0
  %v6728 = vadd.f32 %v6641, %v6725
  %v6729 = vxor.u32 %v6728, 2147483648
  %v6730 = vmul.f32 %v6729, 1.442695
  %v6731 = vpow.pop %v6730
  %v6732 = vadd.f32 %v6731, 1.0
  %v6733 = vrcp.pop %v6732
  %v6734 = vmul.f32 1.0, %v6733
  %6736 = vrot.lane.b32.xlu0 %v6725, 64
  %v6737 = vpop.permute.xlu0 %6736
  %v6739 = vmul.f32 %v6734, %v6737
  %6741 = vrot.lane.b32.xlu0 %v6739, 64
  %v6742 = vpop.permute.xlu0 %6741
  %v6744 = vadd.f32 %v6641, %v6742
  %v6745 = vtanh.pop %v6744
  %v6746 = vsub.f32 1.0, %v6734
  %6748 = vrot.lane.b32.xlu0 %v6745, 96
  %v6749 = vpop.permute.xlu0 %6748
  %v6751 = vmul.f32 %v6746, %v6749
  %v6752 = vmul.f32 %v6734, %v6574
  %v6753 = vadd.f32 %v6751, %v6752
  %v6754 = vld [vmem:[%s13] sm:$0xff]
  %v6755 = vld [vmem:[%s13 + $0x8] sm:$0xff]
  %v6756 = vld [vmem:[%s13 + $0x10] sm:$0xff]
  %v6757 = vld [vmem:[%s13 + $0x18] sm:$0xff]
  %v6758 = vld [vmem:[%s13 + $0x20] sm:$0xff]
  %v6759 = vld [vmem:[%s13 + $0x28] sm:$0xff]
  %v6760 = vld [vmem:[%s13 + $0x30] sm:$0xff]
  %v6761 = vld [vmem:[%s13 + $0x38] sm:$0xff]
  %6763 = vrot.lane.b32.xlu0 %v6753, 96
  %v6764 = vpop.permute.xlu0 %6763
  %v6765 = vsel %vm134, %v6764, 0
  %6767 = vmatprep.subr.mxu0 0.0
  %6768 = vmatpush1.msra.mxu0 0.0
  %6769 = vmatprep.subr.mxu0 0.0
  %6770 = vmatpush1.msra.mxu0 0.0
  %6771 = vmatprep.subr.mxu0 0.0
  %6772 = vmatpush1.msra.mxu0 0.0
  %6773 = vmatprep.subr.mxu0 0.0
  %6774 = vmatpush1.msra.mxu0 0.0
  %6775 = vmatprep.subr.mxu0 0.0
  %6776 = vmatpush1.msra.mxu0 0.0
  %6777 = vmatprep.subr.mxu0 0.0
  %6778 = vmatpush1.msra.mxu0 0.0
  %6779 = vmatprep.subr.mxu0 0.0
  %6780 = vmatpush1.msra.mxu0 0.0
  %6781 = vmatprep.subr.mxu0 0.0
  %6782 = vmatpush1.msra.mxu0 0.0
  %6783 = vmatprep.subr.mxu0 0.0
  %6784 = vmatpush1.msra.mxu0 0.0
  %6785 = vmatprep.subr.mxu0 0.0
  %6786 = vmatpush1.msra.mxu0 0.0
  %6787 = vmatprep.subr.mxu0 0.0
  %6788 = vmatpush1.msra.mxu0 0.0
  %6789 = vmatprep.subr.mxu0 0.0
  %6790 = vmatpush1.msra.mxu0 0.0
  %6791 = vmatprep.subr.mxu0 %v6761
  %6792 = vmatpush1.msra.mxu0 %v6760
  %6793 = vmatprep.subr.mxu0 %v6759
  %6794 = vmatpush1.msra.mxu0 %v6758
  %6795 = vmatprep.subr.mxu0 %v6757
  %6796 = vmatpush1.msra.mxu0 %v6756
  %6797 = vmatprep.subr.mxu0 %v6755
  %6798 = vmatpush1.msra.mxu0 %v6754
  %6799 = vmatprep.subr.mxu0 0.0
  %6800 = vmatpush2.msra.mxu0 0.0
  %6801 = vmatprep.subr.mxu0 0.0
  %6802 = vmatpush2.msra.mxu0 0.0
  %6803 = vmatprep.subr.mxu0 0.0
  %6804 = vmatpush2.msra.mxu0 0.0
  %6805 = vmatprep.subr.mxu0 0.0
  %6806 = vmatpush2.msra.mxu0 0.0
  %6807 = vmatprep.subr.mxu0 0.0
  %6808 = vmatpush2.msra.mxu0 0.0
  %6809 = vmatprep.subr.mxu0 0.0
  %6810 = vmatpush2.msra.mxu0 0.0
  %6811 = vmatprep.subr.mxu0 0.0
  %6812 = vmatpush2.msra.mxu0 0.0
  %6813 = vmatprep.subr.mxu0 0.0
  %6814 = vmatpush2.msra.mxu0 0.0
  %6815 = vmatprep.subr.mxu0 0.0
  %6816 = vmatpush2.msra.mxu0 0.0
  %6817 = vmatprep.subr.mxu0 0.0
  %6818 = vmatpush2.msra.mxu0 0.0
  %6819 = vmatprep.subr.mxu0 0.0
  %6820 = vmatpush2.msra.mxu0 0.0
  %6821 = vmatprep.subr.mxu0 0.0
  %6822 = vmatpush2.msra.mxu0 0.0
  %6823 = vmatprep.subr.mxu0 0.0
  %6824 = vmatpush2.msra.mxu0 0.0
  %6825 = vmatprep.subr.mxu0 0.0
  %6826 = vmatpush2.msra.mxu0 0.0
  %6827 = vmatprep.subr.mxu0 0.0
  %6828 = vmatpush2.msra.mxu0 0.0
  %6829 = vmatprep.subr.mxu0 0.0
  %6830 = vmatpush2.msra.mxu0 0.0
  %6831 = vmatprep.mubr.f32.mxu0 0.0
  %6832 = vmatmul.mubr.f32.gmra.mxu0 %v6765
  %v6833 = vpop.f32.mrf.mxu0
  %v6834 = vadd.f32 0.0, %v6833
  %v6835 = vpop.f32.mrf.mxu0
  %v6836 = vadd.f32 0.0, %v6835
  %6837 = vdwg.mxu0
  %v6838 = vld [vmem:[%s14] sm:$0x1]
  %v6840 = vlaneseq
  %v6841 = vshrl.u32 %v6840, 7
  %v6842 = vsub.s32 0, %v6841
  %v6843 = vrot.slane %v6838, %v6842
  %v6845 = vadd.f32 %v6834, %v6843
  %v6846 = vld [vmem:[#allocation3] sm:$0xff]
  %v6847 = vld [vmem:[#allocation3 + $0x8] sm:$0xff]
  %v6848 = vld [vmem:[#allocation3 + $0x10] sm:$0xff]
  %v6849 = vld [vmem:[#allocation3 + $0x18] sm:$0xff]
  %v6850 = vld [vmem:[#allocation3 + $0x20] sm:$0xff]
  %v6851 = vld [vmem:[#allocation3 + $0x28] sm:$0xff]
  %v6852 = vld [vmem:[#allocation3 + $0x30] sm:$0xff]
  %v6853 = vld [vmem:[#allocation3 + $0x38] sm:$0xff]
  %v6855 = vcombine.high %v6836, %v6836
  %v6857 = vunpack.c.l.s4 1966171168
  %v6858 = vunpack.c.0.s8 %v6857
  %v6859 = vlaneseq
  %v6860 = vshrl.u32 %v6859, 7
  %v6861 = vsub.s32 %v6858, %v6860
  %v6862 = vrot.slane %v6836, %v6861
  %v6864 = vunpack.c.l.s4 1966171168
  %v6865 = vunpack.c.0.s8 %v6864
  %v6866 = vlaneseq
  %v6867 = vshrl.u32 %v6866, 7
  %v6868 = vsub.s32 %v6865, %v6867
  %v6869 = vrot.slane %v6855, %v6868
  %v6870 = vcombine.high %v6862, %v6862
  %v6871 = vcombine.high %v6869, %v6869
  %v6873 = vunpack.c.l.s4 1966171168
  %v6874 = vunpack.c.0.s8 %v6873
  %v6875 = vlaneseq
  %v6876 = vshrl.u32 %v6875, 7
  %v6877 = vsub.s32 %v6874, %v6876
  %v6878 = vrot.slane %v6862, %v6877
  %v6880 = vunpack.c.l.s4 1966171168
  %v6881 = vunpack.c.0.s8 %v6880
  %v6882 = vlaneseq
  %v6883 = vshrl.u32 %v6882, 7
  %v6884 = vsub.s32 %v6881, %v6883
  %v6885 = vrot.slane %v6869, %v6884
  %v6887 = vunpack.c.l.s4 1966171168
  %v6888 = vunpack.c.0.s8 %v6887
  %v6889 = vlaneseq
  %v6890 = vshrl.u32 %v6889, 7
  %v6891 = vsub.s32 %v6888, %v6890
  %v6892 = vrot.slane %v6870, %v6891
  %v6894 = vunpack.c.l.s4 1966171168
  %v6895 = vunpack.c.0.s8 %v6894
  %v6896 = vlaneseq
  %v6897 = vshrl.u32 %v6896, 7
  %v6898 = vsub.s32 %v6895, %v6897
  %v6899 = vrot.slane %v6871, %v6898
  %v6900 = vcombine.high %v6878, %v6878
  %v6901 = vcombine.high %v6885, %v6885
  %v6902 = vcombine.high %v6892, %v6892
  %v6903 = vcombine.high %v6899, %v6899
  %v6904 = vlaneseq
  %v6905 = vshrl.u32 %v6904, 7
  %v6906 = vsub.s32 0, %v6905
  %v6907 = vrot.slane %v6878, %v6906
  %v6908 = vlaneseq
  %v6909 = vshrl.u32 %v6908, 7
  %v6910 = vsub.s32 0, %v6909
  %v6911 = vrot.slane %v6892, %v6910
  %v6912 = vlaneseq
  %v6913 = vshrl.u32 %v6912, 7
  %v6914 = vsub.s32 0, %v6913
  %v6915 = vrot.slane %v6900, %v6914
  %v6916 = vlaneseq
  %v6917 = vshrl.u32 %v6916, 7
  %v6918 = vsub.s32 0, %v6917
  %v6919 = vrot.slane %v6902, %v6918
  %v6920 = vlaneseq
  %v6921 = vshrl.u32 %v6920, 7
  %v6922 = vsub.s32 0, %v6921
  %v6923 = vrot.slane %v6885, %v6922
  %v6924 = vlaneseq
  %v6925 = vshrl.u32 %v6924, 7
  %v6926 = vsub.s32 0, %v6925
  %v6927 = vrot.slane %v6899, %v6926
  %v6928 = vlaneseq
  %v6929 = vshrl.u32 %v6928, 7
  %v6930 = vsub.s32 0, %v6929
  %v6931 = vrot.slane %v6901, %v6930
  %v6932 = vlaneseq
  %v6933 = vshrl.u32 %v6932, 7
  %v6934 = vsub.s32 0, %v6933
  %v6935 = vrot.slane %v6903, %v6934
  %v6944 = vadd.f32 %v6846, %v6907
  %v6945 = vadd.f32 %v6847, %v6911
  %v6946 = vadd.f32 %v6848, %v6915
  %v6947 = vadd.f32 %v6849, %v6919
  %v6948 = vadd.f32 %v6850, %v6923
  %v6949 = vadd.f32 %v6851, %v6927
  %v6950 = vadd.f32 %v6852, %v6931
  %v6951 = vadd.f32 %v6853, %v6935
  %v6952 = vtanh.pop %v6944
  %v6953 = vtanh.pop %v6945
  %v6954 = vtanh.pop %v6946
  %v6955 = vtanh.pop %v6947
  %v6956 = vtanh.pop %v6948
  %v6957 = vtanh.pop %v6949
  %v6958 = vtanh.pop %v6950
  %v6959 = vtanh.pop %v6951
  %v6960 = vld [vmem:[%s12] sm:$0x1]
  %v6962 = vlaneseq
  %v6963 = vshrl.u32 %v6962, 7
  %v6964 = vsub.s32 0, %v6963
  %v6965 = vrot.slane %v6960, %v6964
  %v6967 = vmul.f32 %v6952, %v6965
  %v6968 = vmul.f32 %v6953, %v6965
  %v6969 = vmul.f32 %v6954, %v6965
  %v6970 = vmul.f32 %v6955, %v6965
  %v6971 = vmul.f32 %v6956, %v6965
  %v6972 = vmul.f32 %v6957, %v6965
  %v6973 = vmul.f32 %v6958, %v6965
  %v6974 = vmul.f32 %v6959, %v6965
  %v6975 = vsel %vm134, %v6967, 0.0
  %6976 = vadd.xlane.f32.xlu0 %v6975
  %v6977 = vpop.xlane.xlu0 %6976
  %v6978 = vsel %vm134, %v6968, 0.0
  %6979 = vadd.xlane.f32.xlu0 %v6978
  %v6980 = vpop.xlane.xlu0 %6979
  %v6981 = vsel %vm134, %v6969, 0.0
  %6982 = vadd.xlane.f32.xlu0 %v6981
  %v6983 = vpop.xlane.xlu0 %6982
  %v6984 = vsel %vm134, %v6970, 0.0
  %6985 = vadd.xlane.f32.xlu0 %v6984
  %v6986 = vpop.xlane.xlu0 %6985
  %v6987 = vsel %vm134, %v6971, 0.0
  %6988 = vadd.xlane.f32.xlu0 %v6987
  %v6989 = vpop.xlane.xlu0 %6988
  %v6990 = vsel %vm134, %v6972, 0.0
  %6991 = vadd.xlane.f32.xlu0 %v6990
  %v6992 = vpop.xlane.xlu0 %6991
  %v6993 = vsel %vm134, %v6973, 0.0
  %6994 = vadd.xlane.f32.xlu0 %v6993
  %v6995 = vpop.xlane.xlu0 %6994
  %v6996 = vsel %vm134, %v6974, 0.0
  %6997 = vadd.xlane.f32.xlu0 %v6996
  %v6998 = vpop.xlane.xlu0 %6997
  %v6999 = vld [vmem:[#allocation4] sm:$0xff]
  %v7001 = vlaneseq
  %v7002 = vshrl.u32 %v7001, 7
  %v7003 = vsub.s32 0, %v7002
  %v7004 = vrot.slane %v6999, %v7003
  %7006 = vbcast.lane.b32.xlu0 %v7004, 256
  %v7007 = vpop.permute.xlu0 %7006
  %v7008 = vlaneseq
  %v7009 = vshrl.u32 %v7008, 7
  %v7010 = vsub.s32 1, %v7009
  %v7011 = vrot.slane %v6999, %v7010
  %7013 = vbcast.lane.b32.xlu0 %v7011, 256
  %v7014 = vpop.permute.xlu0 %7013
  %v7015 = vlaneseq
  %v7016 = vshrl.u32 %v7015, 7
  %v7017 = vsub.s32 2, %v7016
  %v7018 = vrot.slane %v6999, %v7017
  %7020 = vbcast.lane.b32.xlu0 %v7018, 256
  %v7021 = vpop.permute.xlu0 %7020
  %v7022 = vlaneseq
  %v7023 = vshrl.u32 %v7022, 7
  %v7024 = vsub.s32 3, %v7023
  %v7025 = vrot.slane %v6999, %v7024
  %7027 = vbcast.lane.b32.xlu0 %v7025, 256
  %v7028 = vpop.permute.xlu0 %7027
  %v7029 = vlaneseq
  %v7030 = vshrl.u32 %v7029, 7
  %v7031 = vsub.s32 4, %v7030
  %v7032 = vrot.slane %v6999, %v7031
  %7034 = vbcast.lane.b32.xlu0 %v7032, 256
  %v7035 = vpop.permute.xlu0 %7034
  %v7036 = vlaneseq
  %v7037 = vshrl.u32 %v7036, 7
  %v7038 = vsub.s32 5, %v7037
  %v7039 = vrot.slane %v6999, %v7038
  %7041 = vbcast.lane.b32.xlu0 %v7039, 256
  %v7042 = vpop.permute.xlu0 %7041
  %v7043 = vlaneseq
  %v7044 = vshrl.u32 %v7043, 7
  %v7045 = vsub.s32 6, %v7044
  %v7046 = vrot.slane %v6999, %v7045
  %7048 = vbcast.lane.b32.xlu0 %v7046, 256
  %v7049 = vpop.permute.xlu0 %7048
  %v7050 = vlaneseq
  %v7051 = vshrl.u32 %v7050, 7
  %v7052 = vsub.s32 7, %v7051
  %v7053 = vrot.slane %v6999, %v7052
  %7055 = vbcast.lane.b32.xlu0 %v7053, 256
  %v7056 = vpop.permute.xlu0 %7055
  %v7065 = vadd.f32 %v6977, %v7007
  %v7066 = vadd.f32 %v6980, %v7014
  %v7067 = vadd.f32 %v6983, %v7021
  %v7068 = vadd.f32 %v6986, %v7028
  %v7069 = vadd.f32 %v6989, %v7035
  %v7070 = vadd.f32 %v6992, %v7042
  %v7071 = vadd.f32 %v6995, %v7049
  %v7072 = vadd.f32 %v6998, %v7056
  %v7073 = vmul.f32 %v7065, 1.442695
  %v7074 = vpow.pop %v7073
  %v7075 = vmul.f32 %v7066, 1.442695
  %v7076 = vpow.pop %v7075
  %v7077 = vmul.f32 %v7067, 1.442695
  %v7078 = vpow.pop %v7077
  %v7079 = vmul.f32 %v7068, 1.442695
  %v7080 = vpow.pop %v7079
  %v7081 = vmul.f32 %v7069, 1.442695
  %v7082 = vpow.pop %v7081
  %v7083 = vmul.f32 %v7070, 1.442695
  %v7084 = vpow.pop %v7083
  %v7085 = vmul.f32 %v7071, 1.442695
  %v7086 = vpow.pop %v7085
  %v7087 = vmul.f32 %v7072, 1.442695
  %v7088 = vpow.pop %v7087
  %7097 = vset.pattern.permute.xlu0 0
  %7098 = vperm.xlu0 %7097, %v7074
  %v7099 = vpop.permute.xlu0 %7098
  %7100 = vset.pattern.permute.xlu0 0
  %7101 = vperm.xlu0 %7100, %v7076
  %v7102 = vpop.permute.xlu0 %7101
  %7103 = vset.pattern.permute.xlu0 0
  %7104 = vperm.xlu0 %7103, %v7078
  %v7105 = vpop.permute.xlu0 %7104
  %7106 = vset.pattern.permute.xlu0 0
  %7107 = vperm.xlu0 %7106, %v7080
  %v7108 = vpop.permute.xlu0 %7107
  %7109 = vset.pattern.permute.xlu0 0
  %7110 = vperm.xlu0 %7109, %v7082
  %v7111 = vpop.permute.xlu0 %7110
  %7112 = vset.pattern.permute.xlu0 0
  %7113 = vperm.xlu0 %7112, %v7084
  %v7114 = vpop.permute.xlu0 %7113
  %7115 = vset.pattern.permute.xlu0 0
  %7116 = vperm.xlu0 %7115, %v7086
  %v7117 = vpop.permute.xlu0 %7116
  %7118 = vset.pattern.permute.xlu0 0
  %7119 = vperm.xlu0 %7118, %v7088
  %v7120 = vpop.permute.xlu0 %7119
  %v7121 = vlaneseq
  %v7122 = vshrl.u32 %v7121, 7
  %v7123 = vsub.s32 %v937, %v7122
  %v7124 = vrot.slane %v7099, %v7123
  %v7125 = vlaneseq
  %v7126 = vshrl.u32 %v7125, 7
  %v7127 = vsub.s32 %v937, %v7126
  %v7128 = vrot.slane %v7102, %v7127
  %v7129 = vlaneseq
  %v7130 = vshrl.u32 %v7129, 7
  %v7131 = vsub.s32 %v937, %v7130
  %v7132 = vrot.slane %v7105, %v7131
  %v7133 = vlaneseq
  %v7134 = vshrl.u32 %v7133, 7
  %v7135 = vsub.s32 %v937, %v7134
  %v7136 = vrot.slane %v7108, %v7135
  %v7137 = vlaneseq
  %v7138 = vshrl.u32 %v7137, 7
  %v7139 = vsub.s32 %v937, %v7138
  %v7140 = vrot.slane %v7111, %v7139
  %v7141 = vlaneseq
  %v7142 = vshrl.u32 %v7141, 7
  %v7143 = vsub.s32 %v937, %v7142
  %v7144 = vrot.slane %v7114, %v7143
  %v7145 = vlaneseq
  %v7146 = vshrl.u32 %v7145, 7
  %v7147 = vsub.s32 %v937, %v7146
  %v7148 = vrot.slane %v7117, %v7147
  %v7149 = vlaneseq
  %v7150 = vshrl.u32 %v7149, 7
  %v7151 = vsub.s32 %v937, %v7150
  %v7152 = vrot.slane %v7120, %v7151
  %v7153 = vsel %vm970, %v7128, %v7124
  %v7154 = vsel %vm972, %v7132, %v7153
  %v7155 = vsel %vm974, %v7136, %v7154
  %v7156 = vsel %vm976, %v7140, %v7155
  %v7157 = vsel %vm978, %v7144, %v7156
  %v7158 = vsel %vm980, %v7148, %v7157
  %v7159 = vsel %vm982, %v7152, %v7158
  %v7161 = vsel %vm452, %v7159, 0.0
  %7162 = vadd.xlane.f32.xlu0 %v7161
  %v7163 = vpop.xlane.xlu0 %7162
  %v7164 = vmax.f32 %v7163, 1e-30
  %v7165 = vrcp.pop %v7164
  %v7167 = vlaneseq
  %v7168 = vshrl.u32 %v7167, 7
  %v7169 = vsub.s32 0, %v7168
  %v7170 = vrot.slane %v7165, %v7169
  %v7171 = vlaneseq
  %v7172 = vshrl.u32 %v7171, 7
  %v7173 = vsub.s32 1, %v7172
  %v7174 = vrot.slane %v7165, %v7173
  %v7175 = vlaneseq
  %v7176 = vshrl.u32 %v7175, 7
  %v7177 = vsub.s32 2, %v7176
  %v7178 = vrot.slane %v7165, %v7177
  %v7179 = vlaneseq
  %v7180 = vshrl.u32 %v7179, 7
  %v7181 = vsub.s32 3, %v7180
  %v7182 = vrot.slane %v7165, %v7181
  %v7183 = vlaneseq
  %v7184 = vshrl.u32 %v7183, 7
  %v7185 = vsub.s32 4, %v7184
  %v7186 = vrot.slane %v7165, %v7185
  %v7187 = vlaneseq
  %v7188 = vshrl.u32 %v7187, 7
  %v7189 = vsub.s32 5, %v7188
  %v7190 = vrot.slane %v7165, %v7189
  %v7191 = vlaneseq
  %v7192 = vshrl.u32 %v7191, 7
  %v7193 = vsub.s32 6, %v7192
  %v7194 = vrot.slane %v7165, %v7193
  %v7195 = vlaneseq
  %v7196 = vshrl.u32 %v7195, 7
  %v7197 = vsub.s32 7, %v7196
  %v7198 = vrot.slane %v7165, %v7197
  %v7207 = vmul.f32 %v7074, %v7170
  %v7208 = vmul.f32 %v7076, %v7174
  %v7209 = vmul.f32 %v7078, %v7178
  %v7210 = vmul.f32 %v7080, %v7182
  %v7211 = vmul.f32 %v7082, %v7186
  %v7212 = vmul.f32 %v7084, %v7190
  %v7213 = vmul.f32 %v7086, %v7194
  %v7214 = vmul.f32 %v7088, %v7198
  %v7215 = vpack.c.bf16 %v7207, %v7207
  %v7216 = vpack.c.bf16 %v7208, %v7208
  %v7217 = vpack.c.bf16 %v7209, %v7209
  %v7218 = vpack.c.bf16 %v7210, %v7210
  %v7219 = vpack.c.bf16 %v7211, %v7211
  %v7220 = vpack.c.bf16 %v7212, %v7212
  %v7221 = vpack.c.bf16 %v7213, %v7213
  %v7222 = vpack.c.bf16 %v7214, %v7214
  %v7223 = vld [vmem:[%s2] sm:$0xf]
  %v7224 = vld [vmem:[%s2 + $0x4] sm:$0xf]
  %v7225 = vld [vmem:[%s2 + $0x8] sm:$0xf]
  %v7226 = vld [vmem:[%s2 + $0xc] sm:$0xf]
  %v7227 = vld [vmem:[%s2 + $0x10] sm:$0xf]
  %v7228 = vld [vmem:[%s2 + $0x14] sm:$0xf]
  %v7229 = vld [vmem:[%s2 + $0x18] sm:$0xf]
  %v7230 = vld [vmem:[%s2 + $0x1c] sm:$0xf]
  %v7232 = vunpack.c.l.b16 %v7215
  %7233 = vset.pattern.permute.xlu0 0
  %7234 = vperm.xlu0 %7233, %v7232
  %v7235 = vpop.permute.xlu0 %7234
  %v7236 = vlaneseq
  %v7237 = vshrl.u32 %v7236, 7
  %v7238 = vsub.s32 %v937, %v7237
  %v7239 = vrot.slane %v7235, %v7238
  %v7240 = vpack.c.b16 %v7239, %v7239
  %v7242 = vsel %vm452, %v7240, 0
  %v7245 = vsel %vm1068, %v7223, 0
  %7247 = vmatprep.subr.bf16.mxu0 0
  %7248 = vmatpush1.bf16.msra.mxu0 0
  %7249 = vmatprep.subr.bf16.mxu0 0
  %7250 = vmatpush1.bf16.msra.mxu0 0
  %7251 = vmatprep.subr.bf16.mxu0 0
  %7252 = vmatpush1.bf16.msra.mxu0 0
  %7253 = vmatprep.subr.bf16.mxu0 0
  %7254 = vmatpush1.bf16.msra.mxu0 0
  %7255 = vmatprep.subr.bf16.mxu0 0
  %7256 = vmatpush1.bf16.msra.mxu0 0
  %7257 = vmatprep.subr.bf16.mxu0 0
  %7258 = vmatpush1.bf16.msra.mxu0 0
  %7259 = vmatprep.subr.bf16.mxu0 0
  %7260 = vmatpush1.bf16.msra.mxu0 0
  %7261 = vmatprep.subr.bf16.mxu0 0
  %7262 = vmatpush1.bf16.msra.mxu0 %v7245
  %7263 = vmatprep.subr.bf16.mxu0 0
  %7264 = vmatpush2.bf16.msra.mxu0 0
  %7265 = vmatprep.subr.bf16.mxu0 0
  %7266 = vmatpush2.bf16.msra.mxu0 0
  %7267 = vmatprep.subr.bf16.mxu0 0
  %7268 = vmatpush2.bf16.msra.mxu0 0
  %7269 = vmatprep.subr.bf16.mxu0 0
  %7270 = vmatpush2.bf16.msra.mxu0 0
  %7271 = vmatprep.subr.bf16.mxu0 0
  %7272 = vmatpush2.bf16.msra.mxu0 0
  %7273 = vmatprep.subr.bf16.mxu0 0
  %7274 = vmatpush2.bf16.msra.mxu0 0
  %7275 = vmatprep.subr.bf16.mxu0 0
  %7276 = vmatpush2.bf16.msra.mxu0 0
  %7277 = vmatprep.subr.bf16.mxu0 0
  %7278 = vmatpush2.bf16.msra.mxu0 0
  %7279 = vmatprep.mubr.bf16.mxu0 0
  %7280 = vmatmul.mubr.bf16.gmra.mxu0 %v7242
  %v7281 = vpop.f32.mrf.mxu0
  %v7282 = vadd.f32 0.0, %v7281
  %v7283 = vpop.f32.mrf.mxu0
  %v7284 = vpop.f32.mrf.mxu0
  %v7285 = vpop.f32.mrf.mxu0
  %7286 = vdwg.mxu0
  %v7288 = vunpack.c.l.b16 %v7216
  %7289 = vset.pattern.permute.xlu0 0
  %7290 = vperm.xlu0 %7289, %v7288
  %v7291 = vpop.permute.xlu0 %7290
  %v7292 = vlaneseq
  %v7293 = vshrl.u32 %v7292, 7
  %v7294 = vsub.s32 %v937, %v7293
  %v7295 = vrot.slane %v7291, %v7294
  %v7296 = vpack.c.b16 %v7295, %v7295
  %v7298 = vsel %vm452, %v7296, 0
  %v7301 = vsel %vm1068, %v7224, 0
  %7303 = vmatprep.subr.bf16.mxu0 0
  %7304 = vmatpush1.bf16.msra.mxu0 0
  %7305 = vmatprep.subr.bf16.mxu0 0
  %7306 = vmatpush1.bf16.msra.mxu0 0
  %7307 = vmatprep.subr.bf16.mxu0 0
  %7308 = vmatpush1.bf16.msra.mxu0 0
  %7309 = vmatprep.subr.bf16.mxu0 0
  %7310 = vmatpush1.bf16.msra.mxu0 0
  %7311 = vmatprep.subr.bf16.mxu0 0
  %7312 = vmatpush1.bf16.msra.mxu0 0
  %7313 = vmatprep.subr.bf16.mxu0 0
  %7314 = vmatpush1.bf16.msra.mxu0 0
  %7315 = vmatprep.subr.bf16.mxu0 0
  %7316 = vmatpush1.bf16.msra.mxu0 0
  %7317 = vmatprep.subr.bf16.mxu0 0
  %7318 = vmatpush1.bf16.msra.mxu0 %v7301
  %7319 = vmatprep.subr.bf16.mxu0 0
  %7320 = vmatpush2.bf16.msra.mxu0 0
  %7321 = vmatprep.subr.bf16.mxu0 0
  %7322 = vmatpush2.bf16.msra.mxu0 0
  %7323 = vmatprep.subr.bf16.mxu0 0
  %7324 = vmatpush2.bf16.msra.mxu0 0
  %7325 = vmatprep.subr.bf16.mxu0 0
  %7326 = vmatpush2.bf16.msra.mxu0 0
  %7327 = vmatprep.subr.bf16.mxu0 0
  %7328 = vmatpush2.bf16.msra.mxu0 0
  %7329 = vmatprep.subr.bf16.mxu0 0
  %7330 = vmatpush2.bf16.msra.mxu0 0
  %7331 = vmatprep.subr.bf16.mxu0 0
  %7332 = vmatpush2.bf16.msra.mxu0 0
  %7333 = vmatprep.subr.bf16.mxu0 0
  %7334 = vmatpush2.bf16.msra.mxu0 0
  %7335 = vmatprep.mubr.bf16.mxu0 0
  %7336 = vmatmul.mubr.bf16.gmra.mxu0 %v7298
  %v7337 = vpop.f32.mrf.mxu0
  %v7338 = vadd.f32 0.0, %v7337
  %v7339 = vpop.f32.mrf.mxu0
  %v7340 = vpop.f32.mrf.mxu0
  %v7341 = vpop.f32.mrf.mxu0
  %7342 = vdwg.mxu0
  %v7344 = vunpack.c.l.b16 %v7217
  %7345 = vset.pattern.permute.xlu0 0
  %7346 = vperm.xlu0 %7345, %v7344
  %v7347 = vpop.permute.xlu0 %7346
  %v7348 = vlaneseq
  %v7349 = vshrl.u32 %v7348, 7
  %v7350 = vsub.s32 %v937, %v7349
  %v7351 = vrot.slane %v7347, %v7350
  %v7352 = vpack.c.b16 %v7351, %v7351
  %v7354 = vsel %vm452, %v7352, 0
  %v7357 = vsel %vm1068, %v7225, 0
  %7359 = vmatprep.subr.bf16.mxu0 0
  %7360 = vmatpush1.bf16.msra.mxu0 0
  %7361 = vmatprep.subr.bf16.mxu0 0
  %7362 = vmatpush1.bf16.msra.mxu0 0
  %7363 = vmatprep.subr.bf16.mxu0 0
  %7364 = vmatpush1.bf16.msra.mxu0 0
  %7365 = vmatprep.subr.bf16.mxu0 0
  %7366 = vmatpush1.bf16.msra.mxu0 0
  %7367 = vmatprep.subr.bf16.mxu0 0
  %7368 = vmatpush1.bf16.msra.mxu0 0
  %7369 = vmatprep.subr.bf16.mxu0 0
  %7370 = vmatpush1.bf16.msra.mxu0 0
  %7371 = vmatprep.subr.bf16.mxu0 0
  %7372 = vmatpush1.bf16.msra.mxu0 0
  %7373 = vmatprep.subr.bf16.mxu0 0
  %7374 = vmatpush1.bf16.msra.mxu0 %v7357
  %7375 = vmatprep.subr.bf16.mxu0 0
  %7376 = vmatpush2.bf16.msra.mxu0 0
  %7377 = vmatprep.subr.bf16.mxu0 0
  %7378 = vmatpush2.bf16.msra.mxu0 0
  %7379 = vmatprep.subr.bf16.mxu0 0
  %7380 = vmatpush2.bf16.msra.mxu0 0
  %7381 = vmatprep.subr.bf16.mxu0 0
  %7382 = vmatpush2.bf16.msra.mxu0 0
  %7383 = vmatprep.subr.bf16.mxu0 0
  %7384 = vmatpush2.bf16.msra.mxu0 0
  %7385 = vmatprep.subr.bf16.mxu0 0
  %7386 = vmatpush2.bf16.msra.mxu0 0
  %7387 = vmatprep.subr.bf16.mxu0 0
  %7388 = vmatpush2.bf16.msra.mxu0 0
  %7389 = vmatprep.subr.bf16.mxu0 0
  %7390 = vmatpush2.bf16.msra.mxu0 0
  %7391 = vmatprep.mubr.bf16.mxu0 0
  %7392 = vmatmul.mubr.bf16.gmra.mxu0 %v7354
  %v7393 = vpop.f32.mrf.mxu0
  %v7394 = vadd.f32 0.0, %v7393
  %v7395 = vpop.f32.mrf.mxu0
  %v7396 = vpop.f32.mrf.mxu0
  %v7397 = vpop.f32.mrf.mxu0
  %7398 = vdwg.mxu0
  %v7400 = vunpack.c.l.b16 %v7218
  %7401 = vset.pattern.permute.xlu0 0
  %7402 = vperm.xlu0 %7401, %v7400
  %v7403 = vpop.permute.xlu0 %7402
  %v7404 = vlaneseq
  %v7405 = vshrl.u32 %v7404, 7
  %v7406 = vsub.s32 %v937, %v7405
  %v7407 = vrot.slane %v7403, %v7406
  %v7408 = vpack.c.b16 %v7407, %v7407
  %v7410 = vsel %vm452, %v7408, 0
  %v7413 = vsel %vm1068, %v7226, 0
  %7415 = vmatprep.subr.bf16.mxu0 0
  %7416 = vmatpush1.bf16.msra.mxu0 0
  %7417 = vmatprep.subr.bf16.mxu0 0
  %7418 = vmatpush1.bf16.msra.mxu0 0
  %7419 = vmatprep.subr.bf16.mxu0 0
  %7420 = vmatpush1.bf16.msra.mxu0 0
  %7421 = vmatprep.subr.bf16.mxu0 0
  %7422 = vmatpush1.bf16.msra.mxu0 0
  %7423 = vmatprep.subr.bf16.mxu0 0
  %7424 = vmatpush1.bf16.msra.mxu0 0
  %7425 = vmatprep.subr.bf16.mxu0 0
  %7426 = vmatpush1.bf16.msra.mxu0 0
  %7427 = vmatprep.subr.bf16.mxu0 0
  %7428 = vmatpush1.bf16.msra.mxu0 0
  %7429 = vmatprep.subr.bf16.mxu0 0
  %7430 = vmatpush1.bf16.msra.mxu0 %v7413
  %7431 = vmatprep.subr.bf16.mxu0 0
  %7432 = vmatpush2.bf16.msra.mxu0 0
  %7433 = vmatprep.subr.bf16.mxu0 0
  %7434 = vmatpush2.bf16.msra.mxu0 0
  %7435 = vmatprep.subr.bf16.mxu0 0
  %7436 = vmatpush2.bf16.msra.mxu0 0
  %7437 = vmatprep.subr.bf16.mxu0 0
  %7438 = vmatpush2.bf16.msra.mxu0 0
  %7439 = vmatprep.subr.bf16.mxu0 0
  %7440 = vmatpush2.bf16.msra.mxu0 0
  %7441 = vmatprep.subr.bf16.mxu0 0
  %7442 = vmatpush2.bf16.msra.mxu0 0
  %7443 = vmatprep.subr.bf16.mxu0 0
  %7444 = vmatpush2.bf16.msra.mxu0 0
  %7445 = vmatprep.subr.bf16.mxu0 0
  %7446 = vmatpush2.bf16.msra.mxu0 0
  %7447 = vmatprep.mubr.bf16.mxu0 0
  %7448 = vmatmul.mubr.bf16.gmra.mxu0 %v7410
  %v7449 = vpop.f32.mrf.mxu0
  %v7450 = vadd.f32 0.0, %v7449
  %v7451 = vpop.f32.mrf.mxu0
  %v7452 = vpop.f32.mrf.mxu0
  %v7453 = vpop.f32.mrf.mxu0
  %7454 = vdwg.mxu0
  %v7456 = vunpack.c.l.b16 %v7219
  %7457 = vset.pattern.permute.xlu0 0
  %7458 = vperm.xlu0 %7457, %v7456
  %v7459 = vpop.permute.xlu0 %7458
  %v7460 = vlaneseq
  %v7461 = vshrl.u32 %v7460, 7
  %v7462 = vsub.s32 %v937, %v7461
  %v7463 = vrot.slane %v7459, %v7462
  %v7464 = vpack.c.b16 %v7463, %v7463
  %v7466 = vsel %vm452, %v7464, 0
  %v7469 = vsel %vm1068, %v7227, 0
  %7471 = vmatprep.subr.bf16.mxu0 0
  %7472 = vmatpush1.bf16.msra.mxu0 0
  %7473 = vmatprep.subr.bf16.mxu0 0
  %7474 = vmatpush1.bf16.msra.mxu0 0
  %7475 = vmatprep.subr.bf16.mxu0 0
  %7476 = vmatpush1.bf16.msra.mxu0 0
  %7477 = vmatprep.subr.bf16.mxu0 0
  %7478 = vmatpush1.bf16.msra.mxu0 0
  %7479 = vmatprep.subr.bf16.mxu0 0
  %7480 = vmatpush1.bf16.msra.mxu0 0
  %7481 = vmatprep.subr.bf16.mxu0 0
  %7482 = vmatpush1.bf16.msra.mxu0 0
  %7483 = vmatprep.subr.bf16.mxu0 0
  %7484 = vmatpush1.bf16.msra.mxu0 0
  %7485 = vmatprep.subr.bf16.mxu0 0
  %7486 = vmatpush1.bf16.msra.mxu0 %v7469
  %7487 = vmatprep.subr.bf16.mxu0 0
  %7488 = vmatpush2.bf16.msra.mxu0 0
  %7489 = vmatprep.subr.bf16.mxu0 0
  %7490 = vmatpush2.bf16.msra.mxu0 0
  %7491 = vmatprep.subr.bf16.mxu0 0
  %7492 = vmatpush2.bf16.msra.mxu0 0
  %7493 = vmatprep.subr.bf16.mxu0 0
  %7494 = vmatpush2.bf16.msra.mxu0 0
  %7495 = vmatprep.subr.bf16.mxu0 0
  %7496 = vmatpush2.bf16.msra.mxu0 0
  %7497 = vmatprep.subr.bf16.mxu0 0
  %7498 = vmatpush2.bf16.msra.mxu0 0
  %7499 = vmatprep.subr.bf16.mxu0 0
  %7500 = vmatpush2.bf16.msra.mxu0 0
  %7501 = vmatprep.subr.bf16.mxu0 0
  %7502 = vmatpush2.bf16.msra.mxu0 0
  %7503 = vmatprep.mubr.bf16.mxu0 0
  %7504 = vmatmul.mubr.bf16.gmra.mxu0 %v7466
  %v7505 = vpop.f32.mrf.mxu0
  %v7506 = vadd.f32 0.0, %v7505
  %v7507 = vpop.f32.mrf.mxu0
  %v7508 = vpop.f32.mrf.mxu0
  %v7509 = vpop.f32.mrf.mxu0
  %7510 = vdwg.mxu0
  %v7512 = vunpack.c.l.b16 %v7220
  %7513 = vset.pattern.permute.xlu0 0
  %7514 = vperm.xlu0 %7513, %v7512
  %v7515 = vpop.permute.xlu0 %7514
  %v7516 = vlaneseq
  %v7517 = vshrl.u32 %v7516, 7
  %v7518 = vsub.s32 %v937, %v7517
  %v7519 = vrot.slane %v7515, %v7518
  %v7520 = vpack.c.b16 %v7519, %v7519
  %v7522 = vsel %vm452, %v7520, 0
  %v7525 = vsel %vm1068, %v7228, 0
  %7527 = vmatprep.subr.bf16.mxu0 0
  %7528 = vmatpush1.bf16.msra.mxu0 0
  %7529 = vmatprep.subr.bf16.mxu0 0
  %7530 = vmatpush1.bf16.msra.mxu0 0
  %7531 = vmatprep.subr.bf16.mxu0 0
  %7532 = vmatpush1.bf16.msra.mxu0 0
  %7533 = vmatprep.subr.bf16.mxu0 0
  %7534 = vmatpush1.bf16.msra.mxu0 0
  %7535 = vmatprep.subr.bf16.mxu0 0
  %7536 = vmatpush1.bf16.msra.mxu0 0
  %7537 = vmatprep.subr.bf16.mxu0 0
  %7538 = vmatpush1.bf16.msra.mxu0 0
  %7539 = vmatprep.subr.bf16.mxu0 0
  %7540 = vmatpush1.bf16.msra.mxu0 0
  %7541 = vmatprep.subr.bf16.mxu0 0
  %7542 = vmatpush1.bf16.msra.mxu0 %v7525
  %7543 = vmatprep.subr.bf16.mxu0 0
  %7544 = vmatpush2.bf16.msra.mxu0 0
  %7545 = vmatprep.subr.bf16.mxu0 0
  %7546 = vmatpush2.bf16.msra.mxu0 0
  %7547 = vmatprep.subr.bf16.mxu0 0
  %7548 = vmatpush2.bf16.msra.mxu0 0
  %7549 = vmatprep.subr.bf16.mxu0 0
  %7550 = vmatpush2.bf16.msra.mxu0 0
  %7551 = vmatprep.subr.bf16.mxu0 0
  %7552 = vmatpush2.bf16.msra.mxu0 0
  %7553 = vmatprep.subr.bf16.mxu0 0
  %7554 = vmatpush2.bf16.msra.mxu0 0
  %7555 = vmatprep.subr.bf16.mxu0 0
  %7556 = vmatpush2.bf16.msra.mxu0 0
  %7557 = vmatprep.subr.bf16.mxu0 0
  %7558 = vmatpush2.bf16.msra.mxu0 0
  %7559 = vmatprep.mubr.bf16.mxu0 0
  %7560 = vmatmul.mubr.bf16.gmra.mxu0 %v7522
  %v7561 = vpop.f32.mrf.mxu0
  %v7562 = vadd.f32 0.0, %v7561
  %v7563 = vpop.f32.mrf.mxu0
  %v7564 = vpop.f32.mrf.mxu0
  %v7565 = vpop.f32.mrf.mxu0
  %7566 = vdwg.mxu0
  %v7568 = vunpack.c.l.b16 %v7221
  %7569 = vset.pattern.permute.xlu0 0
  %7570 = vperm.xlu0 %7569, %v7568
  %v7571 = vpop.permute.xlu0 %7570
  %v7572 = vlaneseq
  %v7573 = vshrl.u32 %v7572, 7
  %v7574 = vsub.s32 %v937, %v7573
  %v7575 = vrot.slane %v7571, %v7574
  %v7576 = vpack.c.b16 %v7575, %v7575
  %v7578 = vsel %vm452, %v7576, 0
  %v7581 = vsel %vm1068, %v7229, 0
  %7583 = vmatprep.subr.bf16.mxu0 0
  %7584 = vmatpush1.bf16.msra.mxu0 0
  %7585 = vmatprep.subr.bf16.mxu0 0
  %7586 = vmatpush1.bf16.msra.mxu0 0
  %7587 = vmatprep.subr.bf16.mxu0 0
  %7588 = vmatpush1.bf16.msra.mxu0 0
  %7589 = vmatprep.subr.bf16.mxu0 0
  %7590 = vmatpush1.bf16.msra.mxu0 0
  %7591 = vmatprep.subr.bf16.mxu0 0
  %7592 = vmatpush1.bf16.msra.mxu0 0
  %7593 = vmatprep.subr.bf16.mxu0 0
  %7594 = vmatpush1.bf16.msra.mxu0 0
  %7595 = vmatprep.subr.bf16.mxu0 0
  %7596 = vmatpush1.bf16.msra.mxu0 0
  %7597 = vmatprep.subr.bf16.mxu0 0
  %7598 = vmatpush1.bf16.msra.mxu0 %v7581
  %7599 = vmatprep.subr.bf16.mxu0 0
  %7600 = vmatpush2.bf16.msra.mxu0 0
  %7601 = vmatprep.subr.bf16.mxu0 0
  %7602 = vmatpush2.bf16.msra.mxu0 0
  %7603 = vmatprep.subr.bf16.mxu0 0
  %7604 = vmatpush2.bf16.msra.mxu0 0
  %7605 = vmatprep.subr.bf16.mxu0 0
  %7606 = vmatpush2.bf16.msra.mxu0 0
  %7607 = vmatprep.subr.bf16.mxu0 0
  %7608 = vmatpush2.bf16.msra.mxu0 0
  %7609 = vmatprep.subr.bf16.mxu0 0
  %7610 = vmatpush2.bf16.msra.mxu0 0
  %7611 = vmatprep.subr.bf16.mxu0 0
  %7612 = vmatpush2.bf16.msra.mxu0 0
  %7613 = vmatprep.subr.bf16.mxu0 0
  %7614 = vmatpush2.bf16.msra.mxu0 0
  %7615 = vmatprep.mubr.bf16.mxu0 0
  %7616 = vmatmul.mubr.bf16.gmra.mxu0 %v7578
  %v7617 = vpop.f32.mrf.mxu0
  %v7618 = vadd.f32 0.0, %v7617
  %v7619 = vpop.f32.mrf.mxu0
  %v7620 = vpop.f32.mrf.mxu0
  %v7621 = vpop.f32.mrf.mxu0
  %7622 = vdwg.mxu0
  %v7624 = vunpack.c.l.b16 %v7222
  %7625 = vset.pattern.permute.xlu0 0
  %7626 = vperm.xlu0 %7625, %v7624
  %v7627 = vpop.permute.xlu0 %7626
  %v7628 = vlaneseq
  %v7629 = vshrl.u32 %v7628, 7
  %v7630 = vsub.s32 %v937, %v7629
  %v7631 = vrot.slane %v7627, %v7630
  %v7632 = vpack.c.b16 %v7631, %v7631
  %v7634 = vsel %vm452, %v7632, 0
  %v7637 = vsel %vm1068, %v7230, 0
  %7639 = vmatprep.subr.bf16.mxu0 0
  %7640 = vmatpush1.bf16.msra.mxu0 0
  %7641 = vmatprep.subr.bf16.mxu0 0
  %7642 = vmatpush1.bf16.msra.mxu0 0
  %7643 = vmatprep.subr.bf16.mxu0 0
  %7644 = vmatpush1.bf16.msra.mxu0 0
  %7645 = vmatprep.subr.bf16.mxu0 0
  %7646 = vmatpush1.bf16.msra.mxu0 0
  %7647 = vmatprep.subr.bf16.mxu0 0
  %7648 = vmatpush1.bf16.msra.mxu0 0
  %7649 = vmatprep.subr.bf16.mxu0 0
  %7650 = vmatpush1.bf16.msra.mxu0 0
  %7651 = vmatprep.subr.bf16.mxu0 0
  %7652 = vmatpush1.bf16.msra.mxu0 0
  %7653 = vmatprep.subr.bf16.mxu0 0
  %7654 = vmatpush1.bf16.msra.mxu0 %v7637
  %7655 = vmatprep.subr.bf16.mxu0 0
  %7656 = vmatpush2.bf16.msra.mxu0 0
  %7657 = vmatprep.subr.bf16.mxu0 0
  %7658 = vmatpush2.bf16.msra.mxu0 0
  %7659 = vmatprep.subr.bf16.mxu0 0
  %7660 = vmatpush2.bf16.msra.mxu0 0
  %7661 = vmatprep.subr.bf16.mxu0 0
  %7662 = vmatpush2.bf16.msra.mxu0 0
  %7663 = vmatprep.subr.bf16.mxu0 0
  %7664 = vmatpush2.bf16.msra.mxu0 0
  %7665 = vmatprep.subr.bf16.mxu0 0
  %7666 = vmatpush2.bf16.msra.mxu0 0
  %7667 = vmatprep.subr.bf16.mxu0 0
  %7668 = vmatpush2.bf16.msra.mxu0 0
  %7669 = vmatprep.subr.bf16.mxu0 0
  %7670 = vmatpush2.bf16.msra.mxu0 0
  %7671 = vmatprep.mubr.bf16.mxu0 0
  %7672 = vmatmul.mubr.bf16.gmra.mxu0 %v7634
  %v7673 = vpop.f32.mrf.mxu0
  %v7674 = vadd.f32 0.0, %v7673
  %v7675 = vpop.f32.mrf.mxu0
  %v7676 = vpop.f32.mrf.mxu0
  %v7677 = vpop.f32.mrf.mxu0
  %7678 = vdwg.mxu0
  %v7679 = vld [vmem:[%s15] sm:$0xff]
  %v7680 = vld [vmem:[%s15 + $0x8] sm:$0xff]
  %v7681 = vld [vmem:[%s15 + $0x10] sm:$0xff]
  %v7682 = vld [vmem:[%s15 + $0x18] sm:$0xff]
  %v7683 = vld [vmem:[%s16] sm:$0x1]
  %v7685 = vlaneseq
  %v7686 = vshrl.u32 %v7685, 7
  %v7687 = vsub.s32 0, %v7686
  %v7688 = vrot.slane %v7683, %v7687
  %v7698 = vrot.slane %v7338, 7
  %v7699 = vsel %vm970, %v7698, %v7282
  %v7700 = vrot.slane %v7394, 6
  %v7701 = vsel %vm972, %v7700, %v7699
  %v7702 = vrot.slane %v7450, 5
  %v7703 = vsel %vm974, %v7702, %v7701
  %v7704 = vrot.slane %v7506, 4
  %v7705 = vsel %vm976, %v7704, %v7703
  %v7706 = vrot.slane %v7562, 3
  %v7707 = vsel %vm978, %v7706, %v7705
  %v7708 = vrot.slane %v7618, 2
  %v7709 = vsel %vm980, %v7708, %v7707
  %v7710 = vrot.slane %v7674, 1
  %v7711 = vsel %vm982, %v7710, %v7709
  %v7712 = vsel %vm134, %v7711, 0
  %7714 = vmatprep.subr.mxu0 0.0
  %7715 = vmatpush1.msra.mxu0 0.0
  %7716 = vmatprep.subr.mxu0 0.0
  %7717 = vmatpush1.msra.mxu0 0.0
  %7718 = vmatprep.subr.mxu0 0.0
  %7719 = vmatpush1.msra.mxu0 0.0
  %7720 = vmatprep.subr.mxu0 0.0
  %7721 = vmatpush1.msra.mxu0 0.0
  %7722 = vmatprep.subr.mxu0 0.0
  %7723 = vmatpush1.msra.mxu0 0.0
  %7724 = vmatprep.subr.mxu0 0.0
  %7725 = vmatpush1.msra.mxu0 0.0
  %7726 = vmatprep.subr.mxu0 0.0
  %7727 = vmatpush1.msra.mxu0 0.0
  %7728 = vmatprep.subr.mxu0 0.0
  %7729 = vmatpush1.msra.mxu0 0.0
  %7730 = vmatprep.subr.mxu0 0.0
  %7731 = vmatpush1.msra.mxu0 0.0
  %7732 = vmatprep.subr.mxu0 0.0
  %7733 = vmatpush1.msra.mxu0 0.0
  %7734 = vmatprep.subr.mxu0 0.0
  %7735 = vmatpush1.msra.mxu0 0.0
  %7736 = vmatprep.subr.mxu0 0.0
  %7737 = vmatpush1.msra.mxu0 0.0
  %7738 = vmatprep.subr.mxu0 0.0
  %7739 = vmatpush1.msra.mxu0 %v7682
  %7740 = vmatprep.subr.mxu0 0.0
  %7741 = vmatpush1.msra.mxu0 %v7681
  %7742 = vmatprep.subr.mxu0 0.0
  %7743 = vmatpush1.msra.mxu0 %v7680
  %7744 = vmatprep.subr.mxu0 0.0
  %7745 = vmatpush1.msra.mxu0 %v7679
  %7746 = vmatprep.subr.mxu0 0.0
  %7747 = vmatpush2.msra.mxu0 0.0
  %7748 = vmatprep.subr.mxu0 0.0
  %7749 = vmatpush2.msra.mxu0 0.0
  %7750 = vmatprep.subr.mxu0 0.0
  %7751 = vmatpush2.msra.mxu0 0.0
  %7752 = vmatprep.subr.mxu0 0.0
  %7753 = vmatpush2.msra.mxu0 0.0
  %7754 = vmatprep.subr.mxu0 0.0
  %7755 = vmatpush2.msra.mxu0 0.0
  %7756 = vmatprep.subr.mxu0 0.0
  %7757 = vmatpush2.msra.mxu0 0.0
  %7758 = vmatprep.subr.mxu0 0.0
  %7759 = vmatpush2.msra.mxu0 0.0
  %7760 = vmatprep.subr.mxu0 0.0
  %7761 = vmatpush2.msra.mxu0 0.0
  %7762 = vmatprep.subr.mxu0 0.0
  %7763 = vmatpush2.msra.mxu0 0.0
  %7764 = vmatprep.subr.mxu0 0.0
  %7765 = vmatpush2.msra.mxu0 0.0
  %7766 = vmatprep.subr.mxu0 0.0
  %7767 = vmatpush2.msra.mxu0 0.0
  %7768 = vmatprep.subr.mxu0 0.0
  %7769 = vmatpush2.msra.mxu0 0.0
  %7770 = vmatprep.subr.mxu0 0.0
  %7771 = vmatpush2.msra.mxu0 0.0
  %7772 = vmatprep.subr.mxu0 0.0
  %7773 = vmatpush2.msra.mxu0 0.0
  %7774 = vmatprep.subr.mxu0 0.0
  %7775 = vmatpush2.msra.mxu0 0.0
  %7776 = vmatprep.subr.mxu0 0.0
  %7777 = vmatpush2.msra.mxu0 0.0
  %7778 = vmatprep.mubr.f32.mxu0 0.0
  %7779 = vmatmul.mubr.f32.gmra.mxu0 %v7712
  %v7780 = vpop.f32.mrf.mxu0
  %v7781 = vadd.f32 %v7688, %v7780
  %v7782 = vpop.f32.mrf.mxu0
  %7783 = vdwg.mxu0
  %v7784 = vadd.f32 %v7781, %v6845
  %v7785 = vxor.u32 %v7784, 2147483648
  %v7786 = vmul.f32 %v7785, 1.442695
  %v7787 = vpow.pop %v7786
  %v7788 = vadd.f32 %v7787, 1.0
  %v7789 = vrcp.pop %v7788
  %v7790 = vmul.f32 1.0, %v7789
  %7792 = vrot.lane.b32.xlu0 %v6845, 64
  %v7793 = vpop.permute.xlu0 %7792
  %v7795 = vmul.f32 %v7790, %v7793
  %7797 = vrot.lane.b32.xlu0 %v7795, 64
  %v7798 = vpop.permute.xlu0 %7797
  %v7800 = vadd.f32 %v7781, %v7798
  %v7801 = vtanh.pop %v7800
  %v7802 = vsub.f32 1.0, %v7790
  %7804 = vrot.lane.b32.xlu0 %v7801, 96
  %v7805 = vpop.permute.xlu0 %7804
  %v7807 = vmul.f32 %v7802, %v7805
  %v7808 = vmul.f32 %v7790, %v6753
  %v7809 = vadd.f32 %v7807, %v7808
  %v7810 = vpack.c.bf16 %v7809, %v7809
  %v7812 = vunpack.c.l.b16 %v7810
  %v7813 = vpack.c.b16 %v7812, %v7812
  %7814 = vrot.lane.b32.xlu0 %v7813, 96
  %v7815 = vpop.permute.xlu0 %7814
  %7817 = vst.msk [vmem:[#allocation5 + $0x40] sm:$0xf] %vm89, %v7815
  %v7818 = vpack.c.bf16 %v7282, %v7282
  %v7819 = vpack.c.bf16 %v7338, %v7338
  %v7820 = vpack.c.bf16 %v7394, %v7394
  %v7821 = vpack.c.bf16 %v7450, %v7450
  %v7822 = vpack.c.bf16 %v7506, %v7506
  %v7823 = vpack.c.bf16 %v7562, %v7562
  %v7824 = vpack.c.bf16 %v7618, %v7618
  %v7825 = vpack.c.bf16 %v7674, %v7674
  %v7834 = vunpack.c.l.b16 %v7818
  %v7835 = vunpack.c.l.b16 %v7819
  %v7836 = vunpack.c.l.b16 %v7820
  %v7837 = vunpack.c.l.b16 %v7821
  %v7838 = vunpack.c.l.b16 %v7822
  %v7839 = vunpack.c.l.b16 %v7823
  %v7840 = vunpack.c.l.b16 %v7824
  %v7841 = vunpack.c.l.b16 %v7825
  %v7842 = vpack.c.b16 %v7834, %v7834
  %v7843 = vpack.c.b16 %v7835, %v7835
  %v7844 = vpack.c.b16 %v7836, %v7836
  %v7845 = vpack.c.b16 %v7837, %v7837
  %v7846 = vpack.c.b16 %v7838, %v7838
  %v7847 = vpack.c.b16 %v7839, %v7839
  %v7848 = vpack.c.b16 %v7840, %v7840
  %v7849 = vpack.c.b16 %v7841, %v7841
  %v7850 = vunpack.c.l.b16 %v7842
  %v7851 = vunpack.c.l.b16 %v7843
  %v7852 = vunpack.c.l.b16 %v7844
  %v7853 = vunpack.c.l.b16 %v7845
  %v7854 = vunpack.c.l.b16 %v7846
  %v7855 = vunpack.c.l.b16 %v7847
  %v7856 = vunpack.c.l.b16 %v7848
  %v7857 = vunpack.c.l.b16 %v7849
  %v7858 = vrot.slane %v7851, 7
  %v7859 = vsel %vm970, %v7858, %v7850
  %v7860 = vrot.slane %v7852, 6
  %v7861 = vsel %vm972, %v7860, %v7859
  %v7862 = vrot.slane %v7853, 5
  %v7863 = vsel %vm974, %v7862, %v7861
  %v7864 = vrot.slane %v7854, 4
  %v7865 = vsel %vm976, %v7864, %v7863
  %v7866 = vrot.slane %v7855, 3
  %v7867 = vsel %vm978, %v7866, %v7865
  %v7868 = vrot.slane %v7856, 2
  %v7869 = vsel %vm980, %v7868, %v7867
  %v7870 = vrot.slane %v7857, 1
  %v7871 = vsel %vm982, %v7870, %v7869
  %v7872 = vpack.c.b16 %v7871, %v7871
  %7874 = vst.msk [vmem:[#allocation5 + $0x44] sm:$0xf] %vm89, %v7872
  %s7875 = scalar_lea.vmem [#allocation2], 48
  %v7876 = vld [vmem:[%s7875] sm:$0xff]
  %v7877 = vld [vmem:[%s8] sm:$0xff]
  %v7878 = vld [vmem:[%s8 + $0x8] sm:$0xff]
  %v7879 = vld [vmem:[%s8 + $0x10] sm:$0xff]
  %v7880 = vld [vmem:[%s8 + $0x18] sm:$0xff]
  %v7881 = vld [vmem:[%s9] sm:$0x1]
  %v7883 = vlaneseq
  %v7884 = vshrl.u32 %v7883, 7
  %v7885 = vsub.s32 0, %v7884
  %v7886 = vrot.slane %v7881, %v7885
  %7889 = vrot.lane.b32.xlu0 %v7809, 96
  %v7890 = vpop.permute.xlu0 %7889
  %v7891 = vsel %vm134, %v7890, 0
  %7893 = vmatprep.subr.mxu0 0.0
  %7894 = vmatpush1.msra.mxu0 0.0
  %7895 = vmatprep.subr.mxu0 0.0
  %7896 = vmatpush1.msra.mxu0 0.0
  %7897 = vmatprep.subr.mxu0 0.0
  %7898 = vmatpush1.msra.mxu0 0.0
  %7899 = vmatprep.subr.mxu0 0.0
  %7900 = vmatpush1.msra.mxu0 0.0
  %7901 = vmatprep.subr.mxu0 0.0
  %7902 = vmatpush1.msra.mxu0 0.0
  %7903 = vmatprep.subr.mxu0 0.0
  %7904 = vmatpush1.msra.mxu0 0.0
  %7905 = vmatprep.subr.mxu0 0.0
  %7906 = vmatpush1.msra.mxu0 0.0
  %7907 = vmatprep.subr.mxu0 0.0
  %7908 = vmatpush1.msra.mxu0 0.0
  %7909 = vmatprep.subr.mxu0 0.0
  %7910 = vmatpush1.msra.mxu0 0.0
  %7911 = vmatprep.subr.mxu0 0.0
  %7912 = vmatpush1.msra.mxu0 0.0
  %7913 = vmatprep.subr.mxu0 0.0
  %7914 = vmatpush1.msra.mxu0 0.0
  %7915 = vmatprep.subr.mxu0 0.0
  %7916 = vmatpush1.msra.mxu0 0.0
  %7917 = vmatprep.subr.mxu0 0.0
  %7918 = vmatpush1.msra.mxu0 %v7880
  %7919 = vmatprep.subr.mxu0 0.0
  %7920 = vmatpush1.msra.mxu0 %v7879
  %7921 = vmatprep.subr.mxu0 0.0
  %7922 = vmatpush1.msra.mxu0 %v7878
  %7923 = vmatprep.subr.mxu0 0.0
  %7924 = vmatpush1.msra.mxu0 %v7877
  %7925 = vmatprep.subr.mxu0 0.0
  %7926 = vmatpush2.msra.mxu0 0.0
  %7927 = vmatprep.subr.mxu0 0.0
  %7928 = vmatpush2.msra.mxu0 0.0
  %7929 = vmatprep.subr.mxu0 0.0
  %7930 = vmatpush2.msra.mxu0 0.0
  %7931 = vmatprep.subr.mxu0 0.0
  %7932 = vmatpush2.msra.mxu0 0.0
  %7933 = vmatprep.subr.mxu0 0.0
  %7934 = vmatpush2.msra.mxu0 0.0
  %7935 = vmatprep.subr.mxu0 0.0
  %7936 = vmatpush2.msra.mxu0 0.0
  %7937 = vmatprep.subr.mxu0 0.0
  %7938 = vmatpush2.msra.mxu0 0.0
  %7939 = vmatprep.subr.mxu0 0.0
  %7940 = vmatpush2.msra.mxu0 0.0
  %7941 = vmatprep.subr.mxu0 0.0
  %7942 = vmatpush2.msra.mxu0 0.0
  %7943 = vmatprep.subr.mxu0 0.0
  %7944 = vmatpush2.msra.mxu0 0.0
  %7945 = vmatprep.subr.mxu0 0.0
  %7946 = vmatpush2.msra.mxu0 0.0
  %7947 = vmatprep.subr.mxu0 0.0
  %7948 = vmatpush2.msra.mxu0 0.0
  %7949 = vmatprep.subr.mxu0 0.0
  %7950 = vmatpush2.msra.mxu0 0.0
  %7951 = vmatprep.subr.mxu0 0.0
  %7952 = vmatpush2.msra.mxu0 0.0
  %7953 = vmatprep.subr.mxu0 0.0
  %7954 = vmatpush2.msra.mxu0 0.0
  %7955 = vmatprep.subr.mxu0 0.0
  %7956 = vmatpush2.msra.mxu0 0.0
  %7957 = vmatprep.mubr.f32.mxu0 0.0
  %7958 = vmatmul.mubr.f32.gmra.mxu0 %v7891
  %v7959 = vpop.f32.mrf.mxu0
  %v7960 = vadd.f32 %v7886, %v7959
  %v7961 = vpop.f32.mrf.mxu0
  %7962 = vdwg.mxu0
  %v7963 = vadd.f32 %v7876, %v7960
  %v7964 = vxor.u32 %v7963, 2147483648
  %v7965 = vmul.f32 %v7964, 1.442695
  %v7966 = vpow.pop %v7965
  %v7967 = vadd.f32 %v7966, 1.0
  %v7968 = vrcp.pop %v7967
  %v7969 = vmul.f32 1.0, %v7968
  %7971 = vrot.lane.b32.xlu0 %v7960, 64
  %v7972 = vpop.permute.xlu0 %7971
  %v7974 = vmul.f32 %v7969, %v7972
  %7976 = vrot.lane.b32.xlu0 %v7974, 64
  %v7977 = vpop.permute.xlu0 %7976
  %v7979 = vadd.f32 %v7876, %v7977
  %v7980 = vtanh.pop %v7979
  %v7981 = vsub.f32 1.0, %v7969
  %7983 = vrot.lane.b32.xlu0 %v7980, 96
  %v7984 = vpop.permute.xlu0 %7983
  %v7986 = vmul.f32 %v7981, %v7984
  %v7987 = vmul.f32 %v7969, %v7809
  %v7988 = vadd.f32 %v7986, %v7987
  %v7989 = vld [vmem:[%s13] sm:$0xff]
  %v7990 = vld [vmem:[%s13 + $0x8] sm:$0xff]
  %v7991 = vld [vmem:[%s13 + $0x10] sm:$0xff]
  %v7992 = vld [vmem:[%s13 + $0x18] sm:$0xff]
  %v7993 = vld [vmem:[%s13 + $0x20] sm:$0xff]
  %v7994 = vld [vmem:[%s13 + $0x28] sm:$0xff]
  %v7995 = vld [vmem:[%s13 + $0x30] sm:$0xff]
  %v7996 = vld [vmem:[%s13 + $0x38] sm:$0xff]
  %7998 = vrot.lane.b32.xlu0 %v7988, 96
  %v7999 = vpop.permute.xlu0 %7998
  %v8000 = vsel %vm134, %v7999, 0
  %8002 = vmatprep.subr.mxu0 0.0
  %8003 = vmatpush1.msra.mxu0 0.0
  %8004 = vmatprep.subr.mxu0 0.0
  %8005 = vmatpush1.msra.mxu0 0.0
  %8006 = vmatprep.subr.mxu0 0.0
  %8007 = vmatpush1.msra.mxu0 0.0
  %8008 = vmatprep.subr.mxu0 0.0
  %8009 = vmatpush1.msra.mxu0 0.0
  %8010 = vmatprep.subr.mxu0 0.0
  %8011 = vmatpush1.msra.mxu0 0.0
  %8012 = vmatprep.subr.mxu0 0.0
  %8013 = vmatpush1.msra.mxu0 0.0
  %8014 = vmatprep.subr.mxu0 0.0
  %8015 = vmatpush1.msra.mxu0 0.0
  %8016 = vmatprep.subr.mxu0 0.0
  %8017 = vmatpush1.msra.mxu0 0.0
  %8018 = vmatprep.subr.mxu0 0.0
  %8019 = vmatpush1.msra.mxu0 0.0
  %8020 = vmatprep.subr.mxu0 0.0
  %8021 = vmatpush1.msra.mxu0 0.0
  %8022 = vmatprep.subr.mxu0 0.0
  %8023 = vmatpush1.msra.mxu0 0.0
  %8024 = vmatprep.subr.mxu0 0.0
  %8025 = vmatpush1.msra.mxu0 0.0
  %8026 = vmatprep.subr.mxu0 %v7996
  %8027 = vmatpush1.msra.mxu0 %v7995
  %8028 = vmatprep.subr.mxu0 %v7994
  %8029 = vmatpush1.msra.mxu0 %v7993
  %8030 = vmatprep.subr.mxu0 %v7992
  %8031 = vmatpush1.msra.mxu0 %v7991
  %8032 = vmatprep.subr.mxu0 %v7990
  %8033 = vmatpush1.msra.mxu0 %v7989
  %8034 = vmatprep.subr.mxu0 0.0
  %8035 = vmatpush2.msra.mxu0 0.0
  %8036 = vmatprep.subr.mxu0 0.0
  %8037 = vmatpush2.msra.mxu0 0.0
  %8038 = vmatprep.subr.mxu0 0.0
  %8039 = vmatpush2.msra.mxu0 0.0
  %8040 = vmatprep.subr.mxu0 0.0
  %8041 = vmatpush2.msra.mxu0 0.0
  %8042 = vmatprep.subr.mxu0 0.0
  %8043 = vmatpush2.msra.mxu0 0.0
  %8044 = vmatprep.subr.mxu0 0.0
  %8045 = vmatpush2.msra.mxu0 0.0
  %8046 = vmatprep.subr.mxu0 0.0
  %8047 = vmatpush2.msra.mxu0 0.0
  %8048 = vmatprep.subr.mxu0 0.0
  %8049 = vmatpush2.msra.mxu0 0.0
  %8050 = vmatprep.subr.mxu0 0.0
  %8051 = vmatpush2.msra.mxu0 0.0
  %8052 = vmatprep.subr.mxu0 0.0
  %8053 = vmatpush2.msra.mxu0 0.0
  %8054 = vmatprep.subr.mxu0 0.0
  %8055 = vmatpush2.msra.mxu0 0.0
  %8056 = vmatprep.subr.mxu0 0.0
  %8057 = vmatpush2.msra.mxu0 0.0
  %8058 = vmatprep.subr.mxu0 0.0
  %8059 = vmatpush2.msra.mxu0 0.0
  %8060 = vmatprep.subr.mxu0 0.0
  %8061 = vmatpush2.msra.mxu0 0.0
  %8062 = vmatprep.subr.mxu0 0.0
  %8063 = vmatpush2.msra.mxu0 0.0
  %8064 = vmatprep.subr.mxu0 0.0
  %8065 = vmatpush2.msra.mxu0 0.0
  %8066 = vmatprep.mubr.f32.mxu0 0.0
  %8067 = vmatmul.mubr.f32.gmra.mxu0 %v8000
  %v8068 = vpop.f32.mrf.mxu0
  %v8069 = vadd.f32 0.0, %v8068
  %v8070 = vpop.f32.mrf.mxu0
  %v8071 = vadd.f32 0.0, %v8070
  %8072 = vdwg.mxu0
  %v8073 = vld [vmem:[%s14] sm:$0x1]
  %v8075 = vlaneseq
  %v8076 = vshrl.u32 %v8075, 7
  %v8077 = vsub.s32 0, %v8076
  %v8078 = vrot.slane %v8073, %v8077
  %v8080 = vadd.f32 %v8069, %v8078
  %v8081 = vld [vmem:[#allocation3] sm:$0xff]
  %v8082 = vld [vmem:[#allocation3 + $0x8] sm:$0xff]
  %v8083 = vld [vmem:[#allocation3 + $0x10] sm:$0xff]
  %v8084 = vld [vmem:[#allocation3 + $0x18] sm:$0xff]
  %v8085 = vld [vmem:[#allocation3 + $0x20] sm:$0xff]
  %v8086 = vld [vmem:[#allocation3 + $0x28] sm:$0xff]
  %v8087 = vld [vmem:[#allocation3 + $0x30] sm:$0xff]
  %v8088 = vld [vmem:[#allocation3 + $0x38] sm:$0xff]
  %v8090 = vcombine.high %v8071, %v8071
  %v8092 = vunpack.c.l.s4 1966171168
  %v8093 = vunpack.c.0.s8 %v8092
  %v8094 = vlaneseq
  %v8095 = vshrl.u32 %v8094, 7
  %v8096 = vsub.s32 %v8093, %v8095
  %v8097 = vrot.slane %v8071, %v8096
  %v8099 = vunpack.c.l.s4 1966171168
  %v8100 = vunpack.c.0.s8 %v8099
  %v8101 = vlaneseq
  %v8102 = vshrl.u32 %v8101, 7
  %v8103 = vsub.s32 %v8100, %v8102
  %v8104 = vrot.slane %v8090, %v8103
  %v8105 = vcombine.high %v8097, %v8097
  %v8106 = vcombine.high %v8104, %v8104
  %v8108 = vunpack.c.l.s4 1966171168
  %v8109 = vunpack.c.0.s8 %v8108
  %v8110 = vlaneseq
  %v8111 = vshrl.u32 %v8110, 7
  %v8112 = vsub.s32 %v8109, %v8111
  %v8113 = vrot.slane %v8097, %v8112
  %v8115 = vunpack.c.l.s4 1966171168
  %v8116 = vunpack.c.0.s8 %v8115
  %v8117 = vlaneseq
  %v8118 = vshrl.u32 %v8117, 7
  %v8119 = vsub.s32 %v8116, %v8118
  %v8120 = vrot.slane %v8104, %v8119
  %v8122 = vunpack.c.l.s4 1966171168
  %v8123 = vunpack.c.0.s8 %v8122
  %v8124 = vlaneseq
  %v8125 = vshrl.u32 %v8124, 7
  %v8126 = vsub.s32 %v8123, %v8125
  %v8127 = vrot.slane %v8105, %v8126
  %v8129 = vunpack.c.l.s4 1966171168
  %v8130 = vunpack.c.0.s8 %v8129
  %v8131 = vlaneseq
  %v8132 = vshrl.u32 %v8131, 7
  %v8133 = vsub.s32 %v8130, %v8132
  %v8134 = vrot.slane %v8106, %v8133
  %v8135 = vcombine.high %v8113, %v8113
  %v8136 = vcombine.high %v8120, %v8120
  %v8137 = vcombine.high %v8127, %v8127
  %v8138 = vcombine.high %v8134, %v8134
  %v8139 = vlaneseq
  %v8140 = vshrl.u32 %v8139, 7
  %v8141 = vsub.s32 0, %v8140
  %v8142 = vrot.slane %v8113, %v8141
  %v8143 = vlaneseq
  %v8144 = vshrl.u32 %v8143, 7
  %v8145 = vsub.s32 0, %v8144
  %v8146 = vrot.slane %v8127, %v8145
  %v8147 = vlaneseq
  %v8148 = vshrl.u32 %v8147, 7
  %v8149 = vsub.s32 0, %v8148
  %v8150 = vrot.slane %v8135, %v8149
  %v8151 = vlaneseq
  %v8152 = vshrl.u32 %v8151, 7
  %v8153 = vsub.s32 0, %v8152
  %v8154 = vrot.slane %v8137, %v8153
  %v8155 = vlaneseq
  %v8156 = vshrl.u32 %v8155, 7
  %v8157 = vsub.s32 0, %v8156
  %v8158 = vrot.slane %v8120, %v8157
  %v8159 = vlaneseq
  %v8160 = vshrl.u32 %v8159, 7
  %v8161 = vsub.s32 0, %v8160
  %v8162 = vrot.slane %v8134, %v8161
  %v8163 = vlaneseq
  %v8164 = vshrl.u32 %v8163, 7
  %v8165 = vsub.s32 0, %v8164
  %v8166 = vrot.slane %v8136, %v8165
  %v8167 = vlaneseq
  %v8168 = vshrl.u32 %v8167, 7
  %v8169 = vsub.s32 0, %v8168
  %v8170 = vrot.slane %v8138, %v8169
  %v8179 = vadd.f32 %v8081, %v8142
  %v8180 = vadd.f32 %v8082, %v8146
  %v8181 = vadd.f32 %v8083, %v8150
  %v8182 = vadd.f32 %v8084, %v8154
  %v8183 = vadd.f32 %v8085, %v8158
  %v8184 = vadd.f32 %v8086, %v8162
  %v8185 = vadd.f32 %v8087, %v8166
  %v8186 = vadd.f32 %v8088, %v8170
  %v8187 = vtanh.pop %v8179
  %v8188 = vtanh.pop %v8180
  %v8189 = vtanh.pop %v8181
  %v8190 = vtanh.pop %v8182
  %v8191 = vtanh.pop %v8183
  %v8192 = vtanh.pop %v8184
  %v8193 = vtanh.pop %v8185
  %v8194 = vtanh.pop %v8186
  %v8195 = vld [vmem:[%s12] sm:$0x1]
  %v8197 = vlaneseq
  %v8198 = vshrl.u32 %v8197, 7
  %v8199 = vsub.s32 0, %v8198
  %v8200 = vrot.slane %v8195, %v8199
  %v8202 = vmul.f32 %v8187, %v8200
  %v8203 = vmul.f32 %v8188, %v8200
  %v8204 = vmul.f32 %v8189, %v8200
  %v8205 = vmul.f32 %v8190, %v8200
  %v8206 = vmul.f32 %v8191, %v8200
  %v8207 = vmul.f32 %v8192, %v8200
  %v8208 = vmul.f32 %v8193, %v8200
  %v8209 = vmul.f32 %v8194, %v8200
  %v8210 = vsel %vm134, %v8202, 0.0
  %8211 = vadd.xlane.f32.xlu0 %v8210
  %v8212 = vpop.xlane.xlu0 %8211
  %v8213 = vsel %vm134, %v8203, 0.0
  %8214 = vadd.xlane.f32.xlu0 %v8213
  %v8215 = vpop.xlane.xlu0 %8214
  %v8216 = vsel %vm134, %v8204, 0.0
  %8217 = vadd.xlane.f32.xlu0 %v8216
  %v8218 = vpop.xlane.xlu0 %8217
  %v8219 = vsel %vm134, %v8205, 0.0
  %8220 = vadd.xlane.f32.xlu0 %v8219
  %v8221 = vpop.xlane.xlu0 %8220
  %v8222 = vsel %vm134, %v8206, 0.0
  %8223 = vadd.xlane.f32.xlu0 %v8222
  %v8224 = vpop.xlane.xlu0 %8223
  %v8225 = vsel %vm134, %v8207, 0.0
  %8226 = vadd.xlane.f32.xlu0 %v8225
  %v8227 = vpop.xlane.xlu0 %8226
  %v8228 = vsel %vm134, %v8208, 0.0
  %8229 = vadd.xlane.f32.xlu0 %v8228
  %v8230 = vpop.xlane.xlu0 %8229
  %v8231 = vsel %vm134, %v8209, 0.0
  %8232 = vadd.xlane.f32.xlu0 %v8231
  %v8233 = vpop.xlane.xlu0 %8232
  %v8234 = vld [vmem:[#allocation4] sm:$0xff]
  %v8236 = vlaneseq
  %v8237 = vshrl.u32 %v8236, 7
  %v8238 = vsub.s32 0, %v8237
  %v8239 = vrot.slane %v8234, %v8238
  %8241 = vbcast.lane.b32.xlu0 %v8239, 256
  %v8242 = vpop.permute.xlu0 %8241
  %v8243 = vlaneseq
  %v8244 = vshrl.u32 %v8243, 7
  %v8245 = vsub.s32 1, %v8244
  %v8246 = vrot.slane %v8234, %v8245
  %8248 = vbcast.lane.b32.xlu0 %v8246, 256
  %v8249 = vpop.permute.xlu0 %8248
  %v8250 = vlaneseq
  %v8251 = vshrl.u32 %v8250, 7
  %v8252 = vsub.s32 2, %v8251
  %v8253 = vrot.slane %v8234, %v8252
  %8255 = vbcast.lane.b32.xlu0 %v8253, 256
  %v8256 = vpop.permute.xlu0 %8255
  %v8257 = vlaneseq
  %v8258 = vshrl.u32 %v8257, 7
  %v8259 = vsub.s32 3, %v8258
  %v8260 = vrot.slane %v8234, %v8259
  %8262 = vbcast.lane.b32.xlu0 %v8260, 256
  %v8263 = vpop.permute.xlu0 %8262
  %v8264 = vlaneseq
  %v8265 = vshrl.u32 %v8264, 7
  %v8266 = vsub.s32 4, %v8265
  %v8267 = vrot.slane %v8234, %v8266
  %8269 = vbcast.lane.b32.xlu0 %v8267, 256
  %v8270 = vpop.permute.xlu0 %8269
  %v8271 = vlaneseq
  %v8272 = vshrl.u32 %v8271, 7
  %v8273 = vsub.s32 5, %v8272
  %v8274 = vrot.slane %v8234, %v8273
  %8276 = vbcast.lane.b32.xlu0 %v8274, 256
  %v8277 = vpop.permute.xlu0 %8276
  %v8278 = vlaneseq
  %v8279 = vshrl.u32 %v8278, 7
  %v8280 = vsub.s32 6, %v8279
  %v8281 = vrot.slane %v8234, %v8280
  %8283 = vbcast.lane.b32.xlu0 %v8281, 256
  %v8284 = vpop.permute.xlu0 %8283
  %v8285 = vlaneseq
  %v8286 = vshrl.u32 %v8285, 7
  %v8287 = vsub.s32 7, %v8286
  %v8288 = vrot.slane %v8234, %v8287
  %8290 = vbcast.lane.b32.xlu0 %v8288, 256
  %v8291 = vpop.permute.xlu0 %8290
  %v8300 = vadd.f32 %v8212, %v8242
  %v8301 = vadd.f32 %v8215, %v8249
  %v8302 = vadd.f32 %v8218, %v8256
  %v8303 = vadd.f32 %v8221, %v8263
  %v8304 = vadd.f32 %v8224, %v8270
  %v8305 = vadd.f32 %v8227, %v8277
  %v8306 = vadd.f32 %v8230, %v8284
  %v8307 = vadd.f32 %v8233, %v8291
  %v8308 = vmul.f32 %v8300, 1.442695
  %v8309 = vpow.pop %v8308
  %v8310 = vmul.f32 %v8301, 1.442695
  %v8311 = vpow.pop %v8310
  %v8312 = vmul.f32 %v8302, 1.442695
  %v8313 = vpow.pop %v8312
  %v8314 = vmul.f32 %v8303, 1.442695
  %v8315 = vpow.pop %v8314
  %v8316 = vmul.f32 %v8304, 1.442695
  %v8317 = vpow.pop %v8316
  %v8318 = vmul.f32 %v8305, 1.442695
  %v8319 = vpow.pop %v8318
  %v8320 = vmul.f32 %v8306, 1.442695
  %v8321 = vpow.pop %v8320
  %v8322 = vmul.f32 %v8307, 1.442695
  %v8323 = vpow.pop %v8322
  %8332 = vset.pattern.permute.xlu0 0
  %8333 = vperm.xlu0 %8332, %v8309
  %v8334 = vpop.permute.xlu0 %8333
  %8335 = vset.pattern.permute.xlu0 0
  %8336 = vperm.xlu0 %8335, %v8311
  %v8337 = vpop.permute.xlu0 %8336
  %8338 = vset.pattern.permute.xlu0 0
  %8339 = vperm.xlu0 %8338, %v8313
  %v8340 = vpop.permute.xlu0 %8339
  %8341 = vset.pattern.permute.xlu0 0
  %8342 = vperm.xlu0 %8341, %v8315
  %v8343 = vpop.permute.xlu0 %8342
  %8344 = vset.pattern.permute.xlu0 0
  %8345 = vperm.xlu0 %8344, %v8317
  %v8346 = vpop.permute.xlu0 %8345
  %8347 = vset.pattern.permute.xlu0 0
  %8348 = vperm.xlu0 %8347, %v8319
  %v8349 = vpop.permute.xlu0 %8348
  %8350 = vset.pattern.permute.xlu0 0
  %8351 = vperm.xlu0 %8350, %v8321
  %v8352 = vpop.permute.xlu0 %8351
  %8353 = vset.pattern.permute.xlu0 0
  %8354 = vperm.xlu0 %8353, %v8323
  %v8355 = vpop.permute.xlu0 %8354
  %v8356 = vlaneseq
  %v8357 = vshrl.u32 %v8356, 7
  %v8358 = vsub.s32 %v937, %v8357
  %v8359 = vrot.slane %v8334, %v8358
  %v8360 = vlaneseq
  %v8361 = vshrl.u32 %v8360, 7
  %v8362 = vsub.s32 %v937, %v8361
  %v8363 = vrot.slane %v8337, %v8362
  %v8364 = vlaneseq
  %v8365 = vshrl.u32 %v8364, 7
  %v8366 = vsub.s32 %v937, %v8365
  %v8367 = vrot.slane %v8340, %v8366
  %v8368 = vlaneseq
  %v8369 = vshrl.u32 %v8368, 7
  %v8370 = vsub.s32 %v937, %v8369
  %v8371 = vrot.slane %v8343, %v8370
  %v8372 = vlaneseq
  %v8373 = vshrl.u32 %v8372, 7
  %v8374 = vsub.s32 %v937, %v8373
  %v8375 = vrot.slane %v8346, %v8374
  %v8376 = vlaneseq
  %v8377 = vshrl.u32 %v8376, 7
  %v8378 = vsub.s32 %v937, %v8377
  %v8379 = vrot.slane %v8349, %v8378
  %v8380 = vlaneseq
  %v8381 = vshrl.u32 %v8380, 7
  %v8382 = vsub.s32 %v937, %v8381
  %v8383 = vrot.slane %v8352, %v8382
  %v8384 = vlaneseq
  %v8385 = vshrl.u32 %v8384, 7
  %v8386 = vsub.s32 %v937, %v8385
  %v8387 = vrot.slane %v8355, %v8386
  %v8388 = vsel %vm970, %v8363, %v8359
  %v8389 = vsel %vm972, %v8367, %v8388
  %v8390 = vsel %vm974, %v8371, %v8389
  %v8391 = vsel %vm976, %v8375, %v8390
  %v8392 = vsel %vm978, %v8379, %v8391
  %v8393 = vsel %vm980, %v8383, %v8392
  %v8394 = vsel %vm982, %v8387, %v8393
  %v8396 = vsel %vm452, %v8394, 0.0
  %8397 = vadd.xlane.f32.xlu0 %v8396
  %v8398 = vpop.xlane.xlu0 %8397
  %v8399 = vmax.f32 %v8398, 1e-30
  %v8400 = vrcp.pop %v8399
  %v8402 = vlaneseq
  %v8403 = vshrl.u32 %v8402, 7
  %v8404 = vsub.s32 0, %v8403
  %v8405 = vrot.slane %v8400, %v8404
  %v8406 = vlaneseq
  %v8407 = vshrl.u32 %v8406, 7
  %v8408 = vsub.s32 1, %v8407
  %v8409 = vrot.slane %v8400, %v8408
  %v8410 = vlaneseq
  %v8411 = vshrl.u32 %v8410, 7
  %v8412 = vsub.s32 2, %v8411
  %v8413 = vrot.slane %v8400, %v8412
  %v8414 = vlaneseq
  %v8415 = vshrl.u32 %v8414, 7
  %v8416 = vsub.s32 3, %v8415
  %v8417 = vrot.slane %v8400, %v8416
  %v8418 = vlaneseq
  %v8419 = vshrl.u32 %v8418, 7
  %v8420 = vsub.s32 4, %v8419
  %v8421 = vrot.slane %v8400, %v8420
  %v8422 = vlaneseq
  %v8423 = vshrl.u32 %v8422, 7
  %v8424 = vsub.s32 5, %v8423
  %v8425 = vrot.slane %v8400, %v8424
  %v8426 = vlaneseq
  %v8427 = vshrl.u32 %v8426, 7
  %v8428 = vsub.s32 6, %v8427
  %v8429 = vrot.slane %v8400, %v8428
  %v8430 = vlaneseq
  %v8431 = vshrl.u32 %v8430, 7
  %v8432 = vsub.s32 7, %v8431
  %v8433 = vrot.slane %v8400, %v8432
  %v8442 = vmul.f32 %v8309, %v8405
  %v8443 = vmul.f32 %v8311, %v8409
  %v8444 = vmul.f32 %v8313, %v8413
  %v8445 = vmul.f32 %v8315, %v8417
  %v8446 = vmul.f32 %v8317, %v8421
  %v8447 = vmul.f32 %v8319, %v8425
  %v8448 = vmul.f32 %v8321, %v8429
  %v8449 = vmul.f32 %v8323, %v8433
  %v8450 = vpack.c.bf16 %v8442, %v8442
  %v8451 = vpack.c.bf16 %v8443, %v8443
  %v8452 = vpack.c.bf16 %v8444, %v8444
  %v8453 = vpack.c.bf16 %v8445, %v8445
  %v8454 = vpack.c.bf16 %v8446, %v8446
  %v8455 = vpack.c.bf16 %v8447, %v8447
  %v8456 = vpack.c.bf16 %v8448, %v8448
  %v8457 = vpack.c.bf16 %v8449, %v8449
  %v8458 = vld [vmem:[%s2] sm:$0xf]
  %v8459 = vld [vmem:[%s2 + $0x4] sm:$0xf]
  %v8460 = vld [vmem:[%s2 + $0x8] sm:$0xf]
  %v8461 = vld [vmem:[%s2 + $0xc] sm:$0xf]
  %v8462 = vld [vmem:[%s2 + $0x10] sm:$0xf]
  %v8463 = vld [vmem:[%s2 + $0x14] sm:$0xf]
  %v8464 = vld [vmem:[%s2 + $0x18] sm:$0xf]
  %v8465 = vld [vmem:[%s2 + $0x1c] sm:$0xf]
  %v8467 = vunpack.c.l.b16 %v8450
  %8468 = vset.pattern.permute.xlu0 0
  %8469 = vperm.xlu0 %8468, %v8467
  %v8470 = vpop.permute.xlu0 %8469
  %v8471 = vlaneseq
  %v8472 = vshrl.u32 %v8471, 7
  %v8473 = vsub.s32 %v937, %v8472
  %v8474 = vrot.slane %v8470, %v8473
  %v8475 = vpack.c.b16 %v8474, %v8474
  %v8477 = vsel %vm452, %v8475, 0
  %v8480 = vsel %vm1068, %v8458, 0
  %8482 = vmatprep.subr.bf16.mxu0 0
  %8483 = vmatpush1.bf16.msra.mxu0 0
  %8484 = vmatprep.subr.bf16.mxu0 0
  %8485 = vmatpush1.bf16.msra.mxu0 0
  %8486 = vmatprep.subr.bf16.mxu0 0
  %8487 = vmatpush1.bf16.msra.mxu0 0
  %8488 = vmatprep.subr.bf16.mxu0 0
  %8489 = vmatpush1.bf16.msra.mxu0 0
  %8490 = vmatprep.subr.bf16.mxu0 0
  %8491 = vmatpush1.bf16.msra.mxu0 0
  %8492 = vmatprep.subr.bf16.mxu0 0
  %8493 = vmatpush1.bf16.msra.mxu0 0
  %8494 = vmatprep.subr.bf16.mxu0 0
  %8495 = vmatpush1.bf16.msra.mxu0 0
  %8496 = vmatprep.subr.bf16.mxu0 0
  %8497 = vmatpush1.bf16.msra.mxu0 %v8480
  %8498 = vmatprep.subr.bf16.mxu0 0
  %8499 = vmatpush2.bf16.msra.mxu0 0
  %8500 = vmatprep.subr.bf16.mxu0 0
  %8501 = vmatpush2.bf16.msra.mxu0 0
  %8502 = vmatprep.subr.bf16.mxu0 0
  %8503 = vmatpush2.bf16.msra.mxu0 0
  %8504 = vmatprep.subr.bf16.mxu0 0
  %8505 = vmatpush2.bf16.msra.mxu0 0
  %8506 = vmatprep.subr.bf16.mxu0 0
  %8507 = vmatpush2.bf16.msra.mxu0 0
  %8508 = vmatprep.subr.bf16.mxu0 0
  %8509 = vmatpush2.bf16.msra.mxu0 0
  %8510 = vmatprep.subr.bf16.mxu0 0
  %8511 = vmatpush2.bf16.msra.mxu0 0
  %8512 = vmatprep.subr.bf16.mxu0 0
  %8513 = vmatpush2.bf16.msra.mxu0 0
  %8514 = vmatprep.mubr.bf16.mxu0 0
  %8515 = vmatmul.mubr.bf16.gmra.mxu0 %v8477
  %v8516 = vpop.f32.mrf.mxu0
  %v8517 = vadd.f32 0.0, %v8516
  %v8518 = vpop.f32.mrf.mxu0
  %v8519 = vpop.f32.mrf.mxu0
  %v8520 = vpop.f32.mrf.mxu0
  %8521 = vdwg.mxu0
  %v8523 = vunpack.c.l.b16 %v8451
  %8524 = vset.pattern.permute.xlu0 0
  %8525 = vperm.xlu0 %8524, %v8523
  %v8526 = vpop.permute.xlu0 %8525
  %v8527 = vlaneseq
  %v8528 = vshrl.u32 %v8527, 7
  %v8529 = vsub.s32 %v937, %v8528
  %v8530 = vrot.slane %v8526, %v8529
  %v8531 = vpack.c.b16 %v8530, %v8530
  %v8533 = vsel %vm452, %v8531, 0
  %v8536 = vsel %vm1068, %v8459, 0
  %8538 = vmatprep.subr.bf16.mxu0 0
  %8539 = vmatpush1.bf16.msra.mxu0 0
  %8540 = vmatprep.subr.bf16.mxu0 0
  %8541 = vmatpush1.bf16.msra.mxu0 0
  %8542 = vmatprep.subr.bf16.mxu0 0
  %8543 = vmatpush1.bf16.msra.mxu0 0
  %8544 = vmatprep.subr.bf16.mxu0 0
  %8545 = vmatpush1.bf16.msra.mxu0 0
  %8546 = vmatprep.subr.bf16.mxu0 0
  %8547 = vmatpush1.bf16.msra.mxu0 0
  %8548 = vmatprep.subr.bf16.mxu0 0
  %8549 = vmatpush1.bf16.msra.mxu0 0
  %8550 = vmatprep.subr.bf16.mxu0 0
  %8551 = vmatpush1.bf16.msra.mxu0 0
  %8552 = vmatprep.subr.bf16.mxu0 0
  %8553 = vmatpush1.bf16.msra.mxu0 %v8536
  %8554 = vmatprep.subr.bf16.mxu0 0
  %8555 = vmatpush2.bf16.msra.mxu0 0
  %8556 = vmatprep.subr.bf16.mxu0 0
  %8557 = vmatpush2.bf16.msra.mxu0 0
  %8558 = vmatprep.subr.bf16.mxu0 0
  %8559 = vmatpush2.bf16.msra.mxu0 0
  %8560 = vmatprep.subr.bf16.mxu0 0
  %8561 = vmatpush2.bf16.msra.mxu0 0
  %8562 = vmatprep.subr.bf16.mxu0 0
  %8563 = vmatpush2.bf16.msra.mxu0 0
  %8564 = vmatprep.subr.bf16.mxu0 0
  %8565 = vmatpush2.bf16.msra.mxu0 0
  %8566 = vmatprep.subr.bf16.mxu0 0
  %8567 = vmatpush2.bf16.msra.mxu0 0
  %8568 = vmatprep.subr.bf16.mxu0 0
  %8569 = vmatpush2.bf16.msra.mxu0 0
  %8570 = vmatprep.mubr.bf16.mxu0 0
  %8571 = vmatmul.mubr.bf16.gmra.mxu0 %v8533
  %v8572 = vpop.f32.mrf.mxu0
  %v8573 = vadd.f32 0.0, %v8572
  %v8574 = vpop.f32.mrf.mxu0
  %v8575 = vpop.f32.mrf.mxu0
  %v8576 = vpop.f32.mrf.mxu0
  %8577 = vdwg.mxu0
  %v8579 = vunpack.c.l.b16 %v8452
  %8580 = vset.pattern.permute.xlu0 0
  %8581 = vperm.xlu0 %8580, %v8579
  %v8582 = vpop.permute.xlu0 %8581
  %v8583 = vlaneseq
  %v8584 = vshrl.u32 %v8583, 7
  %v8585 = vsub.s32 %v937, %v8584
  %v8586 = vrot.slane %v8582, %v8585
  %v8587 = vpack.c.b16 %v8586, %v8586
  %v8589 = vsel %vm452, %v8587, 0
  %v8592 = vsel %vm1068, %v8460, 0
  %8594 = vmatprep.subr.bf16.mxu0 0
  %8595 = vmatpush1.bf16.msra.mxu0 0
  %8596 = vmatprep.subr.bf16.mxu0 0
  %8597 = vmatpush1.bf16.msra.mxu0 0
  %8598 = vmatprep.subr.bf16.mxu0 0
  %8599 = vmatpush1.bf16.msra.mxu0 0
  %8600 = vmatprep.subr.bf16.mxu0 0
  %8601 = vmatpush1.bf16.msra.mxu0 0
  %8602 = vmatprep.subr.bf16.mxu0 0
  %8603 = vmatpush1.bf16.msra.mxu0 0
  %8604 = vmatprep.subr.bf16.mxu0 0
  %8605 = vmatpush1.bf16.msra.mxu0 0
  %8606 = vmatprep.subr.bf16.mxu0 0
  %8607 = vmatpush1.bf16.msra.mxu0 0
  %8608 = vmatprep.subr.bf16.mxu0 0
  %8609 = vmatpush1.bf16.msra.mxu0 %v8592
  %8610 = vmatprep.subr.bf16.mxu0 0
  %8611 = vmatpush2.bf16.msra.mxu0 0
  %8612 = vmatprep.subr.bf16.mxu0 0
  %8613 = vmatpush2.bf16.msra.mxu0 0
  %8614 = vmatprep.subr.bf16.mxu0 0
  %8615 = vmatpush2.bf16.msra.mxu0 0
  %8616 = vmatprep.subr.bf16.mxu0 0
  %8617 = vmatpush2.bf16.msra.mxu0 0
  %8618 = vmatprep.subr.bf16.mxu0 0
  %8619 = vmatpush2.bf16.msra.mxu0 0
  %8620 = vmatprep.subr.bf16.mxu0 0
  %8621 = vmatpush2.bf16.msra.mxu0 0
  %8622 = vmatprep.subr.bf16.mxu0 0
  %8623 = vmatpush2.bf16.msra.mxu0 0
  %8624 = vmatprep.subr.bf16.mxu0 0
  %8625 = vmatpush2.bf16.msra.mxu0 0
  %8626 = vmatprep.mubr.bf16.mxu0 0
  %8627 = vmatmul.mubr.bf16.gmra.mxu0 %v8589
  %v8628 = vpop.f32.mrf.mxu0
  %v8629 = vadd.f32 0.0, %v8628
  %v8630 = vpop.f32.mrf.mxu0
  %v8631 = vpop.f32.mrf.mxu0
  %v8632 = vpop.f32.mrf.mxu0
  %8633 = vdwg.mxu0
  %v8635 = vunpack.c.l.b16 %v8453
  %8636 = vset.pattern.permute.xlu0 0
  %8637 = vperm.xlu0 %8636, %v8635
  %v8638 = vpop.permute.xlu0 %8637
  %v8639 = vlaneseq
  %v8640 = vshrl.u32 %v8639, 7
  %v8641 = vsub.s32 %v937, %v8640
  %v8642 = vrot.slane %v8638, %v8641
  %v8643 = vpack.c.b16 %v8642, %v8642
  %v8645 = vsel %vm452, %v8643, 0
  %v8648 = vsel %vm1068, %v8461, 0
  %8650 = vmatprep.subr.bf16.mxu0 0
  %8651 = vmatpush1.bf16.msra.mxu0 0
  %8652 = vmatprep.subr.bf16.mxu0 0
  %8653 = vmatpush1.bf16.msra.mxu0 0
  %8654 = vmatprep.subr.bf16.mxu0 0
  %8655 = vmatpush1.bf16.msra.mxu0 0
  %8656 = vmatprep.subr.bf16.mxu0 0
  %8657 = vmatpush1.bf16.msra.mxu0 0
  %8658 = vmatprep.subr.bf16.mxu0 0
  %8659 = vmatpush1.bf16.msra.mxu0 0
  %8660 = vmatprep.subr.bf16.mxu0 0
  %8661 = vmatpush1.bf16.msra.mxu0 0
  %8662 = vmatprep.subr.bf16.mxu0 0
  %8663 = vmatpush1.bf16.msra.mxu0 0
  %8664 = vmatprep.subr.bf16.mxu0 0
  %8665 = vmatpush1.bf16.msra.mxu0 %v8648
  %8666 = vmatprep.subr.bf16.mxu0 0
  %8667 = vmatpush2.bf16.msra.mxu0 0
  %8668 = vmatprep.subr.bf16.mxu0 0
  %8669 = vmatpush2.bf16.msra.mxu0 0
  %8670 = vmatprep.subr.bf16.mxu0 0
  %8671 = vmatpush2.bf16.msra.mxu0 0
  %8672 = vmatprep.subr.bf16.mxu0 0
  %8673 = vmatpush2.bf16.msra.mxu0 0
  %8674 = vmatprep.subr.bf16.mxu0 0
  %8675 = vmatpush2.bf16.msra.mxu0 0
  %8676 = vmatprep.subr.bf16.mxu0 0
  %8677 = vmatpush2.bf16.msra.mxu0 0
  %8678 = vmatprep.subr.bf16.mxu0 0
  %8679 = vmatpush2.bf16.msra.mxu0 0
  %8680 = vmatprep.subr.bf16.mxu0 0
  %8681 = vmatpush2.bf16.msra.mxu0 0
  %8682 = vmatprep.mubr.bf16.mxu0 0
  %8683 = vmatmul.mubr.bf16.gmra.mxu0 %v8645
  %v8684 = vpop.f32.mrf.mxu0
  %v8685 = vadd.f32 0.0, %v8684
  %v8686 = vpop.f32.mrf.mxu0
  %v8687 = vpop.f32.mrf.mxu0
  %v8688 = vpop.f32.mrf.mxu0
  %8689 = vdwg.mxu0
  %v8691 = vunpack.c.l.b16 %v8454
  %8692 = vset.pattern.permute.xlu0 0
  %8693 = vperm.xlu0 %8692, %v8691
  %v8694 = vpop.permute.xlu0 %8693
  %v8695 = vlaneseq
  %v8696 = vshrl.u32 %v8695, 7
  %v8697 = vsub.s32 %v937, %v8696
  %v8698 = vrot.slane %v8694, %v8697
  %v8699 = vpack.c.b16 %v8698, %v8698
  %v8701 = vsel %vm452, %v8699, 0
  %v8704 = vsel %vm1068, %v8462, 0
  %8706 = vmatprep.subr.bf16.mxu0 0
  %8707 = vmatpush1.bf16.msra.mxu0 0
  %8708 = vmatprep.subr.bf16.mxu0 0
  %8709 = vmatpush1.bf16.msra.mxu0 0
  %8710 = vmatprep.subr.bf16.mxu0 0
  %8711 = vmatpush1.bf16.msra.mxu0 0
  %8712 = vmatprep.subr.bf16.mxu0 0
  %8713 = vmatpush1.bf16.msra.mxu0 0
  %8714 = vmatprep.subr.bf16.mxu0 0
  %8715 = vmatpush1.bf16.msra.mxu0 0
  %8716 = vmatprep.subr.bf16.mxu0 0
  %8717 = vmatpush1.bf16.msra.mxu0 0
  %8718 = vmatprep.subr.bf16.mxu0 0
  %8719 = vmatpush1.bf16.msra.mxu0 0
  %8720 = vmatprep.subr.bf16.mxu0 0
  %8721 = vmatpush1.bf16.msra.mxu0 %v8704
  %8722 = vmatprep.subr.bf16.mxu0 0
  %8723 = vmatpush2.bf16.msra.mxu0 0
  %8724 = vmatprep.subr.bf16.mxu0 0
  %8725 = vmatpush2.bf16.msra.mxu0 0
  %8726 = vmatprep.subr.bf16.mxu0 0
  %8727 = vmatpush2.bf16.msra.mxu0 0
  %8728 = vmatprep.subr.bf16.mxu0 0
  %8729 = vmatpush2.bf16.msra.mxu0 0
  %8730 = vmatprep.subr.bf16.mxu0 0
  %8731 = vmatpush2.bf16.msra.mxu0 0
  %8732 = vmatprep.subr.bf16.mxu0 0
  %8733 = vmatpush2.bf16.msra.mxu0 0
  %8734 = vmatprep.subr.bf16.mxu0 0
  %8735 = vmatpush2.bf16.msra.mxu0 0
  %8736 = vmatprep.subr.bf16.mxu0 0
  %8737 = vmatpush2.bf16.msra.mxu0 0
  %8738 = vmatprep.mubr.bf16.mxu0 0
  %8739 = vmatmul.mubr.bf16.gmra.mxu0 %v8701
  %v8740 = vpop.f32.mrf.mxu0
  %v8741 = vadd.f32 0.0, %v8740
  %v8742 = vpop.f32.mrf.mxu0
  %v8743 = vpop.f32.mrf.mxu0
  %v8744 = vpop.f32.mrf.mxu0
  %8745 = vdwg.mxu0
  %v8747 = vunpack.c.l.b16 %v8455
  %8748 = vset.pattern.permute.xlu0 0
  %8749 = vperm.xlu0 %8748, %v8747
  %v8750 = vpop.permute.xlu0 %8749
  %v8751 = vlaneseq
  %v8752 = vshrl.u32 %v8751, 7
  %v8753 = vsub.s32 %v937, %v8752
  %v8754 = vrot.slane %v8750, %v8753
  %v8755 = vpack.c.b16 %v8754, %v8754
  %v8757 = vsel %vm452, %v8755, 0
  %v8760 = vsel %vm1068, %v8463, 0
  %8762 = vmatprep.subr.bf16.mxu0 0
  %8763 = vmatpush1.bf16.msra.mxu0 0
  %8764 = vmatprep.subr.bf16.mxu0 0
  %8765 = vmatpush1.bf16.msra.mxu0 0
  %8766 = vmatprep.subr.bf16.mxu0 0
  %8767 = vmatpush1.bf16.msra.mxu0 0
  %8768 = vmatprep.subr.bf16.mxu0 0
  %8769 = vmatpush1.bf16.msra.mxu0 0
  %8770 = vmatprep.subr.bf16.mxu0 0
  %8771 = vmatpush1.bf16.msra.mxu0 0
  %8772 = vmatprep.subr.bf16.mxu0 0
  %8773 = vmatpush1.bf16.msra.mxu0 0
  %8774 = vmatprep.subr.bf16.mxu0 0
  %8775 = vmatpush1.bf16.msra.mxu0 0
  %8776 = vmatprep.subr.bf16.mxu0 0
  %8777 = vmatpush1.bf16.msra.mxu0 %v8760
  %8778 = vmatprep.subr.bf16.mxu0 0
  %8779 = vmatpush2.bf16.msra.mxu0 0
  %8780 = vmatprep.subr.bf16.mxu0 0
  %8781 = vmatpush2.bf16.msra.mxu0 0
  %8782 = vmatprep.subr.bf16.mxu0 0
  %8783 = vmatpush2.bf16.msra.mxu0 0
  %8784 = vmatprep.subr.bf16.mxu0 0
  %8785 = vmatpush2.bf16.msra.mxu0 0
  %8786 = vmatprep.subr.bf16.mxu0 0
  %8787 = vmatpush2.bf16.msra.mxu0 0
  %8788 = vmatprep.subr.bf16.mxu0 0
  %8789 = vmatpush2.bf16.msra.mxu0 0
  %8790 = vmatprep.subr.bf16.mxu0 0
  %8791 = vmatpush2.bf16.msra.mxu0 0
  %8792 = vmatprep.subr.bf16.mxu0 0
  %8793 = vmatpush2.bf16.msra.mxu0 0
  %8794 = vmatprep.mubr.bf16.mxu0 0
  %8795 = vmatmul.mubr.bf16.gmra.mxu0 %v8757
  %v8796 = vpop.f32.mrf.mxu0
  %v8797 = vadd.f32 0.0, %v8796
  %v8798 = vpop.f32.mrf.mxu0
  %v8799 = vpop.f32.mrf.mxu0
  %v8800 = vpop.f32.mrf.mxu0
  %8801 = vdwg.mxu0
  %v8803 = vunpack.c.l.b16 %v8456
  %8804 = vset.pattern.permute.xlu0 0
  %8805 = vperm.xlu0 %8804, %v8803
  %v8806 = vpop.permute.xlu0 %8805
  %v8807 = vlaneseq
  %v8808 = vshrl.u32 %v8807, 7
  %v8809 = vsub.s32 %v937, %v8808
  %v8810 = vrot.slane %v8806, %v8809
  %v8811 = vpack.c.b16 %v8810, %v8810
  %v8813 = vsel %vm452, %v8811, 0
  %v8816 = vsel %vm1068, %v8464, 0
  %8818 = vmatprep.subr.bf16.mxu0 0
  %8819 = vmatpush1.bf16.msra.mxu0 0
  %8820 = vmatprep.subr.bf16.mxu0 0
  %8821 = vmatpush1.bf16.msra.mxu0 0
  %8822 = vmatprep.subr.bf16.mxu0 0
  %8823 = vmatpush1.bf16.msra.mxu0 0
  %8824 = vmatprep.subr.bf16.mxu0 0
  %8825 = vmatpush1.bf16.msra.mxu0 0
  %8826 = vmatprep.subr.bf16.mxu0 0
  %8827 = vmatpush1.bf16.msra.mxu0 0
  %8828 = vmatprep.subr.bf16.mxu0 0
  %8829 = vmatpush1.bf16.msra.mxu0 0
  %8830 = vmatprep.subr.bf16.mxu0 0
  %8831 = vmatpush1.bf16.msra.mxu0 0
  %8832 = vmatprep.subr.bf16.mxu0 0
  %8833 = vmatpush1.bf16.msra.mxu0 %v8816
  %8834 = vmatprep.subr.bf16.mxu0 0
  %8835 = vmatpush2.bf16.msra.mxu0 0
  %8836 = vmatprep.subr.bf16.mxu0 0
  %8837 = vmatpush2.bf16.msra.mxu0 0
  %8838 = vmatprep.subr.bf16.mxu0 0
  %8839 = vmatpush2.bf16.msra.mxu0 0
  %8840 = vmatprep.subr.bf16.mxu0 0
  %8841 = vmatpush2.bf16.msra.mxu0 0
  %8842 = vmatprep.subr.bf16.mxu0 0
  %8843 = vmatpush2.bf16.msra.mxu0 0
  %8844 = vmatprep.subr.bf16.mxu0 0
  %8845 = vmatpush2.bf16.msra.mxu0 0
  %8846 = vmatprep.subr.bf16.mxu0 0
  %8847 = vmatpush2.bf16.msra.mxu0 0
  %8848 = vmatprep.subr.bf16.mxu0 0
  %8849 = vmatpush2.bf16.msra.mxu0 0
  %8850 = vmatprep.mubr.bf16.mxu0 0
  %8851 = vmatmul.mubr.bf16.gmra.mxu0 %v8813
  %v8852 = vpop.f32.mrf.mxu0
  %v8853 = vadd.f32 0.0, %v8852
  %v8854 = vpop.f32.mrf.mxu0
  %v8855 = vpop.f32.mrf.mxu0
  %v8856 = vpop.f32.mrf.mxu0
  %8857 = vdwg.mxu0
  %v8859 = vunpack.c.l.b16 %v8457
  %8860 = vset.pattern.permute.xlu0 0
  %8861 = vperm.xlu0 %8860, %v8859
  %v8862 = vpop.permute.xlu0 %8861
  %v8863 = vlaneseq
  %v8864 = vshrl.u32 %v8863, 7
  %v8865 = vsub.s32 %v937, %v8864
  %v8866 = vrot.slane %v8862, %v8865
  %v8867 = vpack.c.b16 %v8866, %v8866
  %v8869 = vsel %vm452, %v8867, 0
  %v8872 = vsel %vm1068, %v8465, 0
  %8874 = vmatprep.subr.bf16.mxu0 0
  %8875 = vmatpush1.bf16.msra.mxu0 0
  %8876 = vmatprep.subr.bf16.mxu0 0
  %8877 = vmatpush1.bf16.msra.mxu0 0
  %8878 = vmatprep.subr.bf16.mxu0 0
  %8879 = vmatpush1.bf16.msra.mxu0 0
  %8880 = vmatprep.subr.bf16.mxu0 0
  %8881 = vmatpush1.bf16.msra.mxu0 0
  %8882 = vmatprep.subr.bf16.mxu0 0
  %8883 = vmatpush1.bf16.msra.mxu0 0
  %8884 = vmatprep.subr.bf16.mxu0 0
  %8885 = vmatpush1.bf16.msra.mxu0 0
  %8886 = vmatprep.subr.bf16.mxu0 0
  %8887 = vmatpush1.bf16.msra.mxu0 0
  %8888 = vmatprep.subr.bf16.mxu0 0
  %8889 = vmatpush1.bf16.msra.mxu0 %v8872
  %8890 = vmatprep.subr.bf16.mxu0 0
  %8891 = vmatpush2.bf16.msra.mxu0 0
  %8892 = vmatprep.subr.bf16.mxu0 0
  %8893 = vmatpush2.bf16.msra.mxu0 0
  %8894 = vmatprep.subr.bf16.mxu0 0
  %8895 = vmatpush2.bf16.msra.mxu0 0
  %8896 = vmatprep.subr.bf16.mxu0 0
  %8897 = vmatpush2.bf16.msra.mxu0 0
  %8898 = vmatprep.subr.bf16.mxu0 0
  %8899 = vmatpush2.bf16.msra.mxu0 0
  %8900 = vmatprep.subr.bf16.mxu0 0
  %8901 = vmatpush2.bf16.msra.mxu0 0
  %8902 = vmatprep.subr.bf16.mxu0 0
  %8903 = vmatpush2.bf16.msra.mxu0 0
  %8904 = vmatprep.subr.bf16.mxu0 0
  %8905 = vmatpush2.bf16.msra.mxu0 0
  %8906 = vmatprep.mubr.bf16.mxu0 0
  %8907 = vmatmul.mubr.bf16.gmra.mxu0 %v8869
  %v8908 = vpop.f32.mrf.mxu0
  %v8909 = vadd.f32 0.0, %v8908
  %v8910 = vpop.f32.mrf.mxu0
  %v8911 = vpop.f32.mrf.mxu0
  %v8912 = vpop.f32.mrf.mxu0
  %8913 = vdwg.mxu0
  %v8914 = vld [vmem:[%s15] sm:$0xff]
  %v8915 = vld [vmem:[%s15 + $0x8] sm:$0xff]
  %v8916 = vld [vmem:[%s15 + $0x10] sm:$0xff]
  %v8917 = vld [vmem:[%s15 + $0x18] sm:$0xff]
  %v8918 = vld [vmem:[%s16] sm:$0x1]
  %v8920 = vlaneseq
  %v8921 = vshrl.u32 %v8920, 7
  %v8922 = vsub.s32 0, %v8921
  %v8923 = vrot.slane %v8918, %v8922
  %v8933 = vrot.slane %v8573, 7
  %v8934 = vsel %vm970, %v8933, %v8517
  %v8935 = vrot.slane %v8629, 6
  %v8936 = vsel %vm972, %v8935, %v8934
  %v8937 = vrot.slane %v8685, 5
  %v8938 = vsel %vm974, %v8937, %v8936
  %v8939 = vrot.slane %v8741, 4
  %v8940 = vsel %vm976, %v8939, %v8938
  %v8941 = vrot.slane %v8797, 3
  %v8942 = vsel %vm978, %v8941, %v8940
  %v8943 = vrot.slane %v8853, 2
  %v8944 = vsel %vm980, %v8943, %v8942
  %v8945 = vrot.slane %v8909, 1
  %v8946 = vsel %vm982, %v8945, %v8944
  %v8947 = vsel %vm134, %v8946, 0
  %8949 = vmatprep.subr.mxu0 0.0
  %8950 = vmatpush1.msra.mxu0 0.0
  %8951 = vmatprep.subr.mxu0 0.0
  %8952 = vmatpush1.msra.mxu0 0.0
  %8953 = vmatprep.subr.mxu0 0.0
  %8954 = vmatpush1.msra.mxu0 0.0
  %8955 = vmatprep.subr.mxu0 0.0
  %8956 = vmatpush1.msra.mxu0 0.0
  %8957 = vmatprep.subr.mxu0 0.0
  %8958 = vmatpush1.msra.mxu0 0.0
  %8959 = vmatprep.subr.mxu0 0.0
  %8960 = vmatpush1.msra.mxu0 0.0
  %8961 = vmatprep.subr.mxu0 0.0
  %8962 = vmatpush1.msra.mxu0 0.0
  %8963 = vmatprep.subr.mxu0 0.0
  %8964 = vmatpush1.msra.mxu0 0.0
  %8965 = vmatprep.subr.mxu0 0.0
  %8966 = vmatpush1.msra.mxu0 0.0
  %8967 = vmatprep.subr.mxu0 0.0
  %8968 = vmatpush1.msra.mxu0 0.0
  %8969 = vmatprep.subr.mxu0 0.0
  %8970 = vmatpush1.msra.mxu0 0.0
  %8971 = vmatprep.subr.mxu0 0.0
  %8972 = vmatpush1.msra.mxu0 0.0
  %8973 = vmatprep.subr.mxu0 0.0
  %8974 = vmatpush1.msra.mxu0 %v8917
  %8975 = vmatprep.subr.mxu0 0.0
  %8976 = vmatpush1.msra.mxu0 %v8916
  %8977 = vmatprep.subr.mxu0 0.0
  %8978 = vmatpush1.msra.mxu0 %v8915
  %8979 = vmatprep.subr.mxu0 0.0
  %8980 = vmatpush1.msra.mxu0 %v8914
  %8981 = vmatprep.subr.mxu0 0.0
  %8982 = vmatpush2.msra.mxu0 0.0
  %8983 = vmatprep.subr.mxu0 0.0
  %8984 = vmatpush2.msra.mxu0 0.0
  %8985 = vmatprep.subr.mxu0 0.0
  %8986 = vmatpush2.msra.mxu0 0.0
  %8987 = vmatprep.subr.mxu0 0.0
  %8988 = vmatpush2.msra.mxu0 0.0
  %8989 = vmatprep.subr.mxu0 0.0
  %8990 = vmatpush2.msra.mxu0 0.0
  %8991 = vmatprep.subr.mxu0 0.0
  %8992 = vmatpush2.msra.mxu0 0.0
  %8993 = vmatprep.subr.mxu0 0.0
  %8994 = vmatpush2.msra.mxu0 0.0
  %8995 = vmatprep.subr.mxu0 0.0
  %8996 = vmatpush2.msra.mxu0 0.0
  %8997 = vmatprep.subr.mxu0 0.0
  %8998 = vmatpush2.msra.mxu0 0.0
  %8999 = vmatprep.subr.mxu0 0.0
  %9000 = vmatpush2.msra.mxu0 0.0
  %9001 = vmatprep.subr.mxu0 0.0
  %9002 = vmatpush2.msra.mxu0 0.0
  %9003 = vmatprep.subr.mxu0 0.0
  %9004 = vmatpush2.msra.mxu0 0.0
  %9005 = vmatprep.subr.mxu0 0.0
  %9006 = vmatpush2.msra.mxu0 0.0
  %9007 = vmatprep.subr.mxu0 0.0
  %9008 = vmatpush2.msra.mxu0 0.0
  %9009 = vmatprep.subr.mxu0 0.0
  %9010 = vmatpush2.msra.mxu0 0.0
  %9011 = vmatprep.subr.mxu0 0.0
  %9012 = vmatpush2.msra.mxu0 0.0
  %9013 = vmatprep.mubr.f32.mxu0 0.0
  %9014 = vmatmul.mubr.f32.gmra.mxu0 %v8947
  %v9015 = vpop.f32.mrf.mxu0
  %v9016 = vadd.f32 %v8923, %v9015
  %v9017 = vpop.f32.mrf.mxu0
  %9018 = vdwg.mxu0
  %v9019 = vadd.f32 %v9016, %v8080
  %v9020 = vxor.u32 %v9019, 2147483648
  %v9021 = vmul.f32 %v9020, 1.442695
  %v9022 = vpow.pop %v9021
  %v9023 = vadd.f32 %v9022, 1.0
  %v9024 = vrcp.pop %v9023
  %v9025 = vmul.f32 1.0, %v9024
  %9027 = vrot.lane.b32.xlu0 %v8080, 64
  %v9028 = vpop.permute.xlu0 %9027
  %v9030 = vmul.f32 %v9025, %v9028
  %9032 = vrot.lane.b32.xlu0 %v9030, 64
  %v9033 = vpop.permute.xlu0 %9032
  %v9035 = vadd.f32 %v9016, %v9033
  %v9036 = vtanh.pop %v9035
  %v9037 = vsub.f32 1.0, %v9025
  %9039 = vrot.lane.b32.xlu0 %v9036, 96
  %v9040 = vpop.permute.xlu0 %9039
  %v9042 = vmul.f32 %v9037, %v9040
  %v9043 = vmul.f32 %v9025, %v7988
  %v9044 = vadd.f32 %v9042, %v9043
  %v9045 = vpack.c.bf16 %v9044, %v9044
  %v9047 = vunpack.c.l.b16 %v9045
  %v9048 = vpack.c.b16 %v9047, %v9047
  %9049 = vrot.lane.b32.xlu0 %v9048, 96
  %v9050 = vpop.permute.xlu0 %9049
  %9052 = vst.msk [vmem:[#allocation5 + $0x4c] sm:$0xf] %vm89, %v9050
  %v9053 = vpack.c.bf16 %v8517, %v8517
  %v9054 = vpack.c.bf16 %v8573, %v8573
  %v9055 = vpack.c.bf16 %v8629, %v8629
  %v9056 = vpack.c.bf16 %v8685, %v8685
  %v9057 = vpack.c.bf16 %v8741, %v8741
  %v9058 = vpack.c.bf16 %v8797, %v8797
  %v9059 = vpack.c.bf16 %v8853, %v8853
  %v9060 = vpack.c.bf16 %v8909, %v8909
  %v9069 = vunpack.c.l.b16 %v9053
  %v9070 = vunpack.c.l.b16 %v9054
  %v9071 = vunpack.c.l.b16 %v9055
  %v9072 = vunpack.c.l.b16 %v9056
  %v9073 = vunpack.c.l.b16 %v9057
  %v9074 = vunpack.c.l.b16 %v9058
  %v9075 = vunpack.c.l.b16 %v9059
  %v9076 = vunpack.c.l.b16 %v9060
  %v9077 = vpack.c.b16 %v9069, %v9069
  %v9078 = vpack.c.b16 %v9070, %v9070
  %v9079 = vpack.c.b16 %v9071, %v9071
  %v9080 = vpack.c.b16 %v9072, %v9072
  %v9081 = vpack.c.b16 %v9073, %v9073
  %v9082 = vpack.c.b16 %v9074, %v9074
  %v9083 = vpack.c.b16 %v9075, %v9075
  %v9084 = vpack.c.b16 %v9076, %v9076
  %v9085 = vunpack.c.l.b16 %v9077
  %v9086 = vunpack.c.l.b16 %v9078
  %v9087 = vunpack.c.l.b16 %v9079
  %v9088 = vunpack.c.l.b16 %v9080
  %v9089 = vunpack.c.l.b16 %v9081
  %v9090 = vunpack.c.l.b16 %v9082
  %v9091 = vunpack.c.l.b16 %v9083
  %v9092 = vunpack.c.l.b16 %v9084
  %v9093 = vrot.slane %v9086, 7
  %v9094 = vsel %vm970, %v9093, %v9085
  %v9095 = vrot.slane %v9087, 6
  %v9096 = vsel %vm972, %v9095, %v9094
  %v9097 = vrot.slane %v9088, 5
  %v9098 = vsel %vm974, %v9097, %v9096
  %v9099 = vrot.slane %v9089, 4
  %v9100 = vsel %vm976, %v9099, %v9098
  %v9101 = vrot.slane %v9090, 3
  %v9102 = vsel %vm978, %v9101, %v9100
  %v9103 = vrot.slane %v9091, 2
  %v9104 = vsel %vm980, %v9103, %v9102
  %v9105 = vrot.slane %v9092, 1
  %v9106 = vsel %vm982, %v9105, %v9104
  %v9107 = vpack.c.b16 %v9106, %v9106
  %9109 = vst.msk [vmem:[#allocation5 + $0x50] sm:$0xf] %vm89, %v9107
  %s9110 = scalar_lea.vmem [#allocation2], 56
  %v9111 = vld [vmem:[%s9110] sm:$0xff]
  %v9112 = vld [vmem:[%s8] sm:$0xff]
  %v9113 = vld [vmem:[%s8 + $0x8] sm:$0xff]
  %v9114 = vld [vmem:[%s8 + $0x10] sm:$0xff]
  %v9115 = vld [vmem:[%s8 + $0x18] sm:$0xff]
  %v9116 = vld [vmem:[%s9] sm:$0x1]
  %v9118 = vlaneseq
  %v9119 = vshrl.u32 %v9118, 7
  %v9120 = vsub.s32 0, %v9119
  %v9121 = vrot.slane %v9116, %v9120
  %9124 = vrot.lane.b32.xlu0 %v9044, 96
  %v9125 = vpop.permute.xlu0 %9124
  %v9126 = vsel %vm134, %v9125, 0
  %9128 = vmatprep.subr.mxu0 0.0
  %9129 = vmatpush1.msra.mxu0 0.0
  %9130 = vmatprep.subr.mxu0 0.0
  %9131 = vmatpush1.msra.mxu0 0.0
  %9132 = vmatprep.subr.mxu0 0.0
  %9133 = vmatpush1.msra.mxu0 0.0
  %9134 = vmatprep.subr.mxu0 0.0
  %9135 = vmatpush1.msra.mxu0 0.0
  %9136 = vmatprep.subr.mxu0 0.0
  %9137 = vmatpush1.msra.mxu0 0.0
  %9138 = vmatprep.subr.mxu0 0.0
  %9139 = vmatpush1.msra.mxu0 0.0
  %9140 = vmatprep.subr.mxu0 0.0
  %9141 = vmatpush1.msra.mxu0 0.0
  %9142 = vmatprep.subr.mxu0 0.0
  %9143 = vmatpush1.msra.mxu0 0.0
  %9144 = vmatprep.subr.mxu0 0.0
  %9145 = vmatpush1.msra.mxu0 0.0
  %9146 = vmatprep.subr.mxu0 0.0
  %9147 = vmatpush1.msra.mxu0 0.0
  %9148 = vmatprep.subr.mxu0 0.0
  %9149 = vmatpush1.msra.mxu0 0.0
  %9150 = vmatprep.subr.mxu0 0.0
  %9151 = vmatpush1.msra.mxu0 0.0
  %9152 = vmatprep.subr.mxu0 0.0
  %9153 = vmatpush1.msra.mxu0 %v9115
  %9154 = vmatprep.subr.mxu0 0.0
  %9155 = vmatpush1.msra.mxu0 %v9114
  %9156 = vmatprep.subr.mxu0 0.0
  %9157 = vmatpush1.msra.mxu0 %v9113
  %9158 = vmatprep.subr.mxu0 0.0
  %9159 = vmatpush1.msra.mxu0 %v9112
  %9160 = vmatprep.subr.mxu0 0.0
  %9161 = vmatpush2.msra.mxu0 0.0
  %9162 = vmatprep.subr.mxu0 0.0
  %9163 = vmatpush2.msra.mxu0 0.0
  %9164 = vmatprep.subr.mxu0 0.0
  %9165 = vmatpush2.msra.mxu0 0.0
  %9166 = vmatprep.subr.mxu0 0.0
  %9167 = vmatpush2.msra.mxu0 0.0
  %9168 = vmatprep.subr.mxu0 0.0
  %9169 = vmatpush2.msra.mxu0 0.0
  %9170 = vmatprep.subr.mxu0 0.0
  %9171 = vmatpush2.msra.mxu0 0.0
  %9172 = vmatprep.subr.mxu0 0.0
  %9173 = vmatpush2.msra.mxu0 0.0
  %9174 = vmatprep.subr.mxu0 0.0
  %9175 = vmatpush2.msra.mxu0 0.0
  %9176 = vmatprep.subr.mxu0 0.0
  %9177 = vmatpush2.msra.mxu0 0.0
  %9178 = vmatprep.subr.mxu0 0.0
  %9179 = vmatpush2.msra.mxu0 0.0
  %9180 = vmatprep.subr.mxu0 0.0
  %9181 = vmatpush2.msra.mxu0 0.0
  %9182 = vmatprep.subr.mxu0 0.0
  %9183 = vmatpush2.msra.mxu0 0.0
  %9184 = vmatprep.subr.mxu0 0.0
  %9185 = vmatpush2.msra.mxu0 0.0
  %9186 = vmatprep.subr.mxu0 0.0
  %9187 = vmatpush2.msra.mxu0 0.0
  %9188 = vmatprep.subr.mxu0 0.0
  %9189 = vmatpush2.msra.mxu0 0.0
  %9190 = vmatprep.subr.mxu0 0.0
  %9191 = vmatpush2.msra.mxu0 0.0
  %9192 = vmatprep.mubr.f32.mxu0 0.0
  %9193 = vmatmul.mubr.f32.gmra.mxu0 %v9126
  %v9194 = vpop.f32.mrf.mxu0
  %v9195 = vadd.f32 %v9121, %v9194
  %v9196 = vpop.f32.mrf.mxu0
  %9197 = vdwg.mxu0
  %v9198 = vadd.f32 %v9111, %v9195
  %v9199 = vxor.u32 %v9198, 2147483648
  %v9200 = vmul.f32 %v9199, 1.442695
  %v9201 = vpow.pop %v9200
  %v9202 = vadd.f32 %v9201, 1.0
  %v9203 = vrcp.pop %v9202
  %v9204 = vmul.f32 1.0, %v9203
  %9206 = vrot.lane.b32.xlu0 %v9195, 64
  %v9207 = vpop.permute.xlu0 %9206
  %v9209 = vmul.f32 %v9204, %v9207
  %9211 = vrot.lane.b32.xlu0 %v9209, 64
  %v9212 = vpop.permute.xlu0 %9211
  %v9214 = vadd.f32 %v9111, %v9212
  %v9215 = vtanh.pop %v9214
  %v9216 = vsub.f32 1.0, %v9204
  %9218 = vrot.lane.b32.xlu0 %v9215, 96
  %v9219 = vpop.permute.xlu0 %9218
  %v9221 = vmul.f32 %v9216, %v9219
  %v9222 = vmul.f32 %v9204, %v9044
  %v9223 = vadd.f32 %v9221, %v9222
  %v9224 = vld [vmem:[%s13] sm:$0xff]
  %v9225 = vld [vmem:[%s13 + $0x8] sm:$0xff]
  %v9226 = vld [vmem:[%s13 + $0x10] sm:$0xff]
  %v9227 = vld [vmem:[%s13 + $0x18] sm:$0xff]
  %v9228 = vld [vmem:[%s13 + $0x20] sm:$0xff]
  %v9229 = vld [vmem:[%s13 + $0x28] sm:$0xff]
  %v9230 = vld [vmem:[%s13 + $0x30] sm:$0xff]
  %v9231 = vld [vmem:[%s13 + $0x38] sm:$0xff]
  %9233 = vrot.lane.b32.xlu0 %v9223, 96
  %v9234 = vpop.permute.xlu0 %9233
  %v9235 = vsel %vm134, %v9234, 0
  %9237 = vmatprep.subr.mxu0 0.0
  %9238 = vmatpush1.msra.mxu0 0.0
  %9239 = vmatprep.subr.mxu0 0.0
  %9240 = vmatpush1.msra.mxu0 0.0
  %9241 = vmatprep.subr.mxu0 0.0
  %9242 = vmatpush1.msra.mxu0 0.0
  %9243 = vmatprep.subr.mxu0 0.0
  %9244 = vmatpush1.msra.mxu0 0.0
  %9245 = vmatprep.subr.mxu0 0.0
  %9246 = vmatpush1.msra.mxu0 0.0
  %9247 = vmatprep.subr.mxu0 0.0
  %9248 = vmatpush1.msra.mxu0 0.0
  %9249 = vmatprep.subr.mxu0 0.0
  %9250 = vmatpush1.msra.mxu0 0.0
  %9251 = vmatprep.subr.mxu0 0.0
  %9252 = vmatpush1.msra.mxu0 0.0
  %9253 = vmatprep.subr.mxu0 0.0
  %9254 = vmatpush1.msra.mxu0 0.0
  %9255 = vmatprep.subr.mxu0 0.0
  %9256 = vmatpush1.msra.mxu0 0.0
  %9257 = vmatprep.subr.mxu0 0.0
  %9258 = vmatpush1.msra.mxu0 0.0
  %9259 = vmatprep.subr.mxu0 0.0
  %9260 = vmatpush1.msra.mxu0 0.0
  %9261 = vmatprep.subr.mxu0 %v9231
  %9262 = vmatpush1.msra.mxu0 %v9230
  %9263 = vmatprep.subr.mxu0 %v9229
  %9264 = vmatpush1.msra.mxu0 %v9228
  %9265 = vmatprep.subr.mxu0 %v9227
  %9266 = vmatpush1.msra.mxu0 %v9226
  %9267 = vmatprep.subr.mxu0 %v9225
  %9268 = vmatpush1.msra.mxu0 %v9224
  %9269 = vmatprep.subr.mxu0 0.0
  %9270 = vmatpush2.msra.mxu0 0.0
  %9271 = vmatprep.subr.mxu0 0.0
  %9272 = vmatpush2.msra.mxu0 0.0
  %9273 = vmatprep.subr.mxu0 0.0
  %9274 = vmatpush2.msra.mxu0 0.0
  %9275 = vmatprep.subr.mxu0 0.0
  %9276 = vmatpush2.msra.mxu0 0.0
  %9277 = vmatprep.subr.mxu0 0.0
  %9278 = vmatpush2.msra.mxu0 0.0
  %9279 = vmatprep.subr.mxu0 0.0
  %9280 = vmatpush2.msra.mxu0 0.0
  %9281 = vmatprep.subr.mxu0 0.0
  %9282 = vmatpush2.msra.mxu0 0.0
  %9283 = vmatprep.subr.mxu0 0.0
  %9284 = vmatpush2.msra.mxu0 0.0
  %9285 = vmatprep.subr.mxu0 0.0
  %9286 = vmatpush2.msra.mxu0 0.0
  %9287 = vmatprep.subr.mxu0 0.0
  %9288 = vmatpush2.msra.mxu0 0.0
  %9289 = vmatprep.subr.mxu0 0.0
  %9290 = vmatpush2.msra.mxu0 0.0
  %9291 = vmatprep.subr.mxu0 0.0
  %9292 = vmatpush2.msra.mxu0 0.0
  %9293 = vmatprep.subr.mxu0 0.0
  %9294 = vmatpush2.msra.mxu0 0.0
  %9295 = vmatprep.subr.mxu0 0.0
  %9296 = vmatpush2.msra.mxu0 0.0
  %9297 = vmatprep.subr.mxu0 0.0
  %9298 = vmatpush2.msra.mxu0 0.0
  %9299 = vmatprep.subr.mxu0 0.0
  %9300 = vmatpush2.msra.mxu0 0.0
  %9301 = vmatprep.mubr.f32.mxu0 0.0
  %9302 = vmatmul.mubr.f32.gmra.mxu0 %v9235
  %v9303 = vpop.f32.mrf.mxu0
  %v9304 = vadd.f32 0.0, %v9303
  %v9305 = vpop.f32.mrf.mxu0
  %v9306 = vadd.f32 0.0, %v9305
  %9307 = vdwg.mxu0
  %v9308 = vld [vmem:[%s14] sm:$0x1]
  %v9310 = vlaneseq
  %v9311 = vshrl.u32 %v9310, 7
  %v9312 = vsub.s32 0, %v9311
  %v9313 = vrot.slane %v9308, %v9312
  %v9315 = vadd.f32 %v9304, %v9313
  %v9316 = vld [vmem:[#allocation3] sm:$0xff]
  %v9317 = vld [vmem:[#allocation3 + $0x8] sm:$0xff]
  %v9318 = vld [vmem:[#allocation3 + $0x10] sm:$0xff]
  %v9319 = vld [vmem:[#allocation3 + $0x18] sm:$0xff]
  %v9320 = vld [vmem:[#allocation3 + $0x20] sm:$0xff]
  %v9321 = vld [vmem:[#allocation3 + $0x28] sm:$0xff]
  %v9322 = vld [vmem:[#allocation3 + $0x30] sm:$0xff]
  %v9323 = vld [vmem:[#allocation3 + $0x38] sm:$0xff]
  %v9325 = vcombine.high %v9306, %v9306
  %v9327 = vunpack.c.l.s4 1966171168
  %v9328 = vunpack.c.0.s8 %v9327
  %v9329 = vlaneseq
  %v9330 = vshrl.u32 %v9329, 7
  %v9331 = vsub.s32 %v9328, %v9330
  %v9332 = vrot.slane %v9306, %v9331
  %v9334 = vunpack.c.l.s4 1966171168
  %v9335 = vunpack.c.0.s8 %v9334
  %v9336 = vlaneseq
  %v9337 = vshrl.u32 %v9336, 7
  %v9338 = vsub.s32 %v9335, %v9337
  %v9339 = vrot.slane %v9325, %v9338
  %v9340 = vcombine.high %v9332, %v9332
  %v9341 = vcombine.high %v9339, %v9339
  %v9343 = vunpack.c.l.s4 1966171168
  %v9344 = vunpack.c.0.s8 %v9343
  %v9345 = vlaneseq
  %v9346 = vshrl.u32 %v9345, 7
  %v9347 = vsub.s32 %v9344, %v9346
  %v9348 = vrot.slane %v9332, %v9347
  %v9350 = vunpack.c.l.s4 1966171168
  %v9351 = vunpack.c.0.s8 %v9350
  %v9352 = vlaneseq
  %v9353 = vshrl.u32 %v9352, 7
  %v9354 = vsub.s32 %v9351, %v9353
  %v9355 = vrot.slane %v9339, %v9354
  %v9357 = vunpack.c.l.s4 1966171168
  %v9358 = vunpack.c.0.s8 %v9357
  %v9359 = vlaneseq
  %v9360 = vshrl.u32 %v9359, 7
  %v9361 = vsub.s32 %v9358, %v9360
  %v9362 = vrot.slane %v9340, %v9361
  %v9364 = vunpack.c.l.s4 1966171168
  %v9365 = vunpack.c.0.s8 %v9364
  %v9366 = vlaneseq
  %v9367 = vshrl.u32 %v9366, 7
  %v9368 = vsub.s32 %v9365, %v9367
  %v9369 = vrot.slane %v9341, %v9368
  %v9370 = vcombine.high %v9348, %v9348
  %v9371 = vcombine.high %v9355, %v9355
  %v9372 = vcombine.high %v9362, %v9362
  %v9373 = vcombine.high %v9369, %v9369
  %v9374 = vlaneseq
  %v9375 = vshrl.u32 %v9374, 7
  %v9376 = vsub.s32 0, %v9375
  %v9377 = vrot.slane %v9348, %v9376
  %v9378 = vlaneseq
  %v9379 = vshrl.u32 %v9378, 7
  %v9380 = vsub.s32 0, %v9379
  %v9381 = vrot.slane %v9362, %v9380
  %v9382 = vlaneseq
  %v9383 = vshrl.u32 %v9382, 7
  %v9384 = vsub.s32 0, %v9383
  %v9385 = vrot.slane %v9370, %v9384
  %v9386 = vlaneseq
  %v9387 = vshrl.u32 %v9386, 7
  %v9388 = vsub.s32 0, %v9387
  %v9389 = vrot.slane %v9372, %v9388
  %v9390 = vlaneseq
  %v9391 = vshrl.u32 %v9390, 7
  %v9392 = vsub.s32 0, %v9391
  %v9393 = vrot.slane %v9355, %v9392
  %v9394 = vlaneseq
  %v9395 = vshrl.u32 %v9394, 7
  %v9396 = vsub.s32 0, %v9395
  %v9397 = vrot.slane %v9369, %v9396
  %v9398 = vlaneseq
  %v9399 = vshrl.u32 %v9398, 7
  %v9400 = vsub.s32 0, %v9399
  %v9401 = vrot.slane %v9371, %v9400
  %v9402 = vlaneseq
  %v9403 = vshrl.u32 %v9402, 7
  %v9404 = vsub.s32 0, %v9403
  %v9405 = vrot.slane %v9373, %v9404
  %v9414 = vadd.f32 %v9316, %v9377
  %v9415 = vadd.f32 %v9317, %v9381
  %v9416 = vadd.f32 %v9318, %v9385
  %v9417 = vadd.f32 %v9319, %v9389
  %v9418 = vadd.f32 %v9320, %v9393
  %v9419 = vadd.f32 %v9321, %v9397
  %v9420 = vadd.f32 %v9322, %v9401
  %v9421 = vadd.f32 %v9323, %v9405
  %v9422 = vtanh.pop %v9414
  %v9423 = vtanh.pop %v9415
  %v9424 = vtanh.pop %v9416
  %v9425 = vtanh.pop %v9417
  %v9426 = vtanh.pop %v9418
  %v9427 = vtanh.pop %v9419
  %v9428 = vtanh.pop %v9420
  %v9429 = vtanh.pop %v9421
  %v9430 = vld [vmem:[%s12] sm:$0x1]
  %v9432 = vlaneseq
  %v9433 = vshrl.u32 %v9432, 7
  %v9434 = vsub.s32 0, %v9433
  %v9435 = vrot.slane %v9430, %v9434
  %v9437 = vmul.f32 %v9422, %v9435
  %v9438 = vmul.f32 %v9423, %v9435
  %v9439 = vmul.f32 %v9424, %v9435
  %v9440 = vmul.f32 %v9425, %v9435
  %v9441 = vmul.f32 %v9426, %v9435
  %v9442 = vmul.f32 %v9427, %v9435
  %v9443 = vmul.f32 %v9428, %v9435
  %v9444 = vmul.f32 %v9429, %v9435
  %v9445 = vsel %vm134, %v9437, 0.0
  %9446 = vadd.xlane.f32.xlu0 %v9445
  %v9447 = vpop.xlane.xlu0 %9446
  %v9448 = vsel %vm134, %v9438, 0.0
  %9449 = vadd.xlane.f32.xlu0 %v9448
  %v9450 = vpop.xlane.xlu0 %9449
  %v9451 = vsel %vm134, %v9439, 0.0
  %9452 = vadd.xlane.f32.xlu0 %v9451
  %v9453 = vpop.xlane.xlu0 %9452
  %v9454 = vsel %vm134, %v9440, 0.0
  %9455 = vadd.xlane.f32.xlu0 %v9454
  %v9456 = vpop.xlane.xlu0 %9455
  %v9457 = vsel %vm134, %v9441, 0.0
  %9458 = vadd.xlane.f32.xlu0 %v9457
  %v9459 = vpop.xlane.xlu0 %9458
  %v9460 = vsel %vm134, %v9442, 0.0
  %9461 = vadd.xlane.f32.xlu0 %v9460
  %v9462 = vpop.xlane.xlu0 %9461
  %v9463 = vsel %vm134, %v9443, 0.0
  %9464 = vadd.xlane.f32.xlu0 %v9463
  %v9465 = vpop.xlane.xlu0 %9464
  %v9466 = vsel %vm134, %v9444, 0.0
  %9467 = vadd.xlane.f32.xlu0 %v9466
  %v9468 = vpop.xlane.xlu0 %9467
  %v9469 = vld [vmem:[#allocation4] sm:$0xff]
  %v9471 = vlaneseq
  %v9472 = vshrl.u32 %v9471, 7
  %v9473 = vsub.s32 0, %v9472
  %v9474 = vrot.slane %v9469, %v9473
  %9476 = vbcast.lane.b32.xlu0 %v9474, 256
  %v9477 = vpop.permute.xlu0 %9476
  %v9478 = vlaneseq
  %v9479 = vshrl.u32 %v9478, 7
  %v9480 = vsub.s32 1, %v9479
  %v9481 = vrot.slane %v9469, %v9480
  %9483 = vbcast.lane.b32.xlu0 %v9481, 256
  %v9484 = vpop.permute.xlu0 %9483
  %v9485 = vlaneseq
  %v9486 = vshrl.u32 %v9485, 7
  %v9487 = vsub.s32 2, %v9486
  %v9488 = vrot.slane %v9469, %v9487
  %9490 = vbcast.lane.b32.xlu0 %v9488, 256
  %v9491 = vpop.permute.xlu0 %9490
  %v9492 = vlaneseq
  %v9493 = vshrl.u32 %v9492, 7
  %v9494 = vsub.s32 3, %v9493
  %v9495 = vrot.slane %v9469, %v9494
  %9497 = vbcast.lane.b32.xlu0 %v9495, 256
  %v9498 = vpop.permute.xlu0 %9497
  %v9499 = vlaneseq
  %v9500 = vshrl.u32 %v9499, 7
  %v9501 = vsub.s32 4, %v9500
  %v9502 = vrot.slane %v9469, %v9501
  %9504 = vbcast.lane.b32.xlu0 %v9502, 256
  %v9505 = vpop.permute.xlu0 %9504
  %v9506 = vlaneseq
  %v9507 = vshrl.u32 %v9506, 7
  %v9508 = vsub.s32 5, %v9507
  %v9509 = vrot.slane %v9469, %v9508
  %9511 = vbcast.lane.b32.xlu0 %v9509, 256
  %v9512 = vpop.permute.xlu0 %9511
  %v9513 = vlaneseq
  %v9514 = vshrl.u32 %v9513, 7
  %v9515 = vsub.s32 6, %v9514
  %v9516 = vrot.slane %v9469, %v9515
  %9518 = vbcast.lane.b32.xlu0 %v9516, 256
  %v9519 = vpop.permute.xlu0 %9518
  %v9520 = vlaneseq
  %v9521 = vshrl.u32 %v9520, 7
  %v9522 = vsub.s32 7, %v9521
  %v9523 = vrot.slane %v9469, %v9522
  %9525 = vbcast.lane.b32.xlu0 %v9523, 256
  %v9526 = vpop.permute.xlu0 %9525
  %v9535 = vadd.f32 %v9447, %v9477
  %v9536 = vadd.f32 %v9450, %v9484
  %v9537 = vadd.f32 %v9453, %v9491
  %v9538 = vadd.f32 %v9456, %v9498
  %v9539 = vadd.f32 %v9459, %v9505
  %v9540 = vadd.f32 %v9462, %v9512
  %v9541 = vadd.f32 %v9465, %v9519
  %v9542 = vadd.f32 %v9468, %v9526
  %v9543 = vmul.f32 %v9535, 1.442695
  %v9544 = vpow.pop %v9543
  %v9545 = vmul.f32 %v9536, 1.442695
  %v9546 = vpow.pop %v9545
  %v9547 = vmul.f32 %v9537, 1.442695
  %v9548 = vpow.pop %v9547
  %v9549 = vmul.f32 %v9538, 1.442695
  %v9550 = vpow.pop %v9549
  %v9551 = vmul.f32 %v9539, 1.442695
  %v9552 = vpow.pop %v9551
  %v9553 = vmul.f32 %v9540, 1.442695
  %v9554 = vpow.pop %v9553
  %v9555 = vmul.f32 %v9541, 1.442695
  %v9556 = vpow.pop %v9555
  %v9557 = vmul.f32 %v9542, 1.442695
  %v9558 = vpow.pop %v9557
  %9567 = vset.pattern.permute.xlu0 0
  %9568 = vperm.xlu0 %9567, %v9544
  %v9569 = vpop.permute.xlu0 %9568
  %9570 = vset.pattern.permute.xlu0 0
  %9571 = vperm.xlu0 %9570, %v9546
  %v9572 = vpop.permute.xlu0 %9571
  %9573 = vset.pattern.permute.xlu0 0
  %9574 = vperm.xlu0 %9573, %v9548
  %v9575 = vpop.permute.xlu0 %9574
  %9576 = vset.pattern.permute.xlu0 0
  %9577 = vperm.xlu0 %9576, %v9550
  %v9578 = vpop.permute.xlu0 %9577
  %9579 = vset.pattern.permute.xlu0 0
  %9580 = vperm.xlu0 %9579, %v9552
  %v9581 = vpop.permute.xlu0 %9580
  %9582 = vset.pattern.permute.xlu0 0
  %9583 = vperm.xlu0 %9582, %v9554
  %v9584 = vpop.permute.xlu0 %9583
  %9585 = vset.pattern.permute.xlu0 0
  %9586 = vperm.xlu0 %9585, %v9556
  %v9587 = vpop.permute.xlu0 %9586
  %9588 = vset.pattern.permute.xlu0 0
  %9589 = vperm.xlu0 %9588, %v9558
  %v9590 = vpop.permute.xlu0 %9589
  %v9591 = vlaneseq
  %v9592 = vshrl.u32 %v9591, 7
  %v9593 = vsub.s32 %v937, %v9592
  %v9594 = vrot.slane %v9569, %v9593
  %v9595 = vlaneseq
  %v9596 = vshrl.u32 %v9595, 7
  %v9597 = vsub.s32 %v937, %v9596
  %v9598 = vrot.slane %v9572, %v9597
  %v9599 = vlaneseq
  %v9600 = vshrl.u32 %v9599, 7
  %v9601 = vsub.s32 %v937, %v9600
  %v9602 = vrot.slane %v9575, %v9601
  %v9603 = vlaneseq
  %v9604 = vshrl.u32 %v9603, 7
  %v9605 = vsub.s32 %v937, %v9604
  %v9606 = vrot.slane %v9578, %v9605
  %v9607 = vlaneseq
  %v9608 = vshrl.u32 %v9607, 7
  %v9609 = vsub.s32 %v937, %v9608
  %v9610 = vrot.slane %v9581, %v9609
  %v9611 = vlaneseq
  %v9612 = vshrl.u32 %v9611, 7
  %v9613 = vsub.s32 %v937, %v9612
  %v9614 = vrot.slane %v9584, %v9613
  %v9615 = vlaneseq
  %v9616 = vshrl.u32 %v9615, 7
  %v9617 = vsub.s32 %v937, %v9616
  %v9618 = vrot.slane %v9587, %v9617
  %v9619 = vlaneseq
  %v9620 = vshrl.u32 %v9619, 7
  %v9621 = vsub.s32 %v937, %v9620
  %v9622 = vrot.slane %v9590, %v9621
  %v9623 = vsel %vm970, %v9598, %v9594
  %v9624 = vsel %vm972, %v9602, %v9623
  %v9625 = vsel %vm974, %v9606, %v9624
  %v9626 = vsel %vm976, %v9610, %v9625
  %v9627 = vsel %vm978, %v9614, %v9626
  %v9628 = vsel %vm980, %v9618, %v9627
  %v9629 = vsel %vm982, %v9622, %v9628
  %v9631 = vsel %vm452, %v9629, 0.0
  %9632 = vadd.xlane.f32.xlu0 %v9631
  %v9633 = vpop.xlane.xlu0 %9632
  %v9634 = vmax.f32 %v9633, 1e-30
  %v9635 = vrcp.pop %v9634
  %v9637 = vlaneseq
  %v9638 = vshrl.u32 %v9637, 7
  %v9639 = vsub.s32 0, %v9638
  %v9640 = vrot.slane %v9635, %v9639
  %v9641 = vlaneseq
  %v9642 = vshrl.u32 %v9641, 7
  %v9643 = vsub.s32 1, %v9642
  %v9644 = vrot.slane %v9635, %v9643
  %v9645 = vlaneseq
  %v9646 = vshrl.u32 %v9645, 7
  %v9647 = vsub.s32 2, %v9646
  %v9648 = vrot.slane %v9635, %v9647
  %v9649 = vlaneseq
  %v9650 = vshrl.u32 %v9649, 7
  %v9651 = vsub.s32 3, %v9650
  %v9652 = vrot.slane %v9635, %v9651
  %v9653 = vlaneseq
  %v9654 = vshrl.u32 %v9653, 7
  %v9655 = vsub.s32 4, %v9654
  %v9656 = vrot.slane %v9635, %v9655
  %v9657 = vlaneseq
  %v9658 = vshrl.u32 %v9657, 7
  %v9659 = vsub.s32 5, %v9658
  %v9660 = vrot.slane %v9635, %v9659
  %v9661 = vlaneseq
  %v9662 = vshrl.u32 %v9661, 7
  %v9663 = vsub.s32 6, %v9662
  %v9664 = vrot.slane %v9635, %v9663
  %v9665 = vlaneseq
  %v9666 = vshrl.u32 %v9665, 7
  %v9667 = vsub.s32 7, %v9666
  %v9668 = vrot.slane %v9635, %v9667
  %v9677 = vmul.f32 %v9544, %v9640
  %v9678 = vmul.f32 %v9546, %v9644
  %v9679 = vmul.f32 %v9548, %v9648
  %v9680 = vmul.f32 %v9550, %v9652
  %v9681 = vmul.f32 %v9552, %v9656
  %v9682 = vmul.f32 %v9554, %v9660
  %v9683 = vmul.f32 %v9556, %v9664
  %v9684 = vmul.f32 %v9558, %v9668
  %v9685 = vpack.c.bf16 %v9677, %v9677
  %v9686 = vpack.c.bf16 %v9678, %v9678
  %v9687 = vpack.c.bf16 %v9679, %v9679
  %v9688 = vpack.c.bf16 %v9680, %v9680
  %v9689 = vpack.c.bf16 %v9681, %v9681
  %v9690 = vpack.c.bf16 %v9682, %v9682
  %v9691 = vpack.c.bf16 %v9683, %v9683
  %v9692 = vpack.c.bf16 %v9684, %v9684
  %v9693 = vld [vmem:[%s2] sm:$0xf]
  %v9694 = vld [vmem:[%s2 + $0x4] sm:$0xf]
  %v9695 = vld [vmem:[%s2 + $0x8] sm:$0xf]
  %v9696 = vld [vmem:[%s2 + $0xc] sm:$0xf]
  %v9697 = vld [vmem:[%s2 + $0x10] sm:$0xf]
  %v9698 = vld [vmem:[%s2 + $0x14] sm:$0xf]
  %v9699 = vld [vmem:[%s2 + $0x18] sm:$0xf]
  %v9700 = vld [vmem:[%s2 + $0x1c] sm:$0xf]
  %v9702 = vunpack.c.l.b16 %v9685
  %9703 = vset.pattern.permute.xlu0 0
  %9704 = vperm.xlu0 %9703, %v9702
  %v9705 = vpop.permute.xlu0 %9704
  %v9706 = vlaneseq
  %v9707 = vshrl.u32 %v9706, 7
  %v9708 = vsub.s32 %v937, %v9707
  %v9709 = vrot.slane %v9705, %v9708
  %v9710 = vpack.c.b16 %v9709, %v9709
  %v9712 = vsel %vm452, %v9710, 0
  %v9715 = vsel %vm1068, %v9693, 0
  %9717 = vmatprep.subr.bf16.mxu0 0
  %9718 = vmatpush1.bf16.msra.mxu0 0
  %9719 = vmatprep.subr.bf16.mxu0 0
  %9720 = vmatpush1.bf16.msra.mxu0 0
  %9721 = vmatprep.subr.bf16.mxu0 0
  %9722 = vmatpush1.bf16.msra.mxu0 0
  %9723 = vmatprep.subr.bf16.mxu0 0
  %9724 = vmatpush1.bf16.msra.mxu0 0
  %9725 = vmatprep.subr.bf16.mxu0 0
  %9726 = vmatpush1.bf16.msra.mxu0 0
  %9727 = vmatprep.subr.bf16.mxu0 0
  %9728 = vmatpush1.bf16.msra.mxu0 0
  %9729 = vmatprep.subr.bf16.mxu0 0
  %9730 = vmatpush1.bf16.msra.mxu0 0
  %9731 = vmatprep.subr.bf16.mxu0 0
  %9732 = vmatpush1.bf16.msra.mxu0 %v9715
  %9733 = vmatprep.subr.bf16.mxu0 0
  %9734 = vmatpush2.bf16.msra.mxu0 0
  %9735 = vmatprep.subr.bf16.mxu0 0
  %9736 = vmatpush2.bf16.msra.mxu0 0
  %9737 = vmatprep.subr.bf16.mxu0 0
  %9738 = vmatpush2.bf16.msra.mxu0 0
  %9739 = vmatprep.subr.bf16.mxu0 0
  %9740 = vmatpush2.bf16.msra.mxu0 0
  %9741 = vmatprep.subr.bf16.mxu0 0
  %9742 = vmatpush2.bf16.msra.mxu0 0
  %9743 = vmatprep.subr.bf16.mxu0 0
  %9744 = vmatpush2.bf16.msra.mxu0 0
  %9745 = vmatprep.subr.bf16.mxu0 0
  %9746 = vmatpush2.bf16.msra.mxu0 0
  %9747 = vmatprep.subr.bf16.mxu0 0
  %9748 = vmatpush2.bf16.msra.mxu0 0
  %9749 = vmatprep.mubr.bf16.mxu0 0
  %9750 = vmatmul.mubr.bf16.gmra.mxu0 %v9712
  %v9751 = vpop.f32.mrf.mxu0
  %v9752 = vadd.f32 0.0, %v9751
  %v9753 = vpop.f32.mrf.mxu0
  %v9754 = vpop.f32.mrf.mxu0
  %v9755 = vpop.f32.mrf.mxu0
  %9756 = vdwg.mxu0
  %v9758 = vunpack.c.l.b16 %v9686
  %9759 = vset.pattern.permute.xlu0 0
  %9760 = vperm.xlu0 %9759, %v9758
  %v9761 = vpop.permute.xlu0 %9760
  %v9762 = vlaneseq
  %v9763 = vshrl.u32 %v9762, 7
  %v9764 = vsub.s32 %v937, %v9763
  %v9765 = vrot.slane %v9761, %v9764
  %v9766 = vpack.c.b16 %v9765, %v9765
  %v9768 = vsel %vm452, %v9766, 0
  %v9771 = vsel %vm1068, %v9694, 0
  %9773 = vmatprep.subr.bf16.mxu0 0
  %9774 = vmatpush1.bf16.msra.mxu0 0
  %9775 = vmatprep.subr.bf16.mxu0 0
  %9776 = vmatpush1.bf16.msra.mxu0 0
  %9777 = vmatprep.subr.bf16.mxu0 0
  %9778 = vmatpush1.bf16.msra.mxu0 0
  %9779 = vmatprep.subr.bf16.mxu0 0
  %9780 = vmatpush1.bf16.msra.mxu0 0
  %9781 = vmatprep.subr.bf16.mxu0 0
  %9782 = vmatpush1.bf16.msra.mxu0 0
  %9783 = vmatprep.subr.bf16.mxu0 0
  %9784 = vmatpush1.bf16.msra.mxu0 0
  %9785 = vmatprep.subr.bf16.mxu0 0
  %9786 = vmatpush1.bf16.msra.mxu0 0
  %9787 = vmatprep.subr.bf16.mxu0 0
  %9788 = vmatpush1.bf16.msra.mxu0 %v9771
  %9789 = vmatprep.subr.bf16.mxu0 0
  %9790 = vmatpush2.bf16.msra.mxu0 0
  %9791 = vmatprep.subr.bf16.mxu0 0
  %9792 = vmatpush2.bf16.msra.mxu0 0
  %9793 = vmatprep.subr.bf16.mxu0 0
  %9794 = vmatpush2.bf16.msra.mxu0 0
  %9795 = vmatprep.subr.bf16.mxu0 0
  %9796 = vmatpush2.bf16.msra.mxu0 0
  %9797 = vmatprep.subr.bf16.mxu0 0
  %9798 = vmatpush2.bf16.msra.mxu0 0
  %9799 = vmatprep.subr.bf16.mxu0 0
  %9800 = vmatpush2.bf16.msra.mxu0 0
  %9801 = vmatprep.subr.bf16.mxu0 0
  %9802 = vmatpush2.bf16.msra.mxu0 0
  %9803 = vmatprep.subr.bf16.mxu0 0
  %9804 = vmatpush2.bf16.msra.mxu0 0
  %9805 = vmatprep.mubr.bf16.mxu0 0
  %9806 = vmatmul.mubr.bf16.gmra.mxu0 %v9768
  %v9807 = vpop.f32.mrf.mxu0
  %v9808 = vadd.f32 0.0, %v9807
  %v9809 = vpop.f32.mrf.mxu0
  %v9810 = vpop.f32.mrf.mxu0
  %v9811 = vpop.f32.mrf.mxu0
  %9812 = vdwg.mxu0
  %v9814 = vunpack.c.l.b16 %v9687
  %9815 = vset.pattern.permute.xlu0 0
  %9816 = vperm.xlu0 %9815, %v9814
  %v9817 = vpop.permute.xlu0 %9816
  %v9818 = vlaneseq
  %v9819 = vshrl.u32 %v9818, 7
  %v9820 = vsub.s32 %v937, %v9819
  %v9821 = vrot.slane %v9817, %v9820
  %v9822 = vpack.c.b16 %v9821, %v9821
  %v9824 = vsel %vm452, %v9822, 0
  %v9827 = vsel %vm1068, %v9695, 0
  %9829 = vmatprep.subr.bf16.mxu0 0
  %9830 = vmatpush1.bf16.msra.mxu0 0
  %9831 = vmatprep.subr.bf16.mxu0 0
  %9832 = vmatpush1.bf16.msra.mxu0 0
  %9833 = vmatprep.subr.bf16.mxu0 0
  %9834 = vmatpush1.bf16.msra.mxu0 0
  %9835 = vmatprep.subr.bf16.mxu0 0
  %9836 = vmatpush1.bf16.msra.mxu0 0
  %9837 = vmatprep.subr.bf16.mxu0 0
  %9838 = vmatpush1.bf16.msra.mxu0 0
  %9839 = vmatprep.subr.bf16.mxu0 0
  %9840 = vmatpush1.bf16.msra.mxu0 0
  %9841 = vmatprep.subr.bf16.mxu0 0
  %9842 = vmatpush1.bf16.msra.mxu0 0
  %9843 = vmatprep.subr.bf16.mxu0 0
  %9844 = vmatpush1.bf16.msra.mxu0 %v9827
  %9845 = vmatprep.subr.bf16.mxu0 0
  %9846 = vmatpush2.bf16.msra.mxu0 0
  %9847 = vmatprep.subr.bf16.mxu0 0
  %9848 = vmatpush2.bf16.msra.mxu0 0
  %9849 = vmatprep.subr.bf16.mxu0 0
  %9850 = vmatpush2.bf16.msra.mxu0 0
  %9851 = vmatprep.subr.bf16.mxu0 0
  %9852 = vmatpush2.bf16.msra.mxu0 0
  %9853 = vmatprep.subr.bf16.mxu0 0
  %9854 = vmatpush2.bf16.msra.mxu0 0
  %9855 = vmatprep.subr.bf16.mxu0 0
  %9856 = vmatpush2.bf16.msra.mxu0 0
  %9857 = vmatprep.subr.bf16.mxu0 0
  %9858 = vmatpush2.bf16.msra.mxu0 0
  %9859 = vmatprep.subr.bf16.mxu0 0
  %9860 = vmatpush2.bf16.msra.mxu0 0
  %9861 = vmatprep.mubr.bf16.mxu0 0
  %9862 = vmatmul.mubr.bf16.gmra.mxu0 %v9824
  %v9863 = vpop.f32.mrf.mxu0
  %v9864 = vadd.f32 0.0, %v9863
  %v9865 = vpop.f32.mrf.mxu0
  %v9866 = vpop.f32.mrf.mxu0
  %v9867 = vpop.f32.mrf.mxu0
  %9868 = vdwg.mxu0
  %v9870 = vunpack.c.l.b16 %v9688
  %9871 = vset.pattern.permute.xlu0 0
  %9872 = vperm.xlu0 %9871, %v9870
  %v9873 = vpop.permute.xlu0 %9872
  %v9874 = vlaneseq
  %v9875 = vshrl.u32 %v9874, 7
  %v9876 = vsub.s32 %v937, %v9875
  %v9877 = vrot.slane %v9873, %v9876
  %v9878 = vpack.c.b16 %v9877, %v9877
  %v9880 = vsel %vm452, %v9878, 0
  %v9883 = vsel %vm1068, %v9696, 0
  %9885 = vmatprep.subr.bf16.mxu0 0
  %9886 = vmatpush1.bf16.msra.mxu0 0
  %9887 = vmatprep.subr.bf16.mxu0 0
  %9888 = vmatpush1.bf16.msra.mxu0 0
  %9889 = vmatprep.subr.bf16.mxu0 0
  %9890 = vmatpush1.bf16.msra.mxu0 0
  %9891 = vmatprep.subr.bf16.mxu0 0
  %9892 = vmatpush1.bf16.msra.mxu0 0
  %9893 = vmatprep.subr.bf16.mxu0 0
  %9894 = vmatpush1.bf16.msra.mxu0 0
  %9895 = vmatprep.subr.bf16.mxu0 0
  %9896 = vmatpush1.bf16.msra.mxu0 0
  %9897 = vmatprep.subr.bf16.mxu0 0
  %9898 = vmatpush1.bf16.msra.mxu0 0
  %9899 = vmatprep.subr.bf16.mxu0 0
  %9900 = vmatpush1.bf16.msra.mxu0 %v9883
  %9901 = vmatprep.subr.bf16.mxu0 0
  %9902 = vmatpush2.bf16.msra.mxu0 0
  %9903 = vmatprep.subr.bf16.mxu0 0
  %9904 = vmatpush2.bf16.msra.mxu0 0
  %9905 = vmatprep.subr.bf16.mxu0 0
  %9906 = vmatpush2.bf16.msra.mxu0 0
  %9907 = vmatprep.subr.bf16.mxu0 0
  %9908 = vmatpush2.bf16.msra.mxu0 0
  %9909 = vmatprep.subr.bf16.mxu0 0
  %9910 = vmatpush2.bf16.msra.mxu0 0
  %9911 = vmatprep.subr.bf16.mxu0 0
  %9912 = vmatpush2.bf16.msra.mxu0 0
  %9913 = vmatprep.subr.bf16.mxu0 0
  %9914 = vmatpush2.bf16.msra.mxu0 0
  %9915 = vmatprep.subr.bf16.mxu0 0
  %9916 = vmatpush2.bf16.msra.mxu0 0
  %9917 = vmatprep.mubr.bf16.mxu0 0
  %9918 = vmatmul.mubr.bf16.gmra.mxu0 %v9880
  %v9919 = vpop.f32.mrf.mxu0
  %v9920 = vadd.f32 0.0, %v9919
  %v9921 = vpop.f32.mrf.mxu0
  %v9922 = vpop.f32.mrf.mxu0
  %v9923 = vpop.f32.mrf.mxu0
  %9924 = vdwg.mxu0
  %v9926 = vunpack.c.l.b16 %v9689
  %9927 = vset.pattern.permute.xlu0 0
  %9928 = vperm.xlu0 %9927, %v9926
  %v9929 = vpop.permute.xlu0 %9928
  %v9930 = vlaneseq
  %v9931 = vshrl.u32 %v9930, 7
  %v9932 = vsub.s32 %v937, %v9931
  %v9933 = vrot.slane %v9929, %v9932
  %v9934 = vpack.c.b16 %v9933, %v9933
  %v9936 = vsel %vm452, %v9934, 0
  %v9939 = vsel %vm1068, %v9697, 0
  %9941 = vmatprep.subr.bf16.mxu0 0
  %9942 = vmatpush1.bf16.msra.mxu0 0
  %9943 = vmatprep.subr.bf16.mxu0 0
  %9944 = vmatpush1.bf16.msra.mxu0 0
  %9945 = vmatprep.subr.bf16.mxu0 0
  %9946 = vmatpush1.bf16.msra.mxu0 0
  %9947 = vmatprep.subr.bf16.mxu0 0
  %9948 = vmatpush1.bf16.msra.mxu0 0
  %9949 = vmatprep.subr.bf16.mxu0 0
  %9950 = vmatpush1.bf16.msra.mxu0 0
  %9951 = vmatprep.subr.bf16.mxu0 0
  %9952 = vmatpush1.bf16.msra.mxu0 0
  %9953 = vmatprep.subr.bf16.mxu0 0
  %9954 = vmatpush1.bf16.msra.mxu0 0
  %9955 = vmatprep.subr.bf16.mxu0 0
  %9956 = vmatpush1.bf16.msra.mxu0 %v9939
  %9957 = vmatprep.subr.bf16.mxu0 0
  %9958 = vmatpush2.bf16.msra.mxu0 0
  %9959 = vmatprep.subr.bf16.mxu0 0
  %9960 = vmatpush2.bf16.msra.mxu0 0
  %9961 = vmatprep.subr.bf16.mxu0 0
  %9962 = vmatpush2.bf16.msra.mxu0 0
  %9963 = vmatprep.subr.bf16.mxu0 0
  %9964 = vmatpush2.bf16.msra.mxu0 0
  %9965 = vmatprep.subr.bf16.mxu0 0
  %9966 = vmatpush2.bf16.msra.mxu0 0
  %9967 = vmatprep.subr.bf16.mxu0 0
  %9968 = vmatpush2.bf16.msra.mxu0 0
  %9969 = vmatprep.subr.bf16.mxu0 0
  %9970 = vmatpush2.bf16.msra.mxu0 0
  %9971 = vmatprep.subr.bf16.mxu0 0
  %9972 = vmatpush2.bf16.msra.mxu0 0
  %9973 = vmatprep.mubr.bf16.mxu0 0
  %9974 = vmatmul.mubr.bf16.gmra.mxu0 %v9936
  %v9975 = vpop.f32.mrf.mxu0
  %v9976 = vadd.f32 0.0, %v9975
  %v9977 = vpop.f32.mrf.mxu0
  %v9978 = vpop.f32.mrf.mxu0
  %v9979 = vpop.f32.mrf.mxu0
  %9980 = vdwg.mxu0
  %v9982 = vunpack.c.l.b16 %v9690
  %9983 = vset.pattern.permute.xlu0 0
  %9984 = vperm.xlu0 %9983, %v9982
  %v9985 = vpop.permute.xlu0 %9984
  %v9986 = vlaneseq
  %v9987 = vshrl.u32 %v9986, 7
  %v9988 = vsub.s32 %v937, %v9987
  %v9989 = vrot.slane %v9985, %v9988
  %v9990 = vpack.c.b16 %v9989, %v9989
  %v9992 = vsel %vm452, %v9990, 0
  %v9995 = vsel %vm1068, %v9698, 0
  %9997 = vmatprep.subr.bf16.mxu0 0
  %9998 = vmatpush1.bf16.msra.mxu0 0
  %9999 = vmatprep.subr.bf16.mxu0 0
  %10000 = vmatpush1.bf16.msra.mxu0 0
  %10001 = vmatprep.subr.bf16.mxu0 0
  %10002 = vmatpush1.bf16.msra.mxu0 0
  %10003 = vmatprep.subr.bf16.mxu0 0
  %10004 = vmatpush1.bf16.msra.mxu0 0
  %10005 = vmatprep.subr.bf16.mxu0 0
  %10006 = vmatpush1.bf16.msra.mxu0 0
  %10007 = vmatprep.subr.bf16.mxu0 0
  %10008 = vmatpush1.bf16.msra.mxu0 0
  %10009 = vmatprep.subr.bf16.mxu0 0
  %10010 = vmatpush1.bf16.msra.mxu0 0
  %10011 = vmatprep.subr.bf16.mxu0 0
  %10012 = vmatpush1.bf16.msra.mxu0 %v9995
  %10013 = vmatprep.subr.bf16.mxu0 0
  %10014 = vmatpush2.bf16.msra.mxu0 0
  %10015 = vmatprep.subr.bf16.mxu0 0
  %10016 = vmatpush2.bf16.msra.mxu0 0
  %10017 = vmatprep.subr.bf16.mxu0 0
  %10018 = vmatpush2.bf16.msra.mxu0 0
  %10019 = vmatprep.subr.bf16.mxu0 0
  %10020 = vmatpush2.bf16.msra.mxu0 0
  %10021 = vmatprep.subr.bf16.mxu0 0
  %10022 = vmatpush2.bf16.msra.mxu0 0
  %10023 = vmatprep.subr.bf16.mxu0 0
  %10024 = vmatpush2.bf16.msra.mxu0 0
  %10025 = vmatprep.subr.bf16.mxu0 0
  %10026 = vmatpush2.bf16.msra.mxu0 0
  %10027 = vmatprep.subr.bf16.mxu0 0
  %10028 = vmatpush2.bf16.msra.mxu0 0
  %10029 = vmatprep.mubr.bf16.mxu0 0
  %10030 = vmatmul.mubr.bf16.gmra.mxu0 %v9992
  %v10031 = vpop.f32.mrf.mxu0
  %v10032 = vadd.f32 0.0, %v10031
  %v10033 = vpop.f32.mrf.mxu0
  %v10034 = vpop.f32.mrf.mxu0
  %v10035 = vpop.f32.mrf.mxu0
  %10036 = vdwg.mxu0
  %v10038 = vunpack.c.l.b16 %v9691
  %10039 = vset.pattern.permute.xlu0 0
  %10040 = vperm.xlu0 %10039, %v10038
  %v10041 = vpop.permute.xlu0 %10040
  %v10042 = vlaneseq
  %v10043 = vshrl.u32 %v10042, 7
  %v10044 = vsub.s32 %v937, %v10043
  %v10045 = vrot.slane %v10041, %v10044
  %v10046 = vpack.c.b16 %v10045, %v10045
  %v10048 = vsel %vm452, %v10046, 0
  %v10051 = vsel %vm1068, %v9699, 0
  %10053 = vmatprep.subr.bf16.mxu0 0
  %10054 = vmatpush1.bf16.msra.mxu0 0
  %10055 = vmatprep.subr.bf16.mxu0 0
  %10056 = vmatpush1.bf16.msra.mxu0 0
  %10057 = vmatprep.subr.bf16.mxu0 0
  %10058 = vmatpush1.bf16.msra.mxu0 0
  %10059 = vmatprep.subr.bf16.mxu0 0
  %10060 = vmatpush1.bf16.msra.mxu0 0
  %10061 = vmatprep.subr.bf16.mxu0 0
  %10062 = vmatpush1.bf16.msra.mxu0 0
  %10063 = vmatprep.subr.bf16.mxu0 0
  %10064 = vmatpush1.bf16.msra.mxu0 0
  %10065 = vmatprep.subr.bf16.mxu0 0
  %10066 = vmatpush1.bf16.msra.mxu0 0
  %10067 = vmatprep.subr.bf16.mxu0 0
  %10068 = vmatpush1.bf16.msra.mxu0 %v10051
  %10069 = vmatprep.subr.bf16.mxu0 0
  %10070 = vmatpush2.bf16.msra.mxu0 0
  %10071 = vmatprep.subr.bf16.mxu0 0
  %10072 = vmatpush2.bf16.msra.mxu0 0
  %10073 = vmatprep.subr.bf16.mxu0 0
  %10074 = vmatpush2.bf16.msra.mxu0 0
  %10075 = vmatprep.subr.bf16.mxu0 0
  %10076 = vmatpush2.bf16.msra.mxu0 0
  %10077 = vmatprep.subr.bf16.mxu0 0
  %10078 = vmatpush2.bf16.msra.mxu0 0
  %10079 = vmatprep.subr.bf16.mxu0 0
  %10080 = vmatpush2.bf16.msra.mxu0 0
  %10081 = vmatprep.subr.bf16.mxu0 0
  %10082 = vmatpush2.bf16.msra.mxu0 0
  %10083 = vmatprep.subr.bf16.mxu0 0
  %10084 = vmatpush2.bf16.msra.mxu0 0
  %10085 = vmatprep.mubr.bf16.mxu0 0
  %10086 = vmatmul.mubr.bf16.gmra.mxu0 %v10048
  %v10087 = vpop.f32.mrf.mxu0
  %v10088 = vadd.f32 0.0, %v10087
  %v10089 = vpop.f32.mrf.mxu0
  %v10090 = vpop.f32.mrf.mxu0
  %v10091 = vpop.f32.mrf.mxu0
  %10092 = vdwg.mxu0
  %v10094 = vunpack.c.l.b16 %v9692
  %10095 = vset.pattern.permute.xlu0 0
  %10096 = vperm.xlu0 %10095, %v10094
  %v10097 = vpop.permute.xlu0 %10096
  %v10098 = vlaneseq
  %v10099 = vshrl.u32 %v10098, 7
  %v10100 = vsub.s32 %v937, %v10099
  %v10101 = vrot.slane %v10097, %v10100
  %v10102 = vpack.c.b16 %v10101, %v10101
  %v10104 = vsel %vm452, %v10102, 0
  %v10107 = vsel %vm1068, %v9700, 0
  %10109 = vmatprep.subr.bf16.mxu0 0
  %10110 = vmatpush1.bf16.msra.mxu0 0
  %10111 = vmatprep.subr.bf16.mxu0 0
  %10112 = vmatpush1.bf16.msra.mxu0 0
  %10113 = vmatprep.subr.bf16.mxu0 0
  %10114 = vmatpush1.bf16.msra.mxu0 0
  %10115 = vmatprep.subr.bf16.mxu0 0
  %10116 = vmatpush1.bf16.msra.mxu0 0
  %10117 = vmatprep.subr.bf16.mxu0 0
  %10118 = vmatpush1.bf16.msra.mxu0 0
  %10119 = vmatprep.subr.bf16.mxu0 0
  %10120 = vmatpush1.bf16.msra.mxu0 0
  %10121 = vmatprep.subr.bf16.mxu0 0
  %10122 = vmatpush1.bf16.msra.mxu0 0
  %10123 = vmatprep.subr.bf16.mxu0 0
  %10124 = vmatpush1.bf16.msra.mxu0 %v10107
  %10125 = vmatprep.subr.bf16.mxu0 0
  %10126 = vmatpush2.bf16.msra.mxu0 0
  %10127 = vmatprep.subr.bf16.mxu0 0
  %10128 = vmatpush2.bf16.msra.mxu0 0
  %10129 = vmatprep.subr.bf16.mxu0 0
  %10130 = vmatpush2.bf16.msra.mxu0 0
  %10131 = vmatprep.subr.bf16.mxu0 0
  %10132 = vmatpush2.bf16.msra.mxu0 0
  %10133 = vmatprep.subr.bf16.mxu0 0
  %10134 = vmatpush2.bf16.msra.mxu0 0
  %10135 = vmatprep.subr.bf16.mxu0 0
  %10136 = vmatpush2.bf16.msra.mxu0 0
  %10137 = vmatprep.subr.bf16.mxu0 0
  %10138 = vmatpush2.bf16.msra.mxu0 0
  %10139 = vmatprep.subr.bf16.mxu0 0
  %10140 = vmatpush2.bf16.msra.mxu0 0
  %10141 = vmatprep.mubr.bf16.mxu0 0
  %10142 = vmatmul.mubr.bf16.gmra.mxu0 %v10104
  %v10143 = vpop.f32.mrf.mxu0
  %v10144 = vadd.f32 0.0, %v10143
  %v10145 = vpop.f32.mrf.mxu0
  %v10146 = vpop.f32.mrf.mxu0
  %v10147 = vpop.f32.mrf.mxu0
  %10148 = vdwg.mxu0
  %v10149 = vld [vmem:[%s15] sm:$0xff]
  %v10150 = vld [vmem:[%s15 + $0x8] sm:$0xff]
  %v10151 = vld [vmem:[%s15 + $0x10] sm:$0xff]
  %v10152 = vld [vmem:[%s15 + $0x18] sm:$0xff]
  %v10153 = vld [vmem:[%s16] sm:$0x1]
  %v10155 = vlaneseq
  %v10156 = vshrl.u32 %v10155, 7
  %v10157 = vsub.s32 0, %v10156
  %v10158 = vrot.slane %v10153, %v10157
  %v10168 = vrot.slane %v9808, 7
  %v10169 = vsel %vm970, %v10168, %v9752
  %v10170 = vrot.slane %v9864, 6
  %v10171 = vsel %vm972, %v10170, %v10169
  %v10172 = vrot.slane %v9920, 5
  %v10173 = vsel %vm974, %v10172, %v10171
  %v10174 = vrot.slane %v9976, 4
  %v10175 = vsel %vm976, %v10174, %v10173
  %v10176 = vrot.slane %v10032, 3
  %v10177 = vsel %vm978, %v10176, %v10175
  %v10178 = vrot.slane %v10088, 2
  %v10179 = vsel %vm980, %v10178, %v10177
  %v10180 = vrot.slane %v10144, 1
  %v10181 = vsel %vm982, %v10180, %v10179
  %v10182 = vsel %vm134, %v10181, 0
  %10184 = vmatprep.subr.mxu0 0.0
  %10185 = vmatpush1.msra.mxu0 0.0
  %10186 = vmatprep.subr.mxu0 0.0
  %10187 = vmatpush1.msra.mxu0 0.0
  %10188 = vmatprep.subr.mxu0 0.0
  %10189 = vmatpush1.msra.mxu0 0.0
  %10190 = vmatprep.subr.mxu0 0.0
  %10191 = vmatpush1.msra.mxu0 0.0
  %10192 = vmatprep.subr.mxu0 0.0
  %10193 = vmatpush1.msra.mxu0 0.0
  %10194 = vmatprep.subr.mxu0 0.0
  %10195 = vmatpush1.msra.mxu0 0.0
  %10196 = vmatprep.subr.mxu0 0.0
  %10197 = vmatpush1.msra.mxu0 0.0
  %10198 = vmatprep.subr.mxu0 0.0
  %10199 = vmatpush1.msra.mxu0 0.0
  %10200 = vmatprep.subr.mxu0 0.0
  %10201 = vmatpush1.msra.mxu0 0.0
  %10202 = vmatprep.subr.mxu0 0.0
  %10203 = vmatpush1.msra.mxu0 0.0
  %10204 = vmatprep.subr.mxu0 0.0
  %10205 = vmatpush1.msra.mxu0 0.0
  %10206 = vmatprep.subr.mxu0 0.0
  %10207 = vmatpush1.msra.mxu0 0.0
  %10208 = vmatprep.subr.mxu0 0.0
  %10209 = vmatpush1.msra.mxu0 %v10152
  %10210 = vmatprep.subr.mxu0 0.0
  %10211 = vmatpush1.msra.mxu0 %v10151
  %10212 = vmatprep.subr.mxu0 0.0
  %10213 = vmatpush1.msra.mxu0 %v10150
  %10214 = vmatprep.subr.mxu0 0.0
  %10215 = vmatpush1.msra.mxu0 %v10149
  %10216 = vmatprep.subr.mxu0 0.0
  %10217 = vmatpush2.msra.mxu0 0.0
  %10218 = vmatprep.subr.mxu0 0.0
  %10219 = vmatpush2.msra.mxu0 0.0
  %10220 = vmatprep.subr.mxu0 0.0
  %10221 = vmatpush2.msra.mxu0 0.0
  %10222 = vmatprep.subr.mxu0 0.0
  %10223 = vmatpush2.msra.mxu0 0.0
  %10224 = vmatprep.subr.mxu0 0.0
  %10225 = vmatpush2.msra.mxu0 0.0
  %10226 = vmatprep.subr.mxu0 0.0
  %10227 = vmatpush2.msra.mxu0 0.0
  %10228 = vmatprep.subr.mxu0 0.0
  %10229 = vmatpush2.msra.mxu0 0.0
  %10230 = vmatprep.subr.mxu0 0.0
  %10231 = vmatpush2.msra.mxu0 0.0
  %10232 = vmatprep.subr.mxu0 0.0
  %10233 = vmatpush2.msra.mxu0 0.0
  %10234 = vmatprep.subr.mxu0 0.0
  %10235 = vmatpush2.msra.mxu0 0.0
  %10236 = vmatprep.subr.mxu0 0.0
  %10237 = vmatpush2.msra.mxu0 0.0
  %10238 = vmatprep.subr.mxu0 0.0
  %10239 = vmatpush2.msra.mxu0 0.0
  %10240 = vmatprep.subr.mxu0 0.0
  %10241 = vmatpush2.msra.mxu0 0.0
  %10242 = vmatprep.subr.mxu0 0.0
  %10243 = vmatpush2.msra.mxu0 0.0
  %10244 = vmatprep.subr.mxu0 0.0
  %10245 = vmatpush2.msra.mxu0 0.0
  %10246 = vmatprep.subr.mxu0 0.0
  %10247 = vmatpush2.msra.mxu0 0.0
  %10248 = vmatprep.mubr.f32.mxu0 0.0
  %10249 = vmatmul.mubr.f32.gmra.mxu0 %v10182
  %v10250 = vpop.f32.mrf.mxu0
  %v10251 = vadd.f32 %v10158, %v10250
  %v10252 = vpop.f32.mrf.mxu0
  %10253 = vdwg.mxu0
  %v10254 = vadd.f32 %v10251, %v9315
  %v10255 = vxor.u32 %v10254, 2147483648
  %v10256 = vmul.f32 %v10255, 1.442695
  %v10257 = vpow.pop %v10256
  %v10258 = vadd.f32 %v10257, 1.0
  %v10259 = vrcp.pop %v10258
  %v10260 = vmul.f32 1.0, %v10259
  %10262 = vrot.lane.b32.xlu0 %v9315, 64
  %v10263 = vpop.permute.xlu0 %10262
  %v10265 = vmul.f32 %v10260, %v10263
  %10267 = vrot.lane.b32.xlu0 %v10265, 64
  %v10268 = vpop.permute.xlu0 %10267
  %v10270 = vadd.f32 %v10251, %v10268
  %v10271 = vtanh.pop %v10270
  %v10272 = vsub.f32 1.0, %v10260
  %10274 = vrot.lane.b32.xlu0 %v10271, 96
  %v10275 = vpop.permute.xlu0 %10274
  %v10277 = vmul.f32 %v10272, %v10275
  %v10278 = vmul.f32 %v10260, %v9223
  %v10279 = vadd.f32 %v10277, %v10278
  %v10280 = vpack.c.bf16 %v10279, %v10279
  %v10282 = vunpack.c.l.b16 %v10280
  %v10283 = vpack.c.b16 %v10282, %v10282
  %10284 = vrot.lane.b32.xlu0 %v10283, 96
  %v10285 = vpop.permute.xlu0 %10284
  %10287 = vst.msk [vmem:[#allocation5 + $0x58] sm:$0xf] %vm89, %v10285
  %v10288 = vpack.c.bf16 %v9752, %v9752
  %v10289 = vpack.c.bf16 %v9808, %v9808
  %v10290 = vpack.c.bf16 %v9864, %v9864
  %v10291 = vpack.c.bf16 %v9920, %v9920
  %v10292 = vpack.c.bf16 %v9976, %v9976
  %v10293 = vpack.c.bf16 %v10032, %v10032
  %v10294 = vpack.c.bf16 %v10088, %v10088
  %v10295 = vpack.c.bf16 %v10144, %v10144
  %v10304 = vunpack.c.l.b16 %v10288
  %v10305 = vunpack.c.l.b16 %v10289
  %v10306 = vunpack.c.l.b16 %v10290
  %v10307 = vunpack.c.l.b16 %v10291
  %v10308 = vunpack.c.l.b16 %v10292
  %v10309 = vunpack.c.l.b16 %v10293
  %v10310 = vunpack.c.l.b16 %v10294
  %v10311 = vunpack.c.l.b16 %v10295
  %v10312 = vpack.c.b16 %v10304, %v10304
  %v10313 = vpack.c.b16 %v10305, %v10305
  %v10314 = vpack.c.b16 %v10306, %v10306
  %v10315 = vpack.c.b16 %v10307, %v10307
  %v10316 = vpack.c.b16 %v10308, %v10308
  %v10317 = vpack.c.b16 %v10309, %v10309
  %v10318 = vpack.c.b16 %v10310, %v10310
  %v10319 = vpack.c.b16 %v10311, %v10311
  %v10320 = vunpack.c.l.b16 %v10312
  %v10321 = vunpack.c.l.b16 %v10313
  %v10322 = vunpack.c.l.b16 %v10314
  %v10323 = vunpack.c.l.b16 %v10315
  %v10324 = vunpack.c.l.b16 %v10316
  %v10325 = vunpack.c.l.b16 %v10317
  %v10326 = vunpack.c.l.b16 %v10318
  %v10327 = vunpack.c.l.b16 %v10319
  %v10328 = vrot.slane %v10321, 7
  %v10329 = vsel %vm970, %v10328, %v10320
  %v10330 = vrot.slane %v10322, 6
  %v10331 = vsel %vm972, %v10330, %v10329
  %v10332 = vrot.slane %v10323, 5
  %v10333 = vsel %vm974, %v10332, %v10331
  %v10334 = vrot.slane %v10324, 4
  %v10335 = vsel %vm976, %v10334, %v10333
  %v10336 = vrot.slane %v10325, 3
  %v10337 = vsel %vm978, %v10336, %v10335
  %v10338 = vrot.slane %v10326, 2
  %v10339 = vsel %vm980, %v10338, %v10337
  %v10340 = vrot.slane %v10327, 1
  %v10341 = vsel %vm982, %v10340, %v10339
  %v10342 = vpack.c.b16 %v10341, %v10341
  %10344 = vst.msk [vmem:[#allocation5 + $0x5c] sm:$0xf] %vm89, %v10342
  %10346 = vrot.lane.b32.xlu0 %v10279, 96
  %v10347 = vpop.permute.xlu0 %10346
  %10349 = vst.msk [vmem:[%s20] sm:$0xff] %vm134, %v10347
  %v10350 = vld [vmem:[#allocation5] sm:$0xff]
  %v10351 = vld [vmem:[#allocation5 + $0x8] sm:$0xf]
  %v10352 = vld [vmem:[#allocation5 + $0xc] sm:$0xff]
  %v10353 = vld [vmem:[#allocation5 + $0x14] sm:$0xf]
  %v10354 = vld [vmem:[#allocation5 + $0x18] sm:$0xff]
  %v10355 = vld [vmem:[#allocation5 + $0x20] sm:$0xf]
  %v10356 = vld [vmem:[#allocation5 + $0x24] sm:$0xff]
  %v10357 = vld [vmem:[#allocation5 + $0x2c] sm:$0xf]
  %v10358 = vld [vmem:[#allocation5 + $0x30] sm:$0xff]
  %v10359 = vld [vmem:[#allocation5 + $0x38] sm:$0xf]
  %v10360 = vld [vmem:[#allocation5 + $0x3c] sm:$0xff]
  %v10361 = vld [vmem:[#allocation5 + $0x44] sm:$0xf]
  %v10362 = vld [vmem:[#allocation5 + $0x48] sm:$0xff]
  %v10363 = vld [vmem:[#allocation5 + $0x50] sm:$0xf]
  %v10364 = vld [vmem:[#allocation5 + $0x54] sm:$0xff]
  %v10365 = vld [vmem:[#allocation5 + $0x5c] sm:$0xf]
  %v10366 = vld [vmem:[%s17] sm:$0xf]
  %v10367 = vld [vmem:[%s17 + $0x4] sm:$0xf]
  %v10368 = vld [vmem:[%s17 + $0x8] sm:$0xf]
  %v10369 = vld [vmem:[%s17 + $0xc] sm:$0xf]
  %v10370 = vld [vmem:[%s17 + $0x10] sm:$0xf]
  %v10371 = vld [vmem:[%s17 + $0x14] sm:$0xf]
  %v10372 = vld [vmem:[%s17 + $0x18] sm:$0xf]
  %v10373 = vld [vmem:[%s17 + $0x1c] sm:$0xf]
  %v10374 = vld [vmem:[%s17 + $0x20] sm:$0xf]
  %v10375 = vld [vmem:[%s17 + $0x24] sm:$0xf]
  %v10376 = vld [vmem:[%s17 + $0x28] sm:$0xf]
  %v10377 = vld [vmem:[%s17 + $0x2c] sm:$0xf]
  %v10378 = vld [vmem:[%s17 + $0x30] sm:$0xf]
  %v10379 = vld [vmem:[%s17 + $0x34] sm:$0xf]
  %v10380 = vld [vmem:[%s17 + $0x38] sm:$0xf]
  %v10381 = vld [vmem:[%s17 + $0x3c] sm:$0xf]
  %v10382 = vld [vmem:[%s17 + $0x40] sm:$0xf]
  %v10383 = vld [vmem:[%s17 + $0x44] sm:$0xf]
  %v10384 = vld [vmem:[%s17 + $0x48] sm:$0xf]
  %v10385 = vld [vmem:[%s17 + $0x4c] sm:$0xf]
  %v10386 = vld [vmem:[%s17 + $0x50] sm:$0xf]
  %v10387 = vld [vmem:[%s17 + $0x54] sm:$0xf]
  %v10388 = vld [vmem:[%s17 + $0x58] sm:$0xf]
  %v10389 = vld [vmem:[%s17 + $0x5c] sm:$0xf]
  %v10390 = vld [vmem:[%s17 + $0x60] sm:$0xf]
  %v10391 = vld [vmem:[%s17 + $0x64] sm:$0xf]
  %v10392 = vld [vmem:[%s17 + $0x68] sm:$0xf]
  %v10393 = vld [vmem:[%s17 + $0x6c] sm:$0xf]
  %v10394 = vld [vmem:[%s17 + $0x70] sm:$0xf]
  %v10395 = vld [vmem:[%s17 + $0x74] sm:$0xf]
  %v10396 = vld [vmem:[%s17 + $0x78] sm:$0xf]
  %v10397 = vld [vmem:[%s17 + $0x7c] sm:$0xf]
  %v10398 = vld [vmem:[%s17 + $0x80] sm:$0xf]
  %v10399 = vld [vmem:[%s17 + $0x84] sm:$0xf]
  %v10400 = vld [vmem:[%s17 + $0x88] sm:$0xf]
  %v10401 = vld [vmem:[%s17 + $0x8c] sm:$0xf]
  %v10402 = vld [vmem:[%s17 + $0x90] sm:$0xf]
  %v10403 = vld [vmem:[%s17 + $0x94] sm:$0xf]
  %v10404 = vld [vmem:[%s17 + $0x98] sm:$0xf]
  %v10405 = vld [vmem:[%s17 + $0x9c] sm:$0xf]
  %v10406 = vld [vmem:[%s17 + $0xa0] sm:$0xf]
  %v10407 = vld [vmem:[%s17 + $0xa4] sm:$0xf]
  %v10408 = vld [vmem:[%s17 + $0xa8] sm:$0xf]
  %v10409 = vld [vmem:[%s17 + $0xac] sm:$0xf]
  %v10410 = vld [vmem:[%s17 + $0xb0] sm:$0xf]
  %v10411 = vld [vmem:[%s17 + $0xb4] sm:$0xf]
  %v10412 = vld [vmem:[%s17 + $0xb8] sm:$0xf]
  %v10413 = vld [vmem:[%s17 + $0xbc] sm:$0xf]
  %v10414 = vld [vmem:[%s18] sm:$0x1]
  %v10416 = vlaneseq
  %v10417 = vshrl.u32 %v10416, 7
  %v10418 = vsub.s32 0, %v10417
  %v10419 = vrot.slane %v10414, %v10418
  %v10437 = vunpack.c.l.b16 %v10350
  %v10438 = vunpack.c.h.b16 %v10350
  %v10439 = vunpack.c.l.b16 %v10351
  %v10440 = vunpack.c.l.b16 %v10352
  %v10441 = vunpack.c.h.b16 %v10352
  %v10442 = vunpack.c.l.b16 %v10353
  %v10443 = vunpack.c.l.b16 %v10354
  %v10444 = vunpack.c.h.b16 %v10354
  %v10445 = vunpack.c.l.b16 %v10355
  %v10446 = vunpack.c.l.b16 %v10356
  %v10447 = vunpack.c.h.b16 %v10356
  %v10448 = vunpack.c.l.b16 %v10357
  %v10449 = vunpack.c.l.b16 %v10358
  %v10450 = vunpack.c.h.b16 %v10358
  %v10451 = vunpack.c.l.b16 %v10359
  %v10452 = vunpack.c.l.b16 %v10360
  %v10453 = vunpack.c.h.b16 %v10360
  %v10454 = vunpack.c.l.b16 %v10361
  %v10455 = vunpack.c.l.b16 %v10362
  %v10456 = vunpack.c.h.b16 %v10362
  %v10457 = vunpack.c.l.b16 %v10363
  %v10458 = vunpack.c.l.b16 %v10364
  %v10459 = vunpack.c.h.b16 %v10364
  %v10460 = vunpack.c.l.b16 %v10365
  %v10461 = vpack.c.b16 %v10440, %v10437
  %v10462 = vpack.c.b16 %v10441, %v10438
  %v10463 = vpack.c.b16 %v10442, %v10439
  %v10464 = vpack.c.b16 %v10446, %v10443
  %v10465 = vpack.c.b16 %v10447, %v10444
  %v10466 = vpack.c.b16 %v10448, %v10445
  %v10467 = vpack.c.b16 %v10452, %v10449
  %v10468 = vpack.c.b16 %v10453, %v10450
  %v10469 = vpack.c.b16 %v10454, %v10451
  %v10470 = vpack.c.b16 %v10458, %v10455
  %v10471 = vpack.c.b16 %v10459, %v10456
  %v10472 = vpack.c.b16 %v10460, %v10457
  %v10533 = vunpack.c.l.b16 %v10366
  %v10534 = vunpack.c.l.b16 %v10367
  %v10535 = vunpack.c.l.b16 %v10368
  %v10536 = vunpack.c.l.b16 %v10369
  %v10537 = vunpack.c.l.b16 %v10370
  %v10538 = vunpack.c.l.b16 %v10371
  %v10539 = vunpack.c.l.b16 %v10372
  %v10540 = vunpack.c.l.b16 %v10373
  %v10541 = vunpack.c.l.b16 %v10374
  %v10542 = vunpack.c.l.b16 %v10375
  %v10543 = vunpack.c.l.b16 %v10376
  %v10544 = vunpack.c.l.b16 %v10377
  %v10545 = vunpack.c.l.b16 %v10378
  %v10546 = vunpack.c.l.b16 %v10379
  %v10547 = vunpack.c.l.b16 %v10380
  %v10548 = vunpack.c.l.b16 %v10381
  %v10549 = vunpack.c.l.b16 %v10382
  %v10550 = vunpack.c.l.b16 %v10383
  %v10551 = vunpack.c.l.b16 %v10384
  %v10552 = vunpack.c.l.b16 %v10385
  %v10553 = vunpack.c.l.b16 %v10386
  %v10554 = vunpack.c.l.b16 %v10387
  %v10555 = vunpack.c.l.b16 %v10388
  %v10556 = vunpack.c.l.b16 %v10389
  %v10557 = vunpack.c.l.b16 %v10390
  %v10558 = vunpack.c.l.b16 %v10391
  %v10559 = vunpack.c.l.b16 %v10392
  %v10560 = vunpack.c.l.b16 %v10393
  %v10561 = vunpack.c.l.b16 %v10394
  %v10562 = vunpack.c.l.b16 %v10395
  %v10563 = vunpack.c.l.b16 %v10396
  %v10564 = vunpack.c.l.b16 %v10397
  %v10565 = vunpack.c.l.b16 %v10398
  %v10566 = vunpack.c.l.b16 %v10399
  %v10567 = vunpack.c.l.b16 %v10400
  %v10568 = vunpack.c.l.b16 %v10401
  %v10569 = vunpack.c.l.b16 %v10402
  %v10570 = vunpack.c.l.b16 %v10403
  %v10571 = vunpack.c.l.b16 %v10404
  %v10572 = vunpack.c.l.b16 %v10405
  %v10573 = vunpack.c.l.b16 %v10406
  %v10574 = vunpack.c.l.b16 %v10407
  %v10575 = vunpack.c.l.b16 %v10408
  %v10576 = vunpack.c.l.b16 %v10409
  %v10577 = vunpack.c.l.b16 %v10410
  %v10578 = vunpack.c.l.b16 %v10411
  %v10579 = vunpack.c.l.b16 %v10412
  %v10580 = vunpack.c.l.b16 %v10413
  %v10581 = vpack.c.b16 %v10534, %v10533
  %v10582 = vpack.c.b16 %v10536, %v10535
  %v10583 = vpack.c.b16 %v10538, %v10537
  %v10584 = vpack.c.b16 %v10540, %v10539
  %v10585 = vpack.c.b16 %v10542, %v10541
  %v10586 = vpack.c.b16 %v10544, %v10543
  %v10587 = vpack.c.b16 %v10546, %v10545
  %v10588 = vpack.c.b16 %v10548, %v10547
  %v10589 = vpack.c.b16 %v10550, %v10549
  %v10590 = vpack.c.b16 %v10552, %v10551
  %v10591 = vpack.c.b16 %v10554, %v10553
  %v10592 = vpack.c.b16 %v10556, %v10555
  %v10593 = vpack.c.b16 %v10558, %v10557
  %v10594 = vpack.c.b16 %v10560, %v10559
  %v10595 = vpack.c.b16 %v10562, %v10561
  %v10596 = vpack.c.b16 %v10564, %v10563
  %v10597 = vpack.c.b16 %v10566, %v10565
  %v10598 = vpack.c.b16 %v10568, %v10567
  %v10599 = vpack.c.b16 %v10570, %v10569
  %v10600 = vpack.c.b16 %v10572, %v10571
  %v10601 = vpack.c.b16 %v10574, %v10573
  %v10602 = vpack.c.b16 %v10576, %v10575
  %v10603 = vpack.c.b16 %v10578, %v10577
  %v10604 = vpack.c.b16 %v10580, %v10579
  %10629 = vmatprep.subr.bf16.mxu0 0
  %10630 = vmatpush1.bf16.msra.mxu0 %v10588
  %10631 = vmatprep.subr.bf16.mxu0 0
  %10632 = vmatpush1.bf16.msra.mxu0 %v10587
  %10633 = vmatprep.subr.bf16.mxu0 0
  %10634 = vmatpush1.bf16.msra.mxu0 %v10586
  %10635 = vmatprep.subr.bf16.mxu0 0
  %10636 = vmatpush1.bf16.msra.mxu0 %v10585
  %10637 = vmatprep.subr.bf16.mxu0 0
  %10638 = vmatpush1.bf16.msra.mxu0 %v10584
  %10639 = vmatprep.subr.bf16.mxu0 0
  %10640 = vmatpush1.bf16.msra.mxu0 %v10583
  %10641 = vmatprep.subr.bf16.mxu0 0
  %10642 = vmatpush1.bf16.msra.mxu0 %v10582
  %10643 = vmatprep.subr.bf16.mxu0 0
  %10644 = vmatpush1.bf16.msra.mxu0 %v10581
  %10645 = vmatprep.subr.bf16.mxu0 0
  %10646 = vmatpush2.bf16.msra.mxu0 %v10596
  %10647 = vmatprep.subr.bf16.mxu0 0
  %10648 = vmatpush2.bf16.msra.mxu0 %v10595
  %10649 = vmatprep.subr.bf16.mxu0 0
  %10650 = vmatpush2.bf16.msra.mxu0 %v10594
  %10651 = vmatprep.subr.bf16.mxu0 0
  %10652 = vmatpush2.bf16.msra.mxu0 %v10593
  %10653 = vmatprep.subr.bf16.mxu0 0
  %10654 = vmatpush2.bf16.msra.mxu0 %v10592
  %10655 = vmatprep.subr.bf16.mxu0 0
  %10656 = vmatpush2.bf16.msra.mxu0 %v10591
  %10657 = vmatprep.subr.bf16.mxu0 0
  %10658 = vmatpush2.bf16.msra.mxu0 %v10590
  %10659 = vmatprep.subr.bf16.mxu0 0
  %10660 = vmatpush2.bf16.msra.mxu0 %v10589
  %10661 = vmatprep.mubr.bf16.mxu0 %v10462
  %10662 = vmatmul.mubr.bf16.gmra.mxu0 %v10461
  %v10663 = vpop.f32.mrf.mxu0
  %v10664 = vadd.f32 %v10419, %v10663
  %v10665 = vpop.f32.mrf.mxu0
  %v10666 = vpop.f32.mrf.mxu0
  %v10667 = vadd.f32 %v10419, %v10666
  %v10668 = vpop.f32.mrf.mxu0
  %10669 = vmatprep.mubr.bf16.mxu0 %v10465
  %10670 = vmatmul.mubr.bf16.gmra.mxu0 %v10464
  %v10671 = vpop.f32.mrf.mxu0
  %v10672 = vadd.f32 %v10419, %v10671
  %v10673 = vpop.f32.mrf.mxu0
  %v10674 = vpop.f32.mrf.mxu0
  %v10675 = vadd.f32 %v10419, %v10674
  %v10676 = vpop.f32.mrf.mxu0
  %10677 = vmatprep.mubr.bf16.mxu0 %v10468
  %10678 = vmatmul.mubr.bf16.gmra.mxu0 %v10467
  %v10679 = vpop.f32.mrf.mxu0
  %v10680 = vadd.f32 %v10419, %v10679
  %v10681 = vpop.f32.mrf.mxu0
  %v10682 = vpop.f32.mrf.mxu0
  %v10683 = vadd.f32 %v10419, %v10682
  %v10684 = vpop.f32.mrf.mxu0
  %10685 = vmatprep.mubr.bf16.mxu0 %v10471
  %10686 = vmatmul.mubr.bf16.gmra.mxu0 %v10470
  %v10687 = vpop.f32.mrf.mxu0
  %v10688 = vadd.f32 %v10419, %v10687
  %v10689 = vpop.f32.mrf.mxu0
  %v10690 = vpop.f32.mrf.mxu0
  %v10691 = vadd.f32 %v10419, %v10690
  %v10692 = vpop.f32.mrf.mxu0
  %10693 = vdwg.mxu0
  %10694 = vmatprep.subr.bf16.mxu0 0
  %10695 = vmatpush1.bf16.msra.mxu0 %v10604
  %10696 = vmatprep.subr.bf16.mxu0 0
  %10697 = vmatpush1.bf16.msra.mxu0 %v10603
  %10698 = vmatprep.subr.bf16.mxu0 0
  %10699 = vmatpush1.bf16.msra.mxu0 %v10602
  %10700 = vmatprep.subr.bf16.mxu0 0
  %10701 = vmatpush1.bf16.msra.mxu0 %v10601
  %10702 = vmatprep.subr.bf16.mxu0 0
  %10703 = vmatpush1.bf16.msra.mxu0 %v10600
  %10704 = vmatprep.subr.bf16.mxu0 0
  %10705 = vmatpush1.bf16.msra.mxu0 %v10599
  %10706 = vmatprep.subr.bf16.mxu0 0
  %10707 = vmatpush1.bf16.msra.mxu0 %v10598
  %10708 = vmatprep.subr.bf16.mxu0 0
  %10709 = vmatpush1.bf16.msra.mxu0 %v10597
  %10710 = vmatprep.subr.bf16.mxu0 0
  %10711 = vmatpush2.bf16.msra.mxu0 0
  %10712 = vmatprep.subr.bf16.mxu0 0
  %10713 = vmatpush2.bf16.msra.mxu0 0
  %10714 = vmatprep.subr.bf16.mxu0 0
  %10715 = vmatpush2.bf16.msra.mxu0 0
  %10716 = vmatprep.subr.bf16.mxu0 0
  %10717 = vmatpush2.bf16.msra.mxu0 0
  %10718 = vmatprep.subr.bf16.mxu0 0
  %10719 = vmatpush2.bf16.msra.mxu0 0
  %10720 = vmatprep.subr.bf16.mxu0 0
  %10721 = vmatpush2.bf16.msra.mxu0 0
  %10722 = vmatprep.subr.bf16.mxu0 0
  %10723 = vmatpush2.bf16.msra.mxu0 0
  %10724 = vmatprep.subr.bf16.mxu0 0
  %10725 = vmatpush2.bf16.msra.mxu0 0
  %10726 = vmatprep.mubr.bf16.mxu0 0
  %10727 = vmatmul.mubr.bf16.gmra.mxu0 %v10463
  %v10728 = vpop.f32.mrf.mxu0
  %v10729 = vadd.f32 %v10664, %v10728
  %v10730 = vpop.f32.mrf.mxu0
  %v10731 = vpop.f32.mrf.mxu0
  %v10732 = vadd.f32 %v10667, %v10731
  %v10733 = vpop.f32.mrf.mxu0
  %10734 = vmatprep.mubr.bf16.mxu0 0
  %10735 = vmatmul.mubr.bf16.gmra.mxu0 %v10466
  %v10736 = vpop.f32.mrf.mxu0
  %v10737 = vadd.f32 %v10672, %v10736
  %v10738 = vpop.f32.mrf.mxu0
  %v10739 = vpop.f32.mrf.mxu0
  %v10740 = vadd.f32 %v10675, %v10739
  %v10741 = vpop.f32.mrf.mxu0
  %10742 = vmatprep.mubr.bf16.mxu0 0
  %10743 = vmatmul.mubr.bf16.gmra.mxu0 %v10469
  %v10744 = vpop.f32.mrf.mxu0
  %v10745 = vadd.f32 %v10680, %v10744
  %v10746 = vpop.f32.mrf.mxu0
  %v10747 = vpop.f32.mrf.mxu0
  %v10748 = vadd.f32 %v10683, %v10747
  %v10749 = vpop.f32.mrf.mxu0
  %10750 = vmatprep.mubr.bf16.mxu0 0
  %10751 = vmatmul.mubr.bf16.gmra.mxu0 %v10472
  %v10752 = vpop.f32.mrf.mxu0
  %v10753 = vadd.f32 %v10688, %v10752
  %v10754 = vpop.f32.mrf.mxu0
  %v10755 = vpop.f32.mrf.mxu0
  %v10756 = vadd.f32 %v10691, %v10755
  %v10757 = vpop.f32.mrf.mxu0
  %10758 = vdwg.mxu0
  %v10759 = vtanh.pop %v10729
  %v10760 = vtanh.pop %v10732
  %v10761 = vtanh.pop %v10737
  %v10762 = vtanh.pop %v10740
  %v10763 = vtanh.pop %v10745
  %v10764 = vtanh.pop %v10748
  %v10765 = vtanh.pop %v10753
  %v10766 = vtanh.pop %v10756
  %10767 = vst [vmem:[%s19] sm:$0xff] %v10759
  %10768 = vst [vmem:[%s19 + $0x8] sm:$0xff] %v10760
  %10769 = vst [vmem:[%s19 + $0x10] sm:$0xff] %v10761
  %10770 = vst [vmem:[%s19 + $0x18] sm:$0xff] %v10762
  %10771 = vst [vmem:[%s19 + $0x20] sm:$0xff] %v10763
  %10772 = vst [vmem:[%s19 + $0x28] sm:$0xff] %v10764
  %10773 = vst [vmem:[%s19 + $0x30] sm:$0xff] %v10765
  %10774 = vst [vmem:[%s19 + $0x38] sm:$0xff] %v10766
  // Predicated region
  $region78: #{vattn_decoder_forward.1} parent=0 // pred_check
    _
  $region79: #{vattn_decoder_forward.1} parent=0 // pred_check_branch
    %10776 = sbr.rel (0) target = $region81
  $region80: #{vattn_decoder_forward.1} parent=0 // pred_region
    _
  $region81: #{vattn_decoder_forward.1} parent=0 // pred_fallthru
    _
  // Predicated region
  $region82: #{vattn_decoder_forward.1} parent=0 // pred_check
    _
  $region83: #{vattn_decoder_forward.1} parent=0 // pred_check_branch
    %10778 = sbr.rel (0) target = $region85
  $region84: #{vattn_decoder_forward.1} parent=0 // pred_region
    _
  $region85: #{vattn_decoder_forward.1} parent=0 // pred_fallthru
    _
  // Predicated region
  $region86: #{vattn_decoder_forward.1} parent=0 // pred_check
    _
  $region87: #{vattn_decoder_forward.1} parent=0 // pred_check_branch
    %10780 = sbr.rel (0) target = $region89
  $region88: #{vattn_decoder_forward.1} parent=0 // pred_region
    _
  $region89: #{vattn_decoder_forward.1} parent=0 // pred_fallthru
    _
  // Predicated region
  $region90: #{vattn_decoder_forward.1} parent=0 // pred_check
    _
  $region91: #{vattn_decoder_forward.1} parent=0 // pred_check_branch
    %10782 = sbr.rel (0) target = $region93
  $region92: #{vattn_decoder_forward.1} parent=0 // pred_region
    _
  $region93: #{vattn_decoder_forward.1} parent=0 // pred_fallthru
    _

</llo_original>
